<compile_context>
chip_gen: v6e
topology: v6e:2x2x1
jax: 0.10.0
libtpu: 0.0.40
codegen_flags: <defaults>
</compile_context>

<pallas_src>
import jax
import jax.numpy as jnp
from jax.experimental import pallas as pl
from jax.experimental.pallas import tpu as pltpu

C_OUT, KH, KW = 16, 3, 3
H, W = 64, 64
PH, PW = H // 2, W // 2          # 32, 32 after MaxPool2d(2)
POS = PH * PW                    # 1024 pooled positions per channel
N_PHASE = 4                      # 2x2 pooling phases
TAP_PAD = 16                     # 9 conv taps zero-padded to 16 (MXU friendly)
HID = 128
N_ALPHA, N_CHAR = 30, 964
NA_PAD, NC_PAD = 128, 1024       # lane-padded head widths
FLAT = C_OUT * POS               # 16 * 32 * 32 = 16384
NCORE = 2                        # leading parallel grid axis (both TCs on v7x)


# --------------------------------------------------------------------------
# Kernel 1: Conv2d(1->16, 3x3, pad=1) + MaxPool2d(2) + ELU, one batch element.
# Conv taps are contracted on the MXU against wrapper-built im2col patches.
# --------------------------------------------------------------------------
def _build_patches(x_nchw):
    """(B,1,64,64) -> (B, 16, 4*1024) im2col patches.

    For pooling phase (u, v) and tap t = 3*di + dj, row t of lane-slab uv is
    xpad[2r + u + di, 2q + v + dj] flattened over the 32x32 pooled positions;
    the four phase slabs are concatenated along the lane axis.
    """
    B = x_nchw.shape[0]
    xp = jnp.pad(x_nchw[:, 0], ((0, 0), (1, 1), (1, 1)))            # (B, 66, 66)
    # slab[sr][sc][b, 32*r + q] = xpad[b, 2r + sr, 2q + sc]
    slabs = [[xp[:, sr:sr + 64:2, sc:sc + 64:2].reshape(B, POS)
              for sc in range(4)] for sr in range(4)]
    zero = jnp.zeros_like(slabs[0][0])
    phases = []
    for u in range(2):
        for v in range(2):
            taps = [slabs[u + di][v + dj] for di in range(3) for dj in range(3)]
            taps += [zero] * (TAP_PAD - KH * KW)
            phases.append(jnp.stack(taps, axis=1))                  # (B, 16, 1024)
    return jnp.concatenate(phases, axis=2)                          # (B, 16, 4096)


def conv_pool_elu_kernel(p_ref, w_ref, b_ref, out_ref):
    # p_ref:   (1, 16, 4096)  im2col patches, 4 pooling phases along lanes
    # w_ref:   (16, 16)       conv weights, taps zero-padded 9 -> 16
    # b_ref:   (16, 1)        conv bias
    # out_ref: (1, 16, 1024)  pooled + ELU activations (lane-dense, flatten order)
    conv = jnp.dot(w_ref[...], p_ref[0],
                   preferred_element_type=jnp.float32)      # (16, 4096), single MXU op
    pooled = conv[:, 0:POS]
    for uv in range(1, N_PHASE):                            # lane-aligned phase slices
        pooled = jnp.maximum(pooled, conv[:, uv * POS:(uv + 1) * POS])
    pre = pooled + b_ref[...]
    # ELU (alpha = 1), overflow-safe form (exp on the EUP, select on the VPU).
    out_ref[0] = jnp.where(pre > 0, pre, jnp.exp(jnp.minimum(pre, 0.0)) - 1.0)


def conv_pool_elu(x_nchw, conv_w, conv_b):
    B = x_nchw.shape[0]
    patches = _build_patches(x_nchw)                                 # (B, 16, 4096)
    w9 = jnp.pad(conv_w[:, 0].reshape(C_OUT, KH * KW),
                 ((0, 0), (0, TAP_PAD - KH * KW)))                   # (16, 16)
    b = conv_b.reshape(C_OUT, 1)
    feat = pl.pallas_call(
        conv_pool_elu_kernel,
        out_shape=jax.ShapeDtypeStruct((B, C_OUT, POS), jnp.float32),
        grid=(B,),
        in_specs=[
            pl.BlockSpec((1, TAP_PAD, N_PHASE * POS), lambda i: (i, 0, 0)),
            pl.BlockSpec((C_OUT, TAP_PAD), lambda i: (0, 0)),
            pl.BlockSpec((C_OUT, 1), lambda i: (0, 0)),
        ],
        out_specs=pl.BlockSpec((1, C_OUT, POS), lambda i: (i, 0, 0)),
        compiler_params=pltpu.CompilerParams(dimension_semantics=("parallel",)),
    )(patches, w9, b)
    # (B, 16, 1024) -> (B, 16384): identical to torch.nn.Flatten of (B, 16, 32, 32).
    return feat.reshape(B, FLAT)


# --------------------------------------------------------------------------
# Kernel 2: Linear(16384, 128) + two classifier heads, fused.
# Grid = (NCORE, nk): axis 0 ("parallel") splits the K contraction across
# TensorCores (each core streams half of w1); axis 1 ("arbitrary") tiles K.
# Partial head outputs are summed in the wrapper; only core 0 adds biases.
# --------------------------------------------------------------------------
def heads_kernel(x_ref, w1_ref, b1_ref, wa_ref, ba_ref, wc_ref, bc_ref,
                 oa_ref, oc_ref, acc_ref):
    j = pl.program_id(0)            # core / K-half index
    k = pl.program_id(1)            # K tile within this core's half

    @pl.when(k == 0)
    def _():
        acc_ref[...] = jnp.zeros_like(acc_ref)

    acc_ref[...] += jnp.dot(x_ref[...].astype(jnp.bfloat16), w1_ref[...],
                            preferred_element_type=jnp.float32)

    @pl.when(k == pl.num_programs(1) - 1)
    def _():
        scale = (j == 0).astype(jnp.float32)        # biases only once (core 0)
        h = acc_ref[...] + scale * b1_ref[...]
        hb = h.astype(jnp.bfloat16)
        oa_ref[0] = jnp.dot(hb, wa_ref[...],
                            preferred_element_type=jnp.float32) + scale * ba_ref[...]
        oc_ref[0] = jnp.dot(hb, wc_ref[...],
                            preferred_element_type=jnp.float32) + scale * bc_ref[...]


def heads(x_flat, w1, b1, wa, ba, wc, bc, *, tk=8192):
    B, K = x_flat.shape
    assert K % (NCORE * tk) == 0, "K must divide evenly across cores and K-tiles"
    nk = K // (NCORE * tk)

    # bf16 weight streams (f32 accumulation on the MXU); lane-pad head widths.
    w1_bf = w1.astype(jnp.bfloat16)
    wa_p = jnp.pad(wa, ((0, 0), (0, NA_PAD - N_ALPHA))).astype(jnp.bfloat16)
    ba_p = jnp.pad(ba, ((0, 0), (0, NA_PAD - N_ALPHA)))
    wc_p = jnp.pad(wc, ((0, 0), (0, NC_PAD - N_CHAR))).astype(jnp.bfloat16)
    bc_p = jnp.pad(bc, ((0, 0), (0, NC_PAD - N_CHAR)))

    oa_part, oc_part = pl.pallas_call(
        heads_kernel,
        out_shape=(jax.ShapeDtypeStruct((NCORE, B, NA_PAD), jnp.float32),
                   jax.ShapeDtypeStruct((NCORE, B, NC_PAD), jnp.float32)),
        grid=(NCORE, nk),
        in_specs=[
            pl.BlockSpec((B, tk), lambda j, k: (0, j * nk + k)),
            pl.BlockSpec((tk, HID), lambda j, k: (j * nk + k, 0)),
            pl.BlockSpec((1, HID), lambda j, k: (0, 0)),
            pl.BlockSpec((HID, NA_PAD), lambda j, k: (0, 0)),
            pl.BlockSpec((1, NA_PAD), lambda j, k: (0, 0)),
            pl.BlockSpec((HID, NC_PAD), lambda j, k: (0, 0)),
            pl.BlockSpec((1, NC_PAD), lambda j, k: (0, 0)),
        ],
        out_specs=(pl.BlockSpec((1, B, NA_PAD), lambda j, k: (j, 0, 0)),
                   pl.BlockSpec((1, B, NC_PAD), lambda j, k: (j, 0, 0))),
        scratch_shapes=[pltpu.VMEM((B, HID), jnp.float32)],
        compiler_params=pltpu.CompilerParams(
            dimension_semantics=("parallel", "arbitrary"),
            vmem_limit_bytes=64 << 20),
    )(x_flat, w1_bf, b1, wa_p, ba_p, wc_p, bc_p)

    out_alpha = oa_part.sum(axis=0)[:, :N_ALPHA]
    out_char = oc_part.sum(axis=0)[:, :N_CHAR]
    return out_alpha, out_char


def net_forward(x, p):
    x_flat = conv_pool_elu(x, p["conv_w"], p["conv_b"])     # (B, 16384)
    return heads(x_flat, p["w1"], p["b1"], p["wa"], p["ba"], p["wc"], p["bc"])


# --------------------------------------------------------------------------
# Deterministic synthetic parameters (linear weights stored as (in, out);
# equivalent to PyTorch's (out, in) transposed).
# --------------------------------------------------------------------------
def init_params(key):
    ks = jax.random.split(key, 8)
    return dict(
        conv_w=0.1 * jax.random.normal(ks[0], (C_OUT, 1, KH, KW), jnp.float32),
        conv_b=0.1 * jax.random.normal(ks[1], (C_OUT,), jnp.float32),
        w1=0.01 * jax.random.normal(ks[2], (FLAT, HID), jnp.float32),
        b1=0.01 * jax.random.normal(ks[3], (1, HID), jnp.float32),
        wa=0.1 * jax.random.normal(ks[4], (HID, N_ALPHA), jnp.float32),
        ba=0.1 * jax.random.normal(ks[5], (1, N_ALPHA), jnp.float32),
        wc=0.1 * jax.random.normal(ks[6], (HID, N_CHAR), jnp.float32),
        bc=0.1 * jax.random.normal(ks[7], (1, N_CHAR), jnp.float32),
    )


def reference(x, p):
    # Pure-JAX f32 reference replicating the PyTorch forward pass.
    y = jax.lax.conv_general_dilated(
        x, p["conv_w"], window_strides=(1, 1), padding=((1, 1), (1, 1)),
        dimension_numbers=("NCHW", "OIHW", "NCHW"))
    y = y + p["conv_b"][None, :, None, None]
    B = x.shape[0]
    y = y.reshape(B, C_OUT, PH, 2, PW, 2).max(axis=(3, 5))
    y = jnp.where(y > 0, y, jnp.exp(jnp.minimum(y, 0.0)) - 1.0)
    h = y.reshape(B, FLAT) @ p["w1"] + p["b1"]
    return h @ p["wa"] + p["ba"], h @ p["wc"] + p["bc"]


if __name__ == "__main__":
    key = jax.random.PRNGKey(0)
    pkey, xkey = jax.random.split(key)
    params = init_params(pkey)
    # Linear(16*32*32, ...) after MaxPool2d(2) implies a 64x64 single-channel input.
    x = jax.random.normal(xkey, (2, 1, 64, 64), jnp.float32)

    fwd = jax.jit(net_forward)
    out_alpha, out_char = fwd(x, params)
    jax.block_until_ready((out_alpha, out_char))

    ref_alpha, ref_char = reference(x, params)
    assert out_alpha.shape == (2, N_ALPHA) and out_char.shape == (2, N_CHAR)
    # Tolerance accounts for bf16 weight streams (f32 accumulation).
    assert jnp.allclose(out_alpha, ref_alpha, atol=2e-2, rtol=2e-2)
    assert jnp.allclose(out_char, ref_char, atol=2e-2, rtol=2e-2)
    print("KERNEL_OK")
</pallas_src>

<mosaic_0001>
module attributes {stable_mosaic.version = 11 : i64} {
  func.func @conv_pool_elu_kernel(%arg0: i32, %arg1: memref<1x16x4096xf32, #tpu.memory_space<vmem>>, %arg2: memref<16x16xf32, #tpu.memory_space<vmem>>, %arg3: memref<16x1xf32, #tpu.memory_space<vmem>>, %arg4: memref<1x16x1024xf32, #tpu.memory_space<vmem>>) attributes {dimension_semantics = [#tpu.dimension_semantics<parallel>], iteration_bounds = array<i64: 2>, scalar_prefetch = 0 : i64, scratch_operands = 0 : i64, tpu.core_type = #tpu.core_type<tc>, window_params = [{transform_indices = @transform_0, window_bounds = array<i64: 1, 16, 4096>}, {pipeline_mode = #tpu.pipeline_mode<synchronous>, transform_indices = @transform_1, window_bounds = array<i64: 16, 16>}, {pipeline_mode = #tpu.pipeline_mode<synchronous>, transform_indices = @transform_2, window_bounds = array<i64: 16, 1>}, {transform_indices = @transform_3, window_bounds = array<i64: 1, 16, 1024>}]} {
    %c0 = arith.constant 0 : index
    %c0_0 = arith.constant 0 : index
    %0 = vector.load %arg2[%c0, %c0_0] : memref<16x16xf32, #tpu.memory_space<vmem>>, vector<16x16xf32>
    %c0_1 = arith.constant 0 : index
    %c0_2 = arith.constant 0 : index
    %c0_3 = arith.constant 0 : index
    %1 = vector.load %arg1[%c0_1, %c0_2, %c0_3] : memref<1x16x4096xf32, #tpu.memory_space<vmem>>, vector<1x16x4096xf32>
    %2 = vector.shape_cast %1 : vector<1x16x4096xf32> to vector<16x4096xf32>
    %cst = arith.constant dense<0.000000e+00> : vector<16x4096xf32>
    %3 = tpu.matmul %0, %2, %cst {dimension_numbers = #tpu.dot_dimension_numbers<[1], [0], [0], [1], [0, 0, 1, 1], [], []>} : vector<16x16xf32>, vector<16x4096xf32>, vector<16x4096xf32> -> vector<16x4096xf32>
    %4 = vector.extract_strided_slice %3 {offsets = [0, 0], sizes = [16, 1024], strides = [1, 1]} : vector<16x4096xf32> to vector<16x1024xf32>
    %5 = vector.extract_strided_slice %3 {offsets = [0, 1024], sizes = [16, 1024], strides = [1, 1]} : vector<16x4096xf32> to vector<16x1024xf32>
    %6 = arith.maximumf %4, %5 : vector<16x1024xf32>
    %7 = vector.extract_strided_slice %3 {offsets = [0, 2048], sizes = [16, 1024], strides = [1, 1]} : vector<16x4096xf32> to vector<16x1024xf32>
    %8 = arith.maximumf %6, %7 : vector<16x1024xf32>
    %9 = vector.extract_strided_slice %3 {offsets = [0, 3072], sizes = [16, 1024], strides = [1, 1]} : vector<16x4096xf32> to vector<16x1024xf32>
    %10 = arith.maximumf %8, %9 : vector<16x1024xf32>
    %c0_4 = arith.constant 0 : index
    %c0_5 = arith.constant 0 : index
    %11 = vector.load %arg3[%c0_4, %c0_5] : memref<16x1xf32, #tpu.memory_space<vmem>>, vector<16x1xf32>
    %12 = vector.broadcast %11 : vector<16x1xf32> to vector<16x1024xf32>
    %13 = arith.addf %10, %12 : vector<16x1024xf32>
    %cst_6 = arith.constant 0.000000e+00 : f32
    %14 = vector.broadcast %cst_6 : f32 to vector<16x1024xf32>
    %15 = arith.cmpf ogt, %13, %14 : vector<16x1024xf32>
    %cst_7 = arith.constant 0.000000e+00 : f32
    %16 = vector.broadcast %cst_7 : f32 to vector<16x1024xf32>
    %17 = arith.minimumf %13, %16 : vector<16x1024xf32>
    %18 = math.exp %17 : vector<16x1024xf32>
    %cst_8 = arith.constant 1.000000e+00 : f32
    %19 = vector.broadcast %cst_8 : f32 to vector<16x1024xf32>
    %20 = arith.subf %18, %19 : vector<16x1024xf32>
    %21 = arith.select %15, %13, %20 : vector<16x1024xi1>, vector<16x1024xf32>
    %c0_9 = arith.constant 0 : index
    %c0_10 = arith.constant 0 : index
    %c0_11 = arith.constant 0 : index
    %22 = vector.load %arg4[%c0_9, %c0_10, %c0_11] : memref<1x16x1024xf32, #tpu.memory_space<vmem>>, vector<1x16x1024xf32>
    %23 = vector.shape_cast %22 : vector<1x16x1024xf32> to vector<16x1024xf32>
    %24 = vector.shape_cast %21 : vector<16x1024xf32> to vector<1x16x1024xf32>
    tpu.vector_store %arg4[%c0_9, %c0_10, %c0_11], %24 {strides = array<i32>} : memref<1x16x1024xf32, #tpu.memory_space<vmem>>, vector<1x16x1024xf32>,
    return
  }
  func.func @transform_0(%arg0: i32) -> (i32, i32, i32) {
    %c0_i32 = arith.constant 0 : i32
    %c0_i32_0 = arith.constant 0 : i32
    %c0_i32_1 = arith.constant 0 : i32
    return %arg0, %c0_i32, %c0_i32_0 : i32, i32, i32
  }
  func.func @transform_1(%arg0: i32) -> (i32, i32) {
    %c0_i32 = arith.constant 0 : i32
    %c0_i32_0 = arith.constant 0 : i32
    %c0_i32_1 = arith.constant 0 : i32
    return %c0_i32, %c0_i32_0 : i32, i32
  }
  func.func @transform_2(%arg0: i32) -> (i32, i32) {
    %c0_i32 = arith.constant 0 : i32
    %c0_i32_0 = arith.constant 0 : i32
    %c0_i32_1 = arith.constant 0 : i32
    return %c0_i32, %c0_i32_0 : i32, i32
  }
  func.func @transform_3(%arg0: i32) -> (i32, i32, i32) {
    %c0_i32 = arith.constant 0 : i32
    %c0_i32_0 = arith.constant 0 : i32
    %c0_i32_1 = arith.constant 0 : i32
    return %arg0, %c0_i32, %c0_i32_0 : i32, i32, i32
  }
}

module attributes {stable_mosaic.version = 11 : i64} {
  func.func @heads_kernel(%arg0: i32, %arg1: i32, %arg2: memref<2x8192xf32, #tpu.memory_space<vmem>>, %arg3: memref<8192x128xbf16, #tpu.memory_space<vmem>>, %arg4: memref<1x128xf32, #tpu.memory_space<vmem>>, %arg5: memref<128x128xbf16, #tpu.memory_space<vmem>>, %arg6: memref<1x128xf32, #tpu.memory_space<vmem>>, %arg7: memref<128x1024xbf16, #tpu.memory_space<vmem>>, %arg8: memref<1x1024xf32, #tpu.memory_space<vmem>>, %arg9: memref<1x2x128xf32, #tpu.memory_space<vmem>>, %arg10: memref<1x2x1024xf32, #tpu.memory_space<vmem>>, %arg11: memref<2x128xf32, #tpu.memory_space<vmem>>) attributes {dimension_semantics = [#tpu.dimension_semantics<parallel>, #tpu.dimension_semantics<arbitrary>], iteration_bounds = array<i64: 2, 1>, scalar_prefetch = 0 : i64, scratch_operands = 1 : i64, tpu.core_type = #tpu.core_type<tc>, window_params = [{transform_indices = @transform_0, window_bounds = array<i64: 2, 8192>}, {transform_indices = @transform_1, window_bounds = array<i64: 8192, 128>}, {pipeline_mode = #tpu.pipeline_mode<synchronous>, transform_indices = @transform_2, window_bounds = array<i64: 1, 128>}, {pipeline_mode = #tpu.pipeline_mode<synchronous>, transform_indices = @transform_3, window_bounds = array<i64: 128, 128>}, {pipeline_mode = #tpu.pipeline_mode<synchronous>, transform_indices = @transform_4, window_bounds = array<i64: 1, 128>}, {pipeline_mode = #tpu.pipeline_mode<synchronous>, transform_indices = @transform_5, window_bounds = array<i64: 128, 1024>}, {pipeline_mode = #tpu.pipeline_mode<synchronous>, transform_indices = @transform_6, window_bounds = array<i64: 1, 1024>}, {transform_indices = @transform_7, window_bounds = array<i64: 1, 2, 128>}, {transform_indices = @transform_8, window_bounds = array<i64: 1, 2, 1024>}]} {
    %c0_i32 = arith.constant 0 : i32
    %0 = arith.cmpi eq, %arg1, %c0_i32 : i32
    %1 = arith.extui %0 : i1 to i32
    %c0_i32_0 = arith.constant 0 : i32
    %2 = arith.cmpi ne, %1, %c0_i32_0 : i32
    scf.if %2 {
      %cst_10 = arith.constant 0.000000e+00 : f32
      %13 = vector.broadcast %cst_10 : f32 to vector<2x128xf32>
      %c0_11 = arith.constant 0 : index
      %c0_12 = arith.constant 0 : index
      %14 = vector.load %arg11[%c0_11, %c0_12] : memref<2x128xf32, #tpu.memory_space<vmem>>, vector<2x128xf32>
      tpu.vector_store %arg11[%c0_11, %c0_12], %13 {strides = array<i32>} : memref<2x128xf32, #tpu.memory_space<vmem>>, vector<2x128xf32>,
    } else {
    }
    %c0 = arith.constant 0 : index
    %c0_1 = arith.constant 0 : index
    %3 = vector.load %arg11[%c0, %c0_1] : memref<2x128xf32, #tpu.memory_space<vmem>>, vector<2x128xf32>
    %c0_2 = arith.constant 0 : index
    %c0_3 = arith.constant 0 : index
    %4 = vector.load %arg2[%c0_2, %c0_3] : memref<2x8192xf32, #tpu.memory_space<vmem>>, vector<2x8192xf32>
    %5 = arith.truncf %4 : vector<2x8192xf32> to vector<2x8192xbf16>
    %c0_4 = arith.constant 0 : index
    %c0_5 = arith.constant 0 : index
    %6 = vector.load %arg3[%c0_4, %c0_5] : memref<8192x128xbf16, #tpu.memory_space<vmem>>, vector<8192x128xbf16>
    %cst = arith.constant dense<0.000000e+00> : vector<2x128xf32>
    %7 = tpu.matmul %5, %6, %cst {dimension_numbers = #tpu.dot_dimension_numbers<[1], [0], [0], [1], [0, 0, 1, 1], [], []>} : vector<2x8192xbf16>, vector<8192x128xbf16>, vector<2x128xf32> -> vector<2x128xf32>
    %8 = arith.addf %3, %7 : vector<2x128xf32>
    %c0_6 = arith.constant 0 : index
    %c0_7 = arith.constant 0 : index
    %9 = vector.load %arg11[%c0_6, %c0_7] : memref<2x128xf32, #tpu.memory_space<vmem>>, vector<2x128xf32>
    tpu.vector_store %arg11[%c0_6, %c0_7], %8 {strides = array<i32>} : memref<2x128xf32, #tpu.memory_space<vmem>>, vector<2x128xf32>,
    %c0_i32_8 = arith.constant 0 : i32
    %10 = arith.cmpi eq, %arg1, %c0_i32_8 : i32
    %11 = arith.extui %10 : i1 to i32
    %c0_i32_9 = arith.constant 0 : i32
    %12 = arith.cmpi ne, %11, %c0_i32_9 : i32
    scf.if %12 {
      %c0_i32_10 = arith.constant 0 : i32
      %13 = arith.cmpi eq, %arg0, %c0_i32_10 : i32
      %14 = arith.extui %13 : i1 to i32
      %15 = arith.sitofp %14 : i32 to f32
      %c0_11 = arith.constant 0 : index
      %c0_12 = arith.constant 0 : index
      %16 = vector.load %arg11[%c0_11, %c0_12] : memref<2x128xf32, #tpu.memory_space<vmem>>, vector<2x128xf32>
      %c0_13 = arith.constant 0 : index
      %c0_14 = arith.constant 0 : index
      %17 = vector.load %arg4[%c0_13, %c0_14] : memref<1x128xf32, #tpu.memory_space<vmem>>, vector<1x128xf32>
      %18 = vector.broadcast %15 : f32 to vector<1x128xf32>
      %19 = arith.mulf %18, %17 : vector<1x128xf32>
      %20 = vector.broadcast %19 : vector<1x128xf32> to vector<2x128xf32>
      %21 = arith.addf %16, %20 : vector<2x128xf32>
      %22 = arith.truncf %21 : vector<2x128xf32> to vector<2x128xbf16>
      %c0_15 = arith.constant 0 : index
      %c0_16 = arith.constant 0 : index
      %23 = vector.load %arg5[%c0_15, %c0_16] : memref<128x128xbf16, #tpu.memory_space<vmem>>, vector<128x128xbf16>
      %cst_17 = arith.constant dense<0.000000e+00> : vector<2x128xf32>
      %24 = tpu.matmul %22, %23, %cst_17 {dimension_numbers = #tpu.dot_dimension_numbers<[1], [0], [0], [1], [0, 0, 1, 1], [], []>} : vector<2x128xbf16>, vector<128x128xbf16>, vector<2x128xf32> -> vector<2x128xf32>
      %c0_18 = arith.constant 0 : index
      %c0_19 = arith.constant 0 : index
      %25 = vector.load %arg6[%c0_18, %c0_19] : memref<1x128xf32, #tpu.memory_space<vmem>>, vector<1x128xf32>
      %26 = vector.broadcast %15 : f32 to vector<1x128xf32>
      %27 = arith.mulf %26, %25 : vector<1x128xf32>
      %28 = vector.broadcast %27 : vector<1x128xf32> to vector<2x128xf32>
      %29 = arith.addf %24, %28 : vector<2x128xf32>
      %c0_20 = arith.constant 0 : index
      %c0_21 = arith.constant 0 : index
      %c0_22 = arith.constant 0 : index
      %30 = vector.load %arg9[%c0_20, %c0_21, %c0_22] : memref<1x2x128xf32, #tpu.memory_space<vmem>>, vector<1x2x128xf32>
      %31 = vector.shape_cast %30 : vector<1x2x128xf32> to vector<2x128xf32>
      %32 = vector.shape_cast %29 : vector<2x128xf32> to vector<1x2x128xf32>
      tpu.vector_store %arg9[%c0_20, %c0_21, %c0_22], %32 {strides = array<i32>} : memref<1x2x128xf32, #tpu.memory_space<vmem>>, vector<1x2x128xf32>,
      %c0_23 = arith.constant 0 : index
      %c0_24 = arith.constant 0 : index
      %33 = vector.load %arg7[%c0_23, %c0_24] : memref<128x1024xbf16, #tpu.memory_space<vmem>>, vector<128x1024xbf16>
      %cst_25 = arith.constant dense<0.000000e+00> : vector<2x1024xf32>
      %34 = tpu.matmul %22, %33, %cst_25 {dimension_numbers = #tpu.dot_dimension_numbers<[1], [0], [0], [1], [0, 0, 1, 1], [], []>} : vector<2x128xbf16>, vector<128x1024xbf16>, vector<2x1024xf32> -> vector<2x1024xf32>
      %c0_26 = arith.constant 0 : index
      %c0_27 = arith.constant 0 : index
      %35 = vector.load %arg8[%c0_26, %c0_27] : memref<1x1024xf32, #tpu.memory_space<vmem>>, vector<1x1024xf32>
      %36 = vector.broadcast %15 : f32 to vector<1x1024xf32>
      %37 = arith.mulf %36, %35 : vector<1x1024xf32>
      %38 = vector.broadcast %37 : vector<1x1024xf32> to vector<2x1024xf32>
      %39 = arith.addf %34, %38 : vector<2x1024xf32>
      %c0_28 = arith.constant 0 : index
      %c0_29 = arith.constant 0 : index
      %c0_30 = arith.constant 0 : index
      %40 = vector.load %arg10[%c0_28, %c0_29, %c0_30] : memref<1x2x1024xf32, #tpu.memory_space<vmem>>, vector<1x2x1024xf32>
      %41 = vector.shape_cast %40 : vector<1x2x1024xf32> to vector<2x1024xf32>
      %42 = vector.shape_cast %39 : vector<2x1024xf32> to vector<1x2x1024xf32>
      tpu.vector_store %arg10[%c0_28, %c0_29, %c0_30], %42 {strides = array<i32>} : memref<1x2x1024xf32, #tpu.memory_space<vmem>>, vector<1x2x1024xf32>,
    } else {
    }
    return
  }
  func.func @transform_0(%arg0: i32, %arg1: i32) -> (i32, i32) {
    %c1_i32 = arith.constant 1 : i32
    %0 = arith.muli %arg0, %c1_i32 : i32
    %1 = arith.addi %0, %arg1 : i32
    %c0_i32 = arith.constant 0 : i32
    %c0_i32_0 = arith.constant 0 : i32
    return %c0_i32, %1 : i32, i32
  }
  func.func @transform_1(%arg0: i32, %arg1: i32) -> (i32, i32) {
    %c1_i32 = arith.constant 1 : i32
    %0 = arith.muli %arg0, %c1_i32 : i32
    %1 = arith.addi %0, %arg1 : i32
    %c0_i32 = arith.constant 0 : i32
    %c0_i32_0 = arith.constant 0 : i32
    return %1, %c0_i32 : i32, i32
  }
  func.func @transform_2(%arg0: i32, %arg1: i32) -> (i32, i32) {
    %c0_i32 = arith.constant 0 : i32
    %c0_i32_0 = arith.constant 0 : i32
    %c0_i32_1 = arith.constant 0 : i32
    return %c0_i32, %c0_i32_0 : i32, i32
  }
  func.func @transform_3(%arg0: i32, %arg1: i32) -> (i32, i32) {
    %c0_i32 = arith.constant 0 : i32
    %c0_i32_0 = arith.constant 0 : i32
    %c0_i32_1 = arith.constant 0 : i32
    return %c0_i32, %c0_i32_0 : i32, i32
  }
  func.func @transform_4(%arg0: i32, %arg1: i32) -> (i32, i32) {
    %c0_i32 = arith.constant 0 : i32
    %c0_i32_0 = arith.constant 0 : i32
    %c0_i32_1 = arith.constant 0 : i32
    return %c0_i32, %c0_i32_0 : i32, i32
  }
  func.func @transform_5(%arg0: i32, %arg1: i32) -> (i32, i32) {
    %c0_i32 = arith.constant 0 : i32
    %c0_i32_0 = arith.constant 0 : i32
    %c0_i32_1 = arith.constant 0 : i32
    return %c0_i32, %c0_i32_0 : i32, i32
  }
  func.func @transform_6(%arg0: i32, %arg1: i32) -> (i32, i32) {
    %c0_i32 = arith.constant 0 : i32
    %c0_i32_0 = arith.constant 0 : i32
    %c0_i32_1 = arith.constant 0 : i32
    return %c0_i32, %c0_i32_0 : i32, i32
  }
  func.func @transform_7(%arg0: i32, %arg1: i32) -> (i32, i32, i32) {
    %c0_i32 = arith.constant 0 : i32
    %c0_i32_0 = arith.constant 0 : i32
    %c0_i32_1 = arith.constant 0 : i32
    return %arg0, %c0_i32, %c0_i32_0 : i32, i32, i32
  }
  func.func @transform_8(%arg0: i32, %arg1: i32) -> (i32, i32, i32) {
    %c0_i32 = arith.constant 0 : i32
    %c0_i32_0 = arith.constant 0 : i32
    %c0_i32_1 = arith.constant 0 : i32
    return %arg0, %c0_i32, %c0_i32_0 : i32, i32, i32
  }
}

</mosaic_0001>

<llo_original>
// kernel: squeeze.3
$region0: #{squeeze.3}
  %s0 = inlined_call_operand.vmem [shape: f32[16,3,3], index: 0, kind: input, shape index: {}]
  %s1 = inlined_call_operand.vmem [shape: f32[16,9], index: 1, kind: output, shape index: {}]
  $region1: #{squeeze.3} parent=0
    #allocation0 [shape = 'u8[12288]{0}', space=vmem, size = 0x3000, scoped, tag = 'scoped mem for input reshape']
    %s3 = sshll.u32 1, 4
    %s4 = ssub.s32 %s3, 1
    %s5 = smul.addr 4, 2
    %s6 = scalar_lea.vmem %s0, %s5
    %v7 = vld [vmem:[%s6] sm:%s4]
    %s8 = scalar_lea.vmem [#allocation0], 16
    %9 = vst [vmem:[%s8] sm:%s4] %v7
    %s10 = scalar_lea.vmem %s0, 4
    %v11 = vld [vmem:[%s10] sm:%s4]
    %s12 = scalar_lea.vmem [#allocation0], 8
    %13 = vst [vmem:[%s12] sm:%s4] %v11
    %v14 = vld [vmem:[%s0] sm:%s4]
    %15 = vst [vmem:[#allocation0] sm:%s4] %v14
    %v16 = vld [vmem:[#allocation0] sm:$0x7]
    %vm17 = vcmask 130048
    %18 = vst.msk [vmem:[%s1] sm:$0x7] %vm17, %v16
    %s19 = scalar_lea.vmem [#allocation0], 8
    %v20 = vld [vmem:[%s19] sm:$0x7]
    %vm21 = vcmask 130048
    %s22 = scalar_lea.vmem %s1, 3
    %23 = vst.msk [vmem:[%s22] sm:$0x7] %vm21, %v20
    %s24 = scalar_lea.vmem [#allocation0], 16
    %v25 = vld [vmem:[%s24] sm:$0x7]
    %vm26 = vcmask 130048
    %s27 = scalar_lea.vmem %s1, 6
    %28 = vst.msk [vmem:[%s27] sm:$0x7] %vm26, %v25

// kernel: net_forward.2
$region0: #{net_forward.2}
  #allocation0 [shape = 'u32[]', space=smem, size = 0x4, offset = 0x4, fixed_abs, tag = 'smem constant byte address 0x4 - core index']
  #allocation1 [shape = 'u32[144,128]{1,0:T(1,128)}', space=vmem, size = 0x12000, scoped, tag = 'internal scratch']
  %s0 = inlined_call_operand.vmem [shape: f32[2,16,4096], index: 0, kind: input, shape index: {}]
  %s1 = inlined_call_operand.vmem [shape: f32[16,16], index: 1, kind: input, shape index: {}]
  %s2 = inlined_call_operand.vmem [shape: f32[16,1], index: 2, kind: input, shape index: {}]
  %s3 = inlined_call_operand.vmem [shape: f32[2,16,1024], index: 3, kind: output, shape index: {}]
  %s4 = sld [smem:[#allocation0]]
  $region45: #{net_forward.2} parent=0
    _
  %s6 = ssub.s32 1, %s4
  %s7 = scalar_select 0, %s6, %s4
  loop: start=0, step=1, limit=4
  $region2: #{net_forward.2} parent=0 // loop_pre_header
    _
  $region3: #{net_forward.2} parent=0 // loop_header
    %s9 = sphi 0, %s13
    %p10 = scmp.ge.s32.totalorder %s9, 4
    %s19 = sphi 0, %s21
    %s22 = sphi 0, %s19
    %s23 = sphi 0, %s22
    %s39 = sphi 0, %s23
    %s43 = sphi 0, %s43
    %s45 = sphi 0, %s43
    %s46 = sphi 0, %s45
    %s60 = sphi 0, %s46
    %s64 = sphi 0, %s64
    %s66 = sphi 0, %s64
    %s67 = sphi 0, %s66
    %s81 = sphi 0, %s67
    %s87 = sphi 0, %s89
    %s90 = sphi 0, %s87
    %s91 = sphi 0, %s90
    %s107 = sphi 0, %s91
  $region4: #{net_forward.2} parent=0 // loop_header_branch
    %12 = sbr.rel (%p10) target = $region8
  $region5: #{net_forward.2} parent=0 // loop_body
    %s14 = ssub.s32 %s9, 1
    %s15 = ssub.s32 %s9, 2
    %s16 = sadd.s32 %s9, 1
    %s17 = ssub.s32 %s9, %s16
    %p18 = scmp.eq.s32.totalorder %s17, 0
    %s20 = sadd.s32 %s19, 1
    %s21 = scalar_select %p18, %s19, %s20
    %p24 = pneg %p18
    %p25 = scmp.eq.s32.totalorder %s9, 1
    %p26 = por %p24, %p25
    %p27 = scmp.ne.s32.totalorder %s19, %s22
    %p28 = scmp.eq.s32.totalorder %s9, 0
    %p29 = por %p27, %p28
    %p30 = scmp.ne.s32.totalorder %s19, %s22
    %p31 = scmp.eq.s32.totalorder %s14, 1
    %p32 = por %p30, %p31
    %p33 = scmp.ne.s32.totalorder %s22, %s23
    %p34 = scmp.eq.s32.totalorder %s14, 0
    %p35 = por %p33, %p34
    %p36 = scmp.ne.s32.totalorder %s22, %s23
    %p37 = scmp.eq.s32.totalorder %s15, 1
    %p38 = por %p36, %p37
    %p40 = scmp.ne.s32.totalorder %s23, %s39
    %p41 = scmp.eq.s32.totalorder %s15, 0
    %p42 = por %p40, %p41
    %s44 = sadd.s32 %s43, 1
    %p47 = scmp.eq.s32.totalorder %s9, 1
    %p48 = scmp.ne.s32.totalorder %s43, %s45
    %p49 = scmp.eq.s32.totalorder %s9, 0
    %p50 = por %p48, %p49
    %p51 = scmp.ne.s32.totalorder %s43, %s45
    %p52 = scmp.eq.s32.totalorder %s14, 1
    %p53 = por %p51, %p52
    %p54 = scmp.ne.s32.totalorder %s45, %s46
    %p55 = scmp.eq.s32.totalorder %s14, 0
    %p56 = por %p54, %p55
    %p57 = scmp.ne.s32.totalorder %s45, %s46
    %p58 = scmp.eq.s32.totalorder %s15, 1
    %p59 = por %p57, %p58
    %p61 = scmp.ne.s32.totalorder %s46, %s60
    %p62 = scmp.eq.s32.totalorder %s15, 0
    %p63 = por %p61, %p62
    %s65 = sadd.s32 %s64, 1
    %p68 = scmp.eq.s32.totalorder %s9, 1
    %p69 = scmp.ne.s32.totalorder %s64, %s66
    %p70 = scmp.eq.s32.totalorder %s9, 0
    %p71 = por %p69, %p70
    %p72 = scmp.ne.s32.totalorder %s64, %s66
    %p73 = scmp.eq.s32.totalorder %s14, 1
    %p74 = por %p72, %p73
    %p75 = scmp.ne.s32.totalorder %s66, %s67
    %p76 = scmp.eq.s32.totalorder %s14, 0
    %p77 = por %p75, %p76
    %p78 = scmp.ne.s32.totalorder %s66, %s67
    %p79 = scmp.eq.s32.totalorder %s15, 1
    %p80 = por %p78, %p79
    %p82 = scmp.ne.s32.totalorder %s67, %s81
    %p83 = scmp.eq.s32.totalorder %s15, 0
    %p84 = por %p82, %p83
    %s85 = ssub.s32 %s9, %s16
    %p86 = scmp.eq.s32.totalorder %s85, 0
    %s88 = sadd.s32 %s87, 1
    %s89 = scalar_select %p86, %s87, %s88
    %p92 = pneg %p86
    %p93 = scmp.eq.s32.totalorder %s9, 1
    %p94 = por %p92, %p93
    %p95 = scmp.ne.s32.totalorder %s87, %s90
    %p96 = scmp.eq.s32.totalorder %s9, 0
    %p97 = por %p95, %p96
    %p98 = scmp.ne.s32.totalorder %s87, %s90
    %p99 = scmp.eq.s32.totalorder %s14, 1
    %p100 = por %p98, %p99
    %p101 = scmp.ne.s32.totalorder %s90, %s91
    %p102 = scmp.eq.s32.totalorder %s14, 0
    %p103 = por %p101, %p102
    %p104 = scmp.ne.s32.totalorder %s90, %s91
    %p105 = scmp.eq.s32.totalorder %s15, 1
    %p106 = por %p104, %p105
    %p108 = scmp.ne.s32.totalorder %s91, %s107
    %p109 = scmp.eq.s32.totalorder %s15, 0
    %p110 = por %p108, %p109
    %p111 = scmp.le.s32.totalorder 1, %s9
    %p112 = scmp.lt.s32.totalorder %s9, 3
    %p113 = pnand %p111, %p112
    %p114 = pneg %p113
    // Predicated region
    $region9: #{net_forward.2} parent=5 // pred_check
      _
    $region10: #{net_forward.2} parent=5 // pred_check_branch
      %116 = sbr.rel (%p113) target = $region12
    $region11: #{net_forward.2} parent=5 // pred_region
      %s117 = ssub.s32 %s9, 1
      // Predicated region
      $region13: #{net_forward.2} parent=11 // pred_check
        %p118 = pneg %p56
      $region14: #{net_forward.2} parent=11 // pred_check_branch
        %120 = sbr.rel (%p118) target = $region16
      $region15: #{net_forward.2} parent=11 // pred_region
        _
      $region16: #{net_forward.2} parent=11 // pred_fallthru
        _
      // Predicated region
      $region17: #{net_forward.2} parent=11 // pred_check
        %p121 = pneg %p77
      $region18: #{net_forward.2} parent=11 // pred_check_branch
        %123 = sbr.rel (%p121) target = $region20
      $region19: #{net_forward.2} parent=11 // pred_region
        _
      $region20: #{net_forward.2} parent=11 // pred_fallthru
        _
    $region12: #{net_forward.2} parent=5 // pred_fallthru
      _
    %p124 = scmp.lt.s32.totalorder %s9, 2
    // Predicated region
    $region21: #{net_forward.2} parent=5 // pred_check
      %p125 = pneg %p124
    $region22: #{net_forward.2} parent=5 // pred_check_branch
      %127 = sbr.rel (%p125) target = $region24
    $region23: #{net_forward.2} parent=5 // pred_region
      // Predicated region
      $region25: #{net_forward.2} parent=23 // pred_check
        %p128 = pneg %p29
      $region26: #{net_forward.2} parent=23 // pred_check_branch
        %130 = sbr.rel (%p128) target = $region28
      $region27: #{net_forward.2} parent=23 // pred_region
        %p131 = scmp.lt.s32.totalorder %s9, 1
        %s132 = scalar_select %p131, %s9, 1
        %s133 = smul.addr %s132, 64
        %s134 = smul.addr %s133, 8
        %s135 = scalar_lea.vmem %s0, %s134
      $region28: #{net_forward.2} parent=23 // pred_fallthru
        _
    $region24: #{net_forward.2} parent=5 // pred_fallthru
      _
    %p136 = scmp.le.s32.totalorder 1, %s9
    %p137 = scmp.lt.s32.totalorder %s9, 3
    %p138 = pnand %p136, %p137
    %p139 = pneg %p138
    // Predicated region
    $region29: #{net_forward.2} parent=5 // pred_check
      _
    $region30: #{net_forward.2} parent=5 // pred_check_branch
      %141 = sbr.rel (%p138) target = $region32
    $region31: #{net_forward.2} parent=5 // pred_region
      %s142 = ssub.s32 %s9, 1
      %p143 = scmp.lt.s32.totalorder %s14, 1
      %s144 = scalar_select %p143, %s14, 1
      %s145 = smul.addr %s144, 64
      %s146 = smul.addr %s145, 8
      %s147 = scalar_lea.vmem %s0, %s146
      %p148 = pneg %p35
      %p149 = pneg %p32
      %p150 = pneg %p56
      %p151 = pneg %p53
      %p152 = pneg %p77
      %p153 = pneg %p74
      %p154 = pneg %p103
      %p155 = pneg %p100
      %p156 = scmp.lt.s32.totalorder %s14, 1
      %s157 = scalar_select %p156, %s14, 1
      %s158 = smul.addr %s157, 16
      %s159 = smul.addr %s158, 8
      %s160 = scalar_lea.vmem %s3, %s159
      %p161 = scmp.lt.s32.totalorder %s14, 1
      %s162 = scalar_select %p161, %s14, 1
      %s163 = smul.addr %s162, 64
      %s164 = smul.addr %s163, 8
      %s165 = scalar_lea.vmem %s0, %s164
      %p166 = scmp.lt.s32.totalorder %s14, 1
      %s167 = scalar_select %p166, %s14, 1
      %s168 = smul.addr %s167, 16
      %s169 = smul.addr %s168, 8
      %s170 = scalar_lea.vmem %s3, %s169
      %v171 = vld [vmem:[%s1] sm:$0xff]
      %v172 = vld [vmem:[%s1 + $0x8] sm:$0xff]
      %v173 = vld [vmem:[%s165] sm:$0xff]
      %v174 = vld [vmem:[%s165 + $0x8] sm:$0xff]
      %v175 = vld [vmem:[%s165 + $0x10] sm:$0xff]
      %v176 = vld [vmem:[%s165 + $0x18] sm:$0xff]
      %v177 = vld [vmem:[%s165 + $0x20] sm:$0xff]
      %v178 = vld [vmem:[%s165 + $0x28] sm:$0xff]
      %v179 = vld [vmem:[%s165 + $0x30] sm:$0xff]
      %v180 = vld [vmem:[%s165 + $0x38] sm:$0xff]
      %v181 = vld [vmem:[%s165 + $0x40] sm:$0xff]
      %v182 = vld [vmem:[%s165 + $0x48] sm:$0xff]
      %v183 = vld [vmem:[%s165 + $0x50] sm:$0xff]
      %v184 = vld [vmem:[%s165 + $0x58] sm:$0xff]
      %v185 = vld [vmem:[%s165 + $0x60] sm:$0xff]
      %v186 = vld [vmem:[%s165 + $0x68] sm:$0xff]
      %v187 = vld [vmem:[%s165 + $0x70] sm:$0xff]
      %v188 = vld [vmem:[%s165 + $0x78] sm:$0xff]
      %v189 = vld [vmem:[%s165 + $0x80] sm:$0xff]
      %v190 = vld [vmem:[%s165 + $0x88] sm:$0xff]
      %v191 = vld [vmem:[%s165 + $0x90] sm:$0xff]
      %v192 = vld [vmem:[%s165 + $0x98] sm:$0xff]
      %v193 = vld [vmem:[%s165 + $0xa0] sm:$0xff]
      %v194 = vld [vmem:[%s165 + $0xa8] sm:$0xff]
      %v195 = vld [vmem:[%s165 + $0xb0] sm:$0xff]
      %v196 = vld [vmem:[%s165 + $0xb8] sm:$0xff]
      %v197 = vld [vmem:[%s165 + $0xc0] sm:$0xff]
      %v198 = vld [vmem:[%s165 + $0xc8] sm:$0xff]
      %v199 = vld [vmem:[%s165 + $0xd0] sm:$0xff]
      %v200 = vld [vmem:[%s165 + $0xd8] sm:$0xff]
      %v201 = vld [vmem:[%s165 + $0xe0] sm:$0xff]
      %v202 = vld [vmem:[%s165 + $0xe8] sm:$0xff]
      %v203 = vld [vmem:[%s165 + $0xf0] sm:$0xff]
      %v204 = vld [vmem:[%s165 + $0xf8] sm:$0xff]
      %v205 = vld [vmem:[%s165 + $0x100] sm:$0xff]
      %v206 = vld [vmem:[%s165 + $0x108] sm:$0xff]
      %v207 = vld [vmem:[%s165 + $0x110] sm:$0xff]
      %v208 = vld [vmem:[%s165 + $0x118] sm:$0xff]
      %v209 = vld [vmem:[%s165 + $0x120] sm:$0xff]
      %v210 = vld [vmem:[%s165 + $0x128] sm:$0xff]
      %v211 = vld [vmem:[%s165 + $0x130] sm:$0xff]
      %v212 = vld [vmem:[%s165 + $0x138] sm:$0xff]
      %v213 = vld [vmem:[%s165 + $0x140] sm:$0xff]
      %v214 = vld [vmem:[%s165 + $0x148] sm:$0xff]
      %v215 = vld [vmem:[%s165 + $0x150] sm:$0xff]
      %v216 = vld [vmem:[%s165 + $0x158] sm:$0xff]
      %v217 = vld [vmem:[%s165 + $0x160] sm:$0xff]
      %v218 = vld [vmem:[%s165 + $0x168] sm:$0xff]
      %v219 = vld [vmem:[%s165 + $0x170] sm:$0xff]
      %v220 = vld [vmem:[%s165 + $0x178] sm:$0xff]
      %v221 = vld [vmem:[%s165 + $0x180] sm:$0xff]
      %v222 = vld [vmem:[%s165 + $0x188] sm:$0xff]
      %v223 = vld [vmem:[%s165 + $0x190] sm:$0xff]
      %v224 = vld [vmem:[%s165 + $0x198] sm:$0xff]
      %v225 = vld [vmem:[%s165 + $0x1a0] sm:$0xff]
      %v226 = vld [vmem:[%s165 + $0x1a8] sm:$0xff]
      %v227 = vld [vmem:[%s165 + $0x1b0] sm:$0xff]
      %v228 = vld [vmem:[%s165 + $0x1b8] sm:$0xff]
      %v229 = vld [vmem:[%s165 + $0x1c0] sm:$0xff]
      %v230 = vld [vmem:[%s165 + $0x1c8] sm:$0xff]
      %v231 = vld [vmem:[%s165 + $0x1d0] sm:$0xff]
      %v232 = vld [vmem:[%s165 + $0x1d8] sm:$0xff]
      %v233 = vld [vmem:[%s165 + $0x1e0] sm:$0xff]
      %v234 = vld [vmem:[%s165 + $0x1e8] sm:$0xff]
      %v235 = vld [vmem:[%s165 + $0x1f0] sm:$0xff]
      %v236 = vld [vmem:[%s165 + $0x1f8] sm:$0xff]
      %vm237 = vcmask 130048
      %v239 = vsel %vm237, %v171, 0
      %v242 = vsel %vm237, %v172, 0
      %244 = vmatprep.subr.mxu0 0.0
      %245 = vmatpush1.msra.mxu0 0.0
      %246 = vmatprep.subr.mxu0 0.0
      %247 = vmatpush1.msra.mxu0 0.0
      %248 = vmatprep.subr.mxu0 0.0
      %249 = vmatpush1.msra.mxu0 0.0
      %250 = vmatprep.subr.mxu0 0.0
      %251 = vmatpush1.msra.mxu0 0.0
      %252 = vmatprep.subr.mxu0 0.0
      %253 = vmatpush1.msra.mxu0 0.0
      %254 = vmatprep.subr.mxu0 0.0
      %255 = vmatpush1.msra.mxu0 0.0
      %256 = vmatprep.subr.mxu0 0.0
      %257 = vmatpush1.msra.mxu0 0.0
      %258 = vmatprep.subr.mxu0 0.0
      %259 = vmatpush1.msra.mxu0 0.0
      %260 = vmatprep.subr.mxu0 0.0
      %261 = vmatpush1.msra.mxu0 0.0
      %262 = vmatprep.subr.mxu0 0.0
      %263 = vmatpush1.msra.mxu0 0.0
      %264 = vmatprep.subr.mxu0 0.0
      %265 = vmatpush1.msra.mxu0 0.0
      %266 = vmatprep.subr.mxu0 0.0
      %267 = vmatpush1.msra.mxu0 0.0
      %268 = vmatprep.subr.mxu0 0.0
      %269 = vmatpush1.msra.mxu0 0.0
      %270 = vmatprep.subr.mxu0 0.0
      %271 = vmatpush1.msra.mxu0 0.0
      %272 = vmatprep.subr.mxu0 %v206
      %273 = vmatpush1.msra.mxu0 %v205
      %274 = vmatprep.subr.mxu0 %v174
      %275 = vmatpush1.msra.mxu0 %v173
      %276 = vmatprep.subr.mxu0 0.0
      %277 = vmatpush2.msra.mxu0 0.0
      %278 = vmatprep.subr.mxu0 0.0
      %279 = vmatpush2.msra.mxu0 0.0
      %280 = vmatprep.subr.mxu0 0.0
      %281 = vmatpush2.msra.mxu0 0.0
      %282 = vmatprep.subr.mxu0 0.0
      %283 = vmatpush2.msra.mxu0 0.0
      %284 = vmatprep.subr.mxu0 0.0
      %285 = vmatpush2.msra.mxu0 0.0
      %286 = vmatprep.subr.mxu0 0.0
      %287 = vmatpush2.msra.mxu0 0.0
      %288 = vmatprep.subr.mxu0 0.0
      %289 = vmatpush2.msra.mxu0 0.0
      %290 = vmatprep.subr.mxu0 0.0
      %291 = vmatpush2.msra.mxu0 0.0
      %292 = vmatprep.subr.mxu0 0.0
      %293 = vmatpush2.msra.mxu0 0.0
      %294 = vmatprep.subr.mxu0 0.0
      %295 = vmatpush2.msra.mxu0 0.0
      %296 = vmatprep.subr.mxu0 0.0
      %297 = vmatpush2.msra.mxu0 0.0
      %298 = vmatprep.subr.mxu0 0.0
      %299 = vmatpush2.msra.mxu0 0.0
      %300 = vmatprep.subr.mxu0 0.0
      %301 = vmatpush2.msra.mxu0 0.0
      %302 = vmatprep.subr.mxu0 0.0
      %303 = vmatpush2.msra.mxu0 0.0
      %304 = vmatprep.subr.mxu0 0.0
      %305 = vmatpush2.msra.mxu0 0.0
      %306 = vmatprep.subr.mxu0 0.0
      %307 = vmatpush2.msra.mxu0 0.0
      %308 = vmatprep.mubr.f32.mxu0 0.0
      %309 = vmatmul.mubr.f32.gmra.mxu0 %v239
      %v310 = vpop.f32.mrf.mxu0
      %v311 = vadd.f32 0.0, %v310
      %v312 = vpop.f32.mrf.mxu0
      %v313 = vadd.f32 0.0, %v312
      %314 = vmatprep.mubr.f32.mxu0 0.0
      %315 = vmatmul.mubr.f32.gmra.mxu0 %v242
      %v316 = vpop.f32.mrf.mxu0
      %v317 = vadd.f32 0.0, %v316
      %v318 = vpop.f32.mrf.mxu0
      %v319 = vadd.f32 0.0, %v318
      %320 = vdwg.mxu0
      %321 = vmatprep.subr.mxu0 0.0
      %322 = vmatpush1.msra.mxu0 0.0
      %323 = vmatprep.subr.mxu0 0.0
      %324 = vmatpush1.msra.mxu0 0.0
      %325 = vmatprep.subr.mxu0 0.0
      %326 = vmatpush1.msra.mxu0 0.0
      %327 = vmatprep.subr.mxu0 0.0
      %328 = vmatpush1.msra.mxu0 0.0
      %329 = vmatprep.subr.mxu0 0.0
      %330 = vmatpush1.msra.mxu0 0.0
      %331 = vmatprep.subr.mxu0 0.0
      %332 = vmatpush1.msra.mxu0 0.0
      %333 = vmatprep.subr.mxu0 0.0
      %334 = vmatpush1.msra.mxu0 0.0
      %335 = vmatprep.subr.mxu0 0.0
      %336 = vmatpush1.msra.mxu0 0.0
      %337 = vmatprep.subr.mxu0 0.0
      %338 = vmatpush1.msra.mxu0 0.0
      %339 = vmatprep.subr.mxu0 0.0
      %340 = vmatpush1.msra.mxu0 0.0
      %341 = vmatprep.subr.mxu0 0.0
      %342 = vmatpush1.msra.mxu0 0.0
      %343 = vmatprep.subr.mxu0 0.0
      %344 = vmatpush1.msra.mxu0 0.0
      %345 = vmatprep.subr.mxu0 0.0
      %346 = vmatpush1.msra.mxu0 0.0
      %347 = vmatprep.subr.mxu0 0.0
      %348 = vmatpush1.msra.mxu0 0.0
      %349 = vmatprep.subr.mxu0 %v208
      %350 = vmatpush1.msra.mxu0 %v207
      %351 = vmatprep.subr.mxu0 %v176
      %352 = vmatpush1.msra.mxu0 %v175
      %353 = vmatprep.subr.mxu0 0.0
      %354 = vmatpush2.msra.mxu0 0.0
      %355 = vmatprep.subr.mxu0 0.0
      %356 = vmatpush2.msra.mxu0 0.0
      %357 = vmatprep.subr.mxu0 0.0
      %358 = vmatpush2.msra.mxu0 0.0
      %359 = vmatprep.subr.mxu0 0.0
      %360 = vmatpush2.msra.mxu0 0.0
      %361 = vmatprep.subr.mxu0 0.0
      %362 = vmatpush2.msra.mxu0 0.0
      %363 = vmatprep.subr.mxu0 0.0
      %364 = vmatpush2.msra.mxu0 0.0
      %365 = vmatprep.subr.mxu0 0.0
      %366 = vmatpush2.msra.mxu0 0.0
      %367 = vmatprep.subr.mxu0 0.0
      %368 = vmatpush2.msra.mxu0 0.0
      %369 = vmatprep.subr.mxu0 0.0
      %370 = vmatpush2.msra.mxu0 0.0
      %371 = vmatprep.subr.mxu0 0.0
      %372 = vmatpush2.msra.mxu0 0.0
      %373 = vmatprep.subr.mxu0 0.0
      %374 = vmatpush2.msra.mxu0 0.0
      %375 = vmatprep.subr.mxu0 0.0
      %376 = vmatpush2.msra.mxu0 0.0
      %377 = vmatprep.subr.mxu0 0.0
      %378 = vmatpush2.msra.mxu0 0.0
      %379 = vmatprep.subr.mxu0 0.0
      %380 = vmatpush2.msra.mxu0 0.0
      %381 = vmatprep.subr.mxu0 0.0
      %382 = vmatpush2.msra.mxu0 0.0
      %383 = vmatprep.subr.mxu0 0.0
      %384 = vmatpush2.msra.mxu0 0.0
      %385 = vmatprep.mubr.f32.mxu0 0.0
      %386 = vmatmul.mubr.f32.gmra.mxu0 %v239
      %v387 = vpop.f32.mrf.mxu0
      %v388 = vadd.f32 0.0, %v387
      %v389 = vpop.f32.mrf.mxu0
      %v390 = vadd.f32 0.0, %v389
      %391 = vmatprep.mubr.f32.mxu0 0.0
      %392 = vmatmul.mubr.f32.gmra.mxu0 %v242
      %v393 = vpop.f32.mrf.mxu0
      %v394 = vadd.f32 0.0, %v393
      %v395 = vpop.f32.mrf.mxu0
      %v396 = vadd.f32 0.0, %v395
      %397 = vdwg.mxu0
      %398 = vmatprep.subr.mxu0 0.0
      %399 = vmatpush1.msra.mxu0 0.0
      %400 = vmatprep.subr.mxu0 0.0
      %401 = vmatpush1.msra.mxu0 0.0
      %402 = vmatprep.subr.mxu0 0.0
      %403 = vmatpush1.msra.mxu0 0.0
      %404 = vmatprep.subr.mxu0 0.0
      %405 = vmatpush1.msra.mxu0 0.0
      %406 = vmatprep.subr.mxu0 0.0
      %407 = vmatpush1.msra.mxu0 0.0
      %408 = vmatprep.subr.mxu0 0.0
      %409 = vmatpush1.msra.mxu0 0.0
      %410 = vmatprep.subr.mxu0 0.0
      %411 = vmatpush1.msra.mxu0 0.0
      %412 = vmatprep.subr.mxu0 0.0
      %413 = vmatpush1.msra.mxu0 0.0
      %414 = vmatprep.subr.mxu0 0.0
      %415 = vmatpush1.msra.mxu0 0.0
      %416 = vmatprep.subr.mxu0 0.0
      %417 = vmatpush1.msra.mxu0 0.0
      %418 = vmatprep.subr.mxu0 0.0
      %419 = vmatpush1.msra.mxu0 0.0
      %420 = vmatprep.subr.mxu0 0.0
      %421 = vmatpush1.msra.mxu0 0.0
      %422 = vmatprep.subr.mxu0 0.0
      %423 = vmatpush1.msra.mxu0 0.0
      %424 = vmatprep.subr.mxu0 0.0
      %425 = vmatpush1.msra.mxu0 0.0
      %426 = vmatprep.subr.mxu0 %v210
      %427 = vmatpush1.msra.mxu0 %v209
      %428 = vmatprep.subr.mxu0 %v178
      %429 = vmatpush1.msra.mxu0 %v177
      %430 = vmatprep.subr.mxu0 0.0
      %431 = vmatpush2.msra.mxu0 0.0
      %432 = vmatprep.subr.mxu0 0.0
      %433 = vmatpush2.msra.mxu0 0.0
      %434 = vmatprep.subr.mxu0 0.0
      %435 = vmatpush2.msra.mxu0 0.0
      %436 = vmatprep.subr.mxu0 0.0
      %437 = vmatpush2.msra.mxu0 0.0
      %438 = vmatprep.subr.mxu0 0.0
      %439 = vmatpush2.msra.mxu0 0.0
      %440 = vmatprep.subr.mxu0 0.0
      %441 = vmatpush2.msra.mxu0 0.0
      %442 = vmatprep.subr.mxu0 0.0
      %443 = vmatpush2.msra.mxu0 0.0
      %444 = vmatprep.subr.mxu0 0.0
      %445 = vmatpush2.msra.mxu0 0.0
      %446 = vmatprep.subr.mxu0 0.0
      %447 = vmatpush2.msra.mxu0 0.0
      %448 = vmatprep.subr.mxu0 0.0
      %449 = vmatpush2.msra.mxu0 0.0
      %450 = vmatprep.subr.mxu0 0.0
      %451 = vmatpush2.msra.mxu0 0.0
      %452 = vmatprep.subr.mxu0 0.0
      %453 = vmatpush2.msra.mxu0 0.0
      %454 = vmatprep.subr.mxu0 0.0
      %455 = vmatpush2.msra.mxu0 0.0
      %456 = vmatprep.subr.mxu0 0.0
      %457 = vmatpush2.msra.mxu0 0.0
      %458 = vmatprep.subr.mxu0 0.0
      %459 = vmatpush2.msra.mxu0 0.0
      %460 = vmatprep.subr.mxu0 0.0
      %461 = vmatpush2.msra.mxu0 0.0
      %462 = vmatprep.mubr.f32.mxu0 0.0
      %463 = vmatmul.mubr.f32.gmra.mxu0 %v239
      %v464 = vpop.f32.mrf.mxu0
      %v465 = vadd.f32 0.0, %v464
      %v466 = vpop.f32.mrf.mxu0
      %v467 = vadd.f32 0.0, %v466
      %468 = vmatprep.mubr.f32.mxu0 0.0
      %469 = vmatmul.mubr.f32.gmra.mxu0 %v242
      %v470 = vpop.f32.mrf.mxu0
      %v471 = vadd.f32 0.0, %v470
      %v472 = vpop.f32.mrf.mxu0
      %v473 = vadd.f32 0.0, %v472
      %474 = vdwg.mxu0
      %475 = vmatprep.subr.mxu0 0.0
      %476 = vmatpush1.msra.mxu0 0.0
      %477 = vmatprep.subr.mxu0 0.0
      %478 = vmatpush1.msra.mxu0 0.0
      %479 = vmatprep.subr.mxu0 0.0
      %480 = vmatpush1.msra.mxu0 0.0
      %481 = vmatprep.subr.mxu0 0.0
      %482 = vmatpush1.msra.mxu0 0.0
      %483 = vmatprep.subr.mxu0 0.0
      %484 = vmatpush1.msra.mxu0 0.0
      %485 = vmatprep.subr.mxu0 0.0
      %486 = vmatpush1.msra.mxu0 0.0
      %487 = vmatprep.subr.mxu0 0.0
      %488 = vmatpush1.msra.mxu0 0.0
      %489 = vmatprep.subr.mxu0 0.0
      %490 = vmatpush1.msra.mxu0 0.0
      %491 = vmatprep.subr.mxu0 0.0
      %492 = vmatpush1.msra.mxu0 0.0
      %493 = vmatprep.subr.mxu0 0.0
      %494 = vmatpush1.msra.mxu0 0.0
      %495 = vmatprep.subr.mxu0 0.0
      %496 = vmatpush1.msra.mxu0 0.0
      %497 = vmatprep.subr.mxu0 0.0
      %498 = vmatpush1.msra.mxu0 0.0
      %499 = vmatprep.subr.mxu0 0.0
      %500 = vmatpush1.msra.mxu0 0.0
      %501 = vmatprep.subr.mxu0 0.0
      %502 = vmatpush1.msra.mxu0 0.0
      %503 = vmatprep.subr.mxu0 %v212
      %504 = vmatpush1.msra.mxu0 %v211
      %505 = vmatprep.subr.mxu0 %v180
      %506 = vmatpush1.msra.mxu0 %v179
      %507 = vmatprep.subr.mxu0 0.0
      %508 = vmatpush2.msra.mxu0 0.0
      %509 = vmatprep.subr.mxu0 0.0
      %510 = vmatpush2.msra.mxu0 0.0
      %511 = vmatprep.subr.mxu0 0.0
      %512 = vmatpush2.msra.mxu0 0.0
      %513 = vmatprep.subr.mxu0 0.0
      %514 = vmatpush2.msra.mxu0 0.0
      %515 = vmatprep.subr.mxu0 0.0
      %516 = vmatpush2.msra.mxu0 0.0
      %517 = vmatprep.subr.mxu0 0.0
      %518 = vmatpush2.msra.mxu0 0.0
      %519 = vmatprep.subr.mxu0 0.0
      %520 = vmatpush2.msra.mxu0 0.0
      %521 = vmatprep.subr.mxu0 0.0
      %522 = vmatpush2.msra.mxu0 0.0
      %523 = vmatprep.subr.mxu0 0.0
      %524 = vmatpush2.msra.mxu0 0.0
      %525 = vmatprep.subr.mxu0 0.0
      %526 = vmatpush2.msra.mxu0 0.0
      %527 = vmatprep.subr.mxu0 0.0
      %528 = vmatpush2.msra.mxu0 0.0
      %529 = vmatprep.subr.mxu0 0.0
      %530 = vmatpush2.msra.mxu0 0.0
      %531 = vmatprep.subr.mxu0 0.0
      %532 = vmatpush2.msra.mxu0 0.0
      %533 = vmatprep.subr.mxu0 0.0
      %534 = vmatpush2.msra.mxu0 0.0
      %535 = vmatprep.subr.mxu0 0.0
      %536 = vmatpush2.msra.mxu0 0.0
      %537 = vmatprep.subr.mxu0 0.0
      %538 = vmatpush2.msra.mxu0 0.0
      %539 = vmatprep.mubr.f32.mxu0 0.0
      %540 = vmatmul.mubr.f32.gmra.mxu0 %v239
      %v541 = vpop.f32.mrf.mxu0
      %v542 = vadd.f32 0.0, %v541
      %v543 = vpop.f32.mrf.mxu0
      %v544 = vadd.f32 0.0, %v543
      %545 = vmatprep.mubr.f32.mxu0 0.0
      %546 = vmatmul.mubr.f32.gmra.mxu0 %v242
      %v547 = vpop.f32.mrf.mxu0
      %v548 = vadd.f32 0.0, %v547
      %v549 = vpop.f32.mrf.mxu0
      %v550 = vadd.f32 0.0, %v549
      %551 = vdwg.mxu0
      %552 = vmatprep.subr.mxu0 0.0
      %553 = vmatpush1.msra.mxu0 0.0
      %554 = vmatprep.subr.mxu0 0.0
      %555 = vmatpush1.msra.mxu0 0.0
      %556 = vmatprep.subr.mxu0 0.0
      %557 = vmatpush1.msra.mxu0 0.0
      %558 = vmatprep.subr.mxu0 0.0
      %559 = vmatpush1.msra.mxu0 0.0
      %560 = vmatprep.subr.mxu0 0.0
      %561 = vmatpush1.msra.mxu0 0.0
      %562 = vmatprep.subr.mxu0 0.0
      %563 = vmatpush1.msra.mxu0 0.0
      %564 = vmatprep.subr.mxu0 0.0
      %565 = vmatpush1.msra.mxu0 0.0
      %566 = vmatprep.subr.mxu0 0.0
      %567 = vmatpush1.msra.mxu0 0.0
      %568 = vmatprep.subr.mxu0 0.0
      %569 = vmatpush1.msra.mxu0 0.0
      %570 = vmatprep.subr.mxu0 0.0
      %571 = vmatpush1.msra.mxu0 0.0
      %572 = vmatprep.subr.mxu0 0.0
      %573 = vmatpush1.msra.mxu0 0.0
      %574 = vmatprep.subr.mxu0 0.0
      %575 = vmatpush1.msra.mxu0 0.0
      %576 = vmatprep.subr.mxu0 0.0
      %577 = vmatpush1.msra.mxu0 0.0
      %578 = vmatprep.subr.mxu0 0.0
      %579 = vmatpush1.msra.mxu0 0.0
      %580 = vmatprep.subr.mxu0 %v214
      %581 = vmatpush1.msra.mxu0 %v213
      %582 = vmatprep.subr.mxu0 %v182
      %583 = vmatpush1.msra.mxu0 %v181
      %584 = vmatprep.subr.mxu0 0.0
      %585 = vmatpush2.msra.mxu0 0.0
      %586 = vmatprep.subr.mxu0 0.0
      %587 = vmatpush2.msra.mxu0 0.0
      %588 = vmatprep.subr.mxu0 0.0
      %589 = vmatpush2.msra.mxu0 0.0
      %590 = vmatprep.subr.mxu0 0.0
      %591 = vmatpush2.msra.mxu0 0.0
      %592 = vmatprep.subr.mxu0 0.0
      %593 = vmatpush2.msra.mxu0 0.0
      %594 = vmatprep.subr.mxu0 0.0
      %595 = vmatpush2.msra.mxu0 0.0
      %596 = vmatprep.subr.mxu0 0.0
      %597 = vmatpush2.msra.mxu0 0.0
      %598 = vmatprep.subr.mxu0 0.0
      %599 = vmatpush2.msra.mxu0 0.0
      %600 = vmatprep.subr.mxu0 0.0
      %601 = vmatpush2.msra.mxu0 0.0
      %602 = vmatprep.subr.mxu0 0.0
      %603 = vmatpush2.msra.mxu0 0.0
      %604 = vmatprep.subr.mxu0 0.0
      %605 = vmatpush2.msra.mxu0 0.0
      %606 = vmatprep.subr.mxu0 0.0
      %607 = vmatpush2.msra.mxu0 0.0
      %608 = vmatprep.subr.mxu0 0.0
      %609 = vmatpush2.msra.mxu0 0.0
      %610 = vmatprep.subr.mxu0 0.0
      %611 = vmatpush2.msra.mxu0 0.0
      %612 = vmatprep.subr.mxu0 0.0
      %613 = vmatpush2.msra.mxu0 0.0
      %614 = vmatprep.subr.mxu0 0.0
      %615 = vmatpush2.msra.mxu0 0.0
      %616 = vmatprep.mubr.f32.mxu0 0.0
      %617 = vmatmul.mubr.f32.gmra.mxu0 %v239
      %v618 = vpop.f32.mrf.mxu0
      %v619 = vadd.f32 0.0, %v618
      %v620 = vpop.f32.mrf.mxu0
      %v621 = vadd.f32 0.0, %v620
      %622 = vmatprep.mubr.f32.mxu0 0.0
      %623 = vmatmul.mubr.f32.gmra.mxu0 %v242
      %v624 = vpop.f32.mrf.mxu0
      %v625 = vadd.f32 0.0, %v624
      %v626 = vpop.f32.mrf.mxu0
      %v627 = vadd.f32 0.0, %v626
      %628 = vdwg.mxu0
      %629 = vmatprep.subr.mxu0 0.0
      %630 = vmatpush1.msra.mxu0 0.0
      %631 = vmatprep.subr.mxu0 0.0
      %632 = vmatpush1.msra.mxu0 0.0
      %633 = vmatprep.subr.mxu0 0.0
      %634 = vmatpush1.msra.mxu0 0.0
      %635 = vmatprep.subr.mxu0 0.0
      %636 = vmatpush1.msra.mxu0 0.0
      %637 = vmatprep.subr.mxu0 0.0
      %638 = vmatpush1.msra.mxu0 0.0
      %639 = vmatprep.subr.mxu0 0.0
      %640 = vmatpush1.msra.mxu0 0.0
      %641 = vmatprep.subr.mxu0 0.0
      %642 = vmatpush1.msra.mxu0 0.0
      %643 = vmatprep.subr.mxu0 0.0
      %644 = vmatpush1.msra.mxu0 0.0
      %645 = vmatprep.subr.mxu0 0.0
      %646 = vmatpush1.msra.mxu0 0.0
      %647 = vmatprep.subr.mxu0 0.0
      %648 = vmatpush1.msra.mxu0 0.0
      %649 = vmatprep.subr.mxu0 0.0
      %650 = vmatpush1.msra.mxu0 0.0
      %651 = vmatprep.subr.mxu0 0.0
      %652 = vmatpush1.msra.mxu0 0.0
      %653 = vmatprep.subr.mxu0 0.0
      %654 = vmatpush1.msra.mxu0 0.0
      %655 = vmatprep.subr.mxu0 0.0
      %656 = vmatpush1.msra.mxu0 0.0
      %657 = vmatprep.subr.mxu0 %v216
      %658 = vmatpush1.msra.mxu0 %v215
      %659 = vmatprep.subr.mxu0 %v184
      %660 = vmatpush1.msra.mxu0 %v183
      %661 = vmatprep.subr.mxu0 0.0
      %662 = vmatpush2.msra.mxu0 0.0
      %663 = vmatprep.subr.mxu0 0.0
      %664 = vmatpush2.msra.mxu0 0.0
      %665 = vmatprep.subr.mxu0 0.0
      %666 = vmatpush2.msra.mxu0 0.0
      %667 = vmatprep.subr.mxu0 0.0
      %668 = vmatpush2.msra.mxu0 0.0
      %669 = vmatprep.subr.mxu0 0.0
      %670 = vmatpush2.msra.mxu0 0.0
      %671 = vmatprep.subr.mxu0 0.0
      %672 = vmatpush2.msra.mxu0 0.0
      %673 = vmatprep.subr.mxu0 0.0
      %674 = vmatpush2.msra.mxu0 0.0
      %675 = vmatprep.subr.mxu0 0.0
      %676 = vmatpush2.msra.mxu0 0.0
      %677 = vmatprep.subr.mxu0 0.0
      %678 = vmatpush2.msra.mxu0 0.0
      %679 = vmatprep.subr.mxu0 0.0
      %680 = vmatpush2.msra.mxu0 0.0
      %681 = vmatprep.subr.mxu0 0.0
      %682 = vmatpush2.msra.mxu0 0.0
      %683 = vmatprep.subr.mxu0 0.0
      %684 = vmatpush2.msra.mxu0 0.0
      %685 = vmatprep.subr.mxu0 0.0
      %686 = vmatpush2.msra.mxu0 0.0
      %687 = vmatprep.subr.mxu0 0.0
      %688 = vmatpush2.msra.mxu0 0.0
      %689 = vmatprep.subr.mxu0 0.0
      %690 = vmatpush2.msra.mxu0 0.0
      %691 = vmatprep.subr.mxu0 0.0
      %692 = vmatpush2.msra.mxu0 0.0
      %693 = vmatprep.mubr.f32.mxu0 0.0
      %694 = vmatmul.mubr.f32.gmra.mxu0 %v239
      %v695 = vpop.f32.mrf.mxu0
      %v696 = vadd.f32 0.0, %v695
      %v697 = vpop.f32.mrf.mxu0
      %v698 = vadd.f32 0.0, %v697
      %699 = vmatprep.mubr.f32.mxu0 0.0
      %700 = vmatmul.mubr.f32.gmra.mxu0 %v242
      %v701 = vpop.f32.mrf.mxu0
      %v702 = vadd.f32 0.0, %v701
      %v703 = vpop.f32.mrf.mxu0
      %v704 = vadd.f32 0.0, %v703
      %705 = vdwg.mxu0
      %706 = vmatprep.subr.mxu0 0.0
      %707 = vmatpush1.msra.mxu0 0.0
      %708 = vmatprep.subr.mxu0 0.0
      %709 = vmatpush1.msra.mxu0 0.0
      %710 = vmatprep.subr.mxu0 0.0
      %711 = vmatpush1.msra.mxu0 0.0
      %712 = vmatprep.subr.mxu0 0.0
      %713 = vmatpush1.msra.mxu0 0.0
      %714 = vmatprep.subr.mxu0 0.0
      %715 = vmatpush1.msra.mxu0 0.0
      %716 = vmatprep.subr.mxu0 0.0
      %717 = vmatpush1.msra.mxu0 0.0
      %718 = vmatprep.subr.mxu0 0.0
      %719 = vmatpush1.msra.mxu0 0.0
      %720 = vmatprep.subr.mxu0 0.0
      %721 = vmatpush1.msra.mxu0 0.0
      %722 = vmatprep.subr.mxu0 0.0
      %723 = vmatpush1.msra.mxu0 0.0
      %724 = vmatprep.subr.mxu0 0.0
      %725 = vmatpush1.msra.mxu0 0.0
      %726 = vmatprep.subr.mxu0 0.0
      %727 = vmatpush1.msra.mxu0 0.0
      %728 = vmatprep.subr.mxu0 0.0
      %729 = vmatpush1.msra.mxu0 0.0
      %730 = vmatprep.subr.mxu0 0.0
      %731 = vmatpush1.msra.mxu0 0.0
      %732 = vmatprep.subr.mxu0 0.0
      %733 = vmatpush1.msra.mxu0 0.0
      %734 = vmatprep.subr.mxu0 %v218
      %735 = vmatpush1.msra.mxu0 %v217
      %736 = vmatprep.subr.mxu0 %v186
      %737 = vmatpush1.msra.mxu0 %v185
      %738 = vmatprep.subr.mxu0 0.0
      %739 = vmatpush2.msra.mxu0 0.0
      %740 = vmatprep.subr.mxu0 0.0
      %741 = vmatpush2.msra.mxu0 0.0
      %742 = vmatprep.subr.mxu0 0.0
      %743 = vmatpush2.msra.mxu0 0.0
      %744 = vmatprep.subr.mxu0 0.0
      %745 = vmatpush2.msra.mxu0 0.0
      %746 = vmatprep.subr.mxu0 0.0
      %747 = vmatpush2.msra.mxu0 0.0
      %748 = vmatprep.subr.mxu0 0.0
      %749 = vmatpush2.msra.mxu0 0.0
      %750 = vmatprep.subr.mxu0 0.0
      %751 = vmatpush2.msra.mxu0 0.0
      %752 = vmatprep.subr.mxu0 0.0
      %753 = vmatpush2.msra.mxu0 0.0
      %754 = vmatprep.subr.mxu0 0.0
      %755 = vmatpush2.msra.mxu0 0.0
      %756 = vmatprep.subr.mxu0 0.0
      %757 = vmatpush2.msra.mxu0 0.0
      %758 = vmatprep.subr.mxu0 0.0
      %759 = vmatpush2.msra.mxu0 0.0
      %760 = vmatprep.subr.mxu0 0.0
      %761 = vmatpush2.msra.mxu0 0.0
      %762 = vmatprep.subr.mxu0 0.0
      %763 = vmatpush2.msra.mxu0 0.0
      %764 = vmatprep.subr.mxu0 0.0
      %765 = vmatpush2.msra.mxu0 0.0
      %766 = vmatprep.subr.mxu0 0.0
      %767 = vmatpush2.msra.mxu0 0.0
      %768 = vmatprep.subr.mxu0 0.0
      %769 = vmatpush2.msra.mxu0 0.0
      %770 = vmatprep.mubr.f32.mxu0 0.0
      %771 = vmatmul.mubr.f32.gmra.mxu0 %v239
      %v772 = vpop.f32.mrf.mxu0
      %v773 = vadd.f32 0.0, %v772
      %v774 = vpop.f32.mrf.mxu0
      %v775 = vadd.f32 0.0, %v774
      %776 = vmatprep.mubr.f32.mxu0 0.0
      %777 = vmatmul.mubr.f32.gmra.mxu0 %v242
      %v778 = vpop.f32.mrf.mxu0
      %v779 = vadd.f32 0.0, %v778
      %v780 = vpop.f32.mrf.mxu0
      %v781 = vadd.f32 0.0, %v780
      %782 = vdwg.mxu0
      %783 = vmatprep.subr.mxu0 0.0
      %784 = vmatpush1.msra.mxu0 0.0
      %785 = vmatprep.subr.mxu0 0.0
      %786 = vmatpush1.msra.mxu0 0.0
      %787 = vmatprep.subr.mxu0 0.0
      %788 = vmatpush1.msra.mxu0 0.0
      %789 = vmatprep.subr.mxu0 0.0
      %790 = vmatpush1.msra.mxu0 0.0
      %791 = vmatprep.subr.mxu0 0.0
      %792 = vmatpush1.msra.mxu0 0.0
      %793 = vmatprep.subr.mxu0 0.0
      %794 = vmatpush1.msra.mxu0 0.0
      %795 = vmatprep.subr.mxu0 0.0
      %796 = vmatpush1.msra.mxu0 0.0
      %797 = vmatprep.subr.mxu0 0.0
      %798 = vmatpush1.msra.mxu0 0.0
      %799 = vmatprep.subr.mxu0 0.0
      %800 = vmatpush1.msra.mxu0 0.0
      %801 = vmatprep.subr.mxu0 0.0
      %802 = vmatpush1.msra.mxu0 0.0
      %803 = vmatprep.subr.mxu0 0.0
      %804 = vmatpush1.msra.mxu0 0.0
      %805 = vmatprep.subr.mxu0 0.0
      %806 = vmatpush1.msra.mxu0 0.0
      %807 = vmatprep.subr.mxu0 0.0
      %808 = vmatpush1.msra.mxu0 0.0
      %809 = vmatprep.subr.mxu0 0.0
      %810 = vmatpush1.msra.mxu0 0.0
      %811 = vmatprep.subr.mxu0 %v220
      %812 = vmatpush1.msra.mxu0 %v219
      %813 = vmatprep.subr.mxu0 %v188
      %814 = vmatpush1.msra.mxu0 %v187
      %815 = vmatprep.subr.mxu0 0.0
      %816 = vmatpush2.msra.mxu0 0.0
      %817 = vmatprep.subr.mxu0 0.0
      %818 = vmatpush2.msra.mxu0 0.0
      %819 = vmatprep.subr.mxu0 0.0
      %820 = vmatpush2.msra.mxu0 0.0
      %821 = vmatprep.subr.mxu0 0.0
      %822 = vmatpush2.msra.mxu0 0.0
      %823 = vmatprep.subr.mxu0 0.0
      %824 = vmatpush2.msra.mxu0 0.0
      %825 = vmatprep.subr.mxu0 0.0
      %826 = vmatpush2.msra.mxu0 0.0
      %827 = vmatprep.subr.mxu0 0.0
      %828 = vmatpush2.msra.mxu0 0.0
      %829 = vmatprep.subr.mxu0 0.0
      %830 = vmatpush2.msra.mxu0 0.0
      %831 = vmatprep.subr.mxu0 0.0
      %832 = vmatpush2.msra.mxu0 0.0
      %833 = vmatprep.subr.mxu0 0.0
      %834 = vmatpush2.msra.mxu0 0.0
      %835 = vmatprep.subr.mxu0 0.0
      %836 = vmatpush2.msra.mxu0 0.0
      %837 = vmatprep.subr.mxu0 0.0
      %838 = vmatpush2.msra.mxu0 0.0
      %839 = vmatprep.subr.mxu0 0.0
      %840 = vmatpush2.msra.mxu0 0.0
      %841 = vmatprep.subr.mxu0 0.0
      %842 = vmatpush2.msra.mxu0 0.0
      %843 = vmatprep.subr.mxu0 0.0
      %844 = vmatpush2.msra.mxu0 0.0
      %845 = vmatprep.subr.mxu0 0.0
      %846 = vmatpush2.msra.mxu0 0.0
      %847 = vmatprep.mubr.f32.mxu0 0.0
      %848 = vmatmul.mubr.f32.gmra.mxu0 %v239
      %v849 = vpop.f32.mrf.mxu0
      %v850 = vadd.f32 0.0, %v849
      %v851 = vpop.f32.mrf.mxu0
      %v852 = vadd.f32 0.0, %v851
      %853 = vmatprep.mubr.f32.mxu0 0.0
      %854 = vmatmul.mubr.f32.gmra.mxu0 %v242
      %v855 = vpop.f32.mrf.mxu0
      %v856 = vadd.f32 0.0, %v855
      %v857 = vpop.f32.mrf.mxu0
      %v858 = vadd.f32 0.0, %v857
      %859 = vdwg.mxu0
      %860 = vmatprep.subr.mxu0 0.0
      %861 = vmatpush1.msra.mxu0 0.0
      %862 = vmatprep.subr.mxu0 0.0
      %863 = vmatpush1.msra.mxu0 0.0
      %864 = vmatprep.subr.mxu0 0.0
      %865 = vmatpush1.msra.mxu0 0.0
      %866 = vmatprep.subr.mxu0 0.0
      %867 = vmatpush1.msra.mxu0 0.0
      %868 = vmatprep.subr.mxu0 0.0
      %869 = vmatpush1.msra.mxu0 0.0
      %870 = vmatprep.subr.mxu0 0.0
      %871 = vmatpush1.msra.mxu0 0.0
      %872 = vmatprep.subr.mxu0 0.0
      %873 = vmatpush1.msra.mxu0 0.0
      %874 = vmatprep.subr.mxu0 0.0
      %875 = vmatpush1.msra.mxu0 0.0
      %876 = vmatprep.subr.mxu0 0.0
      %877 = vmatpush1.msra.mxu0 0.0
      %878 = vmatprep.subr.mxu0 0.0
      %879 = vmatpush1.msra.mxu0 0.0
      %880 = vmatprep.subr.mxu0 0.0
      %881 = vmatpush1.msra.mxu0 0.0
      %882 = vmatprep.subr.mxu0 0.0
      %883 = vmatpush1.msra.mxu0 0.0
      %884 = vmatprep.subr.mxu0 0.0
      %885 = vmatpush1.msra.mxu0 0.0
      %886 = vmatprep.subr.mxu0 0.0
      %887 = vmatpush1.msra.mxu0 0.0
      %888 = vmatprep.subr.mxu0 %v222
      %889 = vmatpush1.msra.mxu0 %v221
      %890 = vmatprep.subr.mxu0 %v190
      %891 = vmatpush1.msra.mxu0 %v189
      %892 = vmatprep.subr.mxu0 0.0
      %893 = vmatpush2.msra.mxu0 0.0
      %894 = vmatprep.subr.mxu0 0.0
      %895 = vmatpush2.msra.mxu0 0.0
      %896 = vmatprep.subr.mxu0 0.0
      %897 = vmatpush2.msra.mxu0 0.0
      %898 = vmatprep.subr.mxu0 0.0
      %899 = vmatpush2.msra.mxu0 0.0
      %900 = vmatprep.subr.mxu0 0.0
      %901 = vmatpush2.msra.mxu0 0.0
      %902 = vmatprep.subr.mxu0 0.0
      %903 = vmatpush2.msra.mxu0 0.0
      %904 = vmatprep.subr.mxu0 0.0
      %905 = vmatpush2.msra.mxu0 0.0
      %906 = vmatprep.subr.mxu0 0.0
      %907 = vmatpush2.msra.mxu0 0.0
      %908 = vmatprep.subr.mxu0 0.0
      %909 = vmatpush2.msra.mxu0 0.0
      %910 = vmatprep.subr.mxu0 0.0
      %911 = vmatpush2.msra.mxu0 0.0
      %912 = vmatprep.subr.mxu0 0.0
      %913 = vmatpush2.msra.mxu0 0.0
      %914 = vmatprep.subr.mxu0 0.0
      %915 = vmatpush2.msra.mxu0 0.0
      %916 = vmatprep.subr.mxu0 0.0
      %917 = vmatpush2.msra.mxu0 0.0
      %918 = vmatprep.subr.mxu0 0.0
      %919 = vmatpush2.msra.mxu0 0.0
      %920 = vmatprep.subr.mxu0 0.0
      %921 = vmatpush2.msra.mxu0 0.0
      %922 = vmatprep.subr.mxu0 0.0
      %923 = vmatpush2.msra.mxu0 0.0
      %924 = vmatprep.mubr.f32.mxu0 0.0
      %925 = vmatmul.mubr.f32.gmra.mxu0 %v239
      %v926 = vpop.f32.mrf.mxu0
      %v927 = vadd.f32 0.0, %v926
      %v928 = vpop.f32.mrf.mxu0
      %v929 = vadd.f32 0.0, %v928
      %930 = vmatprep.mubr.f32.mxu0 0.0
      %931 = vmatmul.mubr.f32.gmra.mxu0 %v242
      %v932 = vpop.f32.mrf.mxu0
      %v933 = vadd.f32 0.0, %v932
      %v934 = vpop.f32.mrf.mxu0
      %v935 = vadd.f32 0.0, %v934
      %936 = vdwg.mxu0
      %937 = vmatprep.subr.mxu0 0.0
      %938 = vmatpush1.msra.mxu0 0.0
      %939 = vmatprep.subr.mxu0 0.0
      %940 = vmatpush1.msra.mxu0 0.0
      %941 = vmatprep.subr.mxu0 0.0
      %942 = vmatpush1.msra.mxu0 0.0
      %943 = vmatprep.subr.mxu0 0.0
      %944 = vmatpush1.msra.mxu0 0.0
      %945 = vmatprep.subr.mxu0 0.0
      %946 = vmatpush1.msra.mxu0 0.0
      %947 = vmatprep.subr.mxu0 0.0
      %948 = vmatpush1.msra.mxu0 0.0
      %949 = vmatprep.subr.mxu0 0.0
      %950 = vmatpush1.msra.mxu0 0.0
      %951 = vmatprep.subr.mxu0 0.0
      %952 = vmatpush1.msra.mxu0 0.0
      %953 = vmatprep.subr.mxu0 0.0
      %954 = vmatpush1.msra.mxu0 0.0
      %955 = vmatprep.subr.mxu0 0.0
      %956 = vmatpush1.msra.mxu0 0.0
      %957 = vmatprep.subr.mxu0 0.0
      %958 = vmatpush1.msra.mxu0 0.0
      %959 = vmatprep.subr.mxu0 0.0
      %960 = vmatpush1.msra.mxu0 0.0
      %961 = vmatprep.subr.mxu0 0.0
      %962 = vmatpush1.msra.mxu0 0.0
      %963 = vmatprep.subr.mxu0 0.0
      %964 = vmatpush1.msra.mxu0 0.0
      %965 = vmatprep.subr.mxu0 %v224
      %966 = vmatpush1.msra.mxu0 %v223
      %967 = vmatprep.subr.mxu0 %v192
      %968 = vmatpush1.msra.mxu0 %v191
      %969 = vmatprep.subr.mxu0 0.0
      %970 = vmatpush2.msra.mxu0 0.0
      %971 = vmatprep.subr.mxu0 0.0
      %972 = vmatpush2.msra.mxu0 0.0
      %973 = vmatprep.subr.mxu0 0.0
      %974 = vmatpush2.msra.mxu0 0.0
      %975 = vmatprep.subr.mxu0 0.0
      %976 = vmatpush2.msra.mxu0 0.0
      %977 = vmatprep.subr.mxu0 0.0
      %978 = vmatpush2.msra.mxu0 0.0
      %979 = vmatprep.subr.mxu0 0.0
      %980 = vmatpush2.msra.mxu0 0.0
      %981 = vmatprep.subr.mxu0 0.0
      %982 = vmatpush2.msra.mxu0 0.0
      %983 = vmatprep.subr.mxu0 0.0
      %984 = vmatpush2.msra.mxu0 0.0
      %985 = vmatprep.subr.mxu0 0.0
      %986 = vmatpush2.msra.mxu0 0.0
      %987 = vmatprep.subr.mxu0 0.0
      %988 = vmatpush2.msra.mxu0 0.0
      %989 = vmatprep.subr.mxu0 0.0
      %990 = vmatpush2.msra.mxu0 0.0
      %991 = vmatprep.subr.mxu0 0.0
      %992 = vmatpush2.msra.mxu0 0.0
      %993 = vmatprep.subr.mxu0 0.0
      %994 = vmatpush2.msra.mxu0 0.0
      %995 = vmatprep.subr.mxu0 0.0
      %996 = vmatpush2.msra.mxu0 0.0
      %997 = vmatprep.subr.mxu0 0.0
      %998 = vmatpush2.msra.mxu0 0.0
      %999 = vmatprep.subr.mxu0 0.0
      %1000 = vmatpush2.msra.mxu0 0.0
      %1001 = vmatprep.mubr.f32.mxu0 0.0
      %1002 = vmatmul.mubr.f32.gmra.mxu0 %v239
      %v1003 = vpop.f32.mrf.mxu0
      %v1004 = vadd.f32 0.0, %v1003
      %v1005 = vpop.f32.mrf.mxu0
      %v1006 = vadd.f32 0.0, %v1005
      %1007 = vmatprep.mubr.f32.mxu0 0.0
      %1008 = vmatmul.mubr.f32.gmra.mxu0 %v242
      %v1009 = vpop.f32.mrf.mxu0
      %v1010 = vadd.f32 0.0, %v1009
      %v1011 = vpop.f32.mrf.mxu0
      %v1012 = vadd.f32 0.0, %v1011
      %1013 = vdwg.mxu0
      %1014 = vmatprep.subr.mxu0 0.0
      %1015 = vmatpush1.msra.mxu0 0.0
      %1016 = vmatprep.subr.mxu0 0.0
      %1017 = vmatpush1.msra.mxu0 0.0
      %1018 = vmatprep.subr.mxu0 0.0
      %1019 = vmatpush1.msra.mxu0 0.0
      %1020 = vmatprep.subr.mxu0 0.0
      %1021 = vmatpush1.msra.mxu0 0.0
      %1022 = vmatprep.subr.mxu0 0.0
      %1023 = vmatpush1.msra.mxu0 0.0
      %1024 = vmatprep.subr.mxu0 0.0
      %1025 = vmatpush1.msra.mxu0 0.0
      %1026 = vmatprep.subr.mxu0 0.0
      %1027 = vmatpush1.msra.mxu0 0.0
      %1028 = vmatprep.subr.mxu0 0.0
      %1029 = vmatpush1.msra.mxu0 0.0
      %1030 = vmatprep.subr.mxu0 0.0
      %1031 = vmatpush1.msra.mxu0 0.0
      %1032 = vmatprep.subr.mxu0 0.0
      %1033 = vmatpush1.msra.mxu0 0.0
      %1034 = vmatprep.subr.mxu0 0.0
      %1035 = vmatpush1.msra.mxu0 0.0
      %1036 = vmatprep.subr.mxu0 0.0
      %1037 = vmatpush1.msra.mxu0 0.0
      %1038 = vmatprep.subr.mxu0 0.0
      %1039 = vmatpush1.msra.mxu0 0.0
      %1040 = vmatprep.subr.mxu0 0.0
      %1041 = vmatpush1.msra.mxu0 0.0
      %1042 = vmatprep.subr.mxu0 %v226
      %1043 = vmatpush1.msra.mxu0 %v225
      %1044 = vmatprep.subr.mxu0 %v194
      %1045 = vmatpush1.msra.mxu0 %v193
      %1046 = vmatprep.subr.mxu0 0.0
      %1047 = vmatpush2.msra.mxu0 0.0
      %1048 = vmatprep.subr.mxu0 0.0
      %1049 = vmatpush2.msra.mxu0 0.0
      %1050 = vmatprep.subr.mxu0 0.0
      %1051 = vmatpush2.msra.mxu0 0.0
      %1052 = vmatprep.subr.mxu0 0.0
      %1053 = vmatpush2.msra.mxu0 0.0
      %1054 = vmatprep.subr.mxu0 0.0
      %1055 = vmatpush2.msra.mxu0 0.0
      %1056 = vmatprep.subr.mxu0 0.0
      %1057 = vmatpush2.msra.mxu0 0.0
      %1058 = vmatprep.subr.mxu0 0.0
      %1059 = vmatpush2.msra.mxu0 0.0
      %1060 = vmatprep.subr.mxu0 0.0
      %1061 = vmatpush2.msra.mxu0 0.0
      %1062 = vmatprep.subr.mxu0 0.0
      %1063 = vmatpush2.msra.mxu0 0.0
      %1064 = vmatprep.subr.mxu0 0.0
      %1065 = vmatpush2.msra.mxu0 0.0
      %1066 = vmatprep.subr.mxu0 0.0
      %1067 = vmatpush2.msra.mxu0 0.0
      %1068 = vmatprep.subr.mxu0 0.0
      %1069 = vmatpush2.msra.mxu0 0.0
      %1070 = vmatprep.subr.mxu0 0.0
      %1071 = vmatpush2.msra.mxu0 0.0
      %1072 = vmatprep.subr.mxu0 0.0
      %1073 = vmatpush2.msra.mxu0 0.0
      %1074 = vmatprep.subr.mxu0 0.0
      %1075 = vmatpush2.msra.mxu0 0.0
      %1076 = vmatprep.subr.mxu0 0.0
      %1077 = vmatpush2.msra.mxu0 0.0
      %1078 = vmatprep.mubr.f32.mxu0 0.0
      %1079 = vmatmul.mubr.f32.gmra.mxu0 %v239
      %v1080 = vpop.f32.mrf.mxu0
      %v1081 = vadd.f32 0.0, %v1080
      %v1082 = vpop.f32.mrf.mxu0
      %v1083 = vadd.f32 0.0, %v1082
      %1084 = vmatprep.mubr.f32.mxu0 0.0
      %1085 = vmatmul.mubr.f32.gmra.mxu0 %v242
      %v1086 = vpop.f32.mrf.mxu0
      %v1087 = vadd.f32 0.0, %v1086
      %v1088 = vpop.f32.mrf.mxu0
      %v1089 = vadd.f32 0.0, %v1088
      %1090 = vdwg.mxu0
      %1091 = vmatprep.subr.mxu0 0.0
      %1092 = vmatpush1.msra.mxu0 0.0
      %1093 = vmatprep.subr.mxu0 0.0
      %1094 = vmatpush1.msra.mxu0 0.0
      %1095 = vmatprep.subr.mxu0 0.0
      %1096 = vmatpush1.msra.mxu0 0.0
      %1097 = vmatprep.subr.mxu0 0.0
      %1098 = vmatpush1.msra.mxu0 0.0
      %1099 = vmatprep.subr.mxu0 0.0
      %1100 = vmatpush1.msra.mxu0 0.0
      %1101 = vmatprep.subr.mxu0 0.0
      %1102 = vmatpush1.msra.mxu0 0.0
      %1103 = vmatprep.subr.mxu0 0.0
      %1104 = vmatpush1.msra.mxu0 0.0
      %1105 = vmatprep.subr.mxu0 0.0
      %1106 = vmatpush1.msra.mxu0 0.0
      %1107 = vmatprep.subr.mxu0 0.0
      %1108 = vmatpush1.msra.mxu0 0.0
      %1109 = vmatprep.subr.mxu0 0.0
      %1110 = vmatpush1.msra.mxu0 0.0
      %1111 = vmatprep.subr.mxu0 0.0
      %1112 = vmatpush1.msra.mxu0 0.0
      %1113 = vmatprep.subr.mxu0 0.0
      %1114 = vmatpush1.msra.mxu0 0.0
      %1115 = vmatprep.subr.mxu0 0.0
      %1116 = vmatpush1.msra.mxu0 0.0
      %1117 = vmatprep.subr.mxu0 0.0
      %1118 = vmatpush1.msra.mxu0 0.0
      %1119 = vmatprep.subr.mxu0 %v228
      %1120 = vmatpush1.msra.mxu0 %v227
      %1121 = vmatprep.subr.mxu0 %v196
      %1122 = vmatpush1.msra.mxu0 %v195
      %1123 = vmatprep.subr.mxu0 0.0
      %1124 = vmatpush2.msra.mxu0 0.0
      %1125 = vmatprep.subr.mxu0 0.0
      %1126 = vmatpush2.msra.mxu0 0.0
      %1127 = vmatprep.subr.mxu0 0.0
      %1128 = vmatpush2.msra.mxu0 0.0
      %1129 = vmatprep.subr.mxu0 0.0
      %1130 = vmatpush2.msra.mxu0 0.0
      %1131 = vmatprep.subr.mxu0 0.0
      %1132 = vmatpush2.msra.mxu0 0.0
      %1133 = vmatprep.subr.mxu0 0.0
      %1134 = vmatpush2.msra.mxu0 0.0
      %1135 = vmatprep.subr.mxu0 0.0
      %1136 = vmatpush2.msra.mxu0 0.0
      %1137 = vmatprep.subr.mxu0 0.0
      %1138 = vmatpush2.msra.mxu0 0.0
      %1139 = vmatprep.subr.mxu0 0.0
      %1140 = vmatpush2.msra.mxu0 0.0
      %1141 = vmatprep.subr.mxu0 0.0
      %1142 = vmatpush2.msra.mxu0 0.0
      %1143 = vmatprep.subr.mxu0 0.0
      %1144 = vmatpush2.msra.mxu0 0.0
      %1145 = vmatprep.subr.mxu0 0.0
      %1146 = vmatpush2.msra.mxu0 0.0
      %1147 = vmatprep.subr.mxu0 0.0
      %1148 = vmatpush2.msra.mxu0 0.0
      %1149 = vmatprep.subr.mxu0 0.0
      %1150 = vmatpush2.msra.mxu0 0.0
      %1151 = vmatprep.subr.mxu0 0.0
      %1152 = vmatpush2.msra.mxu0 0.0
      %1153 = vmatprep.subr.mxu0 0.0
      %1154 = vmatpush2.msra.mxu0 0.0
      %1155 = vmatprep.mubr.f32.mxu0 0.0
      %1156 = vmatmul.mubr.f32.gmra.mxu0 %v239
      %v1157 = vpop.f32.mrf.mxu0
      %v1158 = vadd.f32 0.0, %v1157
      %v1159 = vpop.f32.mrf.mxu0
      %v1160 = vadd.f32 0.0, %v1159
      %1161 = vmatprep.mubr.f32.mxu0 0.0
      %1162 = vmatmul.mubr.f32.gmra.mxu0 %v242
      %v1163 = vpop.f32.mrf.mxu0
      %v1164 = vadd.f32 0.0, %v1163
      %v1165 = vpop.f32.mrf.mxu0
      %v1166 = vadd.f32 0.0, %v1165
      %1167 = vdwg.mxu0
      %1168 = vmatprep.subr.mxu0 0.0
      %1169 = vmatpush1.msra.mxu0 0.0
      %1170 = vmatprep.subr.mxu0 0.0
      %1171 = vmatpush1.msra.mxu0 0.0
      %1172 = vmatprep.subr.mxu0 0.0
      %1173 = vmatpush1.msra.mxu0 0.0
      %1174 = vmatprep.subr.mxu0 0.0
      %1175 = vmatpush1.msra.mxu0 0.0
      %1176 = vmatprep.subr.mxu0 0.0
      %1177 = vmatpush1.msra.mxu0 0.0
      %1178 = vmatprep.subr.mxu0 0.0
      %1179 = vmatpush1.msra.mxu0 0.0
      %1180 = vmatprep.subr.mxu0 0.0
      %1181 = vmatpush1.msra.mxu0 0.0
      %1182 = vmatprep.subr.mxu0 0.0
      %1183 = vmatpush1.msra.mxu0 0.0
      %1184 = vmatprep.subr.mxu0 0.0
      %1185 = vmatpush1.msra.mxu0 0.0
      %1186 = vmatprep.subr.mxu0 0.0
      %1187 = vmatpush1.msra.mxu0 0.0
      %1188 = vmatprep.subr.mxu0 0.0
      %1189 = vmatpush1.msra.mxu0 0.0
      %1190 = vmatprep.subr.mxu0 0.0
      %1191 = vmatpush1.msra.mxu0 0.0
      %1192 = vmatprep.subr.mxu0 0.0
      %1193 = vmatpush1.msra.mxu0 0.0
      %1194 = vmatprep.subr.mxu0 0.0
      %1195 = vmatpush1.msra.mxu0 0.0
      %1196 = vmatprep.subr.mxu0 %v230
      %1197 = vmatpush1.msra.mxu0 %v229
      %1198 = vmatprep.subr.mxu0 %v198
      %1199 = vmatpush1.msra.mxu0 %v197
      %1200 = vmatprep.subr.mxu0 0.0
      %1201 = vmatpush2.msra.mxu0 0.0
      %1202 = vmatprep.subr.mxu0 0.0
      %1203 = vmatpush2.msra.mxu0 0.0
      %1204 = vmatprep.subr.mxu0 0.0
      %1205 = vmatpush2.msra.mxu0 0.0
      %1206 = vmatprep.subr.mxu0 0.0
      %1207 = vmatpush2.msra.mxu0 0.0
      %1208 = vmatprep.subr.mxu0 0.0
      %1209 = vmatpush2.msra.mxu0 0.0
      %1210 = vmatprep.subr.mxu0 0.0
      %1211 = vmatpush2.msra.mxu0 0.0
      %1212 = vmatprep.subr.mxu0 0.0
      %1213 = vmatpush2.msra.mxu0 0.0
      %1214 = vmatprep.subr.mxu0 0.0
      %1215 = vmatpush2.msra.mxu0 0.0
      %1216 = vmatprep.subr.mxu0 0.0
      %1217 = vmatpush2.msra.mxu0 0.0
      %1218 = vmatprep.subr.mxu0 0.0
      %1219 = vmatpush2.msra.mxu0 0.0
      %1220 = vmatprep.subr.mxu0 0.0
      %1221 = vmatpush2.msra.mxu0 0.0
      %1222 = vmatprep.subr.mxu0 0.0
      %1223 = vmatpush2.msra.mxu0 0.0
      %1224 = vmatprep.subr.mxu0 0.0
      %1225 = vmatpush2.msra.mxu0 0.0
      %1226 = vmatprep.subr.mxu0 0.0
      %1227 = vmatpush2.msra.mxu0 0.0
      %1228 = vmatprep.subr.mxu0 0.0
      %1229 = vmatpush2.msra.mxu0 0.0
      %1230 = vmatprep.subr.mxu0 0.0
      %1231 = vmatpush2.msra.mxu0 0.0
      %1232 = vmatprep.mubr.f32.mxu0 0.0
      %1233 = vmatmul.mubr.f32.gmra.mxu0 %v239
      %v1234 = vpop.f32.mrf.mxu0
      %v1235 = vadd.f32 0.0, %v1234
      %v1236 = vpop.f32.mrf.mxu0
      %v1237 = vadd.f32 0.0, %v1236
      %1238 = vmatprep.mubr.f32.mxu0 0.0
      %1239 = vmatmul.mubr.f32.gmra.mxu0 %v242
      %v1240 = vpop.f32.mrf.mxu0
      %v1241 = vadd.f32 0.0, %v1240
      %v1242 = vpop.f32.mrf.mxu0
      %v1243 = vadd.f32 0.0, %v1242
      %1244 = vdwg.mxu0
      %1245 = vmatprep.subr.mxu0 0.0
      %1246 = vmatpush1.msra.mxu0 0.0
      %1247 = vmatprep.subr.mxu0 0.0
      %1248 = vmatpush1.msra.mxu0 0.0
      %1249 = vmatprep.subr.mxu0 0.0
      %1250 = vmatpush1.msra.mxu0 0.0
      %1251 = vmatprep.subr.mxu0 0.0
      %1252 = vmatpush1.msra.mxu0 0.0
      %1253 = vmatprep.subr.mxu0 0.0
      %1254 = vmatpush1.msra.mxu0 0.0
      %1255 = vmatprep.subr.mxu0 0.0
      %1256 = vmatpush1.msra.mxu0 0.0
      %1257 = vmatprep.subr.mxu0 0.0
      %1258 = vmatpush1.msra.mxu0 0.0
      %1259 = vmatprep.subr.mxu0 0.0
      %1260 = vmatpush1.msra.mxu0 0.0
      %1261 = vmatprep.subr.mxu0 0.0
      %1262 = vmatpush1.msra.mxu0 0.0
      %1263 = vmatprep.subr.mxu0 0.0
      %1264 = vmatpush1.msra.mxu0 0.0
      %1265 = vmatprep.subr.mxu0 0.0
      %1266 = vmatpush1.msra.mxu0 0.0
      %1267 = vmatprep.subr.mxu0 0.0
      %1268 = vmatpush1.msra.mxu0 0.0
      %1269 = vmatprep.subr.mxu0 0.0
      %1270 = vmatpush1.msra.mxu0 0.0
      %1271 = vmatprep.subr.mxu0 0.0
      %1272 = vmatpush1.msra.mxu0 0.0
      %1273 = vmatprep.subr.mxu0 %v232
      %1274 = vmatpush1.msra.mxu0 %v231
      %1275 = vmatprep.subr.mxu0 %v200
      %1276 = vmatpush1.msra.mxu0 %v199
      %1277 = vmatprep.subr.mxu0 0.0
      %1278 = vmatpush2.msra.mxu0 0.0
      %1279 = vmatprep.subr.mxu0 0.0
      %1280 = vmatpush2.msra.mxu0 0.0
      %1281 = vmatprep.subr.mxu0 0.0
      %1282 = vmatpush2.msra.mxu0 0.0
      %1283 = vmatprep.subr.mxu0 0.0
      %1284 = vmatpush2.msra.mxu0 0.0
      %1285 = vmatprep.subr.mxu0 0.0
      %1286 = vmatpush2.msra.mxu0 0.0
      %1287 = vmatprep.subr.mxu0 0.0
      %1288 = vmatpush2.msra.mxu0 0.0
      %1289 = vmatprep.subr.mxu0 0.0
      %1290 = vmatpush2.msra.mxu0 0.0
      %1291 = vmatprep.subr.mxu0 0.0
      %1292 = vmatpush2.msra.mxu0 0.0
      %1293 = vmatprep.subr.mxu0 0.0
      %1294 = vmatpush2.msra.mxu0 0.0
      %1295 = vmatprep.subr.mxu0 0.0
      %1296 = vmatpush2.msra.mxu0 0.0
      %1297 = vmatprep.subr.mxu0 0.0
      %1298 = vmatpush2.msra.mxu0 0.0
      %1299 = vmatprep.subr.mxu0 0.0
      %1300 = vmatpush2.msra.mxu0 0.0
      %1301 = vmatprep.subr.mxu0 0.0
      %1302 = vmatpush2.msra.mxu0 0.0
      %1303 = vmatprep.subr.mxu0 0.0
      %1304 = vmatpush2.msra.mxu0 0.0
      %1305 = vmatprep.subr.mxu0 0.0
      %1306 = vmatpush2.msra.mxu0 0.0
      %1307 = vmatprep.subr.mxu0 0.0
      %1308 = vmatpush2.msra.mxu0 0.0
      %1309 = vmatprep.mubr.f32.mxu0 0.0
      %1310 = vmatmul.mubr.f32.gmra.mxu0 %v239
      %v1311 = vpop.f32.mrf.mxu0
      %v1312 = vadd.f32 0.0, %v1311
      %v1313 = vpop.f32.mrf.mxu0
      %v1314 = vadd.f32 0.0, %v1313
      %1315 = vmatprep.mubr.f32.mxu0 0.0
      %1316 = vmatmul.mubr.f32.gmra.mxu0 %v242
      %v1317 = vpop.f32.mrf.mxu0
      %v1318 = vadd.f32 0.0, %v1317
      %v1319 = vpop.f32.mrf.mxu0
      %v1320 = vadd.f32 0.0, %v1319
      %1321 = vdwg.mxu0
      %1322 = vmatprep.subr.mxu0 0.0
      %1323 = vmatpush1.msra.mxu0 0.0
      %1324 = vmatprep.subr.mxu0 0.0
      %1325 = vmatpush1.msra.mxu0 0.0
      %1326 = vmatprep.subr.mxu0 0.0
      %1327 = vmatpush1.msra.mxu0 0.0
      %1328 = vmatprep.subr.mxu0 0.0
      %1329 = vmatpush1.msra.mxu0 0.0
      %1330 = vmatprep.subr.mxu0 0.0
      %1331 = vmatpush1.msra.mxu0 0.0
      %1332 = vmatprep.subr.mxu0 0.0
      %1333 = vmatpush1.msra.mxu0 0.0
      %1334 = vmatprep.subr.mxu0 0.0
      %1335 = vmatpush1.msra.mxu0 0.0
      %1336 = vmatprep.subr.mxu0 0.0
      %1337 = vmatpush1.msra.mxu0 0.0
      %1338 = vmatprep.subr.mxu0 0.0
      %1339 = vmatpush1.msra.mxu0 0.0
      %1340 = vmatprep.subr.mxu0 0.0
      %1341 = vmatpush1.msra.mxu0 0.0
      %1342 = vmatprep.subr.mxu0 0.0
      %1343 = vmatpush1.msra.mxu0 0.0
      %1344 = vmatprep.subr.mxu0 0.0
      %1345 = vmatpush1.msra.mxu0 0.0
      %1346 = vmatprep.subr.mxu0 0.0
      %1347 = vmatpush1.msra.mxu0 0.0
      %1348 = vmatprep.subr.mxu0 0.0
      %1349 = vmatpush1.msra.mxu0 0.0
      %1350 = vmatprep.subr.mxu0 %v234
      %1351 = vmatpush1.msra.mxu0 %v233
      %1352 = vmatprep.subr.mxu0 %v202
      %1353 = vmatpush1.msra.mxu0 %v201
      %1354 = vmatprep.subr.mxu0 0.0
      %1355 = vmatpush2.msra.mxu0 0.0
      %1356 = vmatprep.subr.mxu0 0.0
      %1357 = vmatpush2.msra.mxu0 0.0
      %1358 = vmatprep.subr.mxu0 0.0
      %1359 = vmatpush2.msra.mxu0 0.0
      %1360 = vmatprep.subr.mxu0 0.0
      %1361 = vmatpush2.msra.mxu0 0.0
      %1362 = vmatprep.subr.mxu0 0.0
      %1363 = vmatpush2.msra.mxu0 0.0
      %1364 = vmatprep.subr.mxu0 0.0
      %1365 = vmatpush2.msra.mxu0 0.0
      %1366 = vmatprep.subr.mxu0 0.0
      %1367 = vmatpush2.msra.mxu0 0.0
      %1368 = vmatprep.subr.mxu0 0.0
      %1369 = vmatpush2.msra.mxu0 0.0
      %1370 = vmatprep.subr.mxu0 0.0
      %1371 = vmatpush2.msra.mxu0 0.0
      %1372 = vmatprep.subr.mxu0 0.0
      %1373 = vmatpush2.msra.mxu0 0.0
      %1374 = vmatprep.subr.mxu0 0.0
      %1375 = vmatpush2.msra.mxu0 0.0
      %1376 = vmatprep.subr.mxu0 0.0
      %1377 = vmatpush2.msra.mxu0 0.0
      %1378 = vmatprep.subr.mxu0 0.0
      %1379 = vmatpush2.msra.mxu0 0.0
      %1380 = vmatprep.subr.mxu0 0.0
      %1381 = vmatpush2.msra.mxu0 0.0
      %1382 = vmatprep.subr.mxu0 0.0
      %1383 = vmatpush2.msra.mxu0 0.0
      %1384 = vmatprep.subr.mxu0 0.0
      %1385 = vmatpush2.msra.mxu0 0.0
      %1386 = vmatprep.mubr.f32.mxu0 0.0
      %1387 = vmatmul.mubr.f32.gmra.mxu0 %v239
      %v1388 = vpop.f32.mrf.mxu0
      %v1389 = vadd.f32 0.0, %v1388
      %v1390 = vpop.f32.mrf.mxu0
      %v1391 = vadd.f32 0.0, %v1390
      %1392 = vmatprep.mubr.f32.mxu0 0.0
      %1393 = vmatmul.mubr.f32.gmra.mxu0 %v242
      %v1394 = vpop.f32.mrf.mxu0
      %v1395 = vadd.f32 0.0, %v1394
      %v1396 = vpop.f32.mrf.mxu0
      %v1397 = vadd.f32 0.0, %v1396
      %1398 = vdwg.mxu0
      %1399 = vmatprep.subr.mxu0 0.0
      %1400 = vmatpush1.msra.mxu0 0.0
      %1401 = vmatprep.subr.mxu0 0.0
      %1402 = vmatpush1.msra.mxu0 0.0
      %1403 = vmatprep.subr.mxu0 0.0
      %1404 = vmatpush1.msra.mxu0 0.0
      %1405 = vmatprep.subr.mxu0 0.0
      %1406 = vmatpush1.msra.mxu0 0.0
      %1407 = vmatprep.subr.mxu0 0.0
      %1408 = vmatpush1.msra.mxu0 0.0
      %1409 = vmatprep.subr.mxu0 0.0
      %1410 = vmatpush1.msra.mxu0 0.0
      %1411 = vmatprep.subr.mxu0 0.0
      %1412 = vmatpush1.msra.mxu0 0.0
      %1413 = vmatprep.subr.mxu0 0.0
      %1414 = vmatpush1.msra.mxu0 0.0
      %1415 = vmatprep.subr.mxu0 0.0
      %1416 = vmatpush1.msra.mxu0 0.0
      %1417 = vmatprep.subr.mxu0 0.0
      %1418 = vmatpush1.msra.mxu0 0.0
      %1419 = vmatprep.subr.mxu0 0.0
      %1420 = vmatpush1.msra.mxu0 0.0
      %1421 = vmatprep.subr.mxu0 0.0
      %1422 = vmatpush1.msra.mxu0 0.0
      %1423 = vmatprep.subr.mxu0 0.0
      %1424 = vmatpush1.msra.mxu0 0.0
      %1425 = vmatprep.subr.mxu0 0.0
      %1426 = vmatpush1.msra.mxu0 0.0
      %1427 = vmatprep.subr.mxu0 %v236
      %1428 = vmatpush1.msra.mxu0 %v235
      %1429 = vmatprep.subr.mxu0 %v204
      %1430 = vmatpush1.msra.mxu0 %v203
      %1431 = vmatprep.subr.mxu0 0.0
      %1432 = vmatpush2.msra.mxu0 0.0
      %1433 = vmatprep.subr.mxu0 0.0
      %1434 = vmatpush2.msra.mxu0 0.0
      %1435 = vmatprep.subr.mxu0 0.0
      %1436 = vmatpush2.msra.mxu0 0.0
      %1437 = vmatprep.subr.mxu0 0.0
      %1438 = vmatpush2.msra.mxu0 0.0
      %1439 = vmatprep.subr.mxu0 0.0
      %1440 = vmatpush2.msra.mxu0 0.0
      %1441 = vmatprep.subr.mxu0 0.0
      %1442 = vmatpush2.msra.mxu0 0.0
      %1443 = vmatprep.subr.mxu0 0.0
      %1444 = vmatpush2.msra.mxu0 0.0
      %1445 = vmatprep.subr.mxu0 0.0
      %1446 = vmatpush2.msra.mxu0 0.0
      %1447 = vmatprep.subr.mxu0 0.0
      %1448 = vmatpush2.msra.mxu0 0.0
      %1449 = vmatprep.subr.mxu0 0.0
      %1450 = vmatpush2.msra.mxu0 0.0
      %1451 = vmatprep.subr.mxu0 0.0
      %1452 = vmatpush2.msra.mxu0 0.0
      %1453 = vmatprep.subr.mxu0 0.0
      %1454 = vmatpush2.msra.mxu0 0.0
      %1455 = vmatprep.subr.mxu0 0.0
      %1456 = vmatpush2.msra.mxu0 0.0
      %1457 = vmatprep.subr.mxu0 0.0
      %1458 = vmatpush2.msra.mxu0 0.0
      %1459 = vmatprep.subr.mxu0 0.0
      %1460 = vmatpush2.msra.mxu0 0.0
      %1461 = vmatprep.subr.mxu0 0.0
      %1462 = vmatpush2.msra.mxu0 0.0
      %1463 = vmatprep.mubr.f32.mxu0 0.0
      %1464 = vmatmul.mubr.f32.gmra.mxu0 %v239
      %v1465 = vpop.f32.mrf.mxu0
      %v1466 = vadd.f32 0.0, %v1465
      %v1467 = vpop.f32.mrf.mxu0
      %v1468 = vadd.f32 0.0, %v1467
      %1469 = vmatprep.mubr.f32.mxu0 0.0
      %1470 = vmatmul.mubr.f32.gmra.mxu0 %v242
      %v1471 = vpop.f32.mrf.mxu0
      %v1472 = vadd.f32 0.0, %v1471
      %v1473 = vpop.f32.mrf.mxu0
      %v1474 = vadd.f32 0.0, %v1473
      %1475 = vdwg.mxu0
      %v1476 = vmax.f32 %v311, %v619
      %v1477 = vmax.f32 %v313, %v621
      %v1478 = vmax.f32 %v388, %v696
      %v1479 = vmax.f32 %v390, %v698
      %v1480 = vmax.f32 %v465, %v773
      %v1481 = vmax.f32 %v467, %v775
      %v1482 = vmax.f32 %v542, %v850
      %v1483 = vmax.f32 %v544, %v852
      %v1484 = vmax.f32 %v317, %v625
      %v1485 = vmax.f32 %v319, %v627
      %v1486 = vmax.f32 %v394, %v702
      %v1487 = vmax.f32 %v396, %v704
      %v1488 = vmax.f32 %v471, %v779
      %v1489 = vmax.f32 %v473, %v781
      %v1490 = vmax.f32 %v548, %v856
      %v1491 = vmax.f32 %v550, %v858
      %v1492 = vmax.f32 %v1476, %v927
      %v1493 = vmax.f32 %v1477, %v929
      %v1494 = vmax.f32 %v1478, %v1004
      %v1495 = vmax.f32 %v1479, %v1006
      %v1496 = vmax.f32 %v1480, %v1081
      %v1497 = vmax.f32 %v1481, %v1083
      %v1498 = vmax.f32 %v1482, %v1158
      %v1499 = vmax.f32 %v1483, %v1160
      %v1500 = vmax.f32 %v1484, %v933
      %v1501 = vmax.f32 %v1485, %v935
      %v1502 = vmax.f32 %v1486, %v1010
      %v1503 = vmax.f32 %v1487, %v1012
      %v1504 = vmax.f32 %v1488, %v1087
      %v1505 = vmax.f32 %v1489, %v1089
      %v1506 = vmax.f32 %v1490, %v1164
      %v1507 = vmax.f32 %v1491, %v1166
      %v1508 = vmax.f32 %v1492, %v1235
      %v1509 = vmax.f32 %v1493, %v1237
      %v1510 = vmax.f32 %v1494, %v1312
      %v1511 = vmax.f32 %v1495, %v1314
      %v1512 = vmax.f32 %v1496, %v1389
      %v1513 = vmax.f32 %v1497, %v1391
      %v1514 = vmax.f32 %v1498, %v1466
      %v1515 = vmax.f32 %v1499, %v1468
      %v1516 = vmax.f32 %v1500, %v1241
      %v1517 = vmax.f32 %v1501, %v1243
      %v1518 = vmax.f32 %v1502, %v1318
      %v1519 = vmax.f32 %v1503, %v1320
      %v1520 = vmax.f32 %v1504, %v1395
      %v1521 = vmax.f32 %v1505, %v1397
      %v1522 = vmax.f32 %v1506, %v1472
      %v1523 = vmax.f32 %v1507, %v1474
      %v1524 = vld [vmem:[%s2] sm:$0xff]
      %v1525 = vld [vmem:[%s2 + $0x8] sm:$0xff]
      %1527 = vset.pattern.permute.xlu0 0
      %1528 = vperm.xlu0 %1527, %v1524
      %v1529 = vpop.permute.xlu0 %1528
      %1532 = vset.pattern.permute.xlu0 0
      %1533 = vperm.xlu0 %1532, %v1525
      %v1534 = vpop.permute.xlu0 %1533
      %v1536 = vadd.f32 %v1508, %v1529
      %v1537 = vadd.f32 %v1509, %v1529
      %v1538 = vadd.f32 %v1510, %v1529
      %v1539 = vadd.f32 %v1511, %v1529
      %v1540 = vadd.f32 %v1512, %v1529
      %v1541 = vadd.f32 %v1513, %v1529
      %v1542 = vadd.f32 %v1514, %v1529
      %v1543 = vadd.f32 %v1515, %v1529
      %v1544 = vadd.f32 %v1516, %v1534
      %v1545 = vadd.f32 %v1517, %v1534
      %v1546 = vadd.f32 %v1518, %v1534
      %v1547 = vadd.f32 %v1519, %v1534
      %v1548 = vadd.f32 %v1520, %v1534
      %v1549 = vadd.f32 %v1521, %v1534
      %v1550 = vadd.f32 %v1522, %v1534
      %v1551 = vadd.f32 %v1523, %v1534
      %vm1552 = vcmp.gt.f32.partialorder %v1536, 0.0
      %vm1553 = vcmp.gt.f32.partialorder %v1537, 0.0
      %vm1554 = vcmp.gt.f32.partialorder %v1538, 0.0
      %vm1555 = vcmp.gt.f32.partialorder %v1539, 0.0
      %vm1556 = vcmp.gt.f32.partialorder %v1540, 0.0
      %vm1557 = vcmp.gt.f32.partialorder %v1541, 0.0
      %vm1558 = vcmp.gt.f32.partialorder %v1542, 0.0
      %vm1559 = vcmp.gt.f32.partialorder %v1543, 0.0
      %vm1560 = vcmp.gt.f32.partialorder %v1544, 0.0
      %vm1561 = vcmp.gt.f32.partialorder %v1545, 0.0
      %vm1562 = vcmp.gt.f32.partialorder %v1546, 0.0
      %vm1563 = vcmp.gt.f32.partialorder %v1547, 0.0
      %vm1564 = vcmp.gt.f32.partialorder %v1548, 0.0
      %vm1565 = vcmp.gt.f32.partialorder %v1549, 0.0
      %vm1566 = vcmp.gt.f32.partialorder %v1550, 0.0
      %vm1567 = vcmp.gt.f32.partialorder %v1551, 0.0
      %v1568 = vmin.f32 %v1536, 0.0
      %v1569 = vmin.f32 %v1537, 0.0
      %v1570 = vmin.f32 %v1538, 0.0
      %v1571 = vmin.f32 %v1539, 0.0
      %v1572 = vmin.f32 %v1540, 0.0
      %v1573 = vmin.f32 %v1541, 0.0
      %v1574 = vmin.f32 %v1542, 0.0
      %v1575 = vmin.f32 %v1543, 0.0
      %v1576 = vmin.f32 %v1544, 0.0
      %v1577 = vmin.f32 %v1545, 0.0
      %v1578 = vmin.f32 %v1546, 0.0
      %v1579 = vmin.f32 %v1547, 0.0
      %v1580 = vmin.f32 %v1548, 0.0
      %v1581 = vmin.f32 %v1549, 0.0
      %v1582 = vmin.f32 %v1550, 0.0
      %v1583 = vmin.f32 %v1551, 0.0
      %v1584 = vmul.f32 %v1568, 1.442695
      %v1585 = vpow.pop %v1584
      %v1586 = vmul.f32 %v1569, 1.442695
      %v1587 = vpow.pop %v1586
      %v1588 = vmul.f32 %v1570, 1.442695
      %v1589 = vpow.pop %v1588
      %v1590 = vmul.f32 %v1571, 1.442695
      %v1591 = vpow.pop %v1590
      %v1592 = vmul.f32 %v1572, 1.442695
      %v1593 = vpow.pop %v1592
      %v1594 = vmul.f32 %v1573, 1.442695
      %v1595 = vpow.pop %v1594
      %v1596 = vmul.f32 %v1574, 1.442695
      %v1597 = vpow.pop %v1596
      %v1598 = vmul.f32 %v1575, 1.442695
      %v1599 = vpow.pop %v1598
      %v1600 = vmul.f32 %v1576, 1.442695
      %v1601 = vpow.pop %v1600
      %v1602 = vmul.f32 %v1577, 1.442695
      %v1603 = vpow.pop %v1602
      %v1604 = vmul.f32 %v1578, 1.442695
      %v1605 = vpow.pop %v1604
      %v1606 = vmul.f32 %v1579, 1.442695
      %v1607 = vpow.pop %v1606
      %v1608 = vmul.f32 %v1580, 1.442695
      %v1609 = vpow.pop %v1608
      %v1610 = vmul.f32 %v1581, 1.442695
      %v1611 = vpow.pop %v1610
      %v1612 = vmul.f32 %v1582, 1.442695
      %v1613 = vpow.pop %v1612
      %v1614 = vmul.f32 %v1583, 1.442695
      %v1615 = vpow.pop %v1614
      %v1616 = vsub.f32 %v1585, 1.0
      %v1617 = vsub.f32 %v1587, 1.0
      %v1618 = vsub.f32 %v1589, 1.0
      %v1619 = vsub.f32 %v1591, 1.0
      %v1620 = vsub.f32 %v1593, 1.0
      %v1621 = vsub.f32 %v1595, 1.0
      %v1622 = vsub.f32 %v1597, 1.0
      %v1623 = vsub.f32 %v1599, 1.0
      %v1624 = vsub.f32 %v1601, 1.0
      %v1625 = vsub.f32 %v1603, 1.0
      %v1626 = vsub.f32 %v1605, 1.0
      %v1627 = vsub.f32 %v1607, 1.0
      %v1628 = vsub.f32 %v1609, 1.0
      %v1629 = vsub.f32 %v1611, 1.0
      %v1630 = vsub.f32 %v1613, 1.0
      %v1631 = vsub.f32 %v1615, 1.0
      %v1632 = vsel %vm1552, %v1536, %v1616
      %v1633 = vsel %vm1553, %v1537, %v1617
      %v1634 = vsel %vm1554, %v1538, %v1618
      %v1635 = vsel %vm1555, %v1539, %v1619
      %v1636 = vsel %vm1556, %v1540, %v1620
      %v1637 = vsel %vm1557, %v1541, %v1621
      %v1638 = vsel %vm1558, %v1542, %v1622
      %v1639 = vsel %vm1559, %v1543, %v1623
      %v1640 = vsel %vm1560, %v1544, %v1624
      %v1641 = vsel %vm1561, %v1545, %v1625
      %v1642 = vsel %vm1562, %v1546, %v1626
      %v1643 = vsel %vm1563, %v1547, %v1627
      %v1644 = vsel %vm1564, %v1548, %v1628
      %v1645 = vsel %vm1565, %v1549, %v1629
      %v1646 = vsel %vm1566, %v1550, %v1630
      %v1647 = vsel %vm1567, %v1551, %v1631
      %1648 = vst [vmem:[%s170] sm:$0xff] %v1632
      %1649 = vst [vmem:[%s170 + $0x8] sm:$0xff] %v1633
      %1650 = vst [vmem:[%s170 + $0x10] sm:$0xff] %v1634
      %1651 = vst [vmem:[%s170 + $0x18] sm:$0xff] %v1635
      %1652 = vst [vmem:[%s170 + $0x20] sm:$0xff] %v1636
      %1653 = vst [vmem:[%s170 + $0x28] sm:$0xff] %v1637
      %1654 = vst [vmem:[%s170 + $0x30] sm:$0xff] %v1638
      %1655 = vst [vmem:[%s170 + $0x38] sm:$0xff] %v1639
      %1656 = vst [vmem:[%s170 + $0x40] sm:$0xff] %v1640
      %1657 = vst [vmem:[%s170 + $0x48] sm:$0xff] %v1641
      %1658 = vst [vmem:[%s170 + $0x50] sm:$0xff] %v1642
      %1659 = vst [vmem:[%s170 + $0x58] sm:$0xff] %v1643
      %1660 = vst [vmem:[%s170 + $0x60] sm:$0xff] %v1644
      %1661 = vst [vmem:[%s170 + $0x68] sm:$0xff] %v1645
      %1662 = vst [vmem:[%s170 + $0x70] sm:$0xff] %v1646
      %1663 = vst [vmem:[%s170 + $0x78] sm:$0xff] %v1647
      %p1664 = scmp.lt.s32.totalorder %s14, 1
      %s1665 = scalar_select %p1664, %s14, 1
      %s1666 = smul.addr %s1665, 16
      %s1667 = smul.addr %s1666, 8
      %s1668 = scalar_lea.vmem %s3, %s1667
      // Predicated region
      $region33: #{net_forward.2} parent=31 // pred_check
        %p1669 = pneg %p100
      $region34: #{net_forward.2} parent=31 // pred_check_branch
        %1671 = sbr.rel (%p1669) target = $region36
      $region35: #{net_forward.2} parent=31 // pred_region
        _
      $region36: #{net_forward.2} parent=31 // pred_fallthru
        _
    $region32: #{net_forward.2} parent=5 // pred_fallthru
      _
    %p1672 = scmp.le.s32.totalorder 2, %s9
    // Predicated region
    $region37: #{net_forward.2} parent=5 // pred_check
      %p1673 = pneg %p1672
    $region38: #{net_forward.2} parent=5 // pred_check_branch
      %1675 = sbr.rel (%p1673) target = $region40
    $region39: #{net_forward.2} parent=5 // pred_region
      %s1676 = ssub.s32 %s9, 2
      // Predicated region
      $region41: #{net_forward.2} parent=39 // pred_check
        %p1677 = pneg %p106
      $region42: #{net_forward.2} parent=39 // pred_check_branch
        %1679 = sbr.rel (%p1677) target = $region44
      $region43: #{net_forward.2} parent=39 // pred_region
        %p1680 = scmp.lt.s32.totalorder %s15, 1
        %s1681 = scalar_select %p1680, %s15, 1
        %s1682 = smul.addr %s1681, 16
        %s1683 = smul.addr %s1682, 8
        %s1684 = scalar_lea.vmem %s3, %s1683
      $region44: #{net_forward.2} parent=39 // pred_fallthru
        _
    $region40: #{net_forward.2} parent=5 // pred_fallthru
      _
  $region6: #{net_forward.2} parent=0 // loop_footer
    %s13 = sadd.s32 1, %s9
  $region7: #{net_forward.2} parent=0 // loop_footer_branch
    %8 = sbr.rel target = $region3
  $region8: #{net_forward.2} parent=0 // loop_exit
    _

// kernel: net_forward.3
$region0: #{net_forward.3}
  #allocation0 [shape = 'u32[]', space=smem, size = 0x4, offset = 0x4, fixed_abs, tag = 'smem constant byte address 0x4 - core index']
  #allocation1 [shape = 'u32[144,128]{1,0:T(1,128)}', space=vmem, size = 0x12000, scoped, tag = 'internal scratch']
  #allocation2 [shape = 'f32[2,128]{1,0:T(2,128)}', space=vmem, size = 0x400, scoped, tag = 'scratch operand']
  %s0 = inlined_call_operand.vmem [shape: f32[2,16384], index: 0, kind: input, shape index: {}]
  %s1 = inlined_call_operand.vmem [shape: bf16[16384,128], index: 1, kind: input, shape index: {}]
  %s2 = inlined_call_operand.vmem [shape: f32[1,128], index: 2, kind: input, shape index: {}]
  %s3 = inlined_call_operand.vmem [shape: bf16[128,128], index: 3, kind: input, shape index: {}]
  %s4 = inlined_call_operand.vmem [shape: f32[1,128], index: 4, kind: input, shape index: {}]
  %s5 = inlined_call_operand.vmem [shape: bf16[128,1024], index: 5, kind: input, shape index: {}]
  %s6 = inlined_call_operand.vmem [shape: f32[1,1024], index: 6, kind: input, shape index: {}]
  %s7 = inlined_call_operand.vmem [shape: f32[2,2,128], index: 7, kind: output, shape index: {0}]
  %s8 = inlined_call_operand.vmem [shape: f32[2,2,1024], index: 8, kind: output, shape index: {1}]
  %9 = xla_tuple %s7, %s8
  %s10 = sld [smem:[#allocation0]]
  $region77: #{net_forward.3} parent=0
    _
  %s12 = ssub.s32 1, %s10
  %s13 = scalar_select 0, %s12, %s10
  loop: start=0, step=1, limit=4
  $region2: #{net_forward.3} parent=0 // loop_pre_header
    _
  $region3: #{net_forward.3} parent=0 // loop_header
    %s15 = sphi 0, %s19
    %p16 = scmp.ge.s32.totalorder %s15, 4
    %s22 = sphi 0, %s34
    %s23 = sphi 0, %s30
    %s24 = sphi 0, %s22
    %s25 = sphi 0, %s23
    %s26 = sphi 0, %s24
    %s27 = sphi 0, %s25
    %s39 = sphi 0, %s41
    %s42 = sphi 0, %s39
    %s43 = sphi 0, %s42
    %s59 = sphi 0, %s43
    %s67 = sphi 0, %s69
    %s70 = sphi 0, %s67
    %s71 = sphi 0, %s70
    %s87 = sphi 0, %s71
    %s91 = sphi 0, %s91
    %s93 = sphi 0, %s91
    %s94 = sphi 0, %s93
    %s108 = sphi 0, %s94
    %s112 = sphi 0, %s112
    %s114 = sphi 0, %s112
    %s115 = sphi 0, %s114
    %s129 = sphi 0, %s115
    %s133 = sphi 0, %s133
    %s135 = sphi 0, %s133
    %s136 = sphi 0, %s135
    %s150 = sphi 0, %s136
    %s154 = sphi 0, %s154
    %s156 = sphi 0, %s154
    %s157 = sphi 0, %s156
    %s171 = sphi 0, %s157
    %s175 = sphi 0, %s175
    %s177 = sphi 0, %s175
    %s178 = sphi 0, %s177
    %s192 = sphi 0, %s178
    %s198 = sphi 0, %s200
    %s201 = sphi 0, %s198
    %s202 = sphi 0, %s201
    %s218 = sphi 0, %s202
    %s224 = sphi 0, %s226
    %s227 = sphi 0, %s224
    %s228 = sphi 0, %s227
    %s244 = sphi 0, %s228
  $region4: #{net_forward.3} parent=0 // loop_header_branch
    %18 = sbr.rel (%p16) target = $region8
  $region5: #{net_forward.3} parent=0 // loop_body
    %s20 = ssub.s32 %s15, 1
    %s21 = ssub.s32 %s15, 2
    %s28 = sadd.s32 1, %s23
    %p29 = scmp.ge.s32.totalorder %s28, 1
    %s30 = scalar_select %p29, 0, %s28
    %s31 = sadd.s32 1, %s22
    %s32 = scalar_select %p29, %s31, %s22
    %p33 = scmp.ge.s32.totalorder %s32, 2
    %s34 = scalar_select %p33, 0, %s32
    %s35 = sadd.s32 %s22, %s23
    %s36 = sadd.s32 %s34, %s30
    %s37 = ssub.s32 %s35, %s36
    %p38 = scmp.eq.s32.totalorder %s37, 0
    %s40 = sadd.s32 %s39, 1
    %s41 = scalar_select %p38, %s39, %s40
    %p44 = pneg %p38
    %p45 = scmp.eq.s32.totalorder %s15, 1
    %p46 = por %p44, %p45
    %p47 = scmp.ne.s32.totalorder %s39, %s42
    %p48 = scmp.eq.s32.totalorder %s15, 0
    %p49 = por %p47, %p48
    %p50 = scmp.ne.s32.totalorder %s39, %s42
    %p51 = scmp.eq.s32.totalorder %s20, 1
    %p52 = por %p50, %p51
    %p53 = scmp.ne.s32.totalorder %s42, %s43
    %p54 = scmp.eq.s32.totalorder %s20, 0
    %p55 = por %p53, %p54
    %p56 = scmp.ne.s32.totalorder %s42, %s43
    %p57 = scmp.eq.s32.totalorder %s21, 1
    %p58 = por %p56, %p57
    %p60 = scmp.ne.s32.totalorder %s43, %s59
    %p61 = scmp.eq.s32.totalorder %s21, 0
    %p62 = por %p60, %p61
    %s63 = sadd.s32 %s22, %s23
    %s64 = sadd.s32 %s34, %s30
    %s65 = ssub.s32 %s63, %s64
    %p66 = scmp.eq.s32.totalorder %s65, 0
    %s68 = sadd.s32 %s67, 1
    %s69 = scalar_select %p66, %s67, %s68
    %p72 = pneg %p66
    %p73 = scmp.eq.s32.totalorder %s15, 1
    %p74 = por %p72, %p73
    %p75 = scmp.ne.s32.totalorder %s67, %s70
    %p76 = scmp.eq.s32.totalorder %s15, 0
    %p77 = por %p75, %p76
    %p78 = scmp.ne.s32.totalorder %s67, %s70
    %p79 = scmp.eq.s32.totalorder %s20, 1
    %p80 = por %p78, %p79
    %p81 = scmp.ne.s32.totalorder %s70, %s71
    %p82 = scmp.eq.s32.totalorder %s20, 0
    %p83 = por %p81, %p82
    %p84 = scmp.ne.s32.totalorder %s70, %s71
    %p85 = scmp.eq.s32.totalorder %s21, 1
    %p86 = por %p84, %p85
    %p88 = scmp.ne.s32.totalorder %s71, %s87
    %p89 = scmp.eq.s32.totalorder %s21, 0
    %p90 = por %p88, %p89
    %s92 = sadd.s32 %s91, 1
    %p95 = scmp.eq.s32.totalorder %s15, 1
    %p96 = scmp.ne.s32.totalorder %s91, %s93
    %p97 = scmp.eq.s32.totalorder %s15, 0
    %p98 = por %p96, %p97
    %p99 = scmp.ne.s32.totalorder %s91, %s93
    %p100 = scmp.eq.s32.totalorder %s20, 1
    %p101 = por %p99, %p100
    %p102 = scmp.ne.s32.totalorder %s93, %s94
    %p103 = scmp.eq.s32.totalorder %s20, 0
    %p104 = por %p102, %p103
    %p105 = scmp.ne.s32.totalorder %s93, %s94
    %p106 = scmp.eq.s32.totalorder %s21, 1
    %p107 = por %p105, %p106
    %p109 = scmp.ne.s32.totalorder %s94, %s108
    %p110 = scmp.eq.s32.totalorder %s21, 0
    %p111 = por %p109, %p110
    %s113 = sadd.s32 %s112, 1
    %p116 = scmp.eq.s32.totalorder %s15, 1
    %p117 = scmp.ne.s32.totalorder %s112, %s114
    %p118 = scmp.eq.s32.totalorder %s15, 0
    %p119 = por %p117, %p118
    %p120 = scmp.ne.s32.totalorder %s112, %s114
    %p121 = scmp.eq.s32.totalorder %s20, 1
    %p122 = por %p120, %p121
    %p123 = scmp.ne.s32.totalorder %s114, %s115
    %p124 = scmp.eq.s32.totalorder %s20, 0
    %p125 = por %p123, %p124
    %p126 = scmp.ne.s32.totalorder %s114, %s115
    %p127 = scmp.eq.s32.totalorder %s21, 1
    %p128 = por %p126, %p127
    %p130 = scmp.ne.s32.totalorder %s115, %s129
    %p131 = scmp.eq.s32.totalorder %s21, 0
    %p132 = por %p130, %p131
    %s134 = sadd.s32 %s133, 1
    %p137 = scmp.eq.s32.totalorder %s15, 1
    %p138 = scmp.ne.s32.totalorder %s133, %s135
    %p139 = scmp.eq.s32.totalorder %s15, 0
    %p140 = por %p138, %p139
    %p141 = scmp.ne.s32.totalorder %s133, %s135
    %p142 = scmp.eq.s32.totalorder %s20, 1
    %p143 = por %p141, %p142
    %p144 = scmp.ne.s32.totalorder %s135, %s136
    %p145 = scmp.eq.s32.totalorder %s20, 0
    %p146 = por %p144, %p145
    %p147 = scmp.ne.s32.totalorder %s135, %s136
    %p148 = scmp.eq.s32.totalorder %s21, 1
    %p149 = por %p147, %p148
    %p151 = scmp.ne.s32.totalorder %s136, %s150
    %p152 = scmp.eq.s32.totalorder %s21, 0
    %p153 = por %p151, %p152
    %s155 = sadd.s32 %s154, 1
    %p158 = scmp.eq.s32.totalorder %s15, 1
    %p159 = scmp.ne.s32.totalorder %s154, %s156
    %p160 = scmp.eq.s32.totalorder %s15, 0
    %p161 = por %p159, %p160
    %p162 = scmp.ne.s32.totalorder %s154, %s156
    %p163 = scmp.eq.s32.totalorder %s20, 1
    %p164 = por %p162, %p163
    %p165 = scmp.ne.s32.totalorder %s156, %s157
    %p166 = scmp.eq.s32.totalorder %s20, 0
    %p167 = por %p165, %p166
    %p168 = scmp.ne.s32.totalorder %s156, %s157
    %p169 = scmp.eq.s32.totalorder %s21, 1
    %p170 = por %p168, %p169
    %p172 = scmp.ne.s32.totalorder %s157, %s171
    %p173 = scmp.eq.s32.totalorder %s21, 0
    %p174 = por %p172, %p173
    %s176 = sadd.s32 %s175, 1
    %p179 = scmp.eq.s32.totalorder %s15, 1
    %p180 = scmp.ne.s32.totalorder %s175, %s177
    %p181 = scmp.eq.s32.totalorder %s15, 0
    %p182 = por %p180, %p181
    %p183 = scmp.ne.s32.totalorder %s175, %s177
    %p184 = scmp.eq.s32.totalorder %s20, 1
    %p185 = por %p183, %p184
    %p186 = scmp.ne.s32.totalorder %s177, %s178
    %p187 = scmp.eq.s32.totalorder %s20, 0
    %p188 = por %p186, %p187
    %p189 = scmp.ne.s32.totalorder %s177, %s178
    %p190 = scmp.eq.s32.totalorder %s21, 1
    %p191 = por %p189, %p190
    %p193 = scmp.ne.s32.totalorder %s178, %s192
    %p194 = scmp.eq.s32.totalorder %s21, 0
    %p195 = por %p193, %p194
    %s196 = ssub.s32 %s22, %s34
    %p197 = scmp.eq.s32.totalorder %s196, 0
    %s199 = sadd.s32 %s198, 1
    %s200 = scalar_select %p197, %s198, %s199
    %p203 = pneg %p197
    %p204 = scmp.eq.s32.totalorder %s15, 1
    %p205 = por %p203, %p204
    %p206 = scmp.ne.s32.totalorder %s198, %s201
    %p207 = scmp.eq.s32.totalorder %s15, 0
    %p208 = por %p206, %p207
    %p209 = scmp.ne.s32.totalorder %s198, %s201
    %p210 = scmp.eq.s32.totalorder %s20, 1
    %p211 = por %p209, %p210
    %p212 = scmp.ne.s32.totalorder %s201, %s202
    %p213 = scmp.eq.s32.totalorder %s20, 0
    %p214 = por %p212, %p213
    %p215 = scmp.ne.s32.totalorder %s201, %s202
    %p216 = scmp.eq.s32.totalorder %s21, 1
    %p217 = por %p215, %p216
    %p219 = scmp.ne.s32.totalorder %s202, %s218
    %p220 = scmp.eq.s32.totalorder %s21, 0
    %p221 = por %p219, %p220
    %s222 = ssub.s32 %s22, %s34
    %p223 = scmp.eq.s32.totalorder %s222, 0
    %s225 = sadd.s32 %s224, 1
    %s226 = scalar_select %p223, %s224, %s225
    %p229 = pneg %p223
    %p230 = scmp.eq.s32.totalorder %s15, 1
    %p231 = por %p229, %p230
    %p232 = scmp.ne.s32.totalorder %s224, %s227
    %p233 = scmp.eq.s32.totalorder %s15, 0
    %p234 = por %p232, %p233
    %p235 = scmp.ne.s32.totalorder %s224, %s227
    %p236 = scmp.eq.s32.totalorder %s20, 1
    %p237 = por %p235, %p236
    %p238 = scmp.ne.s32.totalorder %s227, %s228
    %p239 = scmp.eq.s32.totalorder %s20, 0
    %p240 = por %p238, %p239
    %p241 = scmp.ne.s32.totalorder %s227, %s228
    %p242 = scmp.eq.s32.totalorder %s21, 1
    %p243 = por %p241, %p242
    %p245 = scmp.ne.s32.totalorder %s228, %s244
    %p246 = scmp.eq.s32.totalorder %s21, 0
    %p247 = por %p245, %p246
    %p248 = scmp.le.s32.totalorder 1, %s15
    %p249 = scmp.lt.s32.totalorder %s15, 3
    %p250 = pnand %p248, %p249
    %p251 = pneg %p250
    // Predicated region
    $region9: #{net_forward.3} parent=5 // pred_check
      _
    $region10: #{net_forward.3} parent=5 // pred_check_branch
      %253 = sbr.rel (%p250) target = $region12
    $region11: #{net_forward.3} parent=5 // pred_region
      %s254 = ssub.s32 %s15, 1
      // Predicated region
      $region13: #{net_forward.3} parent=11 // pred_check
        %p255 = pneg %p104
      $region14: #{net_forward.3} parent=11 // pred_check_branch
        %257 = sbr.rel (%p255) target = $region16
      $region15: #{net_forward.3} parent=11 // pred_region
        _
      $region16: #{net_forward.3} parent=11 // pred_fallthru
        _
      // Predicated region
      $region17: #{net_forward.3} parent=11 // pred_check
        %p258 = pneg %p125
      $region18: #{net_forward.3} parent=11 // pred_check_branch
        %260 = sbr.rel (%p258) target = $region20
      $region19: #{net_forward.3} parent=11 // pred_region
        _
      $region20: #{net_forward.3} parent=11 // pred_fallthru
        _
      // Predicated region
      $region21: #{net_forward.3} parent=11 // pred_check
        %p261 = pneg %p146
      $region22: #{net_forward.3} parent=11 // pred_check_branch
        %263 = sbr.rel (%p261) target = $region24
      $region23: #{net_forward.3} parent=11 // pred_region
        _
      $region24: #{net_forward.3} parent=11 // pred_fallthru
        _
      // Predicated region
      $region25: #{net_forward.3} parent=11 // pred_check
        %p264 = pneg %p167
      $region26: #{net_forward.3} parent=11 // pred_check_branch
        %266 = sbr.rel (%p264) target = $region28
      $region27: #{net_forward.3} parent=11 // pred_region
        _
      $region28: #{net_forward.3} parent=11 // pred_fallthru
        _
      // Predicated region
      $region29: #{net_forward.3} parent=11 // pred_check
        %p267 = pneg %p188
      $region30: #{net_forward.3} parent=11 // pred_check_branch
        %269 = sbr.rel (%p267) target = $region32
      $region31: #{net_forward.3} parent=11 // pred_region
        _
      $region32: #{net_forward.3} parent=11 // pred_fallthru
        _
    $region12: #{net_forward.3} parent=5 // pred_fallthru
      _
    %p270 = scmp.lt.s32.totalorder %s15, 2
    // Predicated region
    $region33: #{net_forward.3} parent=5 // pred_check
      %p271 = pneg %p270
    $region34: #{net_forward.3} parent=5 // pred_check_branch
      %273 = sbr.rel (%p271) target = $region36
    $region35: #{net_forward.3} parent=5 // pred_region
      // Predicated region
      $region37: #{net_forward.3} parent=35 // pred_check
        %p274 = pneg %p49
      $region38: #{net_forward.3} parent=35 // pred_check_branch
        %276 = sbr.rel (%p274) target = $region40
      $region39: #{net_forward.3} parent=35 // pred_region
        %s277 = sadd.s32 %s22, %s23
        %s278 = smul.u32 64, %s277
        %p279 = scmp.lt.s32.totalorder %s278, 127
        %s280 = scalar_select %p279, %s278, 127
        %s281 = smul.addr %s280, 2
        %s282 = scalar_lea.vmem %s0, %s281
        %s283 = sadd.s32 %s22, %s23
        %s284 = smul.u32 64, %s283
      $region40: #{net_forward.3} parent=35 // pred_fallthru
        _
      // Predicated region
      $region41: #{net_forward.3} parent=35 // pred_check
        %p285 = pneg %p77
      $region42: #{net_forward.3} parent=35 // pred_check_branch
        %287 = sbr.rel (%p285) target = $region44
      $region43: #{net_forward.3} parent=35 // pred_region
        %s288 = sadd.s32 %s22, %s23
        %s289 = smul.u32 1024, %s288
        %p290 = scmp.lt.s32.totalorder %s289, 2047
        %s291 = scalar_select %p290, %s289, 2047
        %s292 = smul.addr %s291, 4
        %s293 = scalar_lea.vmem %s1, %s292
        %s294 = sadd.s32 %s22, %s23
        %s295 = smul.u32 1024, %s294
      $region44: #{net_forward.3} parent=35 // pred_fallthru
        _
    $region36: #{net_forward.3} parent=5 // pred_fallthru
      _
    %p296 = scmp.le.s32.totalorder 1, %s15
    %p297 = scmp.lt.s32.totalorder %s15, 3
    %p298 = pnand %p296, %p297
    %p299 = pneg %p298
    // Predicated region
    $region45: #{net_forward.3} parent=5 // pred_check
      _
    $region46: #{net_forward.3} parent=5 // pred_check_branch
      %301 = sbr.rel (%p298) target = $region48
    $region47: #{net_forward.3} parent=5 // pred_region
      %s302 = ssub.s32 %s15, 1
      %s303 = sadd.s32 %s24, %s25
      %s304 = smul.u32 64, %s303
      %p305 = scmp.lt.s32.totalorder %s304, 127
      %s306 = scalar_select %p305, %s304, 127
      %s307 = smul.addr %s306, 2
      %s308 = scalar_lea.vmem %s0, %s307
      %p309 = pneg %p55
      %p310 = pneg %p52
      %s311 = sadd.s32 %s24, %s25
      %s312 = smul.u32 1024, %s311
      %p313 = scmp.lt.s32.totalorder %s312, 2047
      %s314 = scalar_select %p313, %s312, 2047
      %s315 = smul.addr %s314, 4
      %s316 = scalar_lea.vmem %s1, %s315
      %p317 = pneg %p83
      %p318 = pneg %p80
      %p319 = pneg %p104
      %p320 = pneg %p101
      %p321 = pneg %p125
      %p322 = pneg %p122
      %p323 = pneg %p146
      %p324 = pneg %p143
      %p325 = pneg %p167
      %p326 = pneg %p164
      %p327 = pneg %p188
      %p328 = pneg %p185
      %p329 = pneg %p214
      %p330 = pneg %p211
      %p331 = scmp.lt.s32.totalorder %s24, 1
      %s332 = scalar_select %p331, %s24, 1
      %s333 = smul.addr %s332, 2
      %s334 = scalar_lea.vmem %s7, %s333
      %p335 = pneg %p240
      %p336 = pneg %p237
      %p337 = scmp.lt.s32.totalorder %s24, 1
      %s338 = scalar_select %p337, %s24, 1
      %s339 = smul.addr %s338, 8
      %s340 = smul.addr %s339, 2
      %s341 = scalar_lea.vmem %s8, %s340
      %s342 = sadd.s32 %s24, %s25
      %s343 = smul.u32 64, %s342
      %p344 = scmp.lt.s32.totalorder %s343, 127
      %s345 = scalar_select %p344, %s343, 127
      %s346 = smul.addr %s345, 2
      %s347 = scalar_lea.vmem %s0, %s346
      %s348 = sadd.s32 %s24, %s25
      %s349 = smul.u32 64, %s348
      %s350 = sadd.s32 %s24, %s25
      %s351 = smul.u32 1024, %s350
      %p352 = scmp.lt.s32.totalorder %s351, 2047
      %s353 = scalar_select %p352, %s351, 2047
      %s354 = smul.addr %s353, 4
      %s355 = scalar_lea.vmem %s1, %s354
      %s356 = sadd.s32 %s24, %s25
      %s357 = smul.u32 1024, %s356
      %p358 = scmp.lt.s32.totalorder %s24, 1
      %s359 = scalar_select %p358, %s24, 1
      %s360 = smul.addr %s359, 2
      %s361 = scalar_lea.vmem %s7, %s360
      %p362 = scmp.lt.s32.totalorder %s24, 1
      %s363 = scalar_select %p362, %s24, 1
      %s364 = smul.addr %s363, 8
      %s365 = smul.addr %s364, 2
      %s366 = scalar_lea.vmem %s8, %s365
      %p368 = scmp.eq.s32.totalorder %s25, 0
      // Predicated region
      $region49: #{net_forward.3} parent=47 // pred_check
        %p369 = pneg %p368
      $region50: #{net_forward.3} parent=47 // pred_check_branch
        %371 = sbr.rel (%p369) target = $region52
      $region51: #{net_forward.3} parent=47 // pred_region
        %372 = vst [vmem:[#allocation2] sm:$0x3] 0.0
      $region52: #{net_forward.3} parent=47 // pred_fallthru
        _
      %v373 = vld [vmem:[#allocation2] sm:$0x3]
      %v374 = vld [vmem:[%s347] sm:$0xff]
      %v375 = vld [vmem:[%s347 + $0x8] sm:$0xff]
      %v376 = vld [vmem:[%s347 + $0x10] sm:$0xff]
      %v377 = vld [vmem:[%s347 + $0x18] sm:$0xff]
      %v378 = vld [vmem:[%s347 + $0x20] sm:$0xff]
      %v379 = vld [vmem:[%s347 + $0x28] sm:$0xff]
      %v380 = vld [vmem:[%s347 + $0x30] sm:$0xff]
      %v381 = vld [vmem:[%s347 + $0x38] sm:$0xff]
      %v382 = vld [vmem:[%s347 + $0x40] sm:$0xff]
      %v383 = vld [vmem:[%s347 + $0x48] sm:$0xff]
      %v384 = vld [vmem:[%s347 + $0x50] sm:$0xff]
      %v385 = vld [vmem:[%s347 + $0x58] sm:$0xff]
      %v386 = vld [vmem:[%s347 + $0x60] sm:$0xff]
      %v387 = vld [vmem:[%s347 + $0x68] sm:$0xff]
      %v388 = vld [vmem:[%s347 + $0x70] sm:$0xff]
      %v389 = vld [vmem:[%s347 + $0x78] sm:$0xff]
      %v406 = vcombine.high %v374, %v374
      %v408 = vunpack.c.l.s4 1983009808
      %v409 = vunpack.c.0.s8 %v408
      %v410 = vlaneseq
      %v411 = vshrl.u32 %v410, 7
      %v412 = vsub.s32 %v409, %v411
      %v413 = vrot.slane %v374, %v412
      %v415 = vunpack.c.l.s4 1983009808
      %v416 = vunpack.c.0.s8 %v415
      %v417 = vlaneseq
      %v418 = vshrl.u32 %v417, 7
      %v419 = vsub.s32 %v416, %v418
      %v420 = vrot.slane %v406, %v419
      %v421 = vcombine.high %v413, %v413
      %v422 = vcombine.high %v420, %v420
      %v423 = vcombine.high %v375, %v375
      %v425 = vunpack.c.l.s4 1983009808
      %v426 = vunpack.c.0.s8 %v425
      %v427 = vlaneseq
      %v428 = vshrl.u32 %v427, 7
      %v429 = vsub.s32 %v426, %v428
      %v430 = vrot.slane %v375, %v429
      %v432 = vunpack.c.l.s4 1983009808
      %v433 = vunpack.c.0.s8 %v432
      %v434 = vlaneseq
      %v435 = vshrl.u32 %v434, 7
      %v436 = vsub.s32 %v433, %v435
      %v437 = vrot.slane %v423, %v436
      %v438 = vcombine.high %v430, %v430
      %v439 = vcombine.high %v437, %v437
      %v440 = vcombine.high %v376, %v376
      %v442 = vunpack.c.l.s4 1983009808
      %v443 = vunpack.c.0.s8 %v442
      %v444 = vlaneseq
      %v445 = vshrl.u32 %v444, 7
      %v446 = vsub.s32 %v443, %v445
      %v447 = vrot.slane %v376, %v446
      %v449 = vunpack.c.l.s4 1983009808
      %v450 = vunpack.c.0.s8 %v449
      %v451 = vlaneseq
      %v452 = vshrl.u32 %v451, 7
      %v453 = vsub.s32 %v450, %v452
      %v454 = vrot.slane %v440, %v453
      %v455 = vcombine.high %v447, %v447
      %v456 = vcombine.high %v454, %v454
      %v457 = vcombine.high %v377, %v377
      %v459 = vunpack.c.l.s4 1983009808
      %v460 = vunpack.c.0.s8 %v459
      %v461 = vlaneseq
      %v462 = vshrl.u32 %v461, 7
      %v463 = vsub.s32 %v460, %v462
      %v464 = vrot.slane %v377, %v463
      %v466 = vunpack.c.l.s4 1983009808
      %v467 = vunpack.c.0.s8 %v466
      %v468 = vlaneseq
      %v469 = vshrl.u32 %v468, 7
      %v470 = vsub.s32 %v467, %v469
      %v471 = vrot.slane %v457, %v470
      %v472 = vcombine.high %v464, %v464
      %v473 = vcombine.high %v471, %v471
      %v474 = vcombine.high %v378, %v378
      %v476 = vunpack.c.l.s4 1983009808
      %v477 = vunpack.c.0.s8 %v476
      %v478 = vlaneseq
      %v479 = vshrl.u32 %v478, 7
      %v480 = vsub.s32 %v477, %v479
      %v481 = vrot.slane %v378, %v480
      %v483 = vunpack.c.l.s4 1983009808
      %v484 = vunpack.c.0.s8 %v483
      %v485 = vlaneseq
      %v486 = vshrl.u32 %v485, 7
      %v487 = vsub.s32 %v484, %v486
      %v488 = vrot.slane %v474, %v487
      %v489 = vcombine.high %v481, %v481
      %v490 = vcombine.high %v488, %v488
      %v491 = vcombine.high %v379, %v379
      %v493 = vunpack.c.l.s4 1983009808
      %v494 = vunpack.c.0.s8 %v493
      %v495 = vlaneseq
      %v496 = vshrl.u32 %v495, 7
      %v497 = vsub.s32 %v494, %v496
      %v498 = vrot.slane %v379, %v497
      %v500 = vunpack.c.l.s4 1983009808
      %v501 = vunpack.c.0.s8 %v500
      %v502 = vlaneseq
      %v503 = vshrl.u32 %v502, 7
      %v504 = vsub.s32 %v501, %v503
      %v505 = vrot.slane %v491, %v504
      %v506 = vcombine.high %v498, %v498
      %v507 = vcombine.high %v505, %v505
      %v508 = vcombine.high %v380, %v380
      %v510 = vunpack.c.l.s4 1983009808
      %v511 = vunpack.c.0.s8 %v510
      %v512 = vlaneseq
      %v513 = vshrl.u32 %v512, 7
      %v514 = vsub.s32 %v511, %v513
      %v515 = vrot.slane %v380, %v514
      %v517 = vunpack.c.l.s4 1983009808
      %v518 = vunpack.c.0.s8 %v517
      %v519 = vlaneseq
      %v520 = vshrl.u32 %v519, 7
      %v521 = vsub.s32 %v518, %v520
      %v522 = vrot.slane %v508, %v521
      %v523 = vcombine.high %v515, %v515
      %v524 = vcombine.high %v522, %v522
      %v525 = vcombine.high %v381, %v381
      %v527 = vunpack.c.l.s4 1983009808
      %v528 = vunpack.c.0.s8 %v527
      %v529 = vlaneseq
      %v530 = vshrl.u32 %v529, 7
      %v531 = vsub.s32 %v528, %v530
      %v532 = vrot.slane %v381, %v531
      %v534 = vunpack.c.l.s4 1983009808
      %v535 = vunpack.c.0.s8 %v534
      %v536 = vlaneseq
      %v537 = vshrl.u32 %v536, 7
      %v538 = vsub.s32 %v535, %v537
      %v539 = vrot.slane %v525, %v538
      %v540 = vcombine.high %v532, %v532
      %v541 = vcombine.high %v539, %v539
      %v542 = vcombine.high %v382, %v382
      %v544 = vunpack.c.l.s4 1983009808
      %v545 = vunpack.c.0.s8 %v544
      %v546 = vlaneseq
      %v547 = vshrl.u32 %v546, 7
      %v548 = vsub.s32 %v545, %v547
      %v549 = vrot.slane %v382, %v548
      %v551 = vunpack.c.l.s4 1983009808
      %v552 = vunpack.c.0.s8 %v551
      %v553 = vlaneseq
      %v554 = vshrl.u32 %v553, 7
      %v555 = vsub.s32 %v552, %v554
      %v556 = vrot.slane %v542, %v555
      %v557 = vcombine.high %v549, %v549
      %v558 = vcombine.high %v556, %v556
      %v559 = vcombine.high %v383, %v383
      %v561 = vunpack.c.l.s4 1983009808
      %v562 = vunpack.c.0.s8 %v561
      %v563 = vlaneseq
      %v564 = vshrl.u32 %v563, 7
      %v565 = vsub.s32 %v562, %v564
      %v566 = vrot.slane %v383, %v565
      %v568 = vunpack.c.l.s4 1983009808
      %v569 = vunpack.c.0.s8 %v568
      %v570 = vlaneseq
      %v571 = vshrl.u32 %v570, 7
      %v572 = vsub.s32 %v569, %v571
      %v573 = vrot.slane %v559, %v572
      %v574 = vcombine.high %v566, %v566
      %v575 = vcombine.high %v573, %v573
      %v576 = vcombine.high %v384, %v384
      %v578 = vunpack.c.l.s4 1983009808
      %v579 = vunpack.c.0.s8 %v578
      %v580 = vlaneseq
      %v581 = vshrl.u32 %v580, 7
      %v582 = vsub.s32 %v579, %v581
      %v583 = vrot.slane %v384, %v582
      %v585 = vunpack.c.l.s4 1983009808
      %v586 = vunpack.c.0.s8 %v585
      %v587 = vlaneseq
      %v588 = vshrl.u32 %v587, 7
      %v589 = vsub.s32 %v586, %v588
      %v590 = vrot.slane %v576, %v589
      %v591 = vcombine.high %v583, %v583
      %v592 = vcombine.high %v590, %v590
      %v593 = vcombine.high %v385, %v385
      %v595 = vunpack.c.l.s4 1983009808
      %v596 = vunpack.c.0.s8 %v595
      %v597 = vlaneseq
      %v598 = vshrl.u32 %v597, 7
      %v599 = vsub.s32 %v596, %v598
      %v600 = vrot.slane %v385, %v599
      %v602 = vunpack.c.l.s4 1983009808
      %v603 = vunpack.c.0.s8 %v602
      %v604 = vlaneseq
      %v605 = vshrl.u32 %v604, 7
      %v606 = vsub.s32 %v603, %v605
      %v607 = vrot.slane %v593, %v606
      %v608 = vcombine.high %v600, %v600
      %v609 = vcombine.high %v607, %v607
      %v610 = vcombine.high %v386, %v386
      %v612 = vunpack.c.l.s4 1983009808
      %v613 = vunpack.c.0.s8 %v612
      %v614 = vlaneseq
      %v615 = vshrl.u32 %v614, 7
      %v616 = vsub.s32 %v613, %v615
      %v617 = vrot.slane %v386, %v616
      %v619 = vunpack.c.l.s4 1983009808
      %v620 = vunpack.c.0.s8 %v619
      %v621 = vlaneseq
      %v622 = vshrl.u32 %v621, 7
      %v623 = vsub.s32 %v620, %v622
      %v624 = vrot.slane %v610, %v623
      %v625 = vcombine.high %v617, %v617
      %v626 = vcombine.high %v624, %v624
      %v627 = vcombine.high %v387, %v387
      %v629 = vunpack.c.l.s4 1983009808
      %v630 = vunpack.c.0.s8 %v629
      %v631 = vlaneseq
      %v632 = vshrl.u32 %v631, 7
      %v633 = vsub.s32 %v630, %v632
      %v634 = vrot.slane %v387, %v633
      %v636 = vunpack.c.l.s4 1983009808
      %v637 = vunpack.c.0.s8 %v636
      %v638 = vlaneseq
      %v639 = vshrl.u32 %v638, 7
      %v640 = vsub.s32 %v637, %v639
      %v641 = vrot.slane %v627, %v640
      %v642 = vcombine.high %v634, %v634
      %v643 = vcombine.high %v641, %v641
      %v644 = vcombine.high %v388, %v388
      %v646 = vunpack.c.l.s4 1983009808
      %v647 = vunpack.c.0.s8 %v646
      %v648 = vlaneseq
      %v649 = vshrl.u32 %v648, 7
      %v650 = vsub.s32 %v647, %v649
      %v651 = vrot.slane %v388, %v650
      %v653 = vunpack.c.l.s4 1983009808
      %v654 = vunpack.c.0.s8 %v653
      %v655 = vlaneseq
      %v656 = vshrl.u32 %v655, 7
      %v657 = vsub.s32 %v654, %v656
      %v658 = vrot.slane %v644, %v657
      %v659 = vcombine.high %v651, %v651
      %v660 = vcombine.high %v658, %v658
      %v661 = vcombine.high %v389, %v389
      %v663 = vunpack.c.l.s4 1983009808
      %v664 = vunpack.c.0.s8 %v663
      %v665 = vlaneseq
      %v666 = vshrl.u32 %v665, 7
      %v667 = vsub.s32 %v664, %v666
      %v668 = vrot.slane %v389, %v667
      %v670 = vunpack.c.l.s4 1983009808
      %v671 = vunpack.c.0.s8 %v670
      %v672 = vlaneseq
      %v673 = vshrl.u32 %v672, 7
      %v674 = vsub.s32 %v671, %v673
      %v675 = vrot.slane %v661, %v674
      %v676 = vcombine.high %v668, %v668
      %v677 = vcombine.high %v675, %v675
      %v742 = vpack.c.bf16 %v413, %v413
      %v743 = vpack.c.bf16 %v421, %v421
      %v744 = vpack.c.bf16 %v420, %v420
      %v745 = vpack.c.bf16 %v422, %v422
      %v746 = vpack.c.bf16 %v430, %v430
      %v747 = vpack.c.bf16 %v438, %v438
      %v748 = vpack.c.bf16 %v437, %v437
      %v749 = vpack.c.bf16 %v439, %v439
      %v750 = vpack.c.bf16 %v447, %v447
      %v751 = vpack.c.bf16 %v455, %v455
      %v752 = vpack.c.bf16 %v454, %v454
      %v753 = vpack.c.bf16 %v456, %v456
      %v754 = vpack.c.bf16 %v464, %v464
      %v755 = vpack.c.bf16 %v472, %v472
      %v756 = vpack.c.bf16 %v471, %v471
      %v757 = vpack.c.bf16 %v473, %v473
      %v758 = vpack.c.bf16 %v481, %v481
      %v759 = vpack.c.bf16 %v489, %v489
      %v760 = vpack.c.bf16 %v488, %v488
      %v761 = vpack.c.bf16 %v490, %v490
      %v762 = vpack.c.bf16 %v498, %v498
      %v763 = vpack.c.bf16 %v506, %v506
      %v764 = vpack.c.bf16 %v505, %v505
      %v765 = vpack.c.bf16 %v507, %v507
      %v766 = vpack.c.bf16 %v515, %v515
      %v767 = vpack.c.bf16 %v523, %v523
      %v768 = vpack.c.bf16 %v522, %v522
      %v769 = vpack.c.bf16 %v524, %v524
      %v770 = vpack.c.bf16 %v532, %v532
      %v771 = vpack.c.bf16 %v540, %v540
      %v772 = vpack.c.bf16 %v539, %v539
      %v773 = vpack.c.bf16 %v541, %v541
      %v774 = vpack.c.bf16 %v549, %v549
      %v775 = vpack.c.bf16 %v557, %v557
      %v776 = vpack.c.bf16 %v556, %v556
      %v777 = vpack.c.bf16 %v558, %v558
      %v778 = vpack.c.bf16 %v566, %v566
      %v779 = vpack.c.bf16 %v574, %v574
      %v780 = vpack.c.bf16 %v573, %v573
      %v781 = vpack.c.bf16 %v575, %v575
      %v782 = vpack.c.bf16 %v583, %v583
      %v783 = vpack.c.bf16 %v591, %v591
      %v784 = vpack.c.bf16 %v590, %v590
      %v785 = vpack.c.bf16 %v592, %v592
      %v786 = vpack.c.bf16 %v600, %v600
      %v787 = vpack.c.bf16 %v608, %v608
      %v788 = vpack.c.bf16 %v607, %v607
      %v789 = vpack.c.bf16 %v609, %v609
      %v790 = vpack.c.bf16 %v617, %v617
      %v791 = vpack.c.bf16 %v625, %v625
      %v792 = vpack.c.bf16 %v624, %v624
      %v793 = vpack.c.bf16 %v626, %v626
      %v794 = vpack.c.bf16 %v634, %v634
      %v795 = vpack.c.bf16 %v642, %v642
      %v796 = vpack.c.bf16 %v641, %v641
      %v797 = vpack.c.bf16 %v643, %v643
      %v798 = vpack.c.bf16 %v651, %v651
      %v799 = vpack.c.bf16 %v659, %v659
      %v800 = vpack.c.bf16 %v658, %v658
      %v801 = vpack.c.bf16 %v660, %v660
      %v802 = vpack.c.bf16 %v668, %v668
      %v803 = vpack.c.bf16 %v676, %v676
      %v804 = vpack.c.bf16 %v675, %v675
      %v805 = vpack.c.bf16 %v677, %v677
      %v806 = vld [vmem:[%s355] sm:$0xf]
      %v807 = vld [vmem:[%s355 + $0x4] sm:$0xf]
      %v808 = vld [vmem:[%s355 + $0x8] sm:$0xf]
      %v809 = vld [vmem:[%s355 + $0xc] sm:$0xf]
      %v810 = vld [vmem:[%s355 + $0x10] sm:$0xf]
      %v811 = vld [vmem:[%s355 + $0x14] sm:$0xf]
      %v812 = vld [vmem:[%s355 + $0x18] sm:$0xf]
      %v813 = vld [vmem:[%s355 + $0x1c] sm:$0xf]
      %v814 = vld [vmem:[%s355 + $0x20] sm:$0xf]
      %v815 = vld [vmem:[%s355 + $0x24] sm:$0xf]
      %v816 = vld [vmem:[%s355 + $0x28] sm:$0xf]
      %v817 = vld [vmem:[%s355 + $0x2c] sm:$0xf]
      %v818 = vld [vmem:[%s355 + $0x30] sm:$0xf]
      %v819 = vld [vmem:[%s355 + $0x34] sm:$0xf]
      %v820 = vld [vmem:[%s355 + $0x38] sm:$0xf]
      %v821 = vld [vmem:[%s355 + $0x3c] sm:$0xf]
      %v822 = vld [vmem:[%s355 + $0x40] sm:$0xf]
      %v823 = vld [vmem:[%s355 + $0x44] sm:$0xf]
      %v824 = vld [vmem:[%s355 + $0x48] sm:$0xf]
      %v825 = vld [vmem:[%s355 + $0x4c] sm:$0xf]
      %v826 = vld [vmem:[%s355 + $0x50] sm:$0xf]
      %v827 = vld [vmem:[%s355 + $0x54] sm:$0xf]
      %v828 = vld [vmem:[%s355 + $0x58] sm:$0xf]
      %v829 = vld [vmem:[%s355 + $0x5c] sm:$0xf]
      %v830 = vld [vmem:[%s355 + $0x60] sm:$0xf]
      %v831 = vld [vmem:[%s355 + $0x64] sm:$0xf]
      %v832 = vld [vmem:[%s355 + $0x68] sm:$0xf]
      %v833 = vld [vmem:[%s355 + $0x6c] sm:$0xf]
      %v834 = vld [vmem:[%s355 + $0x70] sm:$0xf]
      %v835 = vld [vmem:[%s355 + $0x74] sm:$0xf]
      %v836 = vld [vmem:[%s355 + $0x78] sm:$0xf]
      %v837 = vld [vmem:[%s355 + $0x7c] sm:$0xf]
      %v838 = vld [vmem:[%s355 + $0x80] sm:$0xf]
      %v839 = vld [vmem:[%s355 + $0x84] sm:$0xf]
      %v840 = vld [vmem:[%s355 + $0x88] sm:$0xf]
      %v841 = vld [vmem:[%s355 + $0x8c] sm:$0xf]
      %v842 = vld [vmem:[%s355 + $0x90] sm:$0xf]
      %v843 = vld [vmem:[%s355 + $0x94] sm:$0xf]
      %v844 = vld [vmem:[%s355 + $0x98] sm:$0xf]
      %v845 = vld [vmem:[%s355 + $0x9c] sm:$0xf]
      %v846 = vld [vmem:[%s355 + $0xa0] sm:$0xf]
      %v847 = vld [vmem:[%s355 + $0xa4] sm:$0xf]
      %v848 = vld [vmem:[%s355 + $0xa8] sm:$0xf]
      %v849 = vld [vmem:[%s355 + $0xac] sm:$0xf]
      %v850 = vld [vmem:[%s355 + $0xb0] sm:$0xf]
      %v851 = vld [vmem:[%s355 + $0xb4] sm:$0xf]
      %v852 = vld [vmem:[%s355 + $0xb8] sm:$0xf]
      %v853 = vld [vmem:[%s355 + $0xbc] sm:$0xf]
      %v854 = vld [vmem:[%s355 + $0xc0] sm:$0xf]
      %v855 = vld [vmem:[%s355 + $0xc4] sm:$0xf]
      %v856 = vld [vmem:[%s355 + $0xc8] sm:$0xf]
      %v857 = vld [vmem:[%s355 + $0xcc] sm:$0xf]
      %v858 = vld [vmem:[%s355 + $0xd0] sm:$0xf]
      %v859 = vld [vmem:[%s355 + $0xd4] sm:$0xf]
      %v860 = vld [vmem:[%s355 + $0xd8] sm:$0xf]
      %v861 = vld [vmem:[%s355 + $0xdc] sm:$0xf]
      %v862 = vld [vmem:[%s355 + $0xe0] sm:$0xf]
      %v863 = vld [vmem:[%s355 + $0xe4] sm:$0xf]
      %v864 = vld [vmem:[%s355 + $0xe8] sm:$0xf]
      %v865 = vld [vmem:[%s355 + $0xec] sm:$0xf]
      %v866 = vld [vmem:[%s355 + $0xf0] sm:$0xf]
      %v867 = vld [vmem:[%s355 + $0xf4] sm:$0xf]
      %v868 = vld [vmem:[%s355 + $0xf8] sm:$0xf]
      %v869 = vld [vmem:[%s355 + $0xfc] sm:$0xf]
      %v870 = vld [vmem:[%s355 + $0x100] sm:$0xf]
      %v871 = vld [vmem:[%s355 + $0x104] sm:$0xf]
      %v872 = vld [vmem:[%s355 + $0x108] sm:$0xf]
      %v873 = vld [vmem:[%s355 + $0x10c] sm:$0xf]
      %v874 = vld [vmem:[%s355 + $0x110] sm:$0xf]
      %v875 = vld [vmem:[%s355 + $0x114] sm:$0xf]
      %v876 = vld [vmem:[%s355 + $0x118] sm:$0xf]
      %v877 = vld [vmem:[%s355 + $0x11c] sm:$0xf]
      %v878 = vld [vmem:[%s355 + $0x120] sm:$0xf]
      %v879 = vld [vmem:[%s355 + $0x124] sm:$0xf]
      %v880 = vld [vmem:[%s355 + $0x128] sm:$0xf]
      %v881 = vld [vmem:[%s355 + $0x12c] sm:$0xf]
      %v882 = vld [vmem:[%s355 + $0x130] sm:$0xf]
      %v883 = vld [vmem:[%s355 + $0x134] sm:$0xf]
      %v884 = vld [vmem:[%s355 + $0x138] sm:$0xf]
      %v885 = vld [vmem:[%s355 + $0x13c] sm:$0xf]
      %v886 = vld [vmem:[%s355 + $0x140] sm:$0xf]
      %v887 = vld [vmem:[%s355 + $0x144] sm:$0xf]
      %v888 = vld [vmem:[%s355 + $0x148] sm:$0xf]
      %v889 = vld [vmem:[%s355 + $0x14c] sm:$0xf]
      %v890 = vld [vmem:[%s355 + $0x150] sm:$0xf]
      %v891 = vld [vmem:[%s355 + $0x154] sm:$0xf]
      %v892 = vld [vmem:[%s355 + $0x158] sm:$0xf]
      %v893 = vld [vmem:[%s355 + $0x15c] sm:$0xf]
      %v894 = vld [vmem:[%s355 + $0x160] sm:$0xf]
      %v895 = vld [vmem:[%s355 + $0x164] sm:$0xf]
      %v896 = vld [vmem:[%s355 + $0x168] sm:$0xf]
      %v897 = vld [vmem:[%s355 + $0x16c] sm:$0xf]
      %v898 = vld [vmem:[%s355 + $0x170] sm:$0xf]
      %v899 = vld [vmem:[%s355 + $0x174] sm:$0xf]
      %v900 = vld [vmem:[%s355 + $0x178] sm:$0xf]
      %v901 = vld [vmem:[%s355 + $0x17c] sm:$0xf]
      %v902 = vld [vmem:[%s355 + $0x180] sm:$0xf]
      %v903 = vld [vmem:[%s355 + $0x184] sm:$0xf]
      %v904 = vld [vmem:[%s355 + $0x188] sm:$0xf]
      %v905 = vld [vmem:[%s355 + $0x18c] sm:$0xf]
      %v906 = vld [vmem:[%s355 + $0x190] sm:$0xf]
      %v907 = vld [vmem:[%s355 + $0x194] sm:$0xf]
      %v908 = vld [vmem:[%s355 + $0x198] sm:$0xf]
      %v909 = vld [vmem:[%s355 + $0x19c] sm:$0xf]
      %v910 = vld [vmem:[%s355 + $0x1a0] sm:$0xf]
      %v911 = vld [vmem:[%s355 + $0x1a4] sm:$0xf]
      %v912 = vld [vmem:[%s355 + $0x1a8] sm:$0xf]
      %v913 = vld [vmem:[%s355 + $0x1ac] sm:$0xf]
      %v914 = vld [vmem:[%s355 + $0x1b0] sm:$0xf]
      %v915 = vld [vmem:[%s355 + $0x1b4] sm:$0xf]
      %v916 = vld [vmem:[%s355 + $0x1b8] sm:$0xf]
      %v917 = vld [vmem:[%s355 + $0x1bc] sm:$0xf]
      %v918 = vld [vmem:[%s355 + $0x1c0] sm:$0xf]
      %v919 = vld [vmem:[%s355 + $0x1c4] sm:$0xf]
      %v920 = vld [vmem:[%s355 + $0x1c8] sm:$0xf]
      %v921 = vld [vmem:[%s355 + $0x1cc] sm:$0xf]
      %v922 = vld [vmem:[%s355 + $0x1d0] sm:$0xf]
      %v923 = vld [vmem:[%s355 + $0x1d4] sm:$0xf]
      %v924 = vld [vmem:[%s355 + $0x1d8] sm:$0xf]
      %v925 = vld [vmem:[%s355 + $0x1dc] sm:$0xf]
      %v926 = vld [vmem:[%s355 + $0x1e0] sm:$0xf]
      %v927 = vld [vmem:[%s355 + $0x1e4] sm:$0xf]
      %v928 = vld [vmem:[%s355 + $0x1e8] sm:$0xf]
      %v929 = vld [vmem:[%s355 + $0x1ec] sm:$0xf]
      %v930 = vld [vmem:[%s355 + $0x1f0] sm:$0xf]
      %v931 = vld [vmem:[%s355 + $0x1f4] sm:$0xf]
      %v932 = vld [vmem:[%s355 + $0x1f8] sm:$0xf]
      %v933 = vld [vmem:[%s355 + $0x1fc] sm:$0xf]
      %v934 = vld [vmem:[%s355 + $0x200] sm:$0xf]
      %v935 = vld [vmem:[%s355 + $0x204] sm:$0xf]
      %v936 = vld [vmem:[%s355 + $0x208] sm:$0xf]
      %v937 = vld [vmem:[%s355 + $0x20c] sm:$0xf]
      %v938 = vld [vmem:[%s355 + $0x210] sm:$0xf]
      %v939 = vld [vmem:[%s355 + $0x214] sm:$0xf]
      %v940 = vld [vmem:[%s355 + $0x218] sm:$0xf]
      %v941 = vld [vmem:[%s355 + $0x21c] sm:$0xf]
      %v942 = vld [vmem:[%s355 + $0x220] sm:$0xf]
      %v943 = vld [vmem:[%s355 + $0x224] sm:$0xf]
      %v944 = vld [vmem:[%s355 + $0x228] sm:$0xf]
      %v945 = vld [vmem:[%s355 + $0x22c] sm:$0xf]
      %v946 = vld [vmem:[%s355 + $0x230] sm:$0xf]
      %v947 = vld [vmem:[%s355 + $0x234] sm:$0xf]
      %v948 = vld [vmem:[%s355 + $0x238] sm:$0xf]
      %v949 = vld [vmem:[%s355 + $0x23c] sm:$0xf]
      %v950 = vld [vmem:[%s355 + $0x240] sm:$0xf]
      %v951 = vld [vmem:[%s355 + $0x244] sm:$0xf]
      %v952 = vld [vmem:[%s355 + $0x248] sm:$0xf]
      %v953 = vld [vmem:[%s355 + $0x24c] sm:$0xf]
      %v954 = vld [vmem:[%s355 + $0x250] sm:$0xf]
      %v955 = vld [vmem:[%s355 + $0x254] sm:$0xf]
      %v956 = vld [vmem:[%s355 + $0x258] sm:$0xf]
      %v957 = vld [vmem:[%s355 + $0x25c] sm:$0xf]
      %v958 = vld [vmem:[%s355 + $0x260] sm:$0xf]
      %v959 = vld [vmem:[%s355 + $0x264] sm:$0xf]
      %v960 = vld [vmem:[%s355 + $0x268] sm:$0xf]
      %v961 = vld [vmem:[%s355 + $0x26c] sm:$0xf]
      %v962 = vld [vmem:[%s355 + $0x270] sm:$0xf]
      %v963 = vld [vmem:[%s355 + $0x274] sm:$0xf]
      %v964 = vld [vmem:[%s355 + $0x278] sm:$0xf]
      %v965 = vld [vmem:[%s355 + $0x27c] sm:$0xf]
      %v966 = vld [vmem:[%s355 + $0x280] sm:$0xf]
      %v967 = vld [vmem:[%s355 + $0x284] sm:$0xf]
      %v968 = vld [vmem:[%s355 + $0x288] sm:$0xf]
      %v969 = vld [vmem:[%s355 + $0x28c] sm:$0xf]
      %v970 = vld [vmem:[%s355 + $0x290] sm:$0xf]
      %v971 = vld [vmem:[%s355 + $0x294] sm:$0xf]
      %v972 = vld [vmem:[%s355 + $0x298] sm:$0xf]
      %v973 = vld [vmem:[%s355 + $0x29c] sm:$0xf]
      %v974 = vld [vmem:[%s355 + $0x2a0] sm:$0xf]
      %v975 = vld [vmem:[%s355 + $0x2a4] sm:$0xf]
      %v976 = vld [vmem:[%s355 + $0x2a8] sm:$0xf]
      %v977 = vld [vmem:[%s355 + $0x2ac] sm:$0xf]
      %v978 = vld [vmem:[%s355 + $0x2b0] sm:$0xf]
      %v979 = vld [vmem:[%s355 + $0x2b4] sm:$0xf]
      %v980 = vld [vmem:[%s355 + $0x2b8] sm:$0xf]
      %v981 = vld [vmem:[%s355 + $0x2bc] sm:$0xf]
      %v982 = vld [vmem:[%s355 + $0x2c0] sm:$0xf]
      %v983 = vld [vmem:[%s355 + $0x2c4] sm:$0xf]
      %v984 = vld [vmem:[%s355 + $0x2c8] sm:$0xf]
      %v985 = vld [vmem:[%s355 + $0x2cc] sm:$0xf]
      %v986 = vld [vmem:[%s355 + $0x2d0] sm:$0xf]
      %v987 = vld [vmem:[%s355 + $0x2d4] sm:$0xf]
      %v988 = vld [vmem:[%s355 + $0x2d8] sm:$0xf]
      %v989 = vld [vmem:[%s355 + $0x2dc] sm:$0xf]
      %v990 = vld [vmem:[%s355 + $0x2e0] sm:$0xf]
      %v991 = vld [vmem:[%s355 + $0x2e4] sm:$0xf]
      %v992 = vld [vmem:[%s355 + $0x2e8] sm:$0xf]
      %v993 = vld [vmem:[%s355 + $0x2ec] sm:$0xf]
      %v994 = vld [vmem:[%s355 + $0x2f0] sm:$0xf]
      %v995 = vld [vmem:[%s355 + $0x2f4] sm:$0xf]
      %v996 = vld [vmem:[%s355 + $0x2f8] sm:$0xf]
      %v997 = vld [vmem:[%s355 + $0x2fc] sm:$0xf]
      %v998 = vld [vmem:[%s355 + $0x300] sm:$0xf]
      %v999 = vld [vmem:[%s355 + $0x304] sm:$0xf]
      %v1000 = vld [vmem:[%s355 + $0x308] sm:$0xf]
      %v1001 = vld [vmem:[%s355 + $0x30c] sm:$0xf]
      %v1002 = vld [vmem:[%s355 + $0x310] sm:$0xf]
      %v1003 = vld [vmem:[%s355 + $0x314] sm:$0xf]
      %v1004 = vld [vmem:[%s355 + $0x318] sm:$0xf]
      %v1005 = vld [vmem:[%s355 + $0x31c] sm:$0xf]
      %v1006 = vld [vmem:[%s355 + $0x320] sm:$0xf]
      %v1007 = vld [vmem:[%s355 + $0x324] sm:$0xf]
      %v1008 = vld [vmem:[%s355 + $0x328] sm:$0xf]
      %v1009 = vld [vmem:[%s355 + $0x32c] sm:$0xf]
      %v1010 = vld [vmem:[%s355 + $0x330] sm:$0xf]
      %v1011 = vld [vmem:[%s355 + $0x334] sm:$0xf]
      %v1012 = vld [vmem:[%s355 + $0x338] sm:$0xf]
      %v1013 = vld [vmem:[%s355 + $0x33c] sm:$0xf]
      %v1014 = vld [vmem:[%s355 + $0x340] sm:$0xf]
      %v1015 = vld [vmem:[%s355 + $0x344] sm:$0xf]
      %v1016 = vld [vmem:[%s355 + $0x348] sm:$0xf]
      %v1017 = vld [vmem:[%s355 + $0x34c] sm:$0xf]
      %v1018 = vld [vmem:[%s355 + $0x350] sm:$0xf]
      %v1019 = vld [vmem:[%s355 + $0x354] sm:$0xf]
      %v1020 = vld [vmem:[%s355 + $0x358] sm:$0xf]
      %v1021 = vld [vmem:[%s355 + $0x35c] sm:$0xf]
      %v1022 = vld [vmem:[%s355 + $0x360] sm:$0xf]
      %v1023 = vld [vmem:[%s355 + $0x364] sm:$0xf]
      %v1024 = vld [vmem:[%s355 + $0x368] sm:$0xf]
      %v1025 = vld [vmem:[%s355 + $0x36c] sm:$0xf]
      %v1026 = vld [vmem:[%s355 + $0x370] sm:$0xf]
      %v1027 = vld [vmem:[%s355 + $0x374] sm:$0xf]
      %v1028 = vld [vmem:[%s355 + $0x378] sm:$0xf]
      %v1029 = vld [vmem:[%s355 + $0x37c] sm:$0xf]
      %v1030 = vld [vmem:[%s355 + $0x380] sm:$0xf]
      %v1031 = vld [vmem:[%s355 + $0x384] sm:$0xf]
      %v1032 = vld [vmem:[%s355 + $0x388] sm:$0xf]
      %v1033 = vld [vmem:[%s355 + $0x38c] sm:$0xf]
      %v1034 = vld [vmem:[%s355 + $0x390] sm:$0xf]
      %v1035 = vld [vmem:[%s355 + $0x394] sm:$0xf]
      %v1036 = vld [vmem:[%s355 + $0x398] sm:$0xf]
      %v1037 = vld [vmem:[%s355 + $0x39c] sm:$0xf]
      %v1038 = vld [vmem:[%s355 + $0x3a0] sm:$0xf]
      %v1039 = vld [vmem:[%s355 + $0x3a4] sm:$0xf]
      %v1040 = vld [vmem:[%s355 + $0x3a8] sm:$0xf]
      %v1041 = vld [vmem:[%s355 + $0x3ac] sm:$0xf]
      %v1042 = vld [vmem:[%s355 + $0x3b0] sm:$0xf]
      %v1043 = vld [vmem:[%s355 + $0x3b4] sm:$0xf]
      %v1044 = vld [vmem:[%s355 + $0x3b8] sm:$0xf]
      %v1045 = vld [vmem:[%s355 + $0x3bc] sm:$0xf]
      %v1046 = vld [vmem:[%s355 + $0x3c0] sm:$0xf]
      %v1047 = vld [vmem:[%s355 + $0x3c4] sm:$0xf]
      %v1048 = vld [vmem:[%s355 + $0x3c8] sm:$0xf]
      %v1049 = vld [vmem:[%s355 + $0x3cc] sm:$0xf]
      %v1050 = vld [vmem:[%s355 + $0x3d0] sm:$0xf]
      %v1051 = vld [vmem:[%s355 + $0x3d4] sm:$0xf]
      %v1052 = vld [vmem:[%s355 + $0x3d8] sm:$0xf]
      %v1053 = vld [vmem:[%s355 + $0x3dc] sm:$0xf]
      %v1054 = vld [vmem:[%s355 + $0x3e0] sm:$0xf]
      %v1055 = vld [vmem:[%s355 + $0x3e4] sm:$0xf]
      %v1056 = vld [vmem:[%s355 + $0x3e8] sm:$0xf]
      %v1057 = vld [vmem:[%s355 + $0x3ec] sm:$0xf]
      %v1058 = vld [vmem:[%s355 + $0x3f0] sm:$0xf]
      %v1059 = vld [vmem:[%s355 + $0x3f4] sm:$0xf]
      %v1060 = vld [vmem:[%s355 + $0x3f8] sm:$0xf]
      %v1061 = vld [vmem:[%s355 + $0x3fc] sm:$0xf]
      %v1062 = vld [vmem:[%s355 + $0x400] sm:$0xf]
      %v1063 = vld [vmem:[%s355 + $0x404] sm:$0xf]
      %v1064 = vld [vmem:[%s355 + $0x408] sm:$0xf]
      %v1065 = vld [vmem:[%s355 + $0x40c] sm:$0xf]
      %v1066 = vld [vmem:[%s355 + $0x410] sm:$0xf]
      %v1067 = vld [vmem:[%s355 + $0x414] sm:$0xf]
      %v1068 = vld [vmem:[%s355 + $0x418] sm:$0xf]
      %v1069 = vld [vmem:[%s355 + $0x41c] sm:$0xf]
      %v1070 = vld [vmem:[%s355 + $0x420] sm:$0xf]
      %v1071 = vld [vmem:[%s355 + $0x424] sm:$0xf]
      %v1072 = vld [vmem:[%s355 + $0x428] sm:$0xf]
      %v1073 = vld [vmem:[%s355 + $0x42c] sm:$0xf]
      %v1074 = vld [vmem:[%s355 + $0x430] sm:$0xf]
      %v1075 = vld [vmem:[%s355 + $0x434] sm:$0xf]
      %v1076 = vld [vmem:[%s355 + $0x438] sm:$0xf]
      %v1077 = vld [vmem:[%s355 + $0x43c] sm:$0xf]
      %v1078 = vld [vmem:[%s355 + $0x440] sm:$0xf]
      %v1079 = vld [vmem:[%s355 + $0x444] sm:$0xf]
      %v1080 = vld [vmem:[%s355 + $0x448] sm:$0xf]
      %v1081 = vld [vmem:[%s355 + $0x44c] sm:$0xf]
      %v1082 = vld [vmem:[%s355 + $0x450] sm:$0xf]
      %v1083 = vld [vmem:[%s355 + $0x454] sm:$0xf]
      %v1084 = vld [vmem:[%s355 + $0x458] sm:$0xf]
      %v1085 = vld [vmem:[%s355 + $0x45c] sm:$0xf]
      %v1086 = vld [vmem:[%s355 + $0x460] sm:$0xf]
      %v1087 = vld [vmem:[%s355 + $0x464] sm:$0xf]
      %v1088 = vld [vmem:[%s355 + $0x468] sm:$0xf]
      %v1089 = vld [vmem:[%s355 + $0x46c] sm:$0xf]
      %v1090 = vld [vmem:[%s355 + $0x470] sm:$0xf]
      %v1091 = vld [vmem:[%s355 + $0x474] sm:$0xf]
      %v1092 = vld [vmem:[%s355 + $0x478] sm:$0xf]
      %v1093 = vld [vmem:[%s355 + $0x47c] sm:$0xf]
      %v1094 = vld [vmem:[%s355 + $0x480] sm:$0xf]
      %v1095 = vld [vmem:[%s355 + $0x484] sm:$0xf]
      %v1096 = vld [vmem:[%s355 + $0x488] sm:$0xf]
      %v1097 = vld [vmem:[%s355 + $0x48c] sm:$0xf]
      %v1098 = vld [vmem:[%s355 + $0x490] sm:$0xf]
      %v1099 = vld [vmem:[%s355 + $0x494] sm:$0xf]
      %v1100 = vld [vmem:[%s355 + $0x498] sm:$0xf]
      %v1101 = vld [vmem:[%s355 + $0x49c] sm:$0xf]
      %v1102 = vld [vmem:[%s355 + $0x4a0] sm:$0xf]
      %v1103 = vld [vmem:[%s355 + $0x4a4] sm:$0xf]
      %v1104 = vld [vmem:[%s355 + $0x4a8] sm:$0xf]
      %v1105 = vld [vmem:[%s355 + $0x4ac] sm:$0xf]
      %v1106 = vld [vmem:[%s355 + $0x4b0] sm:$0xf]
      %v1107 = vld [vmem:[%s355 + $0x4b4] sm:$0xf]
      %v1108 = vld [vmem:[%s355 + $0x4b8] sm:$0xf]
      %v1109 = vld [vmem:[%s355 + $0x4bc] sm:$0xf]
      %v1110 = vld [vmem:[%s355 + $0x4c0] sm:$0xf]
      %v1111 = vld [vmem:[%s355 + $0x4c4] sm:$0xf]
      %v1112 = vld [vmem:[%s355 + $0x4c8] sm:$0xf]
      %v1113 = vld [vmem:[%s355 + $0x4cc] sm:$0xf]
      %v1114 = vld [vmem:[%s355 + $0x4d0] sm:$0xf]
      %v1115 = vld [vmem:[%s355 + $0x4d4] sm:$0xf]
      %v1116 = vld [vmem:[%s355 + $0x4d8] sm:$0xf]
      %v1117 = vld [vmem:[%s355 + $0x4dc] sm:$0xf]
      %v1118 = vld [vmem:[%s355 + $0x4e0] sm:$0xf]
      %v1119 = vld [vmem:[%s355 + $0x4e4] sm:$0xf]
      %v1120 = vld [vmem:[%s355 + $0x4e8] sm:$0xf]
      %v1121 = vld [vmem:[%s355 + $0x4ec] sm:$0xf]
      %v1122 = vld [vmem:[%s355 + $0x4f0] sm:$0xf]
      %v1123 = vld [vmem:[%s355 + $0x4f4] sm:$0xf]
      %v1124 = vld [vmem:[%s355 + $0x4f8] sm:$0xf]
      %v1125 = vld [vmem:[%s355 + $0x4fc] sm:$0xf]
      %v1126 = vld [vmem:[%s355 + $0x500] sm:$0xf]
      %v1127 = vld [vmem:[%s355 + $0x504] sm:$0xf]
      %v1128 = vld [vmem:[%s355 + $0x508] sm:$0xf]
      %v1129 = vld [vmem:[%s355 + $0x50c] sm:$0xf]
      %v1130 = vld [vmem:[%s355 + $0x510] sm:$0xf]
      %v1131 = vld [vmem:[%s355 + $0x514] sm:$0xf]
      %v1132 = vld [vmem:[%s355 + $0x518] sm:$0xf]
      %v1133 = vld [vmem:[%s355 + $0x51c] sm:$0xf]
      %v1134 = vld [vmem:[%s355 + $0x520] sm:$0xf]
      %v1135 = vld [vmem:[%s355 + $0x524] sm:$0xf]
      %v1136 = vld [vmem:[%s355 + $0x528] sm:$0xf]
      %v1137 = vld [vmem:[%s355 + $0x52c] sm:$0xf]
      %v1138 = vld [vmem:[%s355 + $0x530] sm:$0xf]
      %v1139 = vld [vmem:[%s355 + $0x534] sm:$0xf]
      %v1140 = vld [vmem:[%s355 + $0x538] sm:$0xf]
      %v1141 = vld [vmem:[%s355 + $0x53c] sm:$0xf]
      %v1142 = vld [vmem:[%s355 + $0x540] sm:$0xf]
      %v1143 = vld [vmem:[%s355 + $0x544] sm:$0xf]
      %v1144 = vld [vmem:[%s355 + $0x548] sm:$0xf]
      %v1145 = vld [vmem:[%s355 + $0x54c] sm:$0xf]
      %v1146 = vld [vmem:[%s355 + $0x550] sm:$0xf]
      %v1147 = vld [vmem:[%s355 + $0x554] sm:$0xf]
      %v1148 = vld [vmem:[%s355 + $0x558] sm:$0xf]
      %v1149 = vld [vmem:[%s355 + $0x55c] sm:$0xf]
      %v1150 = vld [vmem:[%s355 + $0x560] sm:$0xf]
      %v1151 = vld [vmem:[%s355 + $0x564] sm:$0xf]
      %v1152 = vld [vmem:[%s355 + $0x568] sm:$0xf]
      %v1153 = vld [vmem:[%s355 + $0x56c] sm:$0xf]
      %v1154 = vld [vmem:[%s355 + $0x570] sm:$0xf]
      %v1155 = vld [vmem:[%s355 + $0x574] sm:$0xf]
      %v1156 = vld [vmem:[%s355 + $0x578] sm:$0xf]
      %v1157 = vld [vmem:[%s355 + $0x57c] sm:$0xf]
      %v1158 = vld [vmem:[%s355 + $0x580] sm:$0xf]
      %v1159 = vld [vmem:[%s355 + $0x584] sm:$0xf]
      %v1160 = vld [vmem:[%s355 + $0x588] sm:$0xf]
      %v1161 = vld [vmem:[%s355 + $0x58c] sm:$0xf]
      %v1162 = vld [vmem:[%s355 + $0x590] sm:$0xf]
      %v1163 = vld [vmem:[%s355 + $0x594] sm:$0xf]
      %v1164 = vld [vmem:[%s355 + $0x598] sm:$0xf]
      %v1165 = vld [vmem:[%s355 + $0x59c] sm:$0xf]
      %v1166 = vld [vmem:[%s355 + $0x5a0] sm:$0xf]
      %v1167 = vld [vmem:[%s355 + $0x5a4] sm:$0xf]
      %v1168 = vld [vmem:[%s355 + $0x5a8] sm:$0xf]
      %v1169 = vld [vmem:[%s355 + $0x5ac] sm:$0xf]
      %v1170 = vld [vmem:[%s355 + $0x5b0] sm:$0xf]
      %v1171 = vld [vmem:[%s355 + $0x5b4] sm:$0xf]
      %v1172 = vld [vmem:[%s355 + $0x5b8] sm:$0xf]
      %v1173 = vld [vmem:[%s355 + $0x5bc] sm:$0xf]
      %v1174 = vld [vmem:[%s355 + $0x5c0] sm:$0xf]
      %v1175 = vld [vmem:[%s355 + $0x5c4] sm:$0xf]
      %v1176 = vld [vmem:[%s355 + $0x5c8] sm:$0xf]
      %v1177 = vld [vmem:[%s355 + $0x5cc] sm:$0xf]
      %v1178 = vld [vmem:[%s355 + $0x5d0] sm:$0xf]
      %v1179 = vld [vmem:[%s355 + $0x5d4] sm:$0xf]
      %v1180 = vld [vmem:[%s355 + $0x5d8] sm:$0xf]
      %v1181 = vld [vmem:[%s355 + $0x5dc] sm:$0xf]
      %v1182 = vld [vmem:[%s355 + $0x5e0] sm:$0xf]
      %v1183 = vld [vmem:[%s355 + $0x5e4] sm:$0xf]
      %v1184 = vld [vmem:[%s355 + $0x5e8] sm:$0xf]
      %v1185 = vld [vmem:[%s355 + $0x5ec] sm:$0xf]
      %v1186 = vld [vmem:[%s355 + $0x5f0] sm:$0xf]
      %v1187 = vld [vmem:[%s355 + $0x5f4] sm:$0xf]
      %v1188 = vld [vmem:[%s355 + $0x5f8] sm:$0xf]
      %v1189 = vld [vmem:[%s355 + $0x5fc] sm:$0xf]
      %v1190 = vld [vmem:[%s355 + $0x600] sm:$0xf]
      %v1191 = vld [vmem:[%s355 + $0x604] sm:$0xf]
      %v1192 = vld [vmem:[%s355 + $0x608] sm:$0xf]
      %v1193 = vld [vmem:[%s355 + $0x60c] sm:$0xf]
      %v1194 = vld [vmem:[%s355 + $0x610] sm:$0xf]
      %v1195 = vld [vmem:[%s355 + $0x614] sm:$0xf]
      %v1196 = vld [vmem:[%s355 + $0x618] sm:$0xf]
      %v1197 = vld [vmem:[%s355 + $0x61c] sm:$0xf]
      %v1198 = vld [vmem:[%s355 + $0x620] sm:$0xf]
      %v1199 = vld [vmem:[%s355 + $0x624] sm:$0xf]
      %v1200 = vld [vmem:[%s355 + $0x628] sm:$0xf]
      %v1201 = vld [vmem:[%s355 + $0x62c] sm:$0xf]
      %v1202 = vld [vmem:[%s355 + $0x630] sm:$0xf]
      %v1203 = vld [vmem:[%s355 + $0x634] sm:$0xf]
      %v1204 = vld [vmem:[%s355 + $0x638] sm:$0xf]
      %v1205 = vld [vmem:[%s355 + $0x63c] sm:$0xf]
      %v1206 = vld [vmem:[%s355 + $0x640] sm:$0xf]
      %v1207 = vld [vmem:[%s355 + $0x644] sm:$0xf]
      %v1208 = vld [vmem:[%s355 + $0x648] sm:$0xf]
      %v1209 = vld [vmem:[%s355 + $0x64c] sm:$0xf]
      %v1210 = vld [vmem:[%s355 + $0x650] sm:$0xf]
      %v1211 = vld [vmem:[%s355 + $0x654] sm:$0xf]
      %v1212 = vld [vmem:[%s355 + $0x658] sm:$0xf]
      %v1213 = vld [vmem:[%s355 + $0x65c] sm:$0xf]
      %v1214 = vld [vmem:[%s355 + $0x660] sm:$0xf]
      %v1215 = vld [vmem:[%s355 + $0x664] sm:$0xf]
      %v1216 = vld [vmem:[%s355 + $0x668] sm:$0xf]
      %v1217 = vld [vmem:[%s355 + $0x66c] sm:$0xf]
      %v1218 = vld [vmem:[%s355 + $0x670] sm:$0xf]
      %v1219 = vld [vmem:[%s355 + $0x674] sm:$0xf]
      %v1220 = vld [vmem:[%s355 + $0x678] sm:$0xf]
      %v1221 = vld [vmem:[%s355 + $0x67c] sm:$0xf]
      %v1222 = vld [vmem:[%s355 + $0x680] sm:$0xf]
      %v1223 = vld [vmem:[%s355 + $0x684] sm:$0xf]
      %v1224 = vld [vmem:[%s355 + $0x688] sm:$0xf]
      %v1225 = vld [vmem:[%s355 + $0x68c] sm:$0xf]
      %v1226 = vld [vmem:[%s355 + $0x690] sm:$0xf]
      %v1227 = vld [vmem:[%s355 + $0x694] sm:$0xf]
      %v1228 = vld [vmem:[%s355 + $0x698] sm:$0xf]
      %v1229 = vld [vmem:[%s355 + $0x69c] sm:$0xf]
      %v1230 = vld [vmem:[%s355 + $0x6a0] sm:$0xf]
      %v1231 = vld [vmem:[%s355 + $0x6a4] sm:$0xf]
      %v1232 = vld [vmem:[%s355 + $0x6a8] sm:$0xf]
      %v1233 = vld [vmem:[%s355 + $0x6ac] sm:$0xf]
      %v1234 = vld [vmem:[%s355 + $0x6b0] sm:$0xf]
      %v1235 = vld [vmem:[%s355 + $0x6b4] sm:$0xf]
      %v1236 = vld [vmem:[%s355 + $0x6b8] sm:$0xf]
      %v1237 = vld [vmem:[%s355 + $0x6bc] sm:$0xf]
      %v1238 = vld [vmem:[%s355 + $0x6c0] sm:$0xf]
      %v1239 = vld [vmem:[%s355 + $0x6c4] sm:$0xf]
      %v1240 = vld [vmem:[%s355 + $0x6c8] sm:$0xf]
      %v1241 = vld [vmem:[%s355 + $0x6cc] sm:$0xf]
      %v1242 = vld [vmem:[%s355 + $0x6d0] sm:$0xf]
      %v1243 = vld [vmem:[%s355 + $0x6d4] sm:$0xf]
      %v1244 = vld [vmem:[%s355 + $0x6d8] sm:$0xf]
      %v1245 = vld [vmem:[%s355 + $0x6dc] sm:$0xf]
      %v1246 = vld [vmem:[%s355 + $0x6e0] sm:$0xf]
      %v1247 = vld [vmem:[%s355 + $0x6e4] sm:$0xf]
      %v1248 = vld [vmem:[%s355 + $0x6e8] sm:$0xf]
      %v1249 = vld [vmem:[%s355 + $0x6ec] sm:$0xf]
      %v1250 = vld [vmem:[%s355 + $0x6f0] sm:$0xf]
      %v1251 = vld [vmem:[%s355 + $0x6f4] sm:$0xf]
      %v1252 = vld [vmem:[%s355 + $0x6f8] sm:$0xf]
      %v1253 = vld [vmem:[%s355 + $0x6fc] sm:$0xf]
      %v1254 = vld [vmem:[%s355 + $0x700] sm:$0xf]
      %v1255 = vld [vmem:[%s355 + $0x704] sm:$0xf]
      %v1256 = vld [vmem:[%s355 + $0x708] sm:$0xf]
      %v1257 = vld [vmem:[%s355 + $0x70c] sm:$0xf]
      %v1258 = vld [vmem:[%s355 + $0x710] sm:$0xf]
      %v1259 = vld [vmem:[%s355 + $0x714] sm:$0xf]
      %v1260 = vld [vmem:[%s355 + $0x718] sm:$0xf]
      %v1261 = vld [vmem:[%s355 + $0x71c] sm:$0xf]
      %v1262 = vld [vmem:[%s355 + $0x720] sm:$0xf]
      %v1263 = vld [vmem:[%s355 + $0x724] sm:$0xf]
      %v1264 = vld [vmem:[%s355 + $0x728] sm:$0xf]
      %v1265 = vld [vmem:[%s355 + $0x72c] sm:$0xf]
      %v1266 = vld [vmem:[%s355 + $0x730] sm:$0xf]
      %v1267 = vld [vmem:[%s355 + $0x734] sm:$0xf]
      %v1268 = vld [vmem:[%s355 + $0x738] sm:$0xf]
      %v1269 = vld [vmem:[%s355 + $0x73c] sm:$0xf]
      %v1270 = vld [vmem:[%s355 + $0x740] sm:$0xf]
      %v1271 = vld [vmem:[%s355 + $0x744] sm:$0xf]
      %v1272 = vld [vmem:[%s355 + $0x748] sm:$0xf]
      %v1273 = vld [vmem:[%s355 + $0x74c] sm:$0xf]
      %v1274 = vld [vmem:[%s355 + $0x750] sm:$0xf]
      %v1275 = vld [vmem:[%s355 + $0x754] sm:$0xf]
      %v1276 = vld [vmem:[%s355 + $0x758] sm:$0xf]
      %v1277 = vld [vmem:[%s355 + $0x75c] sm:$0xf]
      %v1278 = vld [vmem:[%s355 + $0x760] sm:$0xf]
      %v1279 = vld [vmem:[%s355 + $0x764] sm:$0xf]
      %v1280 = vld [vmem:[%s355 + $0x768] sm:$0xf]
      %v1281 = vld [vmem:[%s355 + $0x76c] sm:$0xf]
      %v1282 = vld [vmem:[%s355 + $0x770] sm:$0xf]
      %v1283 = vld [vmem:[%s355 + $0x774] sm:$0xf]
      %v1284 = vld [vmem:[%s355 + $0x778] sm:$0xf]
      %v1285 = vld [vmem:[%s355 + $0x77c] sm:$0xf]
      %v1286 = vld [vmem:[%s355 + $0x780] sm:$0xf]
      %v1287 = vld [vmem:[%s355 + $0x784] sm:$0xf]
      %v1288 = vld [vmem:[%s355 + $0x788] sm:$0xf]
      %v1289 = vld [vmem:[%s355 + $0x78c] sm:$0xf]
      %v1290 = vld [vmem:[%s355 + $0x790] sm:$0xf]
      %v1291 = vld [vmem:[%s355 + $0x794] sm:$0xf]
      %v1292 = vld [vmem:[%s355 + $0x798] sm:$0xf]
      %v1293 = vld [vmem:[%s355 + $0x79c] sm:$0xf]
      %v1294 = vld [vmem:[%s355 + $0x7a0] sm:$0xf]
      %v1295 = vld [vmem:[%s355 + $0x7a4] sm:$0xf]
      %v1296 = vld [vmem:[%s355 + $0x7a8] sm:$0xf]
      %v1297 = vld [vmem:[%s355 + $0x7ac] sm:$0xf]
      %v1298 = vld [vmem:[%s355 + $0x7b0] sm:$0xf]
      %v1299 = vld [vmem:[%s355 + $0x7b4] sm:$0xf]
      %v1300 = vld [vmem:[%s355 + $0x7b8] sm:$0xf]
      %v1301 = vld [vmem:[%s355 + $0x7bc] sm:$0xf]
      %v1302 = vld [vmem:[%s355 + $0x7c0] sm:$0xf]
      %v1303 = vld [vmem:[%s355 + $0x7c4] sm:$0xf]
      %v1304 = vld [vmem:[%s355 + $0x7c8] sm:$0xf]
      %v1305 = vld [vmem:[%s355 + $0x7cc] sm:$0xf]
      %v1306 = vld [vmem:[%s355 + $0x7d0] sm:$0xf]
      %v1307 = vld [vmem:[%s355 + $0x7d4] sm:$0xf]
      %v1308 = vld [vmem:[%s355 + $0x7d8] sm:$0xf]
      %v1309 = vld [vmem:[%s355 + $0x7dc] sm:$0xf]
      %v1310 = vld [vmem:[%s355 + $0x7e0] sm:$0xf]
      %v1311 = vld [vmem:[%s355 + $0x7e4] sm:$0xf]
      %v1312 = vld [vmem:[%s355 + $0x7e8] sm:$0xf]
      %v1313 = vld [vmem:[%s355 + $0x7ec] sm:$0xf]
      %v1314 = vld [vmem:[%s355 + $0x7f0] sm:$0xf]
      %v1315 = vld [vmem:[%s355 + $0x7f4] sm:$0xf]
      %v1316 = vld [vmem:[%s355 + $0x7f8] sm:$0xf]
      %v1317 = vld [vmem:[%s355 + $0x7fc] sm:$0xf]
      %v1318 = vld [vmem:[%s355 + $0x800] sm:$0xf]
      %v1319 = vld [vmem:[%s355 + $0x804] sm:$0xf]
      %v1320 = vld [vmem:[%s355 + $0x808] sm:$0xf]
      %v1321 = vld [vmem:[%s355 + $0x80c] sm:$0xf]
      %v1322 = vld [vmem:[%s355 + $0x810] sm:$0xf]
      %v1323 = vld [vmem:[%s355 + $0x814] sm:$0xf]
      %v1324 = vld [vmem:[%s355 + $0x818] sm:$0xf]
      %v1325 = vld [vmem:[%s355 + $0x81c] sm:$0xf]
      %v1326 = vld [vmem:[%s355 + $0x820] sm:$0xf]
      %v1327 = vld [vmem:[%s355 + $0x824] sm:$0xf]
      %v1328 = vld [vmem:[%s355 + $0x828] sm:$0xf]
      %v1329 = vld [vmem:[%s355 + $0x82c] sm:$0xf]
      %v1330 = vld [vmem:[%s355 + $0x830] sm:$0xf]
      %v1331 = vld [vmem:[%s355 + $0x834] sm:$0xf]
      %v1332 = vld [vmem:[%s355 + $0x838] sm:$0xf]
      %v1333 = vld [vmem:[%s355 + $0x83c] sm:$0xf]
      %v1334 = vld [vmem:[%s355 + $0x840] sm:$0xf]
      %v1335 = vld [vmem:[%s355 + $0x844] sm:$0xf]
      %v1336 = vld [vmem:[%s355 + $0x848] sm:$0xf]
      %v1337 = vld [vmem:[%s355 + $0x84c] sm:$0xf]
      %v1338 = vld [vmem:[%s355 + $0x850] sm:$0xf]
      %v1339 = vld [vmem:[%s355 + $0x854] sm:$0xf]
      %v1340 = vld [vmem:[%s355 + $0x858] sm:$0xf]
      %v1341 = vld [vmem:[%s355 + $0x85c] sm:$0xf]
      %v1342 = vld [vmem:[%s355 + $0x860] sm:$0xf]
      %v1343 = vld [vmem:[%s355 + $0x864] sm:$0xf]
      %v1344 = vld [vmem:[%s355 + $0x868] sm:$0xf]
      %v1345 = vld [vmem:[%s355 + $0x86c] sm:$0xf]
      %v1346 = vld [vmem:[%s355 + $0x870] sm:$0xf]
      %v1347 = vld [vmem:[%s355 + $0x874] sm:$0xf]
      %v1348 = vld [vmem:[%s355 + $0x878] sm:$0xf]
      %v1349 = vld [vmem:[%s355 + $0x87c] sm:$0xf]
      %v1350 = vld [vmem:[%s355 + $0x880] sm:$0xf]
      %v1351 = vld [vmem:[%s355 + $0x884] sm:$0xf]
      %v1352 = vld [vmem:[%s355 + $0x888] sm:$0xf]
      %v1353 = vld [vmem:[%s355 + $0x88c] sm:$0xf]
      %v1354 = vld [vmem:[%s355 + $0x890] sm:$0xf]
      %v1355 = vld [vmem:[%s355 + $0x894] sm:$0xf]
      %v1356 = vld [vmem:[%s355 + $0x898] sm:$0xf]
      %v1357 = vld [vmem:[%s355 + $0x89c] sm:$0xf]
      %v1358 = vld [vmem:[%s355 + $0x8a0] sm:$0xf]
      %v1359 = vld [vmem:[%s355 + $0x8a4] sm:$0xf]
      %v1360 = vld [vmem:[%s355 + $0x8a8] sm:$0xf]
      %v1361 = vld [vmem:[%s355 + $0x8ac] sm:$0xf]
      %v1362 = vld [vmem:[%s355 + $0x8b0] sm:$0xf]
      %v1363 = vld [vmem:[%s355 + $0x8b4] sm:$0xf]
      %v1364 = vld [vmem:[%s355 + $0x8b8] sm:$0xf]
      %v1365 = vld [vmem:[%s355 + $0x8bc] sm:$0xf]
      %v1366 = vld [vmem:[%s355 + $0x8c0] sm:$0xf]
      %v1367 = vld [vmem:[%s355 + $0x8c4] sm:$0xf]
      %v1368 = vld [vmem:[%s355 + $0x8c8] sm:$0xf]
      %v1369 = vld [vmem:[%s355 + $0x8cc] sm:$0xf]
      %v1370 = vld [vmem:[%s355 + $0x8d0] sm:$0xf]
      %v1371 = vld [vmem:[%s355 + $0x8d4] sm:$0xf]
      %v1372 = vld [vmem:[%s355 + $0x8d8] sm:$0xf]
      %v1373 = vld [vmem:[%s355 + $0x8dc] sm:$0xf]
      %v1374 = vld [vmem:[%s355 + $0x8e0] sm:$0xf]
      %v1375 = vld [vmem:[%s355 + $0x8e4] sm:$0xf]
      %v1376 = vld [vmem:[%s355 + $0x8e8] sm:$0xf]
      %v1377 = vld [vmem:[%s355 + $0x8ec] sm:$0xf]
      %v1378 = vld [vmem:[%s355 + $0x8f0] sm:$0xf]
      %v1379 = vld [vmem:[%s355 + $0x8f4] sm:$0xf]
      %v1380 = vld [vmem:[%s355 + $0x8f8] sm:$0xf]
      %v1381 = vld [vmem:[%s355 + $0x8fc] sm:$0xf]
      %v1382 = vld [vmem:[%s355 + $0x900] sm:$0xf]
      %v1383 = vld [vmem:[%s355 + $0x904] sm:$0xf]
      %v1384 = vld [vmem:[%s355 + $0x908] sm:$0xf]
      %v1385 = vld [vmem:[%s355 + $0x90c] sm:$0xf]
      %v1386 = vld [vmem:[%s355 + $0x910] sm:$0xf]
      %v1387 = vld [vmem:[%s355 + $0x914] sm:$0xf]
      %v1388 = vld [vmem:[%s355 + $0x918] sm:$0xf]
      %v1389 = vld [vmem:[%s355 + $0x91c] sm:$0xf]
      %v1390 = vld [vmem:[%s355 + $0x920] sm:$0xf]
      %v1391 = vld [vmem:[%s355 + $0x924] sm:$0xf]
      %v1392 = vld [vmem:[%s355 + $0x928] sm:$0xf]
      %v1393 = vld [vmem:[%s355 + $0x92c] sm:$0xf]
      %v1394 = vld [vmem:[%s355 + $0x930] sm:$0xf]
      %v1395 = vld [vmem:[%s355 + $0x934] sm:$0xf]
      %v1396 = vld [vmem:[%s355 + $0x938] sm:$0xf]
      %v1397 = vld [vmem:[%s355 + $0x93c] sm:$0xf]
      %v1398 = vld [vmem:[%s355 + $0x940] sm:$0xf]
      %v1399 = vld [vmem:[%s355 + $0x944] sm:$0xf]
      %v1400 = vld [vmem:[%s355 + $0x948] sm:$0xf]
      %v1401 = vld [vmem:[%s355 + $0x94c] sm:$0xf]
      %v1402 = vld [vmem:[%s355 + $0x950] sm:$0xf]
      %v1403 = vld [vmem:[%s355 + $0x954] sm:$0xf]
      %v1404 = vld [vmem:[%s355 + $0x958] sm:$0xf]
      %v1405 = vld [vmem:[%s355 + $0x95c] sm:$0xf]
      %v1406 = vld [vmem:[%s355 + $0x960] sm:$0xf]
      %v1407 = vld [vmem:[%s355 + $0x964] sm:$0xf]
      %v1408 = vld [vmem:[%s355 + $0x968] sm:$0xf]
      %v1409 = vld [vmem:[%s355 + $0x96c] sm:$0xf]
      %v1410 = vld [vmem:[%s355 + $0x970] sm:$0xf]
      %v1411 = vld [vmem:[%s355 + $0x974] sm:$0xf]
      %v1412 = vld [vmem:[%s355 + $0x978] sm:$0xf]
      %v1413 = vld [vmem:[%s355 + $0x97c] sm:$0xf]
      %v1414 = vld [vmem:[%s355 + $0x980] sm:$0xf]
      %v1415 = vld [vmem:[%s355 + $0x984] sm:$0xf]
      %v1416 = vld [vmem:[%s355 + $0x988] sm:$0xf]
      %v1417 = vld [vmem:[%s355 + $0x98c] sm:$0xf]
      %v1418 = vld [vmem:[%s355 + $0x990] sm:$0xf]
      %v1419 = vld [vmem:[%s355 + $0x994] sm:$0xf]
      %v1420 = vld [vmem:[%s355 + $0x998] sm:$0xf]
      %v1421 = vld [vmem:[%s355 + $0x99c] sm:$0xf]
      %v1422 = vld [vmem:[%s355 + $0x9a0] sm:$0xf]
      %v1423 = vld [vmem:[%s355 + $0x9a4] sm:$0xf]
      %v1424 = vld [vmem:[%s355 + $0x9a8] sm:$0xf]
      %v1425 = vld [vmem:[%s355 + $0x9ac] sm:$0xf]
      %v1426 = vld [vmem:[%s355 + $0x9b0] sm:$0xf]
      %v1427 = vld [vmem:[%s355 + $0x9b4] sm:$0xf]
      %v1428 = vld [vmem:[%s355 + $0x9b8] sm:$0xf]
      %v1429 = vld [vmem:[%s355 + $0x9bc] sm:$0xf]
      %v1430 = vld [vmem:[%s355 + $0x9c0] sm:$0xf]
      %v1431 = vld [vmem:[%s355 + $0x9c4] sm:$0xf]
      %v1432 = vld [vmem:[%s355 + $0x9c8] sm:$0xf]
      %v1433 = vld [vmem:[%s355 + $0x9cc] sm:$0xf]
      %v1434 = vld [vmem:[%s355 + $0x9d0] sm:$0xf]
      %v1435 = vld [vmem:[%s355 + $0x9d4] sm:$0xf]
      %v1436 = vld [vmem:[%s355 + $0x9d8] sm:$0xf]
      %v1437 = vld [vmem:[%s355 + $0x9dc] sm:$0xf]
      %v1438 = vld [vmem:[%s355 + $0x9e0] sm:$0xf]
      %v1439 = vld [vmem:[%s355 + $0x9e4] sm:$0xf]
      %v1440 = vld [vmem:[%s355 + $0x9e8] sm:$0xf]
      %v1441 = vld [vmem:[%s355 + $0x9ec] sm:$0xf]
      %v1442 = vld [vmem:[%s355 + $0x9f0] sm:$0xf]
      %v1443 = vld [vmem:[%s355 + $0x9f4] sm:$0xf]
      %v1444 = vld [vmem:[%s355 + $0x9f8] sm:$0xf]
      %v1445 = vld [vmem:[%s355 + $0x9fc] sm:$0xf]
      %v1446 = vld [vmem:[%s355 + $0xa00] sm:$0xf]
      %v1447 = vld [vmem:[%s355 + $0xa04] sm:$0xf]
      %v1448 = vld [vmem:[%s355 + $0xa08] sm:$0xf]
      %v1449 = vld [vmem:[%s355 + $0xa0c] sm:$0xf]
      %v1450 = vld [vmem:[%s355 + $0xa10] sm:$0xf]
      %v1451 = vld [vmem:[%s355 + $0xa14] sm:$0xf]
      %v1452 = vld [vmem:[%s355 + $0xa18] sm:$0xf]
      %v1453 = vld [vmem:[%s355 + $0xa1c] sm:$0xf]
      %v1454 = vld [vmem:[%s355 + $0xa20] sm:$0xf]
      %v1455 = vld [vmem:[%s355 + $0xa24] sm:$0xf]
      %v1456 = vld [vmem:[%s355 + $0xa28] sm:$0xf]
      %v1457 = vld [vmem:[%s355 + $0xa2c] sm:$0xf]
      %v1458 = vld [vmem:[%s355 + $0xa30] sm:$0xf]
      %v1459 = vld [vmem:[%s355 + $0xa34] sm:$0xf]
      %v1460 = vld [vmem:[%s355 + $0xa38] sm:$0xf]
      %v1461 = vld [vmem:[%s355 + $0xa3c] sm:$0xf]
      %v1462 = vld [vmem:[%s355 + $0xa40] sm:$0xf]
      %v1463 = vld [vmem:[%s355 + $0xa44] sm:$0xf]
      %v1464 = vld [vmem:[%s355 + $0xa48] sm:$0xf]
      %v1465 = vld [vmem:[%s355 + $0xa4c] sm:$0xf]
      %v1466 = vld [vmem:[%s355 + $0xa50] sm:$0xf]
      %v1467 = vld [vmem:[%s355 + $0xa54] sm:$0xf]
      %v1468 = vld [vmem:[%s355 + $0xa58] sm:$0xf]
      %v1469 = vld [vmem:[%s355 + $0xa5c] sm:$0xf]
      %v1470 = vld [vmem:[%s355 + $0xa60] sm:$0xf]
      %v1471 = vld [vmem:[%s355 + $0xa64] sm:$0xf]
      %v1472 = vld [vmem:[%s355 + $0xa68] sm:$0xf]
      %v1473 = vld [vmem:[%s355 + $0xa6c] sm:$0xf]
      %v1474 = vld [vmem:[%s355 + $0xa70] sm:$0xf]
      %v1475 = vld [vmem:[%s355 + $0xa74] sm:$0xf]
      %v1476 = vld [vmem:[%s355 + $0xa78] sm:$0xf]
      %v1477 = vld [vmem:[%s355 + $0xa7c] sm:$0xf]
      %v1478 = vld [vmem:[%s355 + $0xa80] sm:$0xf]
      %v1479 = vld [vmem:[%s355 + $0xa84] sm:$0xf]
      %v1480 = vld [vmem:[%s355 + $0xa88] sm:$0xf]
      %v1481 = vld [vmem:[%s355 + $0xa8c] sm:$0xf]
      %v1482 = vld [vmem:[%s355 + $0xa90] sm:$0xf]
      %v1483 = vld [vmem:[%s355 + $0xa94] sm:$0xf]
      %v1484 = vld [vmem:[%s355 + $0xa98] sm:$0xf]
      %v1485 = vld [vmem:[%s355 + $0xa9c] sm:$0xf]
      %v1486 = vld [vmem:[%s355 + $0xaa0] sm:$0xf]
      %v1487 = vld [vmem:[%s355 + $0xaa4] sm:$0xf]
      %v1488 = vld [vmem:[%s355 + $0xaa8] sm:$0xf]
      %v1489 = vld [vmem:[%s355 + $0xaac] sm:$0xf]
      %v1490 = vld [vmem:[%s355 + $0xab0] sm:$0xf]
      %v1491 = vld [vmem:[%s355 + $0xab4] sm:$0xf]
      %v1492 = vld [vmem:[%s355 + $0xab8] sm:$0xf]
      %v1493 = vld [vmem:[%s355 + $0xabc] sm:$0xf]
      %v1494 = vld [vmem:[%s355 + $0xac0] sm:$0xf]
      %v1495 = vld [vmem:[%s355 + $0xac4] sm:$0xf]
      %v1496 = vld [vmem:[%s355 + $0xac8] sm:$0xf]
      %v1497 = vld [vmem:[%s355 + $0xacc] sm:$0xf]
      %v1498 = vld [vmem:[%s355 + $0xad0] sm:$0xf]
      %v1499 = vld [vmem:[%s355 + $0xad4] sm:$0xf]
      %v1500 = vld [vmem:[%s355 + $0xad8] sm:$0xf]
      %v1501 = vld [vmem:[%s355 + $0xadc] sm:$0xf]
      %v1502 = vld [vmem:[%s355 + $0xae0] sm:$0xf]
      %v1503 = vld [vmem:[%s355 + $0xae4] sm:$0xf]
      %v1504 = vld [vmem:[%s355 + $0xae8] sm:$0xf]
      %v1505 = vld [vmem:[%s355 + $0xaec] sm:$0xf]
      %v1506 = vld [vmem:[%s355 + $0xaf0] sm:$0xf]
      %v1507 = vld [vmem:[%s355 + $0xaf4] sm:$0xf]
      %v1508 = vld [vmem:[%s355 + $0xaf8] sm:$0xf]
      %v1509 = vld [vmem:[%s355 + $0xafc] sm:$0xf]
      %v1510 = vld [vmem:[%s355 + $0xb00] sm:$0xf]
      %v1511 = vld [vmem:[%s355 + $0xb04] sm:$0xf]
      %v1512 = vld [vmem:[%s355 + $0xb08] sm:$0xf]
      %v1513 = vld [vmem:[%s355 + $0xb0c] sm:$0xf]
      %v1514 = vld [vmem:[%s355 + $0xb10] sm:$0xf]
      %v1515 = vld [vmem:[%s355 + $0xb14] sm:$0xf]
      %v1516 = vld [vmem:[%s355 + $0xb18] sm:$0xf]
      %v1517 = vld [vmem:[%s355 + $0xb1c] sm:$0xf]
      %v1518 = vld [vmem:[%s355 + $0xb20] sm:$0xf]
      %v1519 = vld [vmem:[%s355 + $0xb24] sm:$0xf]
      %v1520 = vld [vmem:[%s355 + $0xb28] sm:$0xf]
      %v1521 = vld [vmem:[%s355 + $0xb2c] sm:$0xf]
      %v1522 = vld [vmem:[%s355 + $0xb30] sm:$0xf]
      %v1523 = vld [vmem:[%s355 + $0xb34] sm:$0xf]
      %v1524 = vld [vmem:[%s355 + $0xb38] sm:$0xf]
      %v1525 = vld [vmem:[%s355 + $0xb3c] sm:$0xf]
      %v1526 = vld [vmem:[%s355 + $0xb40] sm:$0xf]
      %v1527 = vld [vmem:[%s355 + $0xb44] sm:$0xf]
      %v1528 = vld [vmem:[%s355 + $0xb48] sm:$0xf]
      %v1529 = vld [vmem:[%s355 + $0xb4c] sm:$0xf]
      %v1530 = vld [vmem:[%s355 + $0xb50] sm:$0xf]
      %v1531 = vld [vmem:[%s355 + $0xb54] sm:$0xf]
      %v1532 = vld [vmem:[%s355 + $0xb58] sm:$0xf]
      %v1533 = vld [vmem:[%s355 + $0xb5c] sm:$0xf]
      %v1534 = vld [vmem:[%s355 + $0xb60] sm:$0xf]
      %v1535 = vld [vmem:[%s355 + $0xb64] sm:$0xf]
      %v1536 = vld [vmem:[%s355 + $0xb68] sm:$0xf]
      %v1537 = vld [vmem:[%s355 + $0xb6c] sm:$0xf]
      %v1538 = vld [vmem:[%s355 + $0xb70] sm:$0xf]
      %v1539 = vld [vmem:[%s355 + $0xb74] sm:$0xf]
      %v1540 = vld [vmem:[%s355 + $0xb78] sm:$0xf]
      %v1541 = vld [vmem:[%s355 + $0xb7c] sm:$0xf]
      %v1542 = vld [vmem:[%s355 + $0xb80] sm:$0xf]
      %v1543 = vld [vmem:[%s355 + $0xb84] sm:$0xf]
      %v1544 = vld [vmem:[%s355 + $0xb88] sm:$0xf]
      %v1545 = vld [vmem:[%s355 + $0xb8c] sm:$0xf]
      %v1546 = vld [vmem:[%s355 + $0xb90] sm:$0xf]
      %v1547 = vld [vmem:[%s355 + $0xb94] sm:$0xf]
      %v1548 = vld [vmem:[%s355 + $0xb98] sm:$0xf]
      %v1549 = vld [vmem:[%s355 + $0xb9c] sm:$0xf]
      %v1550 = vld [vmem:[%s355 + $0xba0] sm:$0xf]
      %v1551 = vld [vmem:[%s355 + $0xba4] sm:$0xf]
      %v1552 = vld [vmem:[%s355 + $0xba8] sm:$0xf]
      %v1553 = vld [vmem:[%s355 + $0xbac] sm:$0xf]
      %v1554 = vld [vmem:[%s355 + $0xbb0] sm:$0xf]
      %v1555 = vld [vmem:[%s355 + $0xbb4] sm:$0xf]
      %v1556 = vld [vmem:[%s355 + $0xbb8] sm:$0xf]
      %v1557 = vld [vmem:[%s355 + $0xbbc] sm:$0xf]
      %v1558 = vld [vmem:[%s355 + $0xbc0] sm:$0xf]
      %v1559 = vld [vmem:[%s355 + $0xbc4] sm:$0xf]
      %v1560 = vld [vmem:[%s355 + $0xbc8] sm:$0xf]
      %v1561 = vld [vmem:[%s355 + $0xbcc] sm:$0xf]
      %v1562 = vld [vmem:[%s355 + $0xbd0] sm:$0xf]
      %v1563 = vld [vmem:[%s355 + $0xbd4] sm:$0xf]
      %v1564 = vld [vmem:[%s355 + $0xbd8] sm:$0xf]
      %v1565 = vld [vmem:[%s355 + $0xbdc] sm:$0xf]
      %v1566 = vld [vmem:[%s355 + $0xbe0] sm:$0xf]
      %v1567 = vld [vmem:[%s355 + $0xbe4] sm:$0xf]
      %v1568 = vld [vmem:[%s355 + $0xbe8] sm:$0xf]
      %v1569 = vld [vmem:[%s355 + $0xbec] sm:$0xf]
      %v1570 = vld [vmem:[%s355 + $0xbf0] sm:$0xf]
      %v1571 = vld [vmem:[%s355 + $0xbf4] sm:$0xf]
      %v1572 = vld [vmem:[%s355 + $0xbf8] sm:$0xf]
      %v1573 = vld [vmem:[%s355 + $0xbfc] sm:$0xf]
      %v1574 = vld [vmem:[%s355 + $0xc00] sm:$0xf]
      %v1575 = vld [vmem:[%s355 + $0xc04] sm:$0xf]
      %v1576 = vld [vmem:[%s355 + $0xc08] sm:$0xf]
      %v1577 = vld [vmem:[%s355 + $0xc0c] sm:$0xf]
      %v1578 = vld [vmem:[%s355 + $0xc10] sm:$0xf]
      %v1579 = vld [vmem:[%s355 + $0xc14] sm:$0xf]
      %v1580 = vld [vmem:[%s355 + $0xc18] sm:$0xf]
      %v1581 = vld [vmem:[%s355 + $0xc1c] sm:$0xf]
      %v1582 = vld [vmem:[%s355 + $0xc20] sm:$0xf]
      %v1583 = vld [vmem:[%s355 + $0xc24] sm:$0xf]
      %v1584 = vld [vmem:[%s355 + $0xc28] sm:$0xf]
      %v1585 = vld [vmem:[%s355 + $0xc2c] sm:$0xf]
      %v1586 = vld [vmem:[%s355 + $0xc30] sm:$0xf]
      %v1587 = vld [vmem:[%s355 + $0xc34] sm:$0xf]
      %v1588 = vld [vmem:[%s355 + $0xc38] sm:$0xf]
      %v1589 = vld [vmem:[%s355 + $0xc3c] sm:$0xf]
      %v1590 = vld [vmem:[%s355 + $0xc40] sm:$0xf]
      %v1591 = vld [vmem:[%s355 + $0xc44] sm:$0xf]
      %v1592 = vld [vmem:[%s355 + $0xc48] sm:$0xf]
      %v1593 = vld [vmem:[%s355 + $0xc4c] sm:$0xf]
      %v1594 = vld [vmem:[%s355 + $0xc50] sm:$0xf]
      %v1595 = vld [vmem:[%s355 + $0xc54] sm:$0xf]
      %v1596 = vld [vmem:[%s355 + $0xc58] sm:$0xf]
      %v1597 = vld [vmem:[%s355 + $0xc5c] sm:$0xf]
      %v1598 = vld [vmem:[%s355 + $0xc60] sm:$0xf]
      %v1599 = vld [vmem:[%s355 + $0xc64] sm:$0xf]
      %v1600 = vld [vmem:[%s355 + $0xc68] sm:$0xf]
      %v1601 = vld [vmem:[%s355 + $0xc6c] sm:$0xf]
      %v1602 = vld [vmem:[%s355 + $0xc70] sm:$0xf]
      %v1603 = vld [vmem:[%s355 + $0xc74] sm:$0xf]
      %v1604 = vld [vmem:[%s355 + $0xc78] sm:$0xf]
      %v1605 = vld [vmem:[%s355 + $0xc7c] sm:$0xf]
      %v1606 = vld [vmem:[%s355 + $0xc80] sm:$0xf]
      %v1607 = vld [vmem:[%s355 + $0xc84] sm:$0xf]
      %v1608 = vld [vmem:[%s355 + $0xc88] sm:$0xf]
      %v1609 = vld [vmem:[%s355 + $0xc8c] sm:$0xf]
      %v1610 = vld [vmem:[%s355 + $0xc90] sm:$0xf]
      %v1611 = vld [vmem:[%s355 + $0xc94] sm:$0xf]
      %v1612 = vld [vmem:[%s355 + $0xc98] sm:$0xf]
      %v1613 = vld [vmem:[%s355 + $0xc9c] sm:$0xf]
      %v1614 = vld [vmem:[%s355 + $0xca0] sm:$0xf]
      %v1615 = vld [vmem:[%s355 + $0xca4] sm:$0xf]
      %v1616 = vld [vmem:[%s355 + $0xca8] sm:$0xf]
      %v1617 = vld [vmem:[%s355 + $0xcac] sm:$0xf]
      %v1618 = vld [vmem:[%s355 + $0xcb0] sm:$0xf]
      %v1619 = vld [vmem:[%s355 + $0xcb4] sm:$0xf]
      %v1620 = vld [vmem:[%s355 + $0xcb8] sm:$0xf]
      %v1621 = vld [vmem:[%s355 + $0xcbc] sm:$0xf]
      %v1622 = vld [vmem:[%s355 + $0xcc0] sm:$0xf]
      %v1623 = vld [vmem:[%s355 + $0xcc4] sm:$0xf]
      %v1624 = vld [vmem:[%s355 + $0xcc8] sm:$0xf]
      %v1625 = vld [vmem:[%s355 + $0xccc] sm:$0xf]
      %v1626 = vld [vmem:[%s355 + $0xcd0] sm:$0xf]
      %v1627 = vld [vmem:[%s355 + $0xcd4] sm:$0xf]
      %v1628 = vld [vmem:[%s355 + $0xcd8] sm:$0xf]
      %v1629 = vld [vmem:[%s355 + $0xcdc] sm:$0xf]
      %v1630 = vld [vmem:[%s355 + $0xce0] sm:$0xf]
      %v1631 = vld [vmem:[%s355 + $0xce4] sm:$0xf]
      %v1632 = vld [vmem:[%s355 + $0xce8] sm:$0xf]
      %v1633 = vld [vmem:[%s355 + $0xcec] sm:$0xf]
      %v1634 = vld [vmem:[%s355 + $0xcf0] sm:$0xf]
      %v1635 = vld [vmem:[%s355 + $0xcf4] sm:$0xf]
      %v1636 = vld [vmem:[%s355 + $0xcf8] sm:$0xf]
      %v1637 = vld [vmem:[%s355 + $0xcfc] sm:$0xf]
      %v1638 = vld [vmem:[%s355 + $0xd00] sm:$0xf]
      %v1639 = vld [vmem:[%s355 + $0xd04] sm:$0xf]
      %v1640 = vld [vmem:[%s355 + $0xd08] sm:$0xf]
      %v1641 = vld [vmem:[%s355 + $0xd0c] sm:$0xf]
      %v1642 = vld [vmem:[%s355 + $0xd10] sm:$0xf]
      %v1643 = vld [vmem:[%s355 + $0xd14] sm:$0xf]
      %v1644 = vld [vmem:[%s355 + $0xd18] sm:$0xf]
      %v1645 = vld [vmem:[%s355 + $0xd1c] sm:$0xf]
      %v1646 = vld [vmem:[%s355 + $0xd20] sm:$0xf]
      %v1647 = vld [vmem:[%s355 + $0xd24] sm:$0xf]
      %v1648 = vld [vmem:[%s355 + $0xd28] sm:$0xf]
      %v1649 = vld [vmem:[%s355 + $0xd2c] sm:$0xf]
      %v1650 = vld [vmem:[%s355 + $0xd30] sm:$0xf]
      %v1651 = vld [vmem:[%s355 + $0xd34] sm:$0xf]
      %v1652 = vld [vmem:[%s355 + $0xd38] sm:$0xf]
      %v1653 = vld [vmem:[%s355 + $0xd3c] sm:$0xf]
      %v1654 = vld [vmem:[%s355 + $0xd40] sm:$0xf]
      %v1655 = vld [vmem:[%s355 + $0xd44] sm:$0xf]
      %v1656 = vld [vmem:[%s355 + $0xd48] sm:$0xf]
      %v1657 = vld [vmem:[%s355 + $0xd4c] sm:$0xf]
      %v1658 = vld [vmem:[%s355 + $0xd50] sm:$0xf]
      %v1659 = vld [vmem:[%s355 + $0xd54] sm:$0xf]
      %v1660 = vld [vmem:[%s355 + $0xd58] sm:$0xf]
      %v1661 = vld [vmem:[%s355 + $0xd5c] sm:$0xf]
      %v1662 = vld [vmem:[%s355 + $0xd60] sm:$0xf]
      %v1663 = vld [vmem:[%s355 + $0xd64] sm:$0xf]
      %v1664 = vld [vmem:[%s355 + $0xd68] sm:$0xf]
      %v1665 = vld [vmem:[%s355 + $0xd6c] sm:$0xf]
      %v1666 = vld [vmem:[%s355 + $0xd70] sm:$0xf]
      %v1667 = vld [vmem:[%s355 + $0xd74] sm:$0xf]
      %v1668 = vld [vmem:[%s355 + $0xd78] sm:$0xf]
      %v1669 = vld [vmem:[%s355 + $0xd7c] sm:$0xf]
      %v1670 = vld [vmem:[%s355 + $0xd80] sm:$0xf]
      %v1671 = vld [vmem:[%s355 + $0xd84] sm:$0xf]
      %v1672 = vld [vmem:[%s355 + $0xd88] sm:$0xf]
      %v1673 = vld [vmem:[%s355 + $0xd8c] sm:$0xf]
      %v1674 = vld [vmem:[%s355 + $0xd90] sm:$0xf]
      %v1675 = vld [vmem:[%s355 + $0xd94] sm:$0xf]
      %v1676 = vld [vmem:[%s355 + $0xd98] sm:$0xf]
      %v1677 = vld [vmem:[%s355 + $0xd9c] sm:$0xf]
      %v1678 = vld [vmem:[%s355 + $0xda0] sm:$0xf]
      %v1679 = vld [vmem:[%s355 + $0xda4] sm:$0xf]
      %v1680 = vld [vmem:[%s355 + $0xda8] sm:$0xf]
      %v1681 = vld [vmem:[%s355 + $0xdac] sm:$0xf]
      %v1682 = vld [vmem:[%s355 + $0xdb0] sm:$0xf]
      %v1683 = vld [vmem:[%s355 + $0xdb4] sm:$0xf]
      %v1684 = vld [vmem:[%s355 + $0xdb8] sm:$0xf]
      %v1685 = vld [vmem:[%s355 + $0xdbc] sm:$0xf]
      %v1686 = vld [vmem:[%s355 + $0xdc0] sm:$0xf]
      %v1687 = vld [vmem:[%s355 + $0xdc4] sm:$0xf]
      %v1688 = vld [vmem:[%s355 + $0xdc8] sm:$0xf]
      %v1689 = vld [vmem:[%s355 + $0xdcc] sm:$0xf]
      %v1690 = vld [vmem:[%s355 + $0xdd0] sm:$0xf]
      %v1691 = vld [vmem:[%s355 + $0xdd4] sm:$0xf]
      %v1692 = vld [vmem:[%s355 + $0xdd8] sm:$0xf]
      %v1693 = vld [vmem:[%s355 + $0xddc] sm:$0xf]
      %v1694 = vld [vmem:[%s355 + $0xde0] sm:$0xf]
      %v1695 = vld [vmem:[%s355 + $0xde4] sm:$0xf]
      %v1696 = vld [vmem:[%s355 + $0xde8] sm:$0xf]
      %v1697 = vld [vmem:[%s355 + $0xdec] sm:$0xf]
      %v1698 = vld [vmem:[%s355 + $0xdf0] sm:$0xf]
      %v1699 = vld [vmem:[%s355 + $0xdf4] sm:$0xf]
      %v1700 = vld [vmem:[%s355 + $0xdf8] sm:$0xf]
      %v1701 = vld [vmem:[%s355 + $0xdfc] sm:$0xf]
      %v1702 = vld [vmem:[%s355 + $0xe00] sm:$0xf]
      %v1703 = vld [vmem:[%s355 + $0xe04] sm:$0xf]
      %v1704 = vld [vmem:[%s355 + $0xe08] sm:$0xf]
      %v1705 = vld [vmem:[%s355 + $0xe0c] sm:$0xf]
      %v1706 = vld [vmem:[%s355 + $0xe10] sm:$0xf]
      %v1707 = vld [vmem:[%s355 + $0xe14] sm:$0xf]
      %v1708 = vld [vmem:[%s355 + $0xe18] sm:$0xf]
      %v1709 = vld [vmem:[%s355 + $0xe1c] sm:$0xf]
      %v1710 = vld [vmem:[%s355 + $0xe20] sm:$0xf]
      %v1711 = vld [vmem:[%s355 + $0xe24] sm:$0xf]
      %v1712 = vld [vmem:[%s355 + $0xe28] sm:$0xf]
      %v1713 = vld [vmem:[%s355 + $0xe2c] sm:$0xf]
      %v1714 = vld [vmem:[%s355 + $0xe30] sm:$0xf]
      %v1715 = vld [vmem:[%s355 + $0xe34] sm:$0xf]
      %v1716 = vld [vmem:[%s355 + $0xe38] sm:$0xf]
      %v1717 = vld [vmem:[%s355 + $0xe3c] sm:$0xf]
      %v1718 = vld [vmem:[%s355 + $0xe40] sm:$0xf]
      %v1719 = vld [vmem:[%s355 + $0xe44] sm:$0xf]
      %v1720 = vld [vmem:[%s355 + $0xe48] sm:$0xf]
      %v1721 = vld [vmem:[%s355 + $0xe4c] sm:$0xf]
      %v1722 = vld [vmem:[%s355 + $0xe50] sm:$0xf]
      %v1723 = vld [vmem:[%s355 + $0xe54] sm:$0xf]
      %v1724 = vld [vmem:[%s355 + $0xe58] sm:$0xf]
      %v1725 = vld [vmem:[%s355 + $0xe5c] sm:$0xf]
      %v1726 = vld [vmem:[%s355 + $0xe60] sm:$0xf]
      %v1727 = vld [vmem:[%s355 + $0xe64] sm:$0xf]
      %v1728 = vld [vmem:[%s355 + $0xe68] sm:$0xf]
      %v1729 = vld [vmem:[%s355 + $0xe6c] sm:$0xf]
      %v1730 = vld [vmem:[%s355 + $0xe70] sm:$0xf]
      %v1731 = vld [vmem:[%s355 + $0xe74] sm:$0xf]
      %v1732 = vld [vmem:[%s355 + $0xe78] sm:$0xf]
      %v1733 = vld [vmem:[%s355 + $0xe7c] sm:$0xf]
      %v1734 = vld [vmem:[%s355 + $0xe80] sm:$0xf]
      %v1735 = vld [vmem:[%s355 + $0xe84] sm:$0xf]
      %v1736 = vld [vmem:[%s355 + $0xe88] sm:$0xf]
      %v1737 = vld [vmem:[%s355 + $0xe8c] sm:$0xf]
      %v1738 = vld [vmem:[%s355 + $0xe90] sm:$0xf]
      %v1739 = vld [vmem:[%s355 + $0xe94] sm:$0xf]
      %v1740 = vld [vmem:[%s355 + $0xe98] sm:$0xf]
      %v1741 = vld [vmem:[%s355 + $0xe9c] sm:$0xf]
      %v1742 = vld [vmem:[%s355 + $0xea0] sm:$0xf]
      %v1743 = vld [vmem:[%s355 + $0xea4] sm:$0xf]
      %v1744 = vld [vmem:[%s355 + $0xea8] sm:$0xf]
      %v1745 = vld [vmem:[%s355 + $0xeac] sm:$0xf]
      %v1746 = vld [vmem:[%s355 + $0xeb0] sm:$0xf]
      %v1747 = vld [vmem:[%s355 + $0xeb4] sm:$0xf]
      %v1748 = vld [vmem:[%s355 + $0xeb8] sm:$0xf]
      %v1749 = vld [vmem:[%s355 + $0xebc] sm:$0xf]
      %v1750 = vld [vmem:[%s355 + $0xec0] sm:$0xf]
      %v1751 = vld [vmem:[%s355 + $0xec4] sm:$0xf]
      %v1752 = vld [vmem:[%s355 + $0xec8] sm:$0xf]
      %v1753 = vld [vmem:[%s355 + $0xecc] sm:$0xf]
      %v1754 = vld [vmem:[%s355 + $0xed0] sm:$0xf]
      %v1755 = vld [vmem:[%s355 + $0xed4] sm:$0xf]
      %v1756 = vld [vmem:[%s355 + $0xed8] sm:$0xf]
      %v1757 = vld [vmem:[%s355 + $0xedc] sm:$0xf]
      %v1758 = vld [vmem:[%s355 + $0xee0] sm:$0xf]
      %v1759 = vld [vmem:[%s355 + $0xee4] sm:$0xf]
      %v1760 = vld [vmem:[%s355 + $0xee8] sm:$0xf]
      %v1761 = vld [vmem:[%s355 + $0xeec] sm:$0xf]
      %v1762 = vld [vmem:[%s355 + $0xef0] sm:$0xf]
      %v1763 = vld [vmem:[%s355 + $0xef4] sm:$0xf]
      %v1764 = vld [vmem:[%s355 + $0xef8] sm:$0xf]
      %v1765 = vld [vmem:[%s355 + $0xefc] sm:$0xf]
      %v1766 = vld [vmem:[%s355 + $0xf00] sm:$0xf]
      %v1767 = vld [vmem:[%s355 + $0xf04] sm:$0xf]
      %v1768 = vld [vmem:[%s355 + $0xf08] sm:$0xf]
      %v1769 = vld [vmem:[%s355 + $0xf0c] sm:$0xf]
      %v1770 = vld [vmem:[%s355 + $0xf10] sm:$0xf]
      %v1771 = vld [vmem:[%s355 + $0xf14] sm:$0xf]
      %v1772 = vld [vmem:[%s355 + $0xf18] sm:$0xf]
      %v1773 = vld [vmem:[%s355 + $0xf1c] sm:$0xf]
      %v1774 = vld [vmem:[%s355 + $0xf20] sm:$0xf]
      %v1775 = vld [vmem:[%s355 + $0xf24] sm:$0xf]
      %v1776 = vld [vmem:[%s355 + $0xf28] sm:$0xf]
      %v1777 = vld [vmem:[%s355 + $0xf2c] sm:$0xf]
      %v1778 = vld [vmem:[%s355 + $0xf30] sm:$0xf]
      %v1779 = vld [vmem:[%s355 + $0xf34] sm:$0xf]
      %v1780 = vld [vmem:[%s355 + $0xf38] sm:$0xf]
      %v1781 = vld [vmem:[%s355 + $0xf3c] sm:$0xf]
      %v1782 = vld [vmem:[%s355 + $0xf40] sm:$0xf]
      %v1783 = vld [vmem:[%s355 + $0xf44] sm:$0xf]
      %v1784 = vld [vmem:[%s355 + $0xf48] sm:$0xf]
      %v1785 = vld [vmem:[%s355 + $0xf4c] sm:$0xf]
      %v1786 = vld [vmem:[%s355 + $0xf50] sm:$0xf]
      %v1787 = vld [vmem:[%s355 + $0xf54] sm:$0xf]
      %v1788 = vld [vmem:[%s355 + $0xf58] sm:$0xf]
      %v1789 = vld [vmem:[%s355 + $0xf5c] sm:$0xf]
      %v1790 = vld [vmem:[%s355 + $0xf60] sm:$0xf]
      %v1791 = vld [vmem:[%s355 + $0xf64] sm:$0xf]
      %v1792 = vld [vmem:[%s355 + $0xf68] sm:$0xf]
      %v1793 = vld [vmem:[%s355 + $0xf6c] sm:$0xf]
      %v1794 = vld [vmem:[%s355 + $0xf70] sm:$0xf]
      %v1795 = vld [vmem:[%s355 + $0xf74] sm:$0xf]
      %v1796 = vld [vmem:[%s355 + $0xf78] sm:$0xf]
      %v1797 = vld [vmem:[%s355 + $0xf7c] sm:$0xf]
      %v1798 = vld [vmem:[%s355 + $0xf80] sm:$0xf]
      %v1799 = vld [vmem:[%s355 + $0xf84] sm:$0xf]
      %v1800 = vld [vmem:[%s355 + $0xf88] sm:$0xf]
      %v1801 = vld [vmem:[%s355 + $0xf8c] sm:$0xf]
      %v1802 = vld [vmem:[%s355 + $0xf90] sm:$0xf]
      %v1803 = vld [vmem:[%s355 + $0xf94] sm:$0xf]
      %v1804 = vld [vmem:[%s355 + $0xf98] sm:$0xf]
      %v1805 = vld [vmem:[%s355 + $0xf9c] sm:$0xf]
      %v1806 = vld [vmem:[%s355 + $0xfa0] sm:$0xf]
      %v1807 = vld [vmem:[%s355 + $0xfa4] sm:$0xf]
      %v1808 = vld [vmem:[%s355 + $0xfa8] sm:$0xf]
      %v1809 = vld [vmem:[%s355 + $0xfac] sm:$0xf]
      %v1810 = vld [vmem:[%s355 + $0xfb0] sm:$0xf]
      %v1811 = vld [vmem:[%s355 + $0xfb4] sm:$0xf]
      %v1812 = vld [vmem:[%s355 + $0xfb8] sm:$0xf]
      %v1813 = vld [vmem:[%s355 + $0xfbc] sm:$0xf]
      %v1814 = vld [vmem:[%s355 + $0xfc0] sm:$0xf]
      %v1815 = vld [vmem:[%s355 + $0xfc4] sm:$0xf]
      %v1816 = vld [vmem:[%s355 + $0xfc8] sm:$0xf]
      %v1817 = vld [vmem:[%s355 + $0xfcc] sm:$0xf]
      %v1818 = vld [vmem:[%s355 + $0xfd0] sm:$0xf]
      %v1819 = vld [vmem:[%s355 + $0xfd4] sm:$0xf]
      %v1820 = vld [vmem:[%s355 + $0xfd8] sm:$0xf]
      %v1821 = vld [vmem:[%s355 + $0xfdc] sm:$0xf]
      %v1822 = vld [vmem:[%s355 + $0xfe0] sm:$0xf]
      %v1823 = vld [vmem:[%s355 + $0xfe4] sm:$0xf]
      %v1824 = vld [vmem:[%s355 + $0xfe8] sm:$0xf]
      %v1825 = vld [vmem:[%s355 + $0xfec] sm:$0xf]
      %v1826 = vld [vmem:[%s355 + $0xff0] sm:$0xf]
      %v1827 = vld [vmem:[%s355 + $0xff4] sm:$0xf]
      %v1828 = vld [vmem:[%s355 + $0xff8] sm:$0xf]
      %v1829 = vld [vmem:[%s355 + $0xffc] sm:$0xf]
      %v2854 = vunpack.c.l.b16 %v806
      %v2855 = vunpack.c.l.b16 %v807
      %v2856 = vunpack.c.l.b16 %v808
      %v2857 = vunpack.c.l.b16 %v809
      %v2858 = vunpack.c.l.b16 %v810
      %v2859 = vunpack.c.l.b16 %v811
      %v2860 = vunpack.c.l.b16 %v812
      %v2861 = vunpack.c.l.b16 %v813
      %v2862 = vunpack.c.l.b16 %v814
      %v2863 = vunpack.c.l.b16 %v815
      %v2864 = vunpack.c.l.b16 %v816
      %v2865 = vunpack.c.l.b16 %v817
      %v2866 = vunpack.c.l.b16 %v818
      %v2867 = vunpack.c.l.b16 %v819
      %v2868 = vunpack.c.l.b16 %v820
      %v2869 = vunpack.c.l.b16 %v821
      %v2870 = vunpack.c.l.b16 %v822
      %v2871 = vunpack.c.l.b16 %v823
      %v2872 = vunpack.c.l.b16 %v824
      %v2873 = vunpack.c.l.b16 %v825
      %v2874 = vunpack.c.l.b16 %v826
      %v2875 = vunpack.c.l.b16 %v827
      %v2876 = vunpack.c.l.b16 %v828
      %v2877 = vunpack.c.l.b16 %v829
      %v2878 = vunpack.c.l.b16 %v830
      %v2879 = vunpack.c.l.b16 %v831
      %v2880 = vunpack.c.l.b16 %v832
      %v2881 = vunpack.c.l.b16 %v833
      %v2882 = vunpack.c.l.b16 %v834
      %v2883 = vunpack.c.l.b16 %v835
      %v2884 = vunpack.c.l.b16 %v836
      %v2885 = vunpack.c.l.b16 %v837
      %v2886 = vunpack.c.l.b16 %v838
      %v2887 = vunpack.c.l.b16 %v839
      %v2888 = vunpack.c.l.b16 %v840
      %v2889 = vunpack.c.l.b16 %v841
      %v2890 = vunpack.c.l.b16 %v842
      %v2891 = vunpack.c.l.b16 %v843
      %v2892 = vunpack.c.l.b16 %v844
      %v2893 = vunpack.c.l.b16 %v845
      %v2894 = vunpack.c.l.b16 %v846
      %v2895 = vunpack.c.l.b16 %v847
      %v2896 = vunpack.c.l.b16 %v848
      %v2897 = vunpack.c.l.b16 %v849
      %v2898 = vunpack.c.l.b16 %v850
      %v2899 = vunpack.c.l.b16 %v851
      %v2900 = vunpack.c.l.b16 %v852
      %v2901 = vunpack.c.l.b16 %v853
      %v2902 = vunpack.c.l.b16 %v854
      %v2903 = vunpack.c.l.b16 %v855
      %v2904 = vunpack.c.l.b16 %v856
      %v2905 = vunpack.c.l.b16 %v857
      %v2906 = vunpack.c.l.b16 %v858
      %v2907 = vunpack.c.l.b16 %v859
      %v2908 = vunpack.c.l.b16 %v860
      %v2909 = vunpack.c.l.b16 %v861
      %v2910 = vunpack.c.l.b16 %v862
      %v2911 = vunpack.c.l.b16 %v863
      %v2912 = vunpack.c.l.b16 %v864
      %v2913 = vunpack.c.l.b16 %v865
      %v2914 = vunpack.c.l.b16 %v866
      %v2915 = vunpack.c.l.b16 %v867
      %v2916 = vunpack.c.l.b16 %v868
      %v2917 = vunpack.c.l.b16 %v869
      %v2918 = vunpack.c.l.b16 %v870
      %v2919 = vunpack.c.l.b16 %v871
      %v2920 = vunpack.c.l.b16 %v872
      %v2921 = vunpack.c.l.b16 %v873
      %v2922 = vunpack.c.l.b16 %v874
      %v2923 = vunpack.c.l.b16 %v875
      %v2924 = vunpack.c.l.b16 %v876
      %v2925 = vunpack.c.l.b16 %v877
      %v2926 = vunpack.c.l.b16 %v878
      %v2927 = vunpack.c.l.b16 %v879
      %v2928 = vunpack.c.l.b16 %v880
      %v2929 = vunpack.c.l.b16 %v881
      %v2930 = vunpack.c.l.b16 %v882
      %v2931 = vunpack.c.l.b16 %v883
      %v2932 = vunpack.c.l.b16 %v884
      %v2933 = vunpack.c.l.b16 %v885
      %v2934 = vunpack.c.l.b16 %v886
      %v2935 = vunpack.c.l.b16 %v887
      %v2936 = vunpack.c.l.b16 %v888
      %v2937 = vunpack.c.l.b16 %v889
      %v2938 = vunpack.c.l.b16 %v890
      %v2939 = vunpack.c.l.b16 %v891
      %v2940 = vunpack.c.l.b16 %v892
      %v2941 = vunpack.c.l.b16 %v893
      %v2942 = vunpack.c.l.b16 %v894
      %v2943 = vunpack.c.l.b16 %v895
      %v2944 = vunpack.c.l.b16 %v896
      %v2945 = vunpack.c.l.b16 %v897
      %v2946 = vunpack.c.l.b16 %v898
      %v2947 = vunpack.c.l.b16 %v899
      %v2948 = vunpack.c.l.b16 %v900
      %v2949 = vunpack.c.l.b16 %v901
      %v2950 = vunpack.c.l.b16 %v902
      %v2951 = vunpack.c.l.b16 %v903
      %v2952 = vunpack.c.l.b16 %v904
      %v2953 = vunpack.c.l.b16 %v905
      %v2954 = vunpack.c.l.b16 %v906
      %v2955 = vunpack.c.l.b16 %v907
      %v2956 = vunpack.c.l.b16 %v908
      %v2957 = vunpack.c.l.b16 %v909
      %v2958 = vunpack.c.l.b16 %v910
      %v2959 = vunpack.c.l.b16 %v911
      %v2960 = vunpack.c.l.b16 %v912
      %v2961 = vunpack.c.l.b16 %v913
      %v2962 = vunpack.c.l.b16 %v914
      %v2963 = vunpack.c.l.b16 %v915
      %v2964 = vunpack.c.l.b16 %v916
      %v2965 = vunpack.c.l.b16 %v917
      %v2966 = vunpack.c.l.b16 %v918
      %v2967 = vunpack.c.l.b16 %v919
      %v2968 = vunpack.c.l.b16 %v920
      %v2969 = vunpack.c.l.b16 %v921
      %v2970 = vunpack.c.l.b16 %v922
      %v2971 = vunpack.c.l.b16 %v923
      %v2972 = vunpack.c.l.b16 %v924
      %v2973 = vunpack.c.l.b16 %v925
      %v2974 = vunpack.c.l.b16 %v926
      %v2975 = vunpack.c.l.b16 %v927
      %v2976 = vunpack.c.l.b16 %v928
      %v2977 = vunpack.c.l.b16 %v929
      %v2978 = vunpack.c.l.b16 %v930
      %v2979 = vunpack.c.l.b16 %v931
      %v2980 = vunpack.c.l.b16 %v932
      %v2981 = vunpack.c.l.b16 %v933
      %v2982 = vunpack.c.l.b16 %v934
      %v2983 = vunpack.c.l.b16 %v935
      %v2984 = vunpack.c.l.b16 %v936
      %v2985 = vunpack.c.l.b16 %v937
      %v2986 = vunpack.c.l.b16 %v938
      %v2987 = vunpack.c.l.b16 %v939
      %v2988 = vunpack.c.l.b16 %v940
      %v2989 = vunpack.c.l.b16 %v941
      %v2990 = vunpack.c.l.b16 %v942
      %v2991 = vunpack.c.l.b16 %v943
      %v2992 = vunpack.c.l.b16 %v944
      %v2993 = vunpack.c.l.b16 %v945
      %v2994 = vunpack.c.l.b16 %v946
      %v2995 = vunpack.c.l.b16 %v947
      %v2996 = vunpack.c.l.b16 %v948
      %v2997 = vunpack.c.l.b16 %v949
      %v2998 = vunpack.c.l.b16 %v950
      %v2999 = vunpack.c.l.b16 %v951
      %v3000 = vunpack.c.l.b16 %v952
      %v3001 = vunpack.c.l.b16 %v953
      %v3002 = vunpack.c.l.b16 %v954
      %v3003 = vunpack.c.l.b16 %v955
      %v3004 = vunpack.c.l.b16 %v956
      %v3005 = vunpack.c.l.b16 %v957
      %v3006 = vunpack.c.l.b16 %v958
      %v3007 = vunpack.c.l.b16 %v959
      %v3008 = vunpack.c.l.b16 %v960
      %v3009 = vunpack.c.l.b16 %v961
      %v3010 = vunpack.c.l.b16 %v962
      %v3011 = vunpack.c.l.b16 %v963
      %v3012 = vunpack.c.l.b16 %v964
      %v3013 = vunpack.c.l.b16 %v965
      %v3014 = vunpack.c.l.b16 %v966
      %v3015 = vunpack.c.l.b16 %v967
      %v3016 = vunpack.c.l.b16 %v968
      %v3017 = vunpack.c.l.b16 %v969
      %v3018 = vunpack.c.l.b16 %v970
      %v3019 = vunpack.c.l.b16 %v971
      %v3020 = vunpack.c.l.b16 %v972
      %v3021 = vunpack.c.l.b16 %v973
      %v3022 = vunpack.c.l.b16 %v974
      %v3023 = vunpack.c.l.b16 %v975
      %v3024 = vunpack.c.l.b16 %v976
      %v3025 = vunpack.c.l.b16 %v977
      %v3026 = vunpack.c.l.b16 %v978
      %v3027 = vunpack.c.l.b16 %v979
      %v3028 = vunpack.c.l.b16 %v980
      %v3029 = vunpack.c.l.b16 %v981
      %v3030 = vunpack.c.l.b16 %v982
      %v3031 = vunpack.c.l.b16 %v983
      %v3032 = vunpack.c.l.b16 %v984
      %v3033 = vunpack.c.l.b16 %v985
      %v3034 = vunpack.c.l.b16 %v986
      %v3035 = vunpack.c.l.b16 %v987
      %v3036 = vunpack.c.l.b16 %v988
      %v3037 = vunpack.c.l.b16 %v989
      %v3038 = vunpack.c.l.b16 %v990
      %v3039 = vunpack.c.l.b16 %v991
      %v3040 = vunpack.c.l.b16 %v992
      %v3041 = vunpack.c.l.b16 %v993
      %v3042 = vunpack.c.l.b16 %v994
      %v3043 = vunpack.c.l.b16 %v995
      %v3044 = vunpack.c.l.b16 %v996
      %v3045 = vunpack.c.l.b16 %v997
      %v3046 = vunpack.c.l.b16 %v998
      %v3047 = vunpack.c.l.b16 %v999
      %v3048 = vunpack.c.l.b16 %v1000
      %v3049 = vunpack.c.l.b16 %v1001
      %v3050 = vunpack.c.l.b16 %v1002
      %v3051 = vunpack.c.l.b16 %v1003
      %v3052 = vunpack.c.l.b16 %v1004
      %v3053 = vunpack.c.l.b16 %v1005
      %v3054 = vunpack.c.l.b16 %v1006
      %v3055 = vunpack.c.l.b16 %v1007
      %v3056 = vunpack.c.l.b16 %v1008
      %v3057 = vunpack.c.l.b16 %v1009
      %v3058 = vunpack.c.l.b16 %v1010
      %v3059 = vunpack.c.l.b16 %v1011
      %v3060 = vunpack.c.l.b16 %v1012
      %v3061 = vunpack.c.l.b16 %v1013
      %v3062 = vunpack.c.l.b16 %v1014
      %v3063 = vunpack.c.l.b16 %v1015
      %v3064 = vunpack.c.l.b16 %v1016
      %v3065 = vunpack.c.l.b16 %v1017
      %v3066 = vunpack.c.l.b16 %v1018
      %v3067 = vunpack.c.l.b16 %v1019
      %v3068 = vunpack.c.l.b16 %v1020
      %v3069 = vunpack.c.l.b16 %v1021
      %v3070 = vunpack.c.l.b16 %v1022
      %v3071 = vunpack.c.l.b16 %v1023
      %v3072 = vunpack.c.l.b16 %v1024
      %v3073 = vunpack.c.l.b16 %v1025
      %v3074 = vunpack.c.l.b16 %v1026
      %v3075 = vunpack.c.l.b16 %v1027
      %v3076 = vunpack.c.l.b16 %v1028
      %v3077 = vunpack.c.l.b16 %v1029
      %v3078 = vunpack.c.l.b16 %v1030
      %v3079 = vunpack.c.l.b16 %v1031
      %v3080 = vunpack.c.l.b16 %v1032
      %v3081 = vunpack.c.l.b16 %v1033
      %v3082 = vunpack.c.l.b16 %v1034
      %v3083 = vunpack.c.l.b16 %v1035
      %v3084 = vunpack.c.l.b16 %v1036
      %v3085 = vunpack.c.l.b16 %v1037
      %v3086 = vunpack.c.l.b16 %v1038
      %v3087 = vunpack.c.l.b16 %v1039
      %v3088 = vunpack.c.l.b16 %v1040
      %v3089 = vunpack.c.l.b16 %v1041
      %v3090 = vunpack.c.l.b16 %v1042
      %v3091 = vunpack.c.l.b16 %v1043
      %v3092 = vunpack.c.l.b16 %v1044
      %v3093 = vunpack.c.l.b16 %v1045
      %v3094 = vunpack.c.l.b16 %v1046
      %v3095 = vunpack.c.l.b16 %v1047
      %v3096 = vunpack.c.l.b16 %v1048
      %v3097 = vunpack.c.l.b16 %v1049
      %v3098 = vunpack.c.l.b16 %v1050
      %v3099 = vunpack.c.l.b16 %v1051
      %v3100 = vunpack.c.l.b16 %v1052
      %v3101 = vunpack.c.l.b16 %v1053
      %v3102 = vunpack.c.l.b16 %v1054
      %v3103 = vunpack.c.l.b16 %v1055
      %v3104 = vunpack.c.l.b16 %v1056
      %v3105 = vunpack.c.l.b16 %v1057
      %v3106 = vunpack.c.l.b16 %v1058
      %v3107 = vunpack.c.l.b16 %v1059
      %v3108 = vunpack.c.l.b16 %v1060
      %v3109 = vunpack.c.l.b16 %v1061
      %v3110 = vunpack.c.l.b16 %v1062
      %v3111 = vunpack.c.l.b16 %v1063
      %v3112 = vunpack.c.l.b16 %v1064
      %v3113 = vunpack.c.l.b16 %v1065
      %v3114 = vunpack.c.l.b16 %v1066
      %v3115 = vunpack.c.l.b16 %v1067
      %v3116 = vunpack.c.l.b16 %v1068
      %v3117 = vunpack.c.l.b16 %v1069
      %v3118 = vunpack.c.l.b16 %v1070
      %v3119 = vunpack.c.l.b16 %v1071
      %v3120 = vunpack.c.l.b16 %v1072
      %v3121 = vunpack.c.l.b16 %v1073
      %v3122 = vunpack.c.l.b16 %v1074
      %v3123 = vunpack.c.l.b16 %v1075
      %v3124 = vunpack.c.l.b16 %v1076
      %v3125 = vunpack.c.l.b16 %v1077
      %v3126 = vunpack.c.l.b16 %v1078
      %v3127 = vunpack.c.l.b16 %v1079
      %v3128 = vunpack.c.l.b16 %v1080
      %v3129 = vunpack.c.l.b16 %v1081
      %v3130 = vunpack.c.l.b16 %v1082
      %v3131 = vunpack.c.l.b16 %v1083
      %v3132 = vunpack.c.l.b16 %v1084
      %v3133 = vunpack.c.l.b16 %v1085
      %v3134 = vunpack.c.l.b16 %v1086
      %v3135 = vunpack.c.l.b16 %v1087
      %v3136 = vunpack.c.l.b16 %v1088
      %v3137 = vunpack.c.l.b16 %v1089
      %v3138 = vunpack.c.l.b16 %v1090
      %v3139 = vunpack.c.l.b16 %v1091
      %v3140 = vunpack.c.l.b16 %v1092
      %v3141 = vunpack.c.l.b16 %v1093
      %v3142 = vunpack.c.l.b16 %v1094
      %v3143 = vunpack.c.l.b16 %v1095
      %v3144 = vunpack.c.l.b16 %v1096
      %v3145 = vunpack.c.l.b16 %v1097
      %v3146 = vunpack.c.l.b16 %v1098
      %v3147 = vunpack.c.l.b16 %v1099
      %v3148 = vunpack.c.l.b16 %v1100
      %v3149 = vunpack.c.l.b16 %v1101
      %v3150 = vunpack.c.l.b16 %v1102
      %v3151 = vunpack.c.l.b16 %v1103
      %v3152 = vunpack.c.l.b16 %v1104
      %v3153 = vunpack.c.l.b16 %v1105
      %v3154 = vunpack.c.l.b16 %v1106
      %v3155 = vunpack.c.l.b16 %v1107
      %v3156 = vunpack.c.l.b16 %v1108
      %v3157 = vunpack.c.l.b16 %v1109
      %v3158 = vunpack.c.l.b16 %v1110
      %v3159 = vunpack.c.l.b16 %v1111
      %v3160 = vunpack.c.l.b16 %v1112
      %v3161 = vunpack.c.l.b16 %v1113
      %v3162 = vunpack.c.l.b16 %v1114
      %v3163 = vunpack.c.l.b16 %v1115
      %v3164 = vunpack.c.l.b16 %v1116
      %v3165 = vunpack.c.l.b16 %v1117
      %v3166 = vunpack.c.l.b16 %v1118
      %v3167 = vunpack.c.l.b16 %v1119
      %v3168 = vunpack.c.l.b16 %v1120
      %v3169 = vunpack.c.l.b16 %v1121
      %v3170 = vunpack.c.l.b16 %v1122
      %v3171 = vunpack.c.l.b16 %v1123
      %v3172 = vunpack.c.l.b16 %v1124
      %v3173 = vunpack.c.l.b16 %v1125
      %v3174 = vunpack.c.l.b16 %v1126
      %v3175 = vunpack.c.l.b16 %v1127
      %v3176 = vunpack.c.l.b16 %v1128
      %v3177 = vunpack.c.l.b16 %v1129
      %v3178 = vunpack.c.l.b16 %v1130
      %v3179 = vunpack.c.l.b16 %v1131
      %v3180 = vunpack.c.l.b16 %v1132
      %v3181 = vunpack.c.l.b16 %v1133
      %v3182 = vunpack.c.l.b16 %v1134
      %v3183 = vunpack.c.l.b16 %v1135
      %v3184 = vunpack.c.l.b16 %v1136
      %v3185 = vunpack.c.l.b16 %v1137
      %v3186 = vunpack.c.l.b16 %v1138
      %v3187 = vunpack.c.l.b16 %v1139
      %v3188 = vunpack.c.l.b16 %v1140
      %v3189 = vunpack.c.l.b16 %v1141
      %v3190 = vunpack.c.l.b16 %v1142
      %v3191 = vunpack.c.l.b16 %v1143
      %v3192 = vunpack.c.l.b16 %v1144
      %v3193 = vunpack.c.l.b16 %v1145
      %v3194 = vunpack.c.l.b16 %v1146
      %v3195 = vunpack.c.l.b16 %v1147
      %v3196 = vunpack.c.l.b16 %v1148
      %v3197 = vunpack.c.l.b16 %v1149
      %v3198 = vunpack.c.l.b16 %v1150
      %v3199 = vunpack.c.l.b16 %v1151
      %v3200 = vunpack.c.l.b16 %v1152
      %v3201 = vunpack.c.l.b16 %v1153
      %v3202 = vunpack.c.l.b16 %v1154
      %v3203 = vunpack.c.l.b16 %v1155
      %v3204 = vunpack.c.l.b16 %v1156
      %v3205 = vunpack.c.l.b16 %v1157
      %v3206 = vunpack.c.l.b16 %v1158
      %v3207 = vunpack.c.l.b16 %v1159
      %v3208 = vunpack.c.l.b16 %v1160
      %v3209 = vunpack.c.l.b16 %v1161
      %v3210 = vunpack.c.l.b16 %v1162
      %v3211 = vunpack.c.l.b16 %v1163
      %v3212 = vunpack.c.l.b16 %v1164
      %v3213 = vunpack.c.l.b16 %v1165
      %v3214 = vunpack.c.l.b16 %v1166
      %v3215 = vunpack.c.l.b16 %v1167
      %v3216 = vunpack.c.l.b16 %v1168
      %v3217 = vunpack.c.l.b16 %v1169
      %v3218 = vunpack.c.l.b16 %v1170
      %v3219 = vunpack.c.l.b16 %v1171
      %v3220 = vunpack.c.l.b16 %v1172
      %v3221 = vunpack.c.l.b16 %v1173
      %v3222 = vunpack.c.l.b16 %v1174
      %v3223 = vunpack.c.l.b16 %v1175
      %v3224 = vunpack.c.l.b16 %v1176
      %v3225 = vunpack.c.l.b16 %v1177
      %v3226 = vunpack.c.l.b16 %v1178
      %v3227 = vunpack.c.l.b16 %v1179
      %v3228 = vunpack.c.l.b16 %v1180
      %v3229 = vunpack.c.l.b16 %v1181
      %v3230 = vunpack.c.l.b16 %v1182
      %v3231 = vunpack.c.l.b16 %v1183
      %v3232 = vunpack.c.l.b16 %v1184
      %v3233 = vunpack.c.l.b16 %v1185
      %v3234 = vunpack.c.l.b16 %v1186
      %v3235 = vunpack.c.l.b16 %v1187
      %v3236 = vunpack.c.l.b16 %v1188
      %v3237 = vunpack.c.l.b16 %v1189
      %v3238 = vunpack.c.l.b16 %v1190
      %v3239 = vunpack.c.l.b16 %v1191
      %v3240 = vunpack.c.l.b16 %v1192
      %v3241 = vunpack.c.l.b16 %v1193
      %v3242 = vunpack.c.l.b16 %v1194
      %v3243 = vunpack.c.l.b16 %v1195
      %v3244 = vunpack.c.l.b16 %v1196
      %v3245 = vunpack.c.l.b16 %v1197
      %v3246 = vunpack.c.l.b16 %v1198
      %v3247 = vunpack.c.l.b16 %v1199
      %v3248 = vunpack.c.l.b16 %v1200
      %v3249 = vunpack.c.l.b16 %v1201
      %v3250 = vunpack.c.l.b16 %v1202
      %v3251 = vunpack.c.l.b16 %v1203
      %v3252 = vunpack.c.l.b16 %v1204
      %v3253 = vunpack.c.l.b16 %v1205
      %v3254 = vunpack.c.l.b16 %v1206
      %v3255 = vunpack.c.l.b16 %v1207
      %v3256 = vunpack.c.l.b16 %v1208
      %v3257 = vunpack.c.l.b16 %v1209
      %v3258 = vunpack.c.l.b16 %v1210
      %v3259 = vunpack.c.l.b16 %v1211
      %v3260 = vunpack.c.l.b16 %v1212
      %v3261 = vunpack.c.l.b16 %v1213
      %v3262 = vunpack.c.l.b16 %v1214
      %v3263 = vunpack.c.l.b16 %v1215
      %v3264 = vunpack.c.l.b16 %v1216
      %v3265 = vunpack.c.l.b16 %v1217
      %v3266 = vunpack.c.l.b16 %v1218
      %v3267 = vunpack.c.l.b16 %v1219
      %v3268 = vunpack.c.l.b16 %v1220
      %v3269 = vunpack.c.l.b16 %v1221
      %v3270 = vunpack.c.l.b16 %v1222
      %v3271 = vunpack.c.l.b16 %v1223
      %v3272 = vunpack.c.l.b16 %v1224
      %v3273 = vunpack.c.l.b16 %v1225
      %v3274 = vunpack.c.l.b16 %v1226
      %v3275 = vunpack.c.l.b16 %v1227
      %v3276 = vunpack.c.l.b16 %v1228
      %v3277 = vunpack.c.l.b16 %v1229
      %v3278 = vunpack.c.l.b16 %v1230
      %v3279 = vunpack.c.l.b16 %v1231
      %v3280 = vunpack.c.l.b16 %v1232
      %v3281 = vunpack.c.l.b16 %v1233
      %v3282 = vunpack.c.l.b16 %v1234
      %v3283 = vunpack.c.l.b16 %v1235
      %v3284 = vunpack.c.l.b16 %v1236
      %v3285 = vunpack.c.l.b16 %v1237
      %v3286 = vunpack.c.l.b16 %v1238
      %v3287 = vunpack.c.l.b16 %v1239
      %v3288 = vunpack.c.l.b16 %v1240
      %v3289 = vunpack.c.l.b16 %v1241
      %v3290 = vunpack.c.l.b16 %v1242
      %v3291 = vunpack.c.l.b16 %v1243
      %v3292 = vunpack.c.l.b16 %v1244
      %v3293 = vunpack.c.l.b16 %v1245
      %v3294 = vunpack.c.l.b16 %v1246
      %v3295 = vunpack.c.l.b16 %v1247
      %v3296 = vunpack.c.l.b16 %v1248
      %v3297 = vunpack.c.l.b16 %v1249
      %v3298 = vunpack.c.l.b16 %v1250
      %v3299 = vunpack.c.l.b16 %v1251
      %v3300 = vunpack.c.l.b16 %v1252
      %v3301 = vunpack.c.l.b16 %v1253
      %v3302 = vunpack.c.l.b16 %v1254
      %v3303 = vunpack.c.l.b16 %v1255
      %v3304 = vunpack.c.l.b16 %v1256
      %v3305 = vunpack.c.l.b16 %v1257
      %v3306 = vunpack.c.l.b16 %v1258
      %v3307 = vunpack.c.l.b16 %v1259
      %v3308 = vunpack.c.l.b16 %v1260
      %v3309 = vunpack.c.l.b16 %v1261
      %v3310 = vunpack.c.l.b16 %v1262
      %v3311 = vunpack.c.l.b16 %v1263
      %v3312 = vunpack.c.l.b16 %v1264
      %v3313 = vunpack.c.l.b16 %v1265
      %v3314 = vunpack.c.l.b16 %v1266
      %v3315 = vunpack.c.l.b16 %v1267
      %v3316 = vunpack.c.l.b16 %v1268
      %v3317 = vunpack.c.l.b16 %v1269
      %v3318 = vunpack.c.l.b16 %v1270
      %v3319 = vunpack.c.l.b16 %v1271
      %v3320 = vunpack.c.l.b16 %v1272
      %v3321 = vunpack.c.l.b16 %v1273
      %v3322 = vunpack.c.l.b16 %v1274
      %v3323 = vunpack.c.l.b16 %v1275
      %v3324 = vunpack.c.l.b16 %v1276
      %v3325 = vunpack.c.l.b16 %v1277
      %v3326 = vunpack.c.l.b16 %v1278
      %v3327 = vunpack.c.l.b16 %v1279
      %v3328 = vunpack.c.l.b16 %v1280
      %v3329 = vunpack.c.l.b16 %v1281
      %v3330 = vunpack.c.l.b16 %v1282
      %v3331 = vunpack.c.l.b16 %v1283
      %v3332 = vunpack.c.l.b16 %v1284
      %v3333 = vunpack.c.l.b16 %v1285
      %v3334 = vunpack.c.l.b16 %v1286
      %v3335 = vunpack.c.l.b16 %v1287
      %v3336 = vunpack.c.l.b16 %v1288
      %v3337 = vunpack.c.l.b16 %v1289
      %v3338 = vunpack.c.l.b16 %v1290
      %v3339 = vunpack.c.l.b16 %v1291
      %v3340 = vunpack.c.l.b16 %v1292
      %v3341 = vunpack.c.l.b16 %v1293
      %v3342 = vunpack.c.l.b16 %v1294
      %v3343 = vunpack.c.l.b16 %v1295
      %v3344 = vunpack.c.l.b16 %v1296
      %v3345 = vunpack.c.l.b16 %v1297
      %v3346 = vunpack.c.l.b16 %v1298
      %v3347 = vunpack.c.l.b16 %v1299
      %v3348 = vunpack.c.l.b16 %v1300
      %v3349 = vunpack.c.l.b16 %v1301
      %v3350 = vunpack.c.l.b16 %v1302
      %v3351 = vunpack.c.l.b16 %v1303
      %v3352 = vunpack.c.l.b16 %v1304
      %v3353 = vunpack.c.l.b16 %v1305
      %v3354 = vunpack.c.l.b16 %v1306
      %v3355 = vunpack.c.l.b16 %v1307
      %v3356 = vunpack.c.l.b16 %v1308
      %v3357 = vunpack.c.l.b16 %v1309
      %v3358 = vunpack.c.l.b16 %v1310
      %v3359 = vunpack.c.l.b16 %v1311
      %v3360 = vunpack.c.l.b16 %v1312
      %v3361 = vunpack.c.l.b16 %v1313
      %v3362 = vunpack.c.l.b16 %v1314
      %v3363 = vunpack.c.l.b16 %v1315
      %v3364 = vunpack.c.l.b16 %v1316
      %v3365 = vunpack.c.l.b16 %v1317
      %v3366 = vunpack.c.l.b16 %v1318
      %v3367 = vunpack.c.l.b16 %v1319
      %v3368 = vunpack.c.l.b16 %v1320
      %v3369 = vunpack.c.l.b16 %v1321
      %v3370 = vunpack.c.l.b16 %v1322
      %v3371 = vunpack.c.l.b16 %v1323
      %v3372 = vunpack.c.l.b16 %v1324
      %v3373 = vunpack.c.l.b16 %v1325
      %v3374 = vunpack.c.l.b16 %v1326
      %v3375 = vunpack.c.l.b16 %v1327
      %v3376 = vunpack.c.l.b16 %v1328
      %v3377 = vunpack.c.l.b16 %v1329
      %v3378 = vunpack.c.l.b16 %v1330
      %v3379 = vunpack.c.l.b16 %v1331
      %v3380 = vunpack.c.l.b16 %v1332
      %v3381 = vunpack.c.l.b16 %v1333
      %v3382 = vunpack.c.l.b16 %v1334
      %v3383 = vunpack.c.l.b16 %v1335
      %v3384 = vunpack.c.l.b16 %v1336
      %v3385 = vunpack.c.l.b16 %v1337
      %v3386 = vunpack.c.l.b16 %v1338
      %v3387 = vunpack.c.l.b16 %v1339
      %v3388 = vunpack.c.l.b16 %v1340
      %v3389 = vunpack.c.l.b16 %v1341
      %v3390 = vunpack.c.l.b16 %v1342
      %v3391 = vunpack.c.l.b16 %v1343
      %v3392 = vunpack.c.l.b16 %v1344
      %v3393 = vunpack.c.l.b16 %v1345
      %v3394 = vunpack.c.l.b16 %v1346
      %v3395 = vunpack.c.l.b16 %v1347
      %v3396 = vunpack.c.l.b16 %v1348
      %v3397 = vunpack.c.l.b16 %v1349
      %v3398 = vunpack.c.l.b16 %v1350
      %v3399 = vunpack.c.l.b16 %v1351
      %v3400 = vunpack.c.l.b16 %v1352
      %v3401 = vunpack.c.l.b16 %v1353
      %v3402 = vunpack.c.l.b16 %v1354
      %v3403 = vunpack.c.l.b16 %v1355
      %v3404 = vunpack.c.l.b16 %v1356
      %v3405 = vunpack.c.l.b16 %v1357
      %v3406 = vunpack.c.l.b16 %v1358
      %v3407 = vunpack.c.l.b16 %v1359
      %v3408 = vunpack.c.l.b16 %v1360
      %v3409 = vunpack.c.l.b16 %v1361
      %v3410 = vunpack.c.l.b16 %v1362
      %v3411 = vunpack.c.l.b16 %v1363
      %v3412 = vunpack.c.l.b16 %v1364
      %v3413 = vunpack.c.l.b16 %v1365
      %v3414 = vunpack.c.l.b16 %v1366
      %v3415 = vunpack.c.l.b16 %v1367
      %v3416 = vunpack.c.l.b16 %v1368
      %v3417 = vunpack.c.l.b16 %v1369
      %v3418 = vunpack.c.l.b16 %v1370
      %v3419 = vunpack.c.l.b16 %v1371
      %v3420 = vunpack.c.l.b16 %v1372
      %v3421 = vunpack.c.l.b16 %v1373
      %v3422 = vunpack.c.l.b16 %v1374
      %v3423 = vunpack.c.l.b16 %v1375
      %v3424 = vunpack.c.l.b16 %v1376
      %v3425 = vunpack.c.l.b16 %v1377
      %v3426 = vunpack.c.l.b16 %v1378
      %v3427 = vunpack.c.l.b16 %v1379
      %v3428 = vunpack.c.l.b16 %v1380
      %v3429 = vunpack.c.l.b16 %v1381
      %v3430 = vunpack.c.l.b16 %v1382
      %v3431 = vunpack.c.l.b16 %v1383
      %v3432 = vunpack.c.l.b16 %v1384
      %v3433 = vunpack.c.l.b16 %v1385
      %v3434 = vunpack.c.l.b16 %v1386
      %v3435 = vunpack.c.l.b16 %v1387
      %v3436 = vunpack.c.l.b16 %v1388
      %v3437 = vunpack.c.l.b16 %v1389
      %v3438 = vunpack.c.l.b16 %v1390
      %v3439 = vunpack.c.l.b16 %v1391
      %v3440 = vunpack.c.l.b16 %v1392
      %v3441 = vunpack.c.l.b16 %v1393
      %v3442 = vunpack.c.l.b16 %v1394
      %v3443 = vunpack.c.l.b16 %v1395
      %v3444 = vunpack.c.l.b16 %v1396
      %v3445 = vunpack.c.l.b16 %v1397
      %v3446 = vunpack.c.l.b16 %v1398
      %v3447 = vunpack.c.l.b16 %v1399
      %v3448 = vunpack.c.l.b16 %v1400
      %v3449 = vunpack.c.l.b16 %v1401
      %v3450 = vunpack.c.l.b16 %v1402
      %v3451 = vunpack.c.l.b16 %v1403
      %v3452 = vunpack.c.l.b16 %v1404
      %v3453 = vunpack.c.l.b16 %v1405
      %v3454 = vunpack.c.l.b16 %v1406
      %v3455 = vunpack.c.l.b16 %v1407
      %v3456 = vunpack.c.l.b16 %v1408
      %v3457 = vunpack.c.l.b16 %v1409
      %v3458 = vunpack.c.l.b16 %v1410
      %v3459 = vunpack.c.l.b16 %v1411
      %v3460 = vunpack.c.l.b16 %v1412
      %v3461 = vunpack.c.l.b16 %v1413
      %v3462 = vunpack.c.l.b16 %v1414
      %v3463 = vunpack.c.l.b16 %v1415
      %v3464 = vunpack.c.l.b16 %v1416
      %v3465 = vunpack.c.l.b16 %v1417
      %v3466 = vunpack.c.l.b16 %v1418
      %v3467 = vunpack.c.l.b16 %v1419
      %v3468 = vunpack.c.l.b16 %v1420
      %v3469 = vunpack.c.l.b16 %v1421
      %v3470 = vunpack.c.l.b16 %v1422
      %v3471 = vunpack.c.l.b16 %v1423
      %v3472 = vunpack.c.l.b16 %v1424
      %v3473 = vunpack.c.l.b16 %v1425
      %v3474 = vunpack.c.l.b16 %v1426
      %v3475 = vunpack.c.l.b16 %v1427
      %v3476 = vunpack.c.l.b16 %v1428
      %v3477 = vunpack.c.l.b16 %v1429
      %v3478 = vunpack.c.l.b16 %v1430
      %v3479 = vunpack.c.l.b16 %v1431
      %v3480 = vunpack.c.l.b16 %v1432
      %v3481 = vunpack.c.l.b16 %v1433
      %v3482 = vunpack.c.l.b16 %v1434
      %v3483 = vunpack.c.l.b16 %v1435
      %v3484 = vunpack.c.l.b16 %v1436
      %v3485 = vunpack.c.l.b16 %v1437
      %v3486 = vunpack.c.l.b16 %v1438
      %v3487 = vunpack.c.l.b16 %v1439
      %v3488 = vunpack.c.l.b16 %v1440
      %v3489 = vunpack.c.l.b16 %v1441
      %v3490 = vunpack.c.l.b16 %v1442
      %v3491 = vunpack.c.l.b16 %v1443
      %v3492 = vunpack.c.l.b16 %v1444
      %v3493 = vunpack.c.l.b16 %v1445
      %v3494 = vunpack.c.l.b16 %v1446
      %v3495 = vunpack.c.l.b16 %v1447
      %v3496 = vunpack.c.l.b16 %v1448
      %v3497 = vunpack.c.l.b16 %v1449
      %v3498 = vunpack.c.l.b16 %v1450
      %v3499 = vunpack.c.l.b16 %v1451
      %v3500 = vunpack.c.l.b16 %v1452
      %v3501 = vunpack.c.l.b16 %v1453
      %v3502 = vunpack.c.l.b16 %v1454
      %v3503 = vunpack.c.l.b16 %v1455
      %v3504 = vunpack.c.l.b16 %v1456
      %v3505 = vunpack.c.l.b16 %v1457
      %v3506 = vunpack.c.l.b16 %v1458
      %v3507 = vunpack.c.l.b16 %v1459
      %v3508 = vunpack.c.l.b16 %v1460
      %v3509 = vunpack.c.l.b16 %v1461
      %v3510 = vunpack.c.l.b16 %v1462
      %v3511 = vunpack.c.l.b16 %v1463
      %v3512 = vunpack.c.l.b16 %v1464
      %v3513 = vunpack.c.l.b16 %v1465
      %v3514 = vunpack.c.l.b16 %v1466
      %v3515 = vunpack.c.l.b16 %v1467
      %v3516 = vunpack.c.l.b16 %v1468
      %v3517 = vunpack.c.l.b16 %v1469
      %v3518 = vunpack.c.l.b16 %v1470
      %v3519 = vunpack.c.l.b16 %v1471
      %v3520 = vunpack.c.l.b16 %v1472
      %v3521 = vunpack.c.l.b16 %v1473
      %v3522 = vunpack.c.l.b16 %v1474
      %v3523 = vunpack.c.l.b16 %v1475
      %v3524 = vunpack.c.l.b16 %v1476
      %v3525 = vunpack.c.l.b16 %v1477
      %v3526 = vunpack.c.l.b16 %v1478
      %v3527 = vunpack.c.l.b16 %v1479
      %v3528 = vunpack.c.l.b16 %v1480
      %v3529 = vunpack.c.l.b16 %v1481
      %v3530 = vunpack.c.l.b16 %v1482
      %v3531 = vunpack.c.l.b16 %v1483
      %v3532 = vunpack.c.l.b16 %v1484
      %v3533 = vunpack.c.l.b16 %v1485
      %v3534 = vunpack.c.l.b16 %v1486
      %v3535 = vunpack.c.l.b16 %v1487
      %v3536 = vunpack.c.l.b16 %v1488
      %v3537 = vunpack.c.l.b16 %v1489
      %v3538 = vunpack.c.l.b16 %v1490
      %v3539 = vunpack.c.l.b16 %v1491
      %v3540 = vunpack.c.l.b16 %v1492
      %v3541 = vunpack.c.l.b16 %v1493
      %v3542 = vunpack.c.l.b16 %v1494
      %v3543 = vunpack.c.l.b16 %v1495
      %v3544 = vunpack.c.l.b16 %v1496
      %v3545 = vunpack.c.l.b16 %v1497
      %v3546 = vunpack.c.l.b16 %v1498
      %v3547 = vunpack.c.l.b16 %v1499
      %v3548 = vunpack.c.l.b16 %v1500
      %v3549 = vunpack.c.l.b16 %v1501
      %v3550 = vunpack.c.l.b16 %v1502
      %v3551 = vunpack.c.l.b16 %v1503
      %v3552 = vunpack.c.l.b16 %v1504
      %v3553 = vunpack.c.l.b16 %v1505
      %v3554 = vunpack.c.l.b16 %v1506
      %v3555 = vunpack.c.l.b16 %v1507
      %v3556 = vunpack.c.l.b16 %v1508
      %v3557 = vunpack.c.l.b16 %v1509
      %v3558 = vunpack.c.l.b16 %v1510
      %v3559 = vunpack.c.l.b16 %v1511
      %v3560 = vunpack.c.l.b16 %v1512
      %v3561 = vunpack.c.l.b16 %v1513
      %v3562 = vunpack.c.l.b16 %v1514
      %v3563 = vunpack.c.l.b16 %v1515
      %v3564 = vunpack.c.l.b16 %v1516
      %v3565 = vunpack.c.l.b16 %v1517
      %v3566 = vunpack.c.l.b16 %v1518
      %v3567 = vunpack.c.l.b16 %v1519
      %v3568 = vunpack.c.l.b16 %v1520
      %v3569 = vunpack.c.l.b16 %v1521
      %v3570 = vunpack.c.l.b16 %v1522
      %v3571 = vunpack.c.l.b16 %v1523
      %v3572 = vunpack.c.l.b16 %v1524
      %v3573 = vunpack.c.l.b16 %v1525
      %v3574 = vunpack.c.l.b16 %v1526
      %v3575 = vunpack.c.l.b16 %v1527
      %v3576 = vunpack.c.l.b16 %v1528
      %v3577 = vunpack.c.l.b16 %v1529
      %v3578 = vunpack.c.l.b16 %v1530
      %v3579 = vunpack.c.l.b16 %v1531
      %v3580 = vunpack.c.l.b16 %v1532
      %v3581 = vunpack.c.l.b16 %v1533
      %v3582 = vunpack.c.l.b16 %v1534
      %v3583 = vunpack.c.l.b16 %v1535
      %v3584 = vunpack.c.l.b16 %v1536
      %v3585 = vunpack.c.l.b16 %v1537
      %v3586 = vunpack.c.l.b16 %v1538
      %v3587 = vunpack.c.l.b16 %v1539
      %v3588 = vunpack.c.l.b16 %v1540
      %v3589 = vunpack.c.l.b16 %v1541
      %v3590 = vunpack.c.l.b16 %v1542
      %v3591 = vunpack.c.l.b16 %v1543
      %v3592 = vunpack.c.l.b16 %v1544
      %v3593 = vunpack.c.l.b16 %v1545
      %v3594 = vunpack.c.l.b16 %v1546
      %v3595 = vunpack.c.l.b16 %v1547
      %v3596 = vunpack.c.l.b16 %v1548
      %v3597 = vunpack.c.l.b16 %v1549
      %v3598 = vunpack.c.l.b16 %v1550
      %v3599 = vunpack.c.l.b16 %v1551
      %v3600 = vunpack.c.l.b16 %v1552
      %v3601 = vunpack.c.l.b16 %v1553
      %v3602 = vunpack.c.l.b16 %v1554
      %v3603 = vunpack.c.l.b16 %v1555
      %v3604 = vunpack.c.l.b16 %v1556
      %v3605 = vunpack.c.l.b16 %v1557
      %v3606 = vunpack.c.l.b16 %v1558
      %v3607 = vunpack.c.l.b16 %v1559
      %v3608 = vunpack.c.l.b16 %v1560
      %v3609 = vunpack.c.l.b16 %v1561
      %v3610 = vunpack.c.l.b16 %v1562
      %v3611 = vunpack.c.l.b16 %v1563
      %v3612 = vunpack.c.l.b16 %v1564
      %v3613 = vunpack.c.l.b16 %v1565
      %v3614 = vunpack.c.l.b16 %v1566
      %v3615 = vunpack.c.l.b16 %v1567
      %v3616 = vunpack.c.l.b16 %v1568
      %v3617 = vunpack.c.l.b16 %v1569
      %v3618 = vunpack.c.l.b16 %v1570
      %v3619 = vunpack.c.l.b16 %v1571
      %v3620 = vunpack.c.l.b16 %v1572
      %v3621 = vunpack.c.l.b16 %v1573
      %v3622 = vunpack.c.l.b16 %v1574
      %v3623 = vunpack.c.l.b16 %v1575
      %v3624 = vunpack.c.l.b16 %v1576
      %v3625 = vunpack.c.l.b16 %v1577
      %v3626 = vunpack.c.l.b16 %v1578
      %v3627 = vunpack.c.l.b16 %v1579
      %v3628 = vunpack.c.l.b16 %v1580
      %v3629 = vunpack.c.l.b16 %v1581
      %v3630 = vunpack.c.l.b16 %v1582
      %v3631 = vunpack.c.l.b16 %v1583
      %v3632 = vunpack.c.l.b16 %v1584
      %v3633 = vunpack.c.l.b16 %v1585
      %v3634 = vunpack.c.l.b16 %v1586
      %v3635 = vunpack.c.l.b16 %v1587
      %v3636 = vunpack.c.l.b16 %v1588
      %v3637 = vunpack.c.l.b16 %v1589
      %v3638 = vunpack.c.l.b16 %v1590
      %v3639 = vunpack.c.l.b16 %v1591
      %v3640 = vunpack.c.l.b16 %v1592
      %v3641 = vunpack.c.l.b16 %v1593
      %v3642 = vunpack.c.l.b16 %v1594
      %v3643 = vunpack.c.l.b16 %v1595
      %v3644 = vunpack.c.l.b16 %v1596
      %v3645 = vunpack.c.l.b16 %v1597
      %v3646 = vunpack.c.l.b16 %v1598
      %v3647 = vunpack.c.l.b16 %v1599
      %v3648 = vunpack.c.l.b16 %v1600
      %v3649 = vunpack.c.l.b16 %v1601
      %v3650 = vunpack.c.l.b16 %v1602
      %v3651 = vunpack.c.l.b16 %v1603
      %v3652 = vunpack.c.l.b16 %v1604
      %v3653 = vunpack.c.l.b16 %v1605
      %v3654 = vunpack.c.l.b16 %v1606
      %v3655 = vunpack.c.l.b16 %v1607
      %v3656 = vunpack.c.l.b16 %v1608
      %v3657 = vunpack.c.l.b16 %v1609
      %v3658 = vunpack.c.l.b16 %v1610
      %v3659 = vunpack.c.l.b16 %v1611
      %v3660 = vunpack.c.l.b16 %v1612
      %v3661 = vunpack.c.l.b16 %v1613
      %v3662 = vunpack.c.l.b16 %v1614
      %v3663 = vunpack.c.l.b16 %v1615
      %v3664 = vunpack.c.l.b16 %v1616
      %v3665 = vunpack.c.l.b16 %v1617
      %v3666 = vunpack.c.l.b16 %v1618
      %v3667 = vunpack.c.l.b16 %v1619
      %v3668 = vunpack.c.l.b16 %v1620
      %v3669 = vunpack.c.l.b16 %v1621
      %v3670 = vunpack.c.l.b16 %v1622
      %v3671 = vunpack.c.l.b16 %v1623
      %v3672 = vunpack.c.l.b16 %v1624
      %v3673 = vunpack.c.l.b16 %v1625
      %v3674 = vunpack.c.l.b16 %v1626
      %v3675 = vunpack.c.l.b16 %v1627
      %v3676 = vunpack.c.l.b16 %v1628
      %v3677 = vunpack.c.l.b16 %v1629
      %v3678 = vunpack.c.l.b16 %v1630
      %v3679 = vunpack.c.l.b16 %v1631
      %v3680 = vunpack.c.l.b16 %v1632
      %v3681 = vunpack.c.l.b16 %v1633
      %v3682 = vunpack.c.l.b16 %v1634
      %v3683 = vunpack.c.l.b16 %v1635
      %v3684 = vunpack.c.l.b16 %v1636
      %v3685 = vunpack.c.l.b16 %v1637
      %v3686 = vunpack.c.l.b16 %v1638
      %v3687 = vunpack.c.l.b16 %v1639
      %v3688 = vunpack.c.l.b16 %v1640
      %v3689 = vunpack.c.l.b16 %v1641
      %v3690 = vunpack.c.l.b16 %v1642
      %v3691 = vunpack.c.l.b16 %v1643
      %v3692 = vunpack.c.l.b16 %v1644
      %v3693 = vunpack.c.l.b16 %v1645
      %v3694 = vunpack.c.l.b16 %v1646
      %v3695 = vunpack.c.l.b16 %v1647
      %v3696 = vunpack.c.l.b16 %v1648
      %v3697 = vunpack.c.l.b16 %v1649
      %v3698 = vunpack.c.l.b16 %v1650
      %v3699 = vunpack.c.l.b16 %v1651
      %v3700 = vunpack.c.l.b16 %v1652
      %v3701 = vunpack.c.l.b16 %v1653
      %v3702 = vunpack.c.l.b16 %v1654
      %v3703 = vunpack.c.l.b16 %v1655
      %v3704 = vunpack.c.l.b16 %v1656
      %v3705 = vunpack.c.l.b16 %v1657
      %v3706 = vunpack.c.l.b16 %v1658
      %v3707 = vunpack.c.l.b16 %v1659
      %v3708 = vunpack.c.l.b16 %v1660
      %v3709 = vunpack.c.l.b16 %v1661
      %v3710 = vunpack.c.l.b16 %v1662
      %v3711 = vunpack.c.l.b16 %v1663
      %v3712 = vunpack.c.l.b16 %v1664
      %v3713 = vunpack.c.l.b16 %v1665
      %v3714 = vunpack.c.l.b16 %v1666
      %v3715 = vunpack.c.l.b16 %v1667
      %v3716 = vunpack.c.l.b16 %v1668
      %v3717 = vunpack.c.l.b16 %v1669
      %v3718 = vunpack.c.l.b16 %v1670
      %v3719 = vunpack.c.l.b16 %v1671
      %v3720 = vunpack.c.l.b16 %v1672
      %v3721 = vunpack.c.l.b16 %v1673
      %v3722 = vunpack.c.l.b16 %v1674
      %v3723 = vunpack.c.l.b16 %v1675
      %v3724 = vunpack.c.l.b16 %v1676
      %v3725 = vunpack.c.l.b16 %v1677
      %v3726 = vunpack.c.l.b16 %v1678
      %v3727 = vunpack.c.l.b16 %v1679
      %v3728 = vunpack.c.l.b16 %v1680
      %v3729 = vunpack.c.l.b16 %v1681
      %v3730 = vunpack.c.l.b16 %v1682
      %v3731 = vunpack.c.l.b16 %v1683
      %v3732 = vunpack.c.l.b16 %v1684
      %v3733 = vunpack.c.l.b16 %v1685
      %v3734 = vunpack.c.l.b16 %v1686
      %v3735 = vunpack.c.l.b16 %v1687
      %v3736 = vunpack.c.l.b16 %v1688
      %v3737 = vunpack.c.l.b16 %v1689
      %v3738 = vunpack.c.l.b16 %v1690
      %v3739 = vunpack.c.l.b16 %v1691
      %v3740 = vunpack.c.l.b16 %v1692
      %v3741 = vunpack.c.l.b16 %v1693
      %v3742 = vunpack.c.l.b16 %v1694
      %v3743 = vunpack.c.l.b16 %v1695
      %v3744 = vunpack.c.l.b16 %v1696
      %v3745 = vunpack.c.l.b16 %v1697
      %v3746 = vunpack.c.l.b16 %v1698
      %v3747 = vunpack.c.l.b16 %v1699
      %v3748 = vunpack.c.l.b16 %v1700
      %v3749 = vunpack.c.l.b16 %v1701
      %v3750 = vunpack.c.l.b16 %v1702
      %v3751 = vunpack.c.l.b16 %v1703
      %v3752 = vunpack.c.l.b16 %v1704
      %v3753 = vunpack.c.l.b16 %v1705
      %v3754 = vunpack.c.l.b16 %v1706
      %v3755 = vunpack.c.l.b16 %v1707
      %v3756 = vunpack.c.l.b16 %v1708
      %v3757 = vunpack.c.l.b16 %v1709
      %v3758 = vunpack.c.l.b16 %v1710
      %v3759 = vunpack.c.l.b16 %v1711
      %v3760 = vunpack.c.l.b16 %v1712
      %v3761 = vunpack.c.l.b16 %v1713
      %v3762 = vunpack.c.l.b16 %v1714
      %v3763 = vunpack.c.l.b16 %v1715
      %v3764 = vunpack.c.l.b16 %v1716
      %v3765 = vunpack.c.l.b16 %v1717
      %v3766 = vunpack.c.l.b16 %v1718
      %v3767 = vunpack.c.l.b16 %v1719
      %v3768 = vunpack.c.l.b16 %v1720
      %v3769 = vunpack.c.l.b16 %v1721
      %v3770 = vunpack.c.l.b16 %v1722
      %v3771 = vunpack.c.l.b16 %v1723
      %v3772 = vunpack.c.l.b16 %v1724
      %v3773 = vunpack.c.l.b16 %v1725
      %v3774 = vunpack.c.l.b16 %v1726
      %v3775 = vunpack.c.l.b16 %v1727
      %v3776 = vunpack.c.l.b16 %v1728
      %v3777 = vunpack.c.l.b16 %v1729
      %v3778 = vunpack.c.l.b16 %v1730
      %v3779 = vunpack.c.l.b16 %v1731
      %v3780 = vunpack.c.l.b16 %v1732
      %v3781 = vunpack.c.l.b16 %v1733
      %v3782 = vunpack.c.l.b16 %v1734
      %v3783 = vunpack.c.l.b16 %v1735
      %v3784 = vunpack.c.l.b16 %v1736
      %v3785 = vunpack.c.l.b16 %v1737
      %v3786 = vunpack.c.l.b16 %v1738
      %v3787 = vunpack.c.l.b16 %v1739
      %v3788 = vunpack.c.l.b16 %v1740
      %v3789 = vunpack.c.l.b16 %v1741
      %v3790 = vunpack.c.l.b16 %v1742
      %v3791 = vunpack.c.l.b16 %v1743
      %v3792 = vunpack.c.l.b16 %v1744
      %v3793 = vunpack.c.l.b16 %v1745
      %v3794 = vunpack.c.l.b16 %v1746
      %v3795 = vunpack.c.l.b16 %v1747
      %v3796 = vunpack.c.l.b16 %v1748
      %v3797 = vunpack.c.l.b16 %v1749
      %v3798 = vunpack.c.l.b16 %v1750
      %v3799 = vunpack.c.l.b16 %v1751
      %v3800 = vunpack.c.l.b16 %v1752
      %v3801 = vunpack.c.l.b16 %v1753
      %v3802 = vunpack.c.l.b16 %v1754
      %v3803 = vunpack.c.l.b16 %v1755
      %v3804 = vunpack.c.l.b16 %v1756
      %v3805 = vunpack.c.l.b16 %v1757
      %v3806 = vunpack.c.l.b16 %v1758
      %v3807 = vunpack.c.l.b16 %v1759
      %v3808 = vunpack.c.l.b16 %v1760
      %v3809 = vunpack.c.l.b16 %v1761
      %v3810 = vunpack.c.l.b16 %v1762
      %v3811 = vunpack.c.l.b16 %v1763
      %v3812 = vunpack.c.l.b16 %v1764
      %v3813 = vunpack.c.l.b16 %v1765
      %v3814 = vunpack.c.l.b16 %v1766
      %v3815 = vunpack.c.l.b16 %v1767
      %v3816 = vunpack.c.l.b16 %v1768
      %v3817 = vunpack.c.l.b16 %v1769
      %v3818 = vunpack.c.l.b16 %v1770
      %v3819 = vunpack.c.l.b16 %v1771
      %v3820 = vunpack.c.l.b16 %v1772
      %v3821 = vunpack.c.l.b16 %v1773
      %v3822 = vunpack.c.l.b16 %v1774
      %v3823 = vunpack.c.l.b16 %v1775
      %v3824 = vunpack.c.l.b16 %v1776
      %v3825 = vunpack.c.l.b16 %v1777
      %v3826 = vunpack.c.l.b16 %v1778
      %v3827 = vunpack.c.l.b16 %v1779
      %v3828 = vunpack.c.l.b16 %v1780
      %v3829 = vunpack.c.l.b16 %v1781
      %v3830 = vunpack.c.l.b16 %v1782
      %v3831 = vunpack.c.l.b16 %v1783
      %v3832 = vunpack.c.l.b16 %v1784
      %v3833 = vunpack.c.l.b16 %v1785
      %v3834 = vunpack.c.l.b16 %v1786
      %v3835 = vunpack.c.l.b16 %v1787
      %v3836 = vunpack.c.l.b16 %v1788
      %v3837 = vunpack.c.l.b16 %v1789
      %v3838 = vunpack.c.l.b16 %v1790
      %v3839 = vunpack.c.l.b16 %v1791
      %v3840 = vunpack.c.l.b16 %v1792
      %v3841 = vunpack.c.l.b16 %v1793
      %v3842 = vunpack.c.l.b16 %v1794
      %v3843 = vunpack.c.l.b16 %v1795
      %v3844 = vunpack.c.l.b16 %v1796
      %v3845 = vunpack.c.l.b16 %v1797
      %v3846 = vunpack.c.l.b16 %v1798
      %v3847 = vunpack.c.l.b16 %v1799
      %v3848 = vunpack.c.l.b16 %v1800
      %v3849 = vunpack.c.l.b16 %v1801
      %v3850 = vunpack.c.l.b16 %v1802
      %v3851 = vunpack.c.l.b16 %v1803
      %v3852 = vunpack.c.l.b16 %v1804
      %v3853 = vunpack.c.l.b16 %v1805
      %v3854 = vunpack.c.l.b16 %v1806
      %v3855 = vunpack.c.l.b16 %v1807
      %v3856 = vunpack.c.l.b16 %v1808
      %v3857 = vunpack.c.l.b16 %v1809
      %v3858 = vunpack.c.l.b16 %v1810
      %v3859 = vunpack.c.l.b16 %v1811
      %v3860 = vunpack.c.l.b16 %v1812
      %v3861 = vunpack.c.l.b16 %v1813
      %v3862 = vunpack.c.l.b16 %v1814
      %v3863 = vunpack.c.l.b16 %v1815
      %v3864 = vunpack.c.l.b16 %v1816
      %v3865 = vunpack.c.l.b16 %v1817
      %v3866 = vunpack.c.l.b16 %v1818
      %v3867 = vunpack.c.l.b16 %v1819
      %v3868 = vunpack.c.l.b16 %v1820
      %v3869 = vunpack.c.l.b16 %v1821
      %v3870 = vunpack.c.l.b16 %v1822
      %v3871 = vunpack.c.l.b16 %v1823
      %v3872 = vunpack.c.l.b16 %v1824
      %v3873 = vunpack.c.l.b16 %v1825
      %v3874 = vunpack.c.l.b16 %v1826
      %v3875 = vunpack.c.l.b16 %v1827
      %v3876 = vunpack.c.l.b16 %v1828
      %v3877 = vunpack.c.l.b16 %v1829
      %v3878 = vpack.c.b16 %v2855, %v2854
      %v3879 = vpack.c.b16 %v2857, %v2856
      %v3880 = vpack.c.b16 %v2859, %v2858
      %v3881 = vpack.c.b16 %v2861, %v2860
      %v3882 = vpack.c.b16 %v2863, %v2862
      %v3883 = vpack.c.b16 %v2865, %v2864
      %v3884 = vpack.c.b16 %v2867, %v2866
      %v3885 = vpack.c.b16 %v2869, %v2868
      %v3886 = vpack.c.b16 %v2871, %v2870
      %v3887 = vpack.c.b16 %v2873, %v2872
      %v3888 = vpack.c.b16 %v2875, %v2874
      %v3889 = vpack.c.b16 %v2877, %v2876
      %v3890 = vpack.c.b16 %v2879, %v2878
      %v3891 = vpack.c.b16 %v2881, %v2880
      %v3892 = vpack.c.b16 %v2883, %v2882
      %v3893 = vpack.c.b16 %v2885, %v2884
      %v3894 = vpack.c.b16 %v2887, %v2886
      %v3895 = vpack.c.b16 %v2889, %v2888
      %v3896 = vpack.c.b16 %v2891, %v2890
      %v3897 = vpack.c.b16 %v2893, %v2892
      %v3898 = vpack.c.b16 %v2895, %v2894
      %v3899 = vpack.c.b16 %v2897, %v2896
      %v3900 = vpack.c.b16 %v2899, %v2898
      %v3901 = vpack.c.b16 %v2901, %v2900
      %v3902 = vpack.c.b16 %v2903, %v2902
      %v3903 = vpack.c.b16 %v2905, %v2904
      %v3904 = vpack.c.b16 %v2907, %v2906
      %v3905 = vpack.c.b16 %v2909, %v2908
      %v3906 = vpack.c.b16 %v2911, %v2910
      %v3907 = vpack.c.b16 %v2913, %v2912
      %v3908 = vpack.c.b16 %v2915, %v2914
      %v3909 = vpack.c.b16 %v2917, %v2916
      %v3910 = vpack.c.b16 %v2919, %v2918
      %v3911 = vpack.c.b16 %v2921, %v2920
      %v3912 = vpack.c.b16 %v2923, %v2922
      %v3913 = vpack.c.b16 %v2925, %v2924
      %v3914 = vpack.c.b16 %v2927, %v2926
      %v3915 = vpack.c.b16 %v2929, %v2928
      %v3916 = vpack.c.b16 %v2931, %v2930
      %v3917 = vpack.c.b16 %v2933, %v2932
      %v3918 = vpack.c.b16 %v2935, %v2934
      %v3919 = vpack.c.b16 %v2937, %v2936
      %v3920 = vpack.c.b16 %v2939, %v2938
      %v3921 = vpack.c.b16 %v2941, %v2940
      %v3922 = vpack.c.b16 %v2943, %v2942
      %v3923 = vpack.c.b16 %v2945, %v2944
      %v3924 = vpack.c.b16 %v2947, %v2946
      %v3925 = vpack.c.b16 %v2949, %v2948
      %v3926 = vpack.c.b16 %v2951, %v2950
      %v3927 = vpack.c.b16 %v2953, %v2952
      %v3928 = vpack.c.b16 %v2955, %v2954
      %v3929 = vpack.c.b16 %v2957, %v2956
      %v3930 = vpack.c.b16 %v2959, %v2958
      %v3931 = vpack.c.b16 %v2961, %v2960
      %v3932 = vpack.c.b16 %v2963, %v2962
      %v3933 = vpack.c.b16 %v2965, %v2964
      %v3934 = vpack.c.b16 %v2967, %v2966
      %v3935 = vpack.c.b16 %v2969, %v2968
      %v3936 = vpack.c.b16 %v2971, %v2970
      %v3937 = vpack.c.b16 %v2973, %v2972
      %v3938 = vpack.c.b16 %v2975, %v2974
      %v3939 = vpack.c.b16 %v2977, %v2976
      %v3940 = vpack.c.b16 %v2979, %v2978
      %v3941 = vpack.c.b16 %v2981, %v2980
      %v3942 = vpack.c.b16 %v2983, %v2982
      %v3943 = vpack.c.b16 %v2985, %v2984
      %v3944 = vpack.c.b16 %v2987, %v2986
      %v3945 = vpack.c.b16 %v2989, %v2988
      %v3946 = vpack.c.b16 %v2991, %v2990
      %v3947 = vpack.c.b16 %v2993, %v2992
      %v3948 = vpack.c.b16 %v2995, %v2994
      %v3949 = vpack.c.b16 %v2997, %v2996
      %v3950 = vpack.c.b16 %v2999, %v2998
      %v3951 = vpack.c.b16 %v3001, %v3000
      %v3952 = vpack.c.b16 %v3003, %v3002
      %v3953 = vpack.c.b16 %v3005, %v3004
      %v3954 = vpack.c.b16 %v3007, %v3006
      %v3955 = vpack.c.b16 %v3009, %v3008
      %v3956 = vpack.c.b16 %v3011, %v3010
      %v3957 = vpack.c.b16 %v3013, %v3012
      %v3958 = vpack.c.b16 %v3015, %v3014
      %v3959 = vpack.c.b16 %v3017, %v3016
      %v3960 = vpack.c.b16 %v3019, %v3018
      %v3961 = vpack.c.b16 %v3021, %v3020
      %v3962 = vpack.c.b16 %v3023, %v3022
      %v3963 = vpack.c.b16 %v3025, %v3024
      %v3964 = vpack.c.b16 %v3027, %v3026
      %v3965 = vpack.c.b16 %v3029, %v3028
      %v3966 = vpack.c.b16 %v3031, %v3030
      %v3967 = vpack.c.b16 %v3033, %v3032
      %v3968 = vpack.c.b16 %v3035, %v3034
      %v3969 = vpack.c.b16 %v3037, %v3036
      %v3970 = vpack.c.b16 %v3039, %v3038
      %v3971 = vpack.c.b16 %v3041, %v3040
      %v3972 = vpack.c.b16 %v3043, %v3042
      %v3973 = vpack.c.b16 %v3045, %v3044
      %v3974 = vpack.c.b16 %v3047, %v3046
      %v3975 = vpack.c.b16 %v3049, %v3048
      %v3976 = vpack.c.b16 %v3051, %v3050
      %v3977 = vpack.c.b16 %v3053, %v3052
      %v3978 = vpack.c.b16 %v3055, %v3054
      %v3979 = vpack.c.b16 %v3057, %v3056
      %v3980 = vpack.c.b16 %v3059, %v3058
      %v3981 = vpack.c.b16 %v3061, %v3060
      %v3982 = vpack.c.b16 %v3063, %v3062
      %v3983 = vpack.c.b16 %v3065, %v3064
      %v3984 = vpack.c.b16 %v3067, %v3066
      %v3985 = vpack.c.b16 %v3069, %v3068
      %v3986 = vpack.c.b16 %v3071, %v3070
      %v3987 = vpack.c.b16 %v3073, %v3072
      %v3988 = vpack.c.b16 %v3075, %v3074
      %v3989 = vpack.c.b16 %v3077, %v3076
      %v3990 = vpack.c.b16 %v3079, %v3078
      %v3991 = vpack.c.b16 %v3081, %v3080
      %v3992 = vpack.c.b16 %v3083, %v3082
      %v3993 = vpack.c.b16 %v3085, %v3084
      %v3994 = vpack.c.b16 %v3087, %v3086
      %v3995 = vpack.c.b16 %v3089, %v3088
      %v3996 = vpack.c.b16 %v3091, %v3090
      %v3997 = vpack.c.b16 %v3093, %v3092
      %v3998 = vpack.c.b16 %v3095, %v3094
      %v3999 = vpack.c.b16 %v3097, %v3096
      %v4000 = vpack.c.b16 %v3099, %v3098
      %v4001 = vpack.c.b16 %v3101, %v3100
      %v4002 = vpack.c.b16 %v3103, %v3102
      %v4003 = vpack.c.b16 %v3105, %v3104
      %v4004 = vpack.c.b16 %v3107, %v3106
      %v4005 = vpack.c.b16 %v3109, %v3108
      %v4006 = vpack.c.b16 %v3111, %v3110
      %v4007 = vpack.c.b16 %v3113, %v3112
      %v4008 = vpack.c.b16 %v3115, %v3114
      %v4009 = vpack.c.b16 %v3117, %v3116
      %v4010 = vpack.c.b16 %v3119, %v3118
      %v4011 = vpack.c.b16 %v3121, %v3120
      %v4012 = vpack.c.b16 %v3123, %v3122
      %v4013 = vpack.c.b16 %v3125, %v3124
      %v4014 = vpack.c.b16 %v3127, %v3126
      %v4015 = vpack.c.b16 %v3129, %v3128
      %v4016 = vpack.c.b16 %v3131, %v3130
      %v4017 = vpack.c.b16 %v3133, %v3132
      %v4018 = vpack.c.b16 %v3135, %v3134
      %v4019 = vpack.c.b16 %v3137, %v3136
      %v4020 = vpack.c.b16 %v3139, %v3138
      %v4021 = vpack.c.b16 %v3141, %v3140
      %v4022 = vpack.c.b16 %v3143, %v3142
      %v4023 = vpack.c.b16 %v3145, %v3144
      %v4024 = vpack.c.b16 %v3147, %v3146
      %v4025 = vpack.c.b16 %v3149, %v3148
      %v4026 = vpack.c.b16 %v3151, %v3150
      %v4027 = vpack.c.b16 %v3153, %v3152
      %v4028 = vpack.c.b16 %v3155, %v3154
      %v4029 = vpack.c.b16 %v3157, %v3156
      %v4030 = vpack.c.b16 %v3159, %v3158
      %v4031 = vpack.c.b16 %v3161, %v3160
      %v4032 = vpack.c.b16 %v3163, %v3162
      %v4033 = vpack.c.b16 %v3165, %v3164
      %v4034 = vpack.c.b16 %v3167, %v3166
      %v4035 = vpack.c.b16 %v3169, %v3168
      %v4036 = vpack.c.b16 %v3171, %v3170
      %v4037 = vpack.c.b16 %v3173, %v3172
      %v4038 = vpack.c.b16 %v3175, %v3174
      %v4039 = vpack.c.b16 %v3177, %v3176
      %v4040 = vpack.c.b16 %v3179, %v3178
      %v4041 = vpack.c.b16 %v3181, %v3180
      %v4042 = vpack.c.b16 %v3183, %v3182
      %v4043 = vpack.c.b16 %v3185, %v3184
      %v4044 = vpack.c.b16 %v3187, %v3186
      %v4045 = vpack.c.b16 %v3189, %v3188
      %v4046 = vpack.c.b16 %v3191, %v3190
      %v4047 = vpack.c.b16 %v3193, %v3192
      %v4048 = vpack.c.b16 %v3195, %v3194
      %v4049 = vpack.c.b16 %v3197, %v3196
      %v4050 = vpack.c.b16 %v3199, %v3198
      %v4051 = vpack.c.b16 %v3201, %v3200
      %v4052 = vpack.c.b16 %v3203, %v3202
      %v4053 = vpack.c.b16 %v3205, %v3204
      %v4054 = vpack.c.b16 %v3207, %v3206
      %v4055 = vpack.c.b16 %v3209, %v3208
      %v4056 = vpack.c.b16 %v3211, %v3210
      %v4057 = vpack.c.b16 %v3213, %v3212
      %v4058 = vpack.c.b16 %v3215, %v3214
      %v4059 = vpack.c.b16 %v3217, %v3216
      %v4060 = vpack.c.b16 %v3219, %v3218
      %v4061 = vpack.c.b16 %v3221, %v3220
      %v4062 = vpack.c.b16 %v3223, %v3222
      %v4063 = vpack.c.b16 %v3225, %v3224
      %v4064 = vpack.c.b16 %v3227, %v3226
      %v4065 = vpack.c.b16 %v3229, %v3228
      %v4066 = vpack.c.b16 %v3231, %v3230
      %v4067 = vpack.c.b16 %v3233, %v3232
      %v4068 = vpack.c.b16 %v3235, %v3234
      %v4069 = vpack.c.b16 %v3237, %v3236
      %v4070 = vpack.c.b16 %v3239, %v3238
      %v4071 = vpack.c.b16 %v3241, %v3240
      %v4072 = vpack.c.b16 %v3243, %v3242
      %v4073 = vpack.c.b16 %v3245, %v3244
      %v4074 = vpack.c.b16 %v3247, %v3246
      %v4075 = vpack.c.b16 %v3249, %v3248
      %v4076 = vpack.c.b16 %v3251, %v3250
      %v4077 = vpack.c.b16 %v3253, %v3252
      %v4078 = vpack.c.b16 %v3255, %v3254
      %v4079 = vpack.c.b16 %v3257, %v3256
      %v4080 = vpack.c.b16 %v3259, %v3258
      %v4081 = vpack.c.b16 %v3261, %v3260
      %v4082 = vpack.c.b16 %v3263, %v3262
      %v4083 = vpack.c.b16 %v3265, %v3264
      %v4084 = vpack.c.b16 %v3267, %v3266
      %v4085 = vpack.c.b16 %v3269, %v3268
      %v4086 = vpack.c.b16 %v3271, %v3270
      %v4087 = vpack.c.b16 %v3273, %v3272
      %v4088 = vpack.c.b16 %v3275, %v3274
      %v4089 = vpack.c.b16 %v3277, %v3276
      %v4090 = vpack.c.b16 %v3279, %v3278
      %v4091 = vpack.c.b16 %v3281, %v3280
      %v4092 = vpack.c.b16 %v3283, %v3282
      %v4093 = vpack.c.b16 %v3285, %v3284
      %v4094 = vpack.c.b16 %v3287, %v3286
      %v4095 = vpack.c.b16 %v3289, %v3288
      %v4096 = vpack.c.b16 %v3291, %v3290
      %v4097 = vpack.c.b16 %v3293, %v3292
      %v4098 = vpack.c.b16 %v3295, %v3294
      %v4099 = vpack.c.b16 %v3297, %v3296
      %v4100 = vpack.c.b16 %v3299, %v3298
      %v4101 = vpack.c.b16 %v3301, %v3300
      %v4102 = vpack.c.b16 %v3303, %v3302
      %v4103 = vpack.c.b16 %v3305, %v3304
      %v4104 = vpack.c.b16 %v3307, %v3306
      %v4105 = vpack.c.b16 %v3309, %v3308
      %v4106 = vpack.c.b16 %v3311, %v3310
      %v4107 = vpack.c.b16 %v3313, %v3312
      %v4108 = vpack.c.b16 %v3315, %v3314
      %v4109 = vpack.c.b16 %v3317, %v3316
      %v4110 = vpack.c.b16 %v3319, %v3318
      %v4111 = vpack.c.b16 %v3321, %v3320
      %v4112 = vpack.c.b16 %v3323, %v3322
      %v4113 = vpack.c.b16 %v3325, %v3324
      %v4114 = vpack.c.b16 %v3327, %v3326
      %v4115 = vpack.c.b16 %v3329, %v3328
      %v4116 = vpack.c.b16 %v3331, %v3330
      %v4117 = vpack.c.b16 %v3333, %v3332
      %v4118 = vpack.c.b16 %v3335, %v3334
      %v4119 = vpack.c.b16 %v3337, %v3336
      %v4120 = vpack.c.b16 %v3339, %v3338
      %v4121 = vpack.c.b16 %v3341, %v3340
      %v4122 = vpack.c.b16 %v3343, %v3342
      %v4123 = vpack.c.b16 %v3345, %v3344
      %v4124 = vpack.c.b16 %v3347, %v3346
      %v4125 = vpack.c.b16 %v3349, %v3348
      %v4126 = vpack.c.b16 %v3351, %v3350
      %v4127 = vpack.c.b16 %v3353, %v3352
      %v4128 = vpack.c.b16 %v3355, %v3354
      %v4129 = vpack.c.b16 %v3357, %v3356
      %v4130 = vpack.c.b16 %v3359, %v3358
      %v4131 = vpack.c.b16 %v3361, %v3360
      %v4132 = vpack.c.b16 %v3363, %v3362
      %v4133 = vpack.c.b16 %v3365, %v3364
      %v4134 = vpack.c.b16 %v3367, %v3366
      %v4135 = vpack.c.b16 %v3369, %v3368
      %v4136 = vpack.c.b16 %v3371, %v3370
      %v4137 = vpack.c.b16 %v3373, %v3372
      %v4138 = vpack.c.b16 %v3375, %v3374
      %v4139 = vpack.c.b16 %v3377, %v3376
      %v4140 = vpack.c.b16 %v3379, %v3378
      %v4141 = vpack.c.b16 %v3381, %v3380
      %v4142 = vpack.c.b16 %v3383, %v3382
      %v4143 = vpack.c.b16 %v3385, %v3384
      %v4144 = vpack.c.b16 %v3387, %v3386
      %v4145 = vpack.c.b16 %v3389, %v3388
      %v4146 = vpack.c.b16 %v3391, %v3390
      %v4147 = vpack.c.b16 %v3393, %v3392
      %v4148 = vpack.c.b16 %v3395, %v3394
      %v4149 = vpack.c.b16 %v3397, %v3396
      %v4150 = vpack.c.b16 %v3399, %v3398
      %v4151 = vpack.c.b16 %v3401, %v3400
      %v4152 = vpack.c.b16 %v3403, %v3402
      %v4153 = vpack.c.b16 %v3405, %v3404
      %v4154 = vpack.c.b16 %v3407, %v3406
      %v4155 = vpack.c.b16 %v3409, %v3408
      %v4156 = vpack.c.b16 %v3411, %v3410
      %v4157 = vpack.c.b16 %v3413, %v3412
      %v4158 = vpack.c.b16 %v3415, %v3414
      %v4159 = vpack.c.b16 %v3417, %v3416
      %v4160 = vpack.c.b16 %v3419, %v3418
      %v4161 = vpack.c.b16 %v3421, %v3420
      %v4162 = vpack.c.b16 %v3423, %v3422
      %v4163 = vpack.c.b16 %v3425, %v3424
      %v4164 = vpack.c.b16 %v3427, %v3426
      %v4165 = vpack.c.b16 %v3429, %v3428
      %v4166 = vpack.c.b16 %v3431, %v3430
      %v4167 = vpack.c.b16 %v3433, %v3432
      %v4168 = vpack.c.b16 %v3435, %v3434
      %v4169 = vpack.c.b16 %v3437, %v3436
      %v4170 = vpack.c.b16 %v3439, %v3438
      %v4171 = vpack.c.b16 %v3441, %v3440
      %v4172 = vpack.c.b16 %v3443, %v3442
      %v4173 = vpack.c.b16 %v3445, %v3444
      %v4174 = vpack.c.b16 %v3447, %v3446
      %v4175 = vpack.c.b16 %v3449, %v3448
      %v4176 = vpack.c.b16 %v3451, %v3450
      %v4177 = vpack.c.b16 %v3453, %v3452
      %v4178 = vpack.c.b16 %v3455, %v3454
      %v4179 = vpack.c.b16 %v3457, %v3456
      %v4180 = vpack.c.b16 %v3459, %v3458
      %v4181 = vpack.c.b16 %v3461, %v3460
      %v4182 = vpack.c.b16 %v3463, %v3462
      %v4183 = vpack.c.b16 %v3465, %v3464
      %v4184 = vpack.c.b16 %v3467, %v3466
      %v4185 = vpack.c.b16 %v3469, %v3468
      %v4186 = vpack.c.b16 %v3471, %v3470
      %v4187 = vpack.c.b16 %v3473, %v3472
      %v4188 = vpack.c.b16 %v3475, %v3474
      %v4189 = vpack.c.b16 %v3477, %v3476
      %v4190 = vpack.c.b16 %v3479, %v3478
      %v4191 = vpack.c.b16 %v3481, %v3480
      %v4192 = vpack.c.b16 %v3483, %v3482
      %v4193 = vpack.c.b16 %v3485, %v3484
      %v4194 = vpack.c.b16 %v3487, %v3486
      %v4195 = vpack.c.b16 %v3489, %v3488
      %v4196 = vpack.c.b16 %v3491, %v3490
      %v4197 = vpack.c.b16 %v3493, %v3492
      %v4198 = vpack.c.b16 %v3495, %v3494
      %v4199 = vpack.c.b16 %v3497, %v3496
      %v4200 = vpack.c.b16 %v3499, %v3498
      %v4201 = vpack.c.b16 %v3501, %v3500
      %v4202 = vpack.c.b16 %v3503, %v3502
      %v4203 = vpack.c.b16 %v3505, %v3504
      %v4204 = vpack.c.b16 %v3507, %v3506
      %v4205 = vpack.c.b16 %v3509, %v3508
      %v4206 = vpack.c.b16 %v3511, %v3510
      %v4207 = vpack.c.b16 %v3513, %v3512
      %v4208 = vpack.c.b16 %v3515, %v3514
      %v4209 = vpack.c.b16 %v3517, %v3516
      %v4210 = vpack.c.b16 %v3519, %v3518
      %v4211 = vpack.c.b16 %v3521, %v3520
      %v4212 = vpack.c.b16 %v3523, %v3522
      %v4213 = vpack.c.b16 %v3525, %v3524
      %v4214 = vpack.c.b16 %v3527, %v3526
      %v4215 = vpack.c.b16 %v3529, %v3528
      %v4216 = vpack.c.b16 %v3531, %v3530
      %v4217 = vpack.c.b16 %v3533, %v3532
      %v4218 = vpack.c.b16 %v3535, %v3534
      %v4219 = vpack.c.b16 %v3537, %v3536
      %v4220 = vpack.c.b16 %v3539, %v3538
      %v4221 = vpack.c.b16 %v3541, %v3540
      %v4222 = vpack.c.b16 %v3543, %v3542
      %v4223 = vpack.c.b16 %v3545, %v3544
      %v4224 = vpack.c.b16 %v3547, %v3546
      %v4225 = vpack.c.b16 %v3549, %v3548
      %v4226 = vpack.c.b16 %v3551, %v3550
      %v4227 = vpack.c.b16 %v3553, %v3552
      %v4228 = vpack.c.b16 %v3555, %v3554
      %v4229 = vpack.c.b16 %v3557, %v3556
      %v4230 = vpack.c.b16 %v3559, %v3558
      %v4231 = vpack.c.b16 %v3561, %v3560
      %v4232 = vpack.c.b16 %v3563, %v3562
      %v4233 = vpack.c.b16 %v3565, %v3564
      %v4234 = vpack.c.b16 %v3567, %v3566
      %v4235 = vpack.c.b16 %v3569, %v3568
      %v4236 = vpack.c.b16 %v3571, %v3570
      %v4237 = vpack.c.b16 %v3573, %v3572
      %v4238 = vpack.c.b16 %v3575, %v3574
      %v4239 = vpack.c.b16 %v3577, %v3576
      %v4240 = vpack.c.b16 %v3579, %v3578
      %v4241 = vpack.c.b16 %v3581, %v3580
      %v4242 = vpack.c.b16 %v3583, %v3582
      %v4243 = vpack.c.b16 %v3585, %v3584
      %v4244 = vpack.c.b16 %v3587, %v3586
      %v4245 = vpack.c.b16 %v3589, %v3588
      %v4246 = vpack.c.b16 %v3591, %v3590
      %v4247 = vpack.c.b16 %v3593, %v3592
      %v4248 = vpack.c.b16 %v3595, %v3594
      %v4249 = vpack.c.b16 %v3597, %v3596
      %v4250 = vpack.c.b16 %v3599, %v3598
      %v4251 = vpack.c.b16 %v3601, %v3600
      %v4252 = vpack.c.b16 %v3603, %v3602
      %v4253 = vpack.c.b16 %v3605, %v3604
      %v4254 = vpack.c.b16 %v3607, %v3606
      %v4255 = vpack.c.b16 %v3609, %v3608
      %v4256 = vpack.c.b16 %v3611, %v3610
      %v4257 = vpack.c.b16 %v3613, %v3612
      %v4258 = vpack.c.b16 %v3615, %v3614
      %v4259 = vpack.c.b16 %v3617, %v3616
      %v4260 = vpack.c.b16 %v3619, %v3618
      %v4261 = vpack.c.b16 %v3621, %v3620
      %v4262 = vpack.c.b16 %v3623, %v3622
      %v4263 = vpack.c.b16 %v3625, %v3624
      %v4264 = vpack.c.b16 %v3627, %v3626
      %v4265 = vpack.c.b16 %v3629, %v3628
      %v4266 = vpack.c.b16 %v3631, %v3630
      %v4267 = vpack.c.b16 %v3633, %v3632
      %v4268 = vpack.c.b16 %v3635, %v3634
      %v4269 = vpack.c.b16 %v3637, %v3636
      %v4270 = vpack.c.b16 %v3639, %v3638
      %v4271 = vpack.c.b16 %v3641, %v3640
      %v4272 = vpack.c.b16 %v3643, %v3642
      %v4273 = vpack.c.b16 %v3645, %v3644
      %v4274 = vpack.c.b16 %v3647, %v3646
      %v4275 = vpack.c.b16 %v3649, %v3648
      %v4276 = vpack.c.b16 %v3651, %v3650
      %v4277 = vpack.c.b16 %v3653, %v3652
      %v4278 = vpack.c.b16 %v3655, %v3654
      %v4279 = vpack.c.b16 %v3657, %v3656
      %v4280 = vpack.c.b16 %v3659, %v3658
      %v4281 = vpack.c.b16 %v3661, %v3660
      %v4282 = vpack.c.b16 %v3663, %v3662
      %v4283 = vpack.c.b16 %v3665, %v3664
      %v4284 = vpack.c.b16 %v3667, %v3666
      %v4285 = vpack.c.b16 %v3669, %v3668
      %v4286 = vpack.c.b16 %v3671, %v3670
      %v4287 = vpack.c.b16 %v3673, %v3672
      %v4288 = vpack.c.b16 %v3675, %v3674
      %v4289 = vpack.c.b16 %v3677, %v3676
      %v4290 = vpack.c.b16 %v3679, %v3678
      %v4291 = vpack.c.b16 %v3681, %v3680
      %v4292 = vpack.c.b16 %v3683, %v3682
      %v4293 = vpack.c.b16 %v3685, %v3684
      %v4294 = vpack.c.b16 %v3687, %v3686
      %v4295 = vpack.c.b16 %v3689, %v3688
      %v4296 = vpack.c.b16 %v3691, %v3690
      %v4297 = vpack.c.b16 %v3693, %v3692
      %v4298 = vpack.c.b16 %v3695, %v3694
      %v4299 = vpack.c.b16 %v3697, %v3696
      %v4300 = vpack.c.b16 %v3699, %v3698
      %v4301 = vpack.c.b16 %v3701, %v3700
      %v4302 = vpack.c.b16 %v3703, %v3702
      %v4303 = vpack.c.b16 %v3705, %v3704
      %v4304 = vpack.c.b16 %v3707, %v3706
      %v4305 = vpack.c.b16 %v3709, %v3708
      %v4306 = vpack.c.b16 %v3711, %v3710
      %v4307 = vpack.c.b16 %v3713, %v3712
      %v4308 = vpack.c.b16 %v3715, %v3714
      %v4309 = vpack.c.b16 %v3717, %v3716
      %v4310 = vpack.c.b16 %v3719, %v3718
      %v4311 = vpack.c.b16 %v3721, %v3720
      %v4312 = vpack.c.b16 %v3723, %v3722
      %v4313 = vpack.c.b16 %v3725, %v3724
      %v4314 = vpack.c.b16 %v3727, %v3726
      %v4315 = vpack.c.b16 %v3729, %v3728
      %v4316 = vpack.c.b16 %v3731, %v3730
      %v4317 = vpack.c.b16 %v3733, %v3732
      %v4318 = vpack.c.b16 %v3735, %v3734
      %v4319 = vpack.c.b16 %v3737, %v3736
      %v4320 = vpack.c.b16 %v3739, %v3738
      %v4321 = vpack.c.b16 %v3741, %v3740
      %v4322 = vpack.c.b16 %v3743, %v3742
      %v4323 = vpack.c.b16 %v3745, %v3744
      %v4324 = vpack.c.b16 %v3747, %v3746
      %v4325 = vpack.c.b16 %v3749, %v3748
      %v4326 = vpack.c.b16 %v3751, %v3750
      %v4327 = vpack.c.b16 %v3753, %v3752
      %v4328 = vpack.c.b16 %v3755, %v3754
      %v4329 = vpack.c.b16 %v3757, %v3756
      %v4330 = vpack.c.b16 %v3759, %v3758
      %v4331 = vpack.c.b16 %v3761, %v3760
      %v4332 = vpack.c.b16 %v3763, %v3762
      %v4333 = vpack.c.b16 %v3765, %v3764
      %v4334 = vpack.c.b16 %v3767, %v3766
      %v4335 = vpack.c.b16 %v3769, %v3768
      %v4336 = vpack.c.b16 %v3771, %v3770
      %v4337 = vpack.c.b16 %v3773, %v3772
      %v4338 = vpack.c.b16 %v3775, %v3774
      %v4339 = vpack.c.b16 %v3777, %v3776
      %v4340 = vpack.c.b16 %v3779, %v3778
      %v4341 = vpack.c.b16 %v3781, %v3780
      %v4342 = vpack.c.b16 %v3783, %v3782
      %v4343 = vpack.c.b16 %v3785, %v3784
      %v4344 = vpack.c.b16 %v3787, %v3786
      %v4345 = vpack.c.b16 %v3789, %v3788
      %v4346 = vpack.c.b16 %v3791, %v3790
      %v4347 = vpack.c.b16 %v3793, %v3792
      %v4348 = vpack.c.b16 %v3795, %v3794
      %v4349 = vpack.c.b16 %v3797, %v3796
      %v4350 = vpack.c.b16 %v3799, %v3798
      %v4351 = vpack.c.b16 %v3801, %v3800
      %v4352 = vpack.c.b16 %v3803, %v3802
      %v4353 = vpack.c.b16 %v3805, %v3804
      %v4354 = vpack.c.b16 %v3807, %v3806
      %v4355 = vpack.c.b16 %v3809, %v3808
      %v4356 = vpack.c.b16 %v3811, %v3810
      %v4357 = vpack.c.b16 %v3813, %v3812
      %v4358 = vpack.c.b16 %v3815, %v3814
      %v4359 = vpack.c.b16 %v3817, %v3816
      %v4360 = vpack.c.b16 %v3819, %v3818
      %v4361 = vpack.c.b16 %v3821, %v3820
      %v4362 = vpack.c.b16 %v3823, %v3822
      %v4363 = vpack.c.b16 %v3825, %v3824
      %v4364 = vpack.c.b16 %v3827, %v3826
      %v4365 = vpack.c.b16 %v3829, %v3828
      %v4366 = vpack.c.b16 %v3831, %v3830
      %v4367 = vpack.c.b16 %v3833, %v3832
      %v4368 = vpack.c.b16 %v3835, %v3834
      %v4369 = vpack.c.b16 %v3837, %v3836
      %v4370 = vpack.c.b16 %v3839, %v3838
      %v4371 = vpack.c.b16 %v3841, %v3840
      %v4372 = vpack.c.b16 %v3843, %v3842
      %v4373 = vpack.c.b16 %v3845, %v3844
      %v4374 = vpack.c.b16 %v3847, %v3846
      %v4375 = vpack.c.b16 %v3849, %v3848
      %v4376 = vpack.c.b16 %v3851, %v3850
      %v4377 = vpack.c.b16 %v3853, %v3852
      %v4378 = vpack.c.b16 %v3855, %v3854
      %v4379 = vpack.c.b16 %v3857, %v3856
      %v4380 = vpack.c.b16 %v3859, %v3858
      %v4381 = vpack.c.b16 %v3861, %v3860
      %v4382 = vpack.c.b16 %v3863, %v3862
      %v4383 = vpack.c.b16 %v3865, %v3864
      %v4384 = vpack.c.b16 %v3867, %v3866
      %v4385 = vpack.c.b16 %v3869, %v3868
      %v4386 = vpack.c.b16 %v3871, %v3870
      %v4387 = vpack.c.b16 %v3873, %v3872
      %v4388 = vpack.c.b16 %v3875, %v3874
      %v4389 = vpack.c.b16 %v3877, %v3876
      %4902 = vmatprep.subr.bf16.mxu0 0
      %4903 = vmatpush1.bf16.msra.mxu0 %v3885
      %4904 = vmatprep.subr.bf16.mxu0 0
      %4905 = vmatpush1.bf16.msra.mxu0 %v3884
      %4906 = vmatprep.subr.bf16.mxu0 0
      %4907 = vmatpush1.bf16.msra.mxu0 %v3883
      %4908 = vmatprep.subr.bf16.mxu0 0
      %4909 = vmatpush1.bf16.msra.mxu0 %v3882
      %4910 = vmatprep.subr.bf16.mxu0 0
      %4911 = vmatpush1.bf16.msra.mxu0 %v3881
      %4912 = vmatprep.subr.bf16.mxu0 0
      %4913 = vmatpush1.bf16.msra.mxu0 %v3880
      %4914 = vmatprep.subr.bf16.mxu0 0
      %4915 = vmatpush1.bf16.msra.mxu0 %v3879
      %4916 = vmatprep.subr.bf16.mxu0 0
      %4917 = vmatpush1.bf16.msra.mxu0 %v3878
      %4918 = vmatprep.subr.bf16.mxu0 0
      %4919 = vmatpush2.bf16.msra.mxu0 %v3893
      %4920 = vmatprep.subr.bf16.mxu0 0
      %4921 = vmatpush2.bf16.msra.mxu0 %v3892
      %4922 = vmatprep.subr.bf16.mxu0 0
      %4923 = vmatpush2.bf16.msra.mxu0 %v3891
      %4924 = vmatprep.subr.bf16.mxu0 0
      %4925 = vmatpush2.bf16.msra.mxu0 %v3890
      %4926 = vmatprep.subr.bf16.mxu0 0
      %4927 = vmatpush2.bf16.msra.mxu0 %v3889
      %4928 = vmatprep.subr.bf16.mxu0 0
      %4929 = vmatpush2.bf16.msra.mxu0 %v3888
      %4930 = vmatprep.subr.bf16.mxu0 0
      %4931 = vmatpush2.bf16.msra.mxu0 %v3887
      %4932 = vmatprep.subr.bf16.mxu0 0
      %4933 = vmatpush2.bf16.msra.mxu0 %v3886
      %4934 = vmatprep.mubr.bf16.mxu0 %v743
      %4935 = vmatmul.mubr.bf16.gmra.mxu0 %v742
      %v4936 = vpop.f32.mrf.mxu0
      %v4937 = vadd.f32 0.0, %v4936
      %v4938 = vpop.f32.mrf.mxu0
      %v4939 = vpop.f32.mrf.mxu0
      %v4940 = vpop.f32.mrf.mxu0
      %4941 = vdwg.mxu0
      %4942 = vmatprep.subr.bf16.mxu0 0
      %4943 = vmatpush1.bf16.msra.mxu0 %v3901
      %4944 = vmatprep.subr.bf16.mxu0 0
      %4945 = vmatpush1.bf16.msra.mxu0 %v3900
      %4946 = vmatprep.subr.bf16.mxu0 0
      %4947 = vmatpush1.bf16.msra.mxu0 %v3899
      %4948 = vmatprep.subr.bf16.mxu0 0
      %4949 = vmatpush1.bf16.msra.mxu0 %v3898
      %4950 = vmatprep.subr.bf16.mxu0 0
      %4951 = vmatpush1.bf16.msra.mxu0 %v3897
      %4952 = vmatprep.subr.bf16.mxu0 0
      %4953 = vmatpush1.bf16.msra.mxu0 %v3896
      %4954 = vmatprep.subr.bf16.mxu0 0
      %4955 = vmatpush1.bf16.msra.mxu0 %v3895
      %4956 = vmatprep.subr.bf16.mxu0 0
      %4957 = vmatpush1.bf16.msra.mxu0 %v3894
      %4958 = vmatprep.subr.bf16.mxu0 0
      %4959 = vmatpush2.bf16.msra.mxu0 %v3909
      %4960 = vmatprep.subr.bf16.mxu0 0
      %4961 = vmatpush2.bf16.msra.mxu0 %v3908
      %4962 = vmatprep.subr.bf16.mxu0 0
      %4963 = vmatpush2.bf16.msra.mxu0 %v3907
      %4964 = vmatprep.subr.bf16.mxu0 0
      %4965 = vmatpush2.bf16.msra.mxu0 %v3906
      %4966 = vmatprep.subr.bf16.mxu0 0
      %4967 = vmatpush2.bf16.msra.mxu0 %v3905
      %4968 = vmatprep.subr.bf16.mxu0 0
      %4969 = vmatpush2.bf16.msra.mxu0 %v3904
      %4970 = vmatprep.subr.bf16.mxu0 0
      %4971 = vmatpush2.bf16.msra.mxu0 %v3903
      %4972 = vmatprep.subr.bf16.mxu0 0
      %4973 = vmatpush2.bf16.msra.mxu0 %v3902
      %4974 = vmatprep.mubr.bf16.mxu0 %v745
      %4975 = vmatmul.mubr.bf16.gmra.mxu0 %v744
      %v4976 = vpop.f32.mrf.mxu0
      %v4977 = vadd.f32 %v4937, %v4976
      %v4978 = vpop.f32.mrf.mxu0
      %v4979 = vpop.f32.mrf.mxu0
      %v4980 = vpop.f32.mrf.mxu0
      %4981 = vdwg.mxu0
      %4982 = vmatprep.subr.bf16.mxu0 0
      %4983 = vmatpush1.bf16.msra.mxu0 %v3917
      %4984 = vmatprep.subr.bf16.mxu0 0
      %4985 = vmatpush1.bf16.msra.mxu0 %v3916
      %4986 = vmatprep.subr.bf16.mxu0 0
      %4987 = vmatpush1.bf16.msra.mxu0 %v3915
      %4988 = vmatprep.subr.bf16.mxu0 0
      %4989 = vmatpush1.bf16.msra.mxu0 %v3914
      %4990 = vmatprep.subr.bf16.mxu0 0
      %4991 = vmatpush1.bf16.msra.mxu0 %v3913
      %4992 = vmatprep.subr.bf16.mxu0 0
      %4993 = vmatpush1.bf16.msra.mxu0 %v3912
      %4994 = vmatprep.subr.bf16.mxu0 0
      %4995 = vmatpush1.bf16.msra.mxu0 %v3911
      %4996 = vmatprep.subr.bf16.mxu0 0
      %4997 = vmatpush1.bf16.msra.mxu0 %v3910
      %4998 = vmatprep.subr.bf16.mxu0 0
      %4999 = vmatpush2.bf16.msra.mxu0 %v3925
      %5000 = vmatprep.subr.bf16.mxu0 0
      %5001 = vmatpush2.bf16.msra.mxu0 %v3924
      %5002 = vmatprep.subr.bf16.mxu0 0
      %5003 = vmatpush2.bf16.msra.mxu0 %v3923
      %5004 = vmatprep.subr.bf16.mxu0 0
      %5005 = vmatpush2.bf16.msra.mxu0 %v3922
      %5006 = vmatprep.subr.bf16.mxu0 0
      %5007 = vmatpush2.bf16.msra.mxu0 %v3921
      %5008 = vmatprep.subr.bf16.mxu0 0
      %5009 = vmatpush2.bf16.msra.mxu0 %v3920
      %5010 = vmatprep.subr.bf16.mxu0 0
      %5011 = vmatpush2.bf16.msra.mxu0 %v3919
      %5012 = vmatprep.subr.bf16.mxu0 0
      %5013 = vmatpush2.bf16.msra.mxu0 %v3918
      %5014 = vmatprep.mubr.bf16.mxu0 %v747
      %5015 = vmatmul.mubr.bf16.gmra.mxu0 %v746
      %v5016 = vpop.f32.mrf.mxu0
      %v5017 = vadd.f32 %v4977, %v5016
      %v5018 = vpop.f32.mrf.mxu0
      %v5019 = vpop.f32.mrf.mxu0
      %v5020 = vpop.f32.mrf.mxu0
      %5021 = vdwg.mxu0
      %5022 = vmatprep.subr.bf16.mxu0 0
      %5023 = vmatpush1.bf16.msra.mxu0 %v3933
      %5024 = vmatprep.subr.bf16.mxu0 0
      %5025 = vmatpush1.bf16.msra.mxu0 %v3932
      %5026 = vmatprep.subr.bf16.mxu0 0
      %5027 = vmatpush1.bf16.msra.mxu0 %v3931
      %5028 = vmatprep.subr.bf16.mxu0 0
      %5029 = vmatpush1.bf16.msra.mxu0 %v3930
      %5030 = vmatprep.subr.bf16.mxu0 0
      %5031 = vmatpush1.bf16.msra.mxu0 %v3929
      %5032 = vmatprep.subr.bf16.mxu0 0
      %5033 = vmatpush1.bf16.msra.mxu0 %v3928
      %5034 = vmatprep.subr.bf16.mxu0 0
      %5035 = vmatpush1.bf16.msra.mxu0 %v3927
      %5036 = vmatprep.subr.bf16.mxu0 0
      %5037 = vmatpush1.bf16.msra.mxu0 %v3926
      %5038 = vmatprep.subr.bf16.mxu0 0
      %5039 = vmatpush2.bf16.msra.mxu0 %v3941
      %5040 = vmatprep.subr.bf16.mxu0 0
      %5041 = vmatpush2.bf16.msra.mxu0 %v3940
      %5042 = vmatprep.subr.bf16.mxu0 0
      %5043 = vmatpush2.bf16.msra.mxu0 %v3939
      %5044 = vmatprep.subr.bf16.mxu0 0
      %5045 = vmatpush2.bf16.msra.mxu0 %v3938
      %5046 = vmatprep.subr.bf16.mxu0 0
      %5047 = vmatpush2.bf16.msra.mxu0 %v3937
      %5048 = vmatprep.subr.bf16.mxu0 0
      %5049 = vmatpush2.bf16.msra.mxu0 %v3936
      %5050 = vmatprep.subr.bf16.mxu0 0
      %5051 = vmatpush2.bf16.msra.mxu0 %v3935
      %5052 = vmatprep.subr.bf16.mxu0 0
      %5053 = vmatpush2.bf16.msra.mxu0 %v3934
      %5054 = vmatprep.mubr.bf16.mxu0 %v749
      %5055 = vmatmul.mubr.bf16.gmra.mxu0 %v748
      %v5056 = vpop.f32.mrf.mxu0
      %v5057 = vadd.f32 %v5017, %v5056
      %v5058 = vpop.f32.mrf.mxu0
      %v5059 = vpop.f32.mrf.mxu0
      %v5060 = vpop.f32.mrf.mxu0
      %5061 = vdwg.mxu0
      %5062 = vmatprep.subr.bf16.mxu0 0
      %5063 = vmatpush1.bf16.msra.mxu0 %v3949
      %5064 = vmatprep.subr.bf16.mxu0 0
      %5065 = vmatpush1.bf16.msra.mxu0 %v3948
      %5066 = vmatprep.subr.bf16.mxu0 0
      %5067 = vmatpush1.bf16.msra.mxu0 %v3947
      %5068 = vmatprep.subr.bf16.mxu0 0
      %5069 = vmatpush1.bf16.msra.mxu0 %v3946
      %5070 = vmatprep.subr.bf16.mxu0 0
      %5071 = vmatpush1.bf16.msra.mxu0 %v3945
      %5072 = vmatprep.subr.bf16.mxu0 0
      %5073 = vmatpush1.bf16.msra.mxu0 %v3944
      %5074 = vmatprep.subr.bf16.mxu0 0
      %5075 = vmatpush1.bf16.msra.mxu0 %v3943
      %5076 = vmatprep.subr.bf16.mxu0 0
      %5077 = vmatpush1.bf16.msra.mxu0 %v3942
      %5078 = vmatprep.subr.bf16.mxu0 0
      %5079 = vmatpush2.bf16.msra.mxu0 %v3957
      %5080 = vmatprep.subr.bf16.mxu0 0
      %5081 = vmatpush2.bf16.msra.mxu0 %v3956
      %5082 = vmatprep.subr.bf16.mxu0 0
      %5083 = vmatpush2.bf16.msra.mxu0 %v3955
      %5084 = vmatprep.subr.bf16.mxu0 0
      %5085 = vmatpush2.bf16.msra.mxu0 %v3954
      %5086 = vmatprep.subr.bf16.mxu0 0
      %5087 = vmatpush2.bf16.msra.mxu0 %v3953
      %5088 = vmatprep.subr.bf16.mxu0 0
      %5089 = vmatpush2.bf16.msra.mxu0 %v3952
      %5090 = vmatprep.subr.bf16.mxu0 0
      %5091 = vmatpush2.bf16.msra.mxu0 %v3951
      %5092 = vmatprep.subr.bf16.mxu0 0
      %5093 = vmatpush2.bf16.msra.mxu0 %v3950
      %5094 = vmatprep.mubr.bf16.mxu0 %v751
      %5095 = vmatmul.mubr.bf16.gmra.mxu0 %v750
      %v5096 = vpop.f32.mrf.mxu0
      %v5097 = vadd.f32 %v5057, %v5096
      %v5098 = vpop.f32.mrf.mxu0
      %v5099 = vpop.f32.mrf.mxu0
      %v5100 = vpop.f32.mrf.mxu0
      %5101 = vdwg.mxu0
      %5102 = vmatprep.subr.bf16.mxu0 0
      %5103 = vmatpush1.bf16.msra.mxu0 %v3965
      %5104 = vmatprep.subr.bf16.mxu0 0
      %5105 = vmatpush1.bf16.msra.mxu0 %v3964
      %5106 = vmatprep.subr.bf16.mxu0 0
      %5107 = vmatpush1.bf16.msra.mxu0 %v3963
      %5108 = vmatprep.subr.bf16.mxu0 0
      %5109 = vmatpush1.bf16.msra.mxu0 %v3962
      %5110 = vmatprep.subr.bf16.mxu0 0
      %5111 = vmatpush1.bf16.msra.mxu0 %v3961
      %5112 = vmatprep.subr.bf16.mxu0 0
      %5113 = vmatpush1.bf16.msra.mxu0 %v3960
      %5114 = vmatprep.subr.bf16.mxu0 0
      %5115 = vmatpush1.bf16.msra.mxu0 %v3959
      %5116 = vmatprep.subr.bf16.mxu0 0
      %5117 = vmatpush1.bf16.msra.mxu0 %v3958
      %5118 = vmatprep.subr.bf16.mxu0 0
      %5119 = vmatpush2.bf16.msra.mxu0 %v3973
      %5120 = vmatprep.subr.bf16.mxu0 0
      %5121 = vmatpush2.bf16.msra.mxu0 %v3972
      %5122 = vmatprep.subr.bf16.mxu0 0
      %5123 = vmatpush2.bf16.msra.mxu0 %v3971
      %5124 = vmatprep.subr.bf16.mxu0 0
      %5125 = vmatpush2.bf16.msra.mxu0 %v3970
      %5126 = vmatprep.subr.bf16.mxu0 0
      %5127 = vmatpush2.bf16.msra.mxu0 %v3969
      %5128 = vmatprep.subr.bf16.mxu0 0
      %5129 = vmatpush2.bf16.msra.mxu0 %v3968
      %5130 = vmatprep.subr.bf16.mxu0 0
      %5131 = vmatpush2.bf16.msra.mxu0 %v3967
      %5132 = vmatprep.subr.bf16.mxu0 0
      %5133 = vmatpush2.bf16.msra.mxu0 %v3966
      %5134 = vmatprep.mubr.bf16.mxu0 %v753
      %5135 = vmatmul.mubr.bf16.gmra.mxu0 %v752
      %v5136 = vpop.f32.mrf.mxu0
      %v5137 = vadd.f32 %v5097, %v5136
      %v5138 = vpop.f32.mrf.mxu0
      %v5139 = vpop.f32.mrf.mxu0
      %v5140 = vpop.f32.mrf.mxu0
      %5141 = vdwg.mxu0
      %5142 = vmatprep.subr.bf16.mxu0 0
      %5143 = vmatpush1.bf16.msra.mxu0 %v3981
      %5144 = vmatprep.subr.bf16.mxu0 0
      %5145 = vmatpush1.bf16.msra.mxu0 %v3980
      %5146 = vmatprep.subr.bf16.mxu0 0
      %5147 = vmatpush1.bf16.msra.mxu0 %v3979
      %5148 = vmatprep.subr.bf16.mxu0 0
      %5149 = vmatpush1.bf16.msra.mxu0 %v3978
      %5150 = vmatprep.subr.bf16.mxu0 0
      %5151 = vmatpush1.bf16.msra.mxu0 %v3977
      %5152 = vmatprep.subr.bf16.mxu0 0
      %5153 = vmatpush1.bf16.msra.mxu0 %v3976
      %5154 = vmatprep.subr.bf16.mxu0 0
      %5155 = vmatpush1.bf16.msra.mxu0 %v3975
      %5156 = vmatprep.subr.bf16.mxu0 0
      %5157 = vmatpush1.bf16.msra.mxu0 %v3974
      %5158 = vmatprep.subr.bf16.mxu0 0
      %5159 = vmatpush2.bf16.msra.mxu0 %v3989
      %5160 = vmatprep.subr.bf16.mxu0 0
      %5161 = vmatpush2.bf16.msra.mxu0 %v3988
      %5162 = vmatprep.subr.bf16.mxu0 0
      %5163 = vmatpush2.bf16.msra.mxu0 %v3987
      %5164 = vmatprep.subr.bf16.mxu0 0
      %5165 = vmatpush2.bf16.msra.mxu0 %v3986
      %5166 = vmatprep.subr.bf16.mxu0 0
      %5167 = vmatpush2.bf16.msra.mxu0 %v3985
      %5168 = vmatprep.subr.bf16.mxu0 0
      %5169 = vmatpush2.bf16.msra.mxu0 %v3984
      %5170 = vmatprep.subr.bf16.mxu0 0
      %5171 = vmatpush2.bf16.msra.mxu0 %v3983
      %5172 = vmatprep.subr.bf16.mxu0 0
      %5173 = vmatpush2.bf16.msra.mxu0 %v3982
      %5174 = vmatprep.mubr.bf16.mxu0 %v755
      %5175 = vmatmul.mubr.bf16.gmra.mxu0 %v754
      %v5176 = vpop.f32.mrf.mxu0
      %v5177 = vadd.f32 %v5137, %v5176
      %v5178 = vpop.f32.mrf.mxu0
      %v5179 = vpop.f32.mrf.mxu0
      %v5180 = vpop.f32.mrf.mxu0
      %5181 = vdwg.mxu0
      %5182 = vmatprep.subr.bf16.mxu0 0
      %5183 = vmatpush1.bf16.msra.mxu0 %v3997
      %5184 = vmatprep.subr.bf16.mxu0 0
      %5185 = vmatpush1.bf16.msra.mxu0 %v3996
      %5186 = vmatprep.subr.bf16.mxu0 0
      %5187 = vmatpush1.bf16.msra.mxu0 %v3995
      %5188 = vmatprep.subr.bf16.mxu0 0
      %5189 = vmatpush1.bf16.msra.mxu0 %v3994
      %5190 = vmatprep.subr.bf16.mxu0 0
      %5191 = vmatpush1.bf16.msra.mxu0 %v3993
      %5192 = vmatprep.subr.bf16.mxu0 0
      %5193 = vmatpush1.bf16.msra.mxu0 %v3992
      %5194 = vmatprep.subr.bf16.mxu0 0
      %5195 = vmatpush1.bf16.msra.mxu0 %v3991
      %5196 = vmatprep.subr.bf16.mxu0 0
      %5197 = vmatpush1.bf16.msra.mxu0 %v3990
      %5198 = vmatprep.subr.bf16.mxu0 0
      %5199 = vmatpush2.bf16.msra.mxu0 %v4005
      %5200 = vmatprep.subr.bf16.mxu0 0
      %5201 = vmatpush2.bf16.msra.mxu0 %v4004
      %5202 = vmatprep.subr.bf16.mxu0 0
      %5203 = vmatpush2.bf16.msra.mxu0 %v4003
      %5204 = vmatprep.subr.bf16.mxu0 0
      %5205 = vmatpush2.bf16.msra.mxu0 %v4002
      %5206 = vmatprep.subr.bf16.mxu0 0
      %5207 = vmatpush2.bf16.msra.mxu0 %v4001
      %5208 = vmatprep.subr.bf16.mxu0 0
      %5209 = vmatpush2.bf16.msra.mxu0 %v4000
      %5210 = vmatprep.subr.bf16.mxu0 0
      %5211 = vmatpush2.bf16.msra.mxu0 %v3999
      %5212 = vmatprep.subr.bf16.mxu0 0
      %5213 = vmatpush2.bf16.msra.mxu0 %v3998
      %5214 = vmatprep.mubr.bf16.mxu0 %v757
      %5215 = vmatmul.mubr.bf16.gmra.mxu0 %v756
      %v5216 = vpop.f32.mrf.mxu0
      %v5217 = vadd.f32 %v5177, %v5216
      %v5218 = vpop.f32.mrf.mxu0
      %v5219 = vpop.f32.mrf.mxu0
      %v5220 = vpop.f32.mrf.mxu0
      %5221 = vdwg.mxu0
      %5222 = vmatprep.subr.bf16.mxu0 0
      %5223 = vmatpush1.bf16.msra.mxu0 %v4013
      %5224 = vmatprep.subr.bf16.mxu0 0
      %5225 = vmatpush1.bf16.msra.mxu0 %v4012
      %5226 = vmatprep.subr.bf16.mxu0 0
      %5227 = vmatpush1.bf16.msra.mxu0 %v4011
      %5228 = vmatprep.subr.bf16.mxu0 0
      %5229 = vmatpush1.bf16.msra.mxu0 %v4010
      %5230 = vmatprep.subr.bf16.mxu0 0
      %5231 = vmatpush1.bf16.msra.mxu0 %v4009
      %5232 = vmatprep.subr.bf16.mxu0 0
      %5233 = vmatpush1.bf16.msra.mxu0 %v4008
      %5234 = vmatprep.subr.bf16.mxu0 0
      %5235 = vmatpush1.bf16.msra.mxu0 %v4007
      %5236 = vmatprep.subr.bf16.mxu0 0
      %5237 = vmatpush1.bf16.msra.mxu0 %v4006
      %5238 = vmatprep.subr.bf16.mxu0 0
      %5239 = vmatpush2.bf16.msra.mxu0 %v4021
      %5240 = vmatprep.subr.bf16.mxu0 0
      %5241 = vmatpush2.bf16.msra.mxu0 %v4020
      %5242 = vmatprep.subr.bf16.mxu0 0
      %5243 = vmatpush2.bf16.msra.mxu0 %v4019
      %5244 = vmatprep.subr.bf16.mxu0 0
      %5245 = vmatpush2.bf16.msra.mxu0 %v4018
      %5246 = vmatprep.subr.bf16.mxu0 0
      %5247 = vmatpush2.bf16.msra.mxu0 %v4017
      %5248 = vmatprep.subr.bf16.mxu0 0
      %5249 = vmatpush2.bf16.msra.mxu0 %v4016
      %5250 = vmatprep.subr.bf16.mxu0 0
      %5251 = vmatpush2.bf16.msra.mxu0 %v4015
      %5252 = vmatprep.subr.bf16.mxu0 0
      %5253 = vmatpush2.bf16.msra.mxu0 %v4014
      %5254 = vmatprep.mubr.bf16.mxu0 %v759
      %5255 = vmatmul.mubr.bf16.gmra.mxu0 %v758
      %v5256 = vpop.f32.mrf.mxu0
      %v5257 = vadd.f32 %v5217, %v5256
      %v5258 = vpop.f32.mrf.mxu0
      %v5259 = vpop.f32.mrf.mxu0
      %v5260 = vpop.f32.mrf.mxu0
      %5261 = vdwg.mxu0
      %5262 = vmatprep.subr.bf16.mxu0 0
      %5263 = vmatpush1.bf16.msra.mxu0 %v4029
      %5264 = vmatprep.subr.bf16.mxu0 0
      %5265 = vmatpush1.bf16.msra.mxu0 %v4028
      %5266 = vmatprep.subr.bf16.mxu0 0
      %5267 = vmatpush1.bf16.msra.mxu0 %v4027
      %5268 = vmatprep.subr.bf16.mxu0 0
      %5269 = vmatpush1.bf16.msra.mxu0 %v4026
      %5270 = vmatprep.subr.bf16.mxu0 0
      %5271 = vmatpush1.bf16.msra.mxu0 %v4025
      %5272 = vmatprep.subr.bf16.mxu0 0
      %5273 = vmatpush1.bf16.msra.mxu0 %v4024
      %5274 = vmatprep.subr.bf16.mxu0 0
      %5275 = vmatpush1.bf16.msra.mxu0 %v4023
      %5276 = vmatprep.subr.bf16.mxu0 0
      %5277 = vmatpush1.bf16.msra.mxu0 %v4022
      %5278 = vmatprep.subr.bf16.mxu0 0
      %5279 = vmatpush2.bf16.msra.mxu0 %v4037
      %5280 = vmatprep.subr.bf16.mxu0 0
      %5281 = vmatpush2.bf16.msra.mxu0 %v4036
      %5282 = vmatprep.subr.bf16.mxu0 0
      %5283 = vmatpush2.bf16.msra.mxu0 %v4035
      %5284 = vmatprep.subr.bf16.mxu0 0
      %5285 = vmatpush2.bf16.msra.mxu0 %v4034
      %5286 = vmatprep.subr.bf16.mxu0 0
      %5287 = vmatpush2.bf16.msra.mxu0 %v4033
      %5288 = vmatprep.subr.bf16.mxu0 0
      %5289 = vmatpush2.bf16.msra.mxu0 %v4032
      %5290 = vmatprep.subr.bf16.mxu0 0
      %5291 = vmatpush2.bf16.msra.mxu0 %v4031
      %5292 = vmatprep.subr.bf16.mxu0 0
      %5293 = vmatpush2.bf16.msra.mxu0 %v4030
      %5294 = vmatprep.mubr.bf16.mxu0 %v761
      %5295 = vmatmul.mubr.bf16.gmra.mxu0 %v760
      %v5296 = vpop.f32.mrf.mxu0
      %v5297 = vadd.f32 %v5257, %v5296
      %v5298 = vpop.f32.mrf.mxu0
      %v5299 = vpop.f32.mrf.mxu0
      %v5300 = vpop.f32.mrf.mxu0
      %5301 = vdwg.mxu0
      %5302 = vmatprep.subr.bf16.mxu0 0
      %5303 = vmatpush1.bf16.msra.mxu0 %v4045
      %5304 = vmatprep.subr.bf16.mxu0 0
      %5305 = vmatpush1.bf16.msra.mxu0 %v4044
      %5306 = vmatprep.subr.bf16.mxu0 0
      %5307 = vmatpush1.bf16.msra.mxu0 %v4043
      %5308 = vmatprep.subr.bf16.mxu0 0
      %5309 = vmatpush1.bf16.msra.mxu0 %v4042
      %5310 = vmatprep.subr.bf16.mxu0 0
      %5311 = vmatpush1.bf16.msra.mxu0 %v4041
      %5312 = vmatprep.subr.bf16.mxu0 0
      %5313 = vmatpush1.bf16.msra.mxu0 %v4040
      %5314 = vmatprep.subr.bf16.mxu0 0
      %5315 = vmatpush1.bf16.msra.mxu0 %v4039
      %5316 = vmatprep.subr.bf16.mxu0 0
      %5317 = vmatpush1.bf16.msra.mxu0 %v4038
      %5318 = vmatprep.subr.bf16.mxu0 0
      %5319 = vmatpush2.bf16.msra.mxu0 %v4053
      %5320 = vmatprep.subr.bf16.mxu0 0
      %5321 = vmatpush2.bf16.msra.mxu0 %v4052
      %5322 = vmatprep.subr.bf16.mxu0 0
      %5323 = vmatpush2.bf16.msra.mxu0 %v4051
      %5324 = vmatprep.subr.bf16.mxu0 0
      %5325 = vmatpush2.bf16.msra.mxu0 %v4050
      %5326 = vmatprep.subr.bf16.mxu0 0
      %5327 = vmatpush2.bf16.msra.mxu0 %v4049
      %5328 = vmatprep.subr.bf16.mxu0 0
      %5329 = vmatpush2.bf16.msra.mxu0 %v4048
      %5330 = vmatprep.subr.bf16.mxu0 0
      %5331 = vmatpush2.bf16.msra.mxu0 %v4047
      %5332 = vmatprep.subr.bf16.mxu0 0
      %5333 = vmatpush2.bf16.msra.mxu0 %v4046
      %5334 = vmatprep.mubr.bf16.mxu0 %v763
      %5335 = vmatmul.mubr.bf16.gmra.mxu0 %v762
      %v5336 = vpop.f32.mrf.mxu0
      %v5337 = vadd.f32 %v5297, %v5336
      %v5338 = vpop.f32.mrf.mxu0
      %v5339 = vpop.f32.mrf.mxu0
      %v5340 = vpop.f32.mrf.mxu0
      %5341 = vdwg.mxu0
      %5342 = vmatprep.subr.bf16.mxu0 0
      %5343 = vmatpush1.bf16.msra.mxu0 %v4061
      %5344 = vmatprep.subr.bf16.mxu0 0
      %5345 = vmatpush1.bf16.msra.mxu0 %v4060
      %5346 = vmatprep.subr.bf16.mxu0 0
      %5347 = vmatpush1.bf16.msra.mxu0 %v4059
      %5348 = vmatprep.subr.bf16.mxu0 0
      %5349 = vmatpush1.bf16.msra.mxu0 %v4058
      %5350 = vmatprep.subr.bf16.mxu0 0
      %5351 = vmatpush1.bf16.msra.mxu0 %v4057
      %5352 = vmatprep.subr.bf16.mxu0 0
      %5353 = vmatpush1.bf16.msra.mxu0 %v4056
      %5354 = vmatprep.subr.bf16.mxu0 0
      %5355 = vmatpush1.bf16.msra.mxu0 %v4055
      %5356 = vmatprep.subr.bf16.mxu0 0
      %5357 = vmatpush1.bf16.msra.mxu0 %v4054
      %5358 = vmatprep.subr.bf16.mxu0 0
      %5359 = vmatpush2.bf16.msra.mxu0 %v4069
      %5360 = vmatprep.subr.bf16.mxu0 0
      %5361 = vmatpush2.bf16.msra.mxu0 %v4068
      %5362 = vmatprep.subr.bf16.mxu0 0
      %5363 = vmatpush2.bf16.msra.mxu0 %v4067
      %5364 = vmatprep.subr.bf16.mxu0 0
      %5365 = vmatpush2.bf16.msra.mxu0 %v4066
      %5366 = vmatprep.subr.bf16.mxu0 0
      %5367 = vmatpush2.bf16.msra.mxu0 %v4065
      %5368 = vmatprep.subr.bf16.mxu0 0
      %5369 = vmatpush2.bf16.msra.mxu0 %v4064
      %5370 = vmatprep.subr.bf16.mxu0 0
      %5371 = vmatpush2.bf16.msra.mxu0 %v4063
      %5372 = vmatprep.subr.bf16.mxu0 0
      %5373 = vmatpush2.bf16.msra.mxu0 %v4062
      %5374 = vmatprep.mubr.bf16.mxu0 %v765
      %5375 = vmatmul.mubr.bf16.gmra.mxu0 %v764
      %v5376 = vpop.f32.mrf.mxu0
      %v5377 = vadd.f32 %v5337, %v5376
      %v5378 = vpop.f32.mrf.mxu0
      %v5379 = vpop.f32.mrf.mxu0
      %v5380 = vpop.f32.mrf.mxu0
      %5381 = vdwg.mxu0
      %5382 = vmatprep.subr.bf16.mxu0 0
      %5383 = vmatpush1.bf16.msra.mxu0 %v4077
      %5384 = vmatprep.subr.bf16.mxu0 0
      %5385 = vmatpush1.bf16.msra.mxu0 %v4076
      %5386 = vmatprep.subr.bf16.mxu0 0
      %5387 = vmatpush1.bf16.msra.mxu0 %v4075
      %5388 = vmatprep.subr.bf16.mxu0 0
      %5389 = vmatpush1.bf16.msra.mxu0 %v4074
      %5390 = vmatprep.subr.bf16.mxu0 0
      %5391 = vmatpush1.bf16.msra.mxu0 %v4073
      %5392 = vmatprep.subr.bf16.mxu0 0
      %5393 = vmatpush1.bf16.msra.mxu0 %v4072
      %5394 = vmatprep.subr.bf16.mxu0 0
      %5395 = vmatpush1.bf16.msra.mxu0 %v4071
      %5396 = vmatprep.subr.bf16.mxu0 0
      %5397 = vmatpush1.bf16.msra.mxu0 %v4070
      %5398 = vmatprep.subr.bf16.mxu0 0
      %5399 = vmatpush2.bf16.msra.mxu0 %v4085
      %5400 = vmatprep.subr.bf16.mxu0 0
      %5401 = vmatpush2.bf16.msra.mxu0 %v4084
      %5402 = vmatprep.subr.bf16.mxu0 0
      %5403 = vmatpush2.bf16.msra.mxu0 %v4083
      %5404 = vmatprep.subr.bf16.mxu0 0
      %5405 = vmatpush2.bf16.msra.mxu0 %v4082
      %5406 = vmatprep.subr.bf16.mxu0 0
      %5407 = vmatpush2.bf16.msra.mxu0 %v4081
      %5408 = vmatprep.subr.bf16.mxu0 0
      %5409 = vmatpush2.bf16.msra.mxu0 %v4080
      %5410 = vmatprep.subr.bf16.mxu0 0
      %5411 = vmatpush2.bf16.msra.mxu0 %v4079
      %5412 = vmatprep.subr.bf16.mxu0 0
      %5413 = vmatpush2.bf16.msra.mxu0 %v4078
      %5414 = vmatprep.mubr.bf16.mxu0 %v767
      %5415 = vmatmul.mubr.bf16.gmra.mxu0 %v766
      %v5416 = vpop.f32.mrf.mxu0
      %v5417 = vadd.f32 %v5377, %v5416
      %v5418 = vpop.f32.mrf.mxu0
      %v5419 = vpop.f32.mrf.mxu0
      %v5420 = vpop.f32.mrf.mxu0
      %5421 = vdwg.mxu0
      %5422 = vmatprep.subr.bf16.mxu0 0
      %5423 = vmatpush1.bf16.msra.mxu0 %v4093
      %5424 = vmatprep.subr.bf16.mxu0 0
      %5425 = vmatpush1.bf16.msra.mxu0 %v4092
      %5426 = vmatprep.subr.bf16.mxu0 0
      %5427 = vmatpush1.bf16.msra.mxu0 %v4091
      %5428 = vmatprep.subr.bf16.mxu0 0
      %5429 = vmatpush1.bf16.msra.mxu0 %v4090
      %5430 = vmatprep.subr.bf16.mxu0 0
      %5431 = vmatpush1.bf16.msra.mxu0 %v4089
      %5432 = vmatprep.subr.bf16.mxu0 0
      %5433 = vmatpush1.bf16.msra.mxu0 %v4088
      %5434 = vmatprep.subr.bf16.mxu0 0
      %5435 = vmatpush1.bf16.msra.mxu0 %v4087
      %5436 = vmatprep.subr.bf16.mxu0 0
      %5437 = vmatpush1.bf16.msra.mxu0 %v4086
      %5438 = vmatprep.subr.bf16.mxu0 0
      %5439 = vmatpush2.bf16.msra.mxu0 %v4101
      %5440 = vmatprep.subr.bf16.mxu0 0
      %5441 = vmatpush2.bf16.msra.mxu0 %v4100
      %5442 = vmatprep.subr.bf16.mxu0 0
      %5443 = vmatpush2.bf16.msra.mxu0 %v4099
      %5444 = vmatprep.subr.bf16.mxu0 0
      %5445 = vmatpush2.bf16.msra.mxu0 %v4098
      %5446 = vmatprep.subr.bf16.mxu0 0
      %5447 = vmatpush2.bf16.msra.mxu0 %v4097
      %5448 = vmatprep.subr.bf16.mxu0 0
      %5449 = vmatpush2.bf16.msra.mxu0 %v4096
      %5450 = vmatprep.subr.bf16.mxu0 0
      %5451 = vmatpush2.bf16.msra.mxu0 %v4095
      %5452 = vmatprep.subr.bf16.mxu0 0
      %5453 = vmatpush2.bf16.msra.mxu0 %v4094
      %5454 = vmatprep.mubr.bf16.mxu0 %v769
      %5455 = vmatmul.mubr.bf16.gmra.mxu0 %v768
      %v5456 = vpop.f32.mrf.mxu0
      %v5457 = vadd.f32 %v5417, %v5456
      %v5458 = vpop.f32.mrf.mxu0
      %v5459 = vpop.f32.mrf.mxu0
      %v5460 = vpop.f32.mrf.mxu0
      %5461 = vdwg.mxu0
      %5462 = vmatprep.subr.bf16.mxu0 0
      %5463 = vmatpush1.bf16.msra.mxu0 %v4109
      %5464 = vmatprep.subr.bf16.mxu0 0
      %5465 = vmatpush1.bf16.msra.mxu0 %v4108
      %5466 = vmatprep.subr.bf16.mxu0 0
      %5467 = vmatpush1.bf16.msra.mxu0 %v4107
      %5468 = vmatprep.subr.bf16.mxu0 0
      %5469 = vmatpush1.bf16.msra.mxu0 %v4106
      %5470 = vmatprep.subr.bf16.mxu0 0
      %5471 = vmatpush1.bf16.msra.mxu0 %v4105
      %5472 = vmatprep.subr.bf16.mxu0 0
      %5473 = vmatpush1.bf16.msra.mxu0 %v4104
      %5474 = vmatprep.subr.bf16.mxu0 0
      %5475 = vmatpush1.bf16.msra.mxu0 %v4103
      %5476 = vmatprep.subr.bf16.mxu0 0
      %5477 = vmatpush1.bf16.msra.mxu0 %v4102
      %5478 = vmatprep.subr.bf16.mxu0 0
      %5479 = vmatpush2.bf16.msra.mxu0 %v4117
      %5480 = vmatprep.subr.bf16.mxu0 0
      %5481 = vmatpush2.bf16.msra.mxu0 %v4116
      %5482 = vmatprep.subr.bf16.mxu0 0
      %5483 = vmatpush2.bf16.msra.mxu0 %v4115
      %5484 = vmatprep.subr.bf16.mxu0 0
      %5485 = vmatpush2.bf16.msra.mxu0 %v4114
      %5486 = vmatprep.subr.bf16.mxu0 0
      %5487 = vmatpush2.bf16.msra.mxu0 %v4113
      %5488 = vmatprep.subr.bf16.mxu0 0
      %5489 = vmatpush2.bf16.msra.mxu0 %v4112
      %5490 = vmatprep.subr.bf16.mxu0 0
      %5491 = vmatpush2.bf16.msra.mxu0 %v4111
      %5492 = vmatprep.subr.bf16.mxu0 0
      %5493 = vmatpush2.bf16.msra.mxu0 %v4110
      %5494 = vmatprep.mubr.bf16.mxu0 %v771
      %5495 = vmatmul.mubr.bf16.gmra.mxu0 %v770
      %v5496 = vpop.f32.mrf.mxu0
      %v5497 = vadd.f32 %v5457, %v5496
      %v5498 = vpop.f32.mrf.mxu0
      %v5499 = vpop.f32.mrf.mxu0
      %v5500 = vpop.f32.mrf.mxu0
      %5501 = vdwg.mxu0
      %5502 = vmatprep.subr.bf16.mxu0 0
      %5503 = vmatpush1.bf16.msra.mxu0 %v4125
      %5504 = vmatprep.subr.bf16.mxu0 0
      %5505 = vmatpush1.bf16.msra.mxu0 %v4124
      %5506 = vmatprep.subr.bf16.mxu0 0
      %5507 = vmatpush1.bf16.msra.mxu0 %v4123
      %5508 = vmatprep.subr.bf16.mxu0 0
      %5509 = vmatpush1.bf16.msra.mxu0 %v4122
      %5510 = vmatprep.subr.bf16.mxu0 0
      %5511 = vmatpush1.bf16.msra.mxu0 %v4121
      %5512 = vmatprep.subr.bf16.mxu0 0
      %5513 = vmatpush1.bf16.msra.mxu0 %v4120
      %5514 = vmatprep.subr.bf16.mxu0 0
      %5515 = vmatpush1.bf16.msra.mxu0 %v4119
      %5516 = vmatprep.subr.bf16.mxu0 0
      %5517 = vmatpush1.bf16.msra.mxu0 %v4118
      %5518 = vmatprep.subr.bf16.mxu0 0
      %5519 = vmatpush2.bf16.msra.mxu0 %v4133
      %5520 = vmatprep.subr.bf16.mxu0 0
      %5521 = vmatpush2.bf16.msra.mxu0 %v4132
      %5522 = vmatprep.subr.bf16.mxu0 0
      %5523 = vmatpush2.bf16.msra.mxu0 %v4131
      %5524 = vmatprep.subr.bf16.mxu0 0
      %5525 = vmatpush2.bf16.msra.mxu0 %v4130
      %5526 = vmatprep.subr.bf16.mxu0 0
      %5527 = vmatpush2.bf16.msra.mxu0 %v4129
      %5528 = vmatprep.subr.bf16.mxu0 0
      %5529 = vmatpush2.bf16.msra.mxu0 %v4128
      %5530 = vmatprep.subr.bf16.mxu0 0
      %5531 = vmatpush2.bf16.msra.mxu0 %v4127
      %5532 = vmatprep.subr.bf16.mxu0 0
      %5533 = vmatpush2.bf16.msra.mxu0 %v4126
      %5534 = vmatprep.mubr.bf16.mxu0 %v773
      %5535 = vmatmul.mubr.bf16.gmra.mxu0 %v772
      %v5536 = vpop.f32.mrf.mxu0
      %v5537 = vadd.f32 %v5497, %v5536
      %v5538 = vpop.f32.mrf.mxu0
      %v5539 = vpop.f32.mrf.mxu0
      %v5540 = vpop.f32.mrf.mxu0
      %5541 = vdwg.mxu0
      %5542 = vmatprep.subr.bf16.mxu0 0
      %5543 = vmatpush1.bf16.msra.mxu0 %v4141
      %5544 = vmatprep.subr.bf16.mxu0 0
      %5545 = vmatpush1.bf16.msra.mxu0 %v4140
      %5546 = vmatprep.subr.bf16.mxu0 0
      %5547 = vmatpush1.bf16.msra.mxu0 %v4139
      %5548 = vmatprep.subr.bf16.mxu0 0
      %5549 = vmatpush1.bf16.msra.mxu0 %v4138
      %5550 = vmatprep.subr.bf16.mxu0 0
      %5551 = vmatpush1.bf16.msra.mxu0 %v4137
      %5552 = vmatprep.subr.bf16.mxu0 0
      %5553 = vmatpush1.bf16.msra.mxu0 %v4136
      %5554 = vmatprep.subr.bf16.mxu0 0
      %5555 = vmatpush1.bf16.msra.mxu0 %v4135
      %5556 = vmatprep.subr.bf16.mxu0 0
      %5557 = vmatpush1.bf16.msra.mxu0 %v4134
      %5558 = vmatprep.subr.bf16.mxu0 0
      %5559 = vmatpush2.bf16.msra.mxu0 %v4149
      %5560 = vmatprep.subr.bf16.mxu0 0
      %5561 = vmatpush2.bf16.msra.mxu0 %v4148
      %5562 = vmatprep.subr.bf16.mxu0 0
      %5563 = vmatpush2.bf16.msra.mxu0 %v4147
      %5564 = vmatprep.subr.bf16.mxu0 0
      %5565 = vmatpush2.bf16.msra.mxu0 %v4146
      %5566 = vmatprep.subr.bf16.mxu0 0
      %5567 = vmatpush2.bf16.msra.mxu0 %v4145
      %5568 = vmatprep.subr.bf16.mxu0 0
      %5569 = vmatpush2.bf16.msra.mxu0 %v4144
      %5570 = vmatprep.subr.bf16.mxu0 0
      %5571 = vmatpush2.bf16.msra.mxu0 %v4143
      %5572 = vmatprep.subr.bf16.mxu0 0
      %5573 = vmatpush2.bf16.msra.mxu0 %v4142
      %5574 = vmatprep.mubr.bf16.mxu0 %v775
      %5575 = vmatmul.mubr.bf16.gmra.mxu0 %v774
      %v5576 = vpop.f32.mrf.mxu0
      %v5577 = vadd.f32 %v5537, %v5576
      %v5578 = vpop.f32.mrf.mxu0
      %v5579 = vpop.f32.mrf.mxu0
      %v5580 = vpop.f32.mrf.mxu0
      %5581 = vdwg.mxu0
      %5582 = vmatprep.subr.bf16.mxu0 0
      %5583 = vmatpush1.bf16.msra.mxu0 %v4157
      %5584 = vmatprep.subr.bf16.mxu0 0
      %5585 = vmatpush1.bf16.msra.mxu0 %v4156
      %5586 = vmatprep.subr.bf16.mxu0 0
      %5587 = vmatpush1.bf16.msra.mxu0 %v4155
      %5588 = vmatprep.subr.bf16.mxu0 0
      %5589 = vmatpush1.bf16.msra.mxu0 %v4154
      %5590 = vmatprep.subr.bf16.mxu0 0
      %5591 = vmatpush1.bf16.msra.mxu0 %v4153
      %5592 = vmatprep.subr.bf16.mxu0 0
      %5593 = vmatpush1.bf16.msra.mxu0 %v4152
      %5594 = vmatprep.subr.bf16.mxu0 0
      %5595 = vmatpush1.bf16.msra.mxu0 %v4151
      %5596 = vmatprep.subr.bf16.mxu0 0
      %5597 = vmatpush1.bf16.msra.mxu0 %v4150
      %5598 = vmatprep.subr.bf16.mxu0 0
      %5599 = vmatpush2.bf16.msra.mxu0 %v4165
      %5600 = vmatprep.subr.bf16.mxu0 0
      %5601 = vmatpush2.bf16.msra.mxu0 %v4164
      %5602 = vmatprep.subr.bf16.mxu0 0
      %5603 = vmatpush2.bf16.msra.mxu0 %v4163
      %5604 = vmatprep.subr.bf16.mxu0 0
      %5605 = vmatpush2.bf16.msra.mxu0 %v4162
      %5606 = vmatprep.subr.bf16.mxu0 0
      %5607 = vmatpush2.bf16.msra.mxu0 %v4161
      %5608 = vmatprep.subr.bf16.mxu0 0
      %5609 = vmatpush2.bf16.msra.mxu0 %v4160
      %5610 = vmatprep.subr.bf16.mxu0 0
      %5611 = vmatpush2.bf16.msra.mxu0 %v4159
      %5612 = vmatprep.subr.bf16.mxu0 0
      %5613 = vmatpush2.bf16.msra.mxu0 %v4158
      %5614 = vmatprep.mubr.bf16.mxu0 %v777
      %5615 = vmatmul.mubr.bf16.gmra.mxu0 %v776
      %v5616 = vpop.f32.mrf.mxu0
      %v5617 = vadd.f32 %v5577, %v5616
      %v5618 = vpop.f32.mrf.mxu0
      %v5619 = vpop.f32.mrf.mxu0
      %v5620 = vpop.f32.mrf.mxu0
      %5621 = vdwg.mxu0
      %5622 = vmatprep.subr.bf16.mxu0 0
      %5623 = vmatpush1.bf16.msra.mxu0 %v4173
      %5624 = vmatprep.subr.bf16.mxu0 0
      %5625 = vmatpush1.bf16.msra.mxu0 %v4172
      %5626 = vmatprep.subr.bf16.mxu0 0
      %5627 = vmatpush1.bf16.msra.mxu0 %v4171
      %5628 = vmatprep.subr.bf16.mxu0 0
      %5629 = vmatpush1.bf16.msra.mxu0 %v4170
      %5630 = vmatprep.subr.bf16.mxu0 0
      %5631 = vmatpush1.bf16.msra.mxu0 %v4169
      %5632 = vmatprep.subr.bf16.mxu0 0
      %5633 = vmatpush1.bf16.msra.mxu0 %v4168
      %5634 = vmatprep.subr.bf16.mxu0 0
      %5635 = vmatpush1.bf16.msra.mxu0 %v4167
      %5636 = vmatprep.subr.bf16.mxu0 0
      %5637 = vmatpush1.bf16.msra.mxu0 %v4166
      %5638 = vmatprep.subr.bf16.mxu0 0
      %5639 = vmatpush2.bf16.msra.mxu0 %v4181
      %5640 = vmatprep.subr.bf16.mxu0 0
      %5641 = vmatpush2.bf16.msra.mxu0 %v4180
      %5642 = vmatprep.subr.bf16.mxu0 0
      %5643 = vmatpush2.bf16.msra.mxu0 %v4179
      %5644 = vmatprep.subr.bf16.mxu0 0
      %5645 = vmatpush2.bf16.msra.mxu0 %v4178
      %5646 = vmatprep.subr.bf16.mxu0 0
      %5647 = vmatpush2.bf16.msra.mxu0 %v4177
      %5648 = vmatprep.subr.bf16.mxu0 0
      %5649 = vmatpush2.bf16.msra.mxu0 %v4176
      %5650 = vmatprep.subr.bf16.mxu0 0
      %5651 = vmatpush2.bf16.msra.mxu0 %v4175
      %5652 = vmatprep.subr.bf16.mxu0 0
      %5653 = vmatpush2.bf16.msra.mxu0 %v4174
      %5654 = vmatprep.mubr.bf16.mxu0 %v779
      %5655 = vmatmul.mubr.bf16.gmra.mxu0 %v778
      %v5656 = vpop.f32.mrf.mxu0
      %v5657 = vadd.f32 %v5617, %v5656
      %v5658 = vpop.f32.mrf.mxu0
      %v5659 = vpop.f32.mrf.mxu0
      %v5660 = vpop.f32.mrf.mxu0
      %5661 = vdwg.mxu0
      %5662 = vmatprep.subr.bf16.mxu0 0
      %5663 = vmatpush1.bf16.msra.mxu0 %v4189
      %5664 = vmatprep.subr.bf16.mxu0 0
      %5665 = vmatpush1.bf16.msra.mxu0 %v4188
      %5666 = vmatprep.subr.bf16.mxu0 0
      %5667 = vmatpush1.bf16.msra.mxu0 %v4187
      %5668 = vmatprep.subr.bf16.mxu0 0
      %5669 = vmatpush1.bf16.msra.mxu0 %v4186
      %5670 = vmatprep.subr.bf16.mxu0 0
      %5671 = vmatpush1.bf16.msra.mxu0 %v4185
      %5672 = vmatprep.subr.bf16.mxu0 0
      %5673 = vmatpush1.bf16.msra.mxu0 %v4184
      %5674 = vmatprep.subr.bf16.mxu0 0
      %5675 = vmatpush1.bf16.msra.mxu0 %v4183
      %5676 = vmatprep.subr.bf16.mxu0 0
      %5677 = vmatpush1.bf16.msra.mxu0 %v4182
      %5678 = vmatprep.subr.bf16.mxu0 0
      %5679 = vmatpush2.bf16.msra.mxu0 %v4197
      %5680 = vmatprep.subr.bf16.mxu0 0
      %5681 = vmatpush2.bf16.msra.mxu0 %v4196
      %5682 = vmatprep.subr.bf16.mxu0 0
      %5683 = vmatpush2.bf16.msra.mxu0 %v4195
      %5684 = vmatprep.subr.bf16.mxu0 0
      %5685 = vmatpush2.bf16.msra.mxu0 %v4194
      %5686 = vmatprep.subr.bf16.mxu0 0
      %5687 = vmatpush2.bf16.msra.mxu0 %v4193
      %5688 = vmatprep.subr.bf16.mxu0 0
      %5689 = vmatpush2.bf16.msra.mxu0 %v4192
      %5690 = vmatprep.subr.bf16.mxu0 0
      %5691 = vmatpush2.bf16.msra.mxu0 %v4191
      %5692 = vmatprep.subr.bf16.mxu0 0
      %5693 = vmatpush2.bf16.msra.mxu0 %v4190
      %5694 = vmatprep.mubr.bf16.mxu0 %v781
      %5695 = vmatmul.mubr.bf16.gmra.mxu0 %v780
      %v5696 = vpop.f32.mrf.mxu0
      %v5697 = vadd.f32 %v5657, %v5696
      %v5698 = vpop.f32.mrf.mxu0
      %v5699 = vpop.f32.mrf.mxu0
      %v5700 = vpop.f32.mrf.mxu0
      %5701 = vdwg.mxu0
      %5702 = vmatprep.subr.bf16.mxu0 0
      %5703 = vmatpush1.bf16.msra.mxu0 %v4205
      %5704 = vmatprep.subr.bf16.mxu0 0
      %5705 = vmatpush1.bf16.msra.mxu0 %v4204
      %5706 = vmatprep.subr.bf16.mxu0 0
      %5707 = vmatpush1.bf16.msra.mxu0 %v4203
      %5708 = vmatprep.subr.bf16.mxu0 0
      %5709 = vmatpush1.bf16.msra.mxu0 %v4202
      %5710 = vmatprep.subr.bf16.mxu0 0
      %5711 = vmatpush1.bf16.msra.mxu0 %v4201
      %5712 = vmatprep.subr.bf16.mxu0 0
      %5713 = vmatpush1.bf16.msra.mxu0 %v4200
      %5714 = vmatprep.subr.bf16.mxu0 0
      %5715 = vmatpush1.bf16.msra.mxu0 %v4199
      %5716 = vmatprep.subr.bf16.mxu0 0
      %5717 = vmatpush1.bf16.msra.mxu0 %v4198
      %5718 = vmatprep.subr.bf16.mxu0 0
      %5719 = vmatpush2.bf16.msra.mxu0 %v4213
      %5720 = vmatprep.subr.bf16.mxu0 0
      %5721 = vmatpush2.bf16.msra.mxu0 %v4212
      %5722 = vmatprep.subr.bf16.mxu0 0
      %5723 = vmatpush2.bf16.msra.mxu0 %v4211
      %5724 = vmatprep.subr.bf16.mxu0 0
      %5725 = vmatpush2.bf16.msra.mxu0 %v4210
      %5726 = vmatprep.subr.bf16.mxu0 0
      %5727 = vmatpush2.bf16.msra.mxu0 %v4209
      %5728 = vmatprep.subr.bf16.mxu0 0
      %5729 = vmatpush2.bf16.msra.mxu0 %v4208
      %5730 = vmatprep.subr.bf16.mxu0 0
      %5731 = vmatpush2.bf16.msra.mxu0 %v4207
      %5732 = vmatprep.subr.bf16.mxu0 0
      %5733 = vmatpush2.bf16.msra.mxu0 %v4206
      %5734 = vmatprep.mubr.bf16.mxu0 %v783
      %5735 = vmatmul.mubr.bf16.gmra.mxu0 %v782
      %v5736 = vpop.f32.mrf.mxu0
      %v5737 = vadd.f32 %v5697, %v5736
      %v5738 = vpop.f32.mrf.mxu0
      %v5739 = vpop.f32.mrf.mxu0
      %v5740 = vpop.f32.mrf.mxu0
      %5741 = vdwg.mxu0
      %5742 = vmatprep.subr.bf16.mxu0 0
      %5743 = vmatpush1.bf16.msra.mxu0 %v4221
      %5744 = vmatprep.subr.bf16.mxu0 0
      %5745 = vmatpush1.bf16.msra.mxu0 %v4220
      %5746 = vmatprep.subr.bf16.mxu0 0
      %5747 = vmatpush1.bf16.msra.mxu0 %v4219
      %5748 = vmatprep.subr.bf16.mxu0 0
      %5749 = vmatpush1.bf16.msra.mxu0 %v4218
      %5750 = vmatprep.subr.bf16.mxu0 0
      %5751 = vmatpush1.bf16.msra.mxu0 %v4217
      %5752 = vmatprep.subr.bf16.mxu0 0
      %5753 = vmatpush1.bf16.msra.mxu0 %v4216
      %5754 = vmatprep.subr.bf16.mxu0 0
      %5755 = vmatpush1.bf16.msra.mxu0 %v4215
      %5756 = vmatprep.subr.bf16.mxu0 0
      %5757 = vmatpush1.bf16.msra.mxu0 %v4214
      %5758 = vmatprep.subr.bf16.mxu0 0
      %5759 = vmatpush2.bf16.msra.mxu0 %v4229
      %5760 = vmatprep.subr.bf16.mxu0 0
      %5761 = vmatpush2.bf16.msra.mxu0 %v4228
      %5762 = vmatprep.subr.bf16.mxu0 0
      %5763 = vmatpush2.bf16.msra.mxu0 %v4227
      %5764 = vmatprep.subr.bf16.mxu0 0
      %5765 = vmatpush2.bf16.msra.mxu0 %v4226
      %5766 = vmatprep.subr.bf16.mxu0 0
      %5767 = vmatpush2.bf16.msra.mxu0 %v4225
      %5768 = vmatprep.subr.bf16.mxu0 0
      %5769 = vmatpush2.bf16.msra.mxu0 %v4224
      %5770 = vmatprep.subr.bf16.mxu0 0
      %5771 = vmatpush2.bf16.msra.mxu0 %v4223
      %5772 = vmatprep.subr.bf16.mxu0 0
      %5773 = vmatpush2.bf16.msra.mxu0 %v4222
      %5774 = vmatprep.mubr.bf16.mxu0 %v785
      %5775 = vmatmul.mubr.bf16.gmra.mxu0 %v784
      %v5776 = vpop.f32.mrf.mxu0
      %v5777 = vadd.f32 %v5737, %v5776
      %v5778 = vpop.f32.mrf.mxu0
      %v5779 = vpop.f32.mrf.mxu0
      %v5780 = vpop.f32.mrf.mxu0
      %5781 = vdwg.mxu0
      %5782 = vmatprep.subr.bf16.mxu0 0
      %5783 = vmatpush1.bf16.msra.mxu0 %v4237
      %5784 = vmatprep.subr.bf16.mxu0 0
      %5785 = vmatpush1.bf16.msra.mxu0 %v4236
      %5786 = vmatprep.subr.bf16.mxu0 0
      %5787 = vmatpush1.bf16.msra.mxu0 %v4235
      %5788 = vmatprep.subr.bf16.mxu0 0
      %5789 = vmatpush1.bf16.msra.mxu0 %v4234
      %5790 = vmatprep.subr.bf16.mxu0 0
      %5791 = vmatpush1.bf16.msra.mxu0 %v4233
      %5792 = vmatprep.subr.bf16.mxu0 0
      %5793 = vmatpush1.bf16.msra.mxu0 %v4232
      %5794 = vmatprep.subr.bf16.mxu0 0
      %5795 = vmatpush1.bf16.msra.mxu0 %v4231
      %5796 = vmatprep.subr.bf16.mxu0 0
      %5797 = vmatpush1.bf16.msra.mxu0 %v4230
      %5798 = vmatprep.subr.bf16.mxu0 0
      %5799 = vmatpush2.bf16.msra.mxu0 %v4245
      %5800 = vmatprep.subr.bf16.mxu0 0
      %5801 = vmatpush2.bf16.msra.mxu0 %v4244
      %5802 = vmatprep.subr.bf16.mxu0 0
      %5803 = vmatpush2.bf16.msra.mxu0 %v4243
      %5804 = vmatprep.subr.bf16.mxu0 0
      %5805 = vmatpush2.bf16.msra.mxu0 %v4242
      %5806 = vmatprep.subr.bf16.mxu0 0
      %5807 = vmatpush2.bf16.msra.mxu0 %v4241
      %5808 = vmatprep.subr.bf16.mxu0 0
      %5809 = vmatpush2.bf16.msra.mxu0 %v4240
      %5810 = vmatprep.subr.bf16.mxu0 0
      %5811 = vmatpush2.bf16.msra.mxu0 %v4239
      %5812 = vmatprep.subr.bf16.mxu0 0
      %5813 = vmatpush2.bf16.msra.mxu0 %v4238
      %5814 = vmatprep.mubr.bf16.mxu0 %v787
      %5815 = vmatmul.mubr.bf16.gmra.mxu0 %v786
      %v5816 = vpop.f32.mrf.mxu0
      %v5817 = vadd.f32 %v5777, %v5816
      %v5818 = vpop.f32.mrf.mxu0
      %v5819 = vpop.f32.mrf.mxu0
      %v5820 = vpop.f32.mrf.mxu0
      %5821 = vdwg.mxu0
      %5822 = vmatprep.subr.bf16.mxu0 0
      %5823 = vmatpush1.bf16.msra.mxu0 %v4253
      %5824 = vmatprep.subr.bf16.mxu0 0
      %5825 = vmatpush1.bf16.msra.mxu0 %v4252
      %5826 = vmatprep.subr.bf16.mxu0 0
      %5827 = vmatpush1.bf16.msra.mxu0 %v4251
      %5828 = vmatprep.subr.bf16.mxu0 0
      %5829 = vmatpush1.bf16.msra.mxu0 %v4250
      %5830 = vmatprep.subr.bf16.mxu0 0
      %5831 = vmatpush1.bf16.msra.mxu0 %v4249
      %5832 = vmatprep.subr.bf16.mxu0 0
      %5833 = vmatpush1.bf16.msra.mxu0 %v4248
      %5834 = vmatprep.subr.bf16.mxu0 0
      %5835 = vmatpush1.bf16.msra.mxu0 %v4247
      %5836 = vmatprep.subr.bf16.mxu0 0
      %5837 = vmatpush1.bf16.msra.mxu0 %v4246
      %5838 = vmatprep.subr.bf16.mxu0 0
      %5839 = vmatpush2.bf16.msra.mxu0 %v4261
      %5840 = vmatprep.subr.bf16.mxu0 0
      %5841 = vmatpush2.bf16.msra.mxu0 %v4260
      %5842 = vmatprep.subr.bf16.mxu0 0
      %5843 = vmatpush2.bf16.msra.mxu0 %v4259
      %5844 = vmatprep.subr.bf16.mxu0 0
      %5845 = vmatpush2.bf16.msra.mxu0 %v4258
      %5846 = vmatprep.subr.bf16.mxu0 0
      %5847 = vmatpush2.bf16.msra.mxu0 %v4257
      %5848 = vmatprep.subr.bf16.mxu0 0
      %5849 = vmatpush2.bf16.msra.mxu0 %v4256
      %5850 = vmatprep.subr.bf16.mxu0 0
      %5851 = vmatpush2.bf16.msra.mxu0 %v4255
      %5852 = vmatprep.subr.bf16.mxu0 0
      %5853 = vmatpush2.bf16.msra.mxu0 %v4254
      %5854 = vmatprep.mubr.bf16.mxu0 %v789
      %5855 = vmatmul.mubr.bf16.gmra.mxu0 %v788
      %v5856 = vpop.f32.mrf.mxu0
      %v5857 = vadd.f32 %v5817, %v5856
      %v5858 = vpop.f32.mrf.mxu0
      %v5859 = vpop.f32.mrf.mxu0
      %v5860 = vpop.f32.mrf.mxu0
      %5861 = vdwg.mxu0
      %5862 = vmatprep.subr.bf16.mxu0 0
      %5863 = vmatpush1.bf16.msra.mxu0 %v4269
      %5864 = vmatprep.subr.bf16.mxu0 0
      %5865 = vmatpush1.bf16.msra.mxu0 %v4268
      %5866 = vmatprep.subr.bf16.mxu0 0
      %5867 = vmatpush1.bf16.msra.mxu0 %v4267
      %5868 = vmatprep.subr.bf16.mxu0 0
      %5869 = vmatpush1.bf16.msra.mxu0 %v4266
      %5870 = vmatprep.subr.bf16.mxu0 0
      %5871 = vmatpush1.bf16.msra.mxu0 %v4265
      %5872 = vmatprep.subr.bf16.mxu0 0
      %5873 = vmatpush1.bf16.msra.mxu0 %v4264
      %5874 = vmatprep.subr.bf16.mxu0 0
      %5875 = vmatpush1.bf16.msra.mxu0 %v4263
      %5876 = vmatprep.subr.bf16.mxu0 0
      %5877 = vmatpush1.bf16.msra.mxu0 %v4262
      %5878 = vmatprep.subr.bf16.mxu0 0
      %5879 = vmatpush2.bf16.msra.mxu0 %v4277
      %5880 = vmatprep.subr.bf16.mxu0 0
      %5881 = vmatpush2.bf16.msra.mxu0 %v4276
      %5882 = vmatprep.subr.bf16.mxu0 0
      %5883 = vmatpush2.bf16.msra.mxu0 %v4275
      %5884 = vmatprep.subr.bf16.mxu0 0
      %5885 = vmatpush2.bf16.msra.mxu0 %v4274
      %5886 = vmatprep.subr.bf16.mxu0 0
      %5887 = vmatpush2.bf16.msra.mxu0 %v4273
      %5888 = vmatprep.subr.bf16.mxu0 0
      %5889 = vmatpush2.bf16.msra.mxu0 %v4272
      %5890 = vmatprep.subr.bf16.mxu0 0
      %5891 = vmatpush2.bf16.msra.mxu0 %v4271
      %5892 = vmatprep.subr.bf16.mxu0 0
      %5893 = vmatpush2.bf16.msra.mxu0 %v4270
      %5894 = vmatprep.mubr.bf16.mxu0 %v791
      %5895 = vmatmul.mubr.bf16.gmra.mxu0 %v790
      %v5896 = vpop.f32.mrf.mxu0
      %v5897 = vadd.f32 %v5857, %v5896
      %v5898 = vpop.f32.mrf.mxu0
      %v5899 = vpop.f32.mrf.mxu0
      %v5900 = vpop.f32.mrf.mxu0
      %5901 = vdwg.mxu0
      %5902 = vmatprep.subr.bf16.mxu0 0
      %5903 = vmatpush1.bf16.msra.mxu0 %v4285
      %5904 = vmatprep.subr.bf16.mxu0 0
      %5905 = vmatpush1.bf16.msra.mxu0 %v4284
      %5906 = vmatprep.subr.bf16.mxu0 0
      %5907 = vmatpush1.bf16.msra.mxu0 %v4283
      %5908 = vmatprep.subr.bf16.mxu0 0
      %5909 = vmatpush1.bf16.msra.mxu0 %v4282
      %5910 = vmatprep.subr.bf16.mxu0 0
      %5911 = vmatpush1.bf16.msra.mxu0 %v4281
      %5912 = vmatprep.subr.bf16.mxu0 0
      %5913 = vmatpush1.bf16.msra.mxu0 %v4280
      %5914 = vmatprep.subr.bf16.mxu0 0
      %5915 = vmatpush1.bf16.msra.mxu0 %v4279
      %5916 = vmatprep.subr.bf16.mxu0 0
      %5917 = vmatpush1.bf16.msra.mxu0 %v4278
      %5918 = vmatprep.subr.bf16.mxu0 0
      %5919 = vmatpush2.bf16.msra.mxu0 %v4293
      %5920 = vmatprep.subr.bf16.mxu0 0
      %5921 = vmatpush2.bf16.msra.mxu0 %v4292
      %5922 = vmatprep.subr.bf16.mxu0 0
      %5923 = vmatpush2.bf16.msra.mxu0 %v4291
      %5924 = vmatprep.subr.bf16.mxu0 0
      %5925 = vmatpush2.bf16.msra.mxu0 %v4290
      %5926 = vmatprep.subr.bf16.mxu0 0
      %5927 = vmatpush2.bf16.msra.mxu0 %v4289
      %5928 = vmatprep.subr.bf16.mxu0 0
      %5929 = vmatpush2.bf16.msra.mxu0 %v4288
      %5930 = vmatprep.subr.bf16.mxu0 0
      %5931 = vmatpush2.bf16.msra.mxu0 %v4287
      %5932 = vmatprep.subr.bf16.mxu0 0
      %5933 = vmatpush2.bf16.msra.mxu0 %v4286
      %5934 = vmatprep.mubr.bf16.mxu0 %v793
      %5935 = vmatmul.mubr.bf16.gmra.mxu0 %v792
      %v5936 = vpop.f32.mrf.mxu0
      %v5937 = vadd.f32 %v5897, %v5936
      %v5938 = vpop.f32.mrf.mxu0
      %v5939 = vpop.f32.mrf.mxu0
      %v5940 = vpop.f32.mrf.mxu0
      %5941 = vdwg.mxu0
      %5942 = vmatprep.subr.bf16.mxu0 0
      %5943 = vmatpush1.bf16.msra.mxu0 %v4301
      %5944 = vmatprep.subr.bf16.mxu0 0
      %5945 = vmatpush1.bf16.msra.mxu0 %v4300
      %5946 = vmatprep.subr.bf16.mxu0 0
      %5947 = vmatpush1.bf16.msra.mxu0 %v4299
      %5948 = vmatprep.subr.bf16.mxu0 0
      %5949 = vmatpush1.bf16.msra.mxu0 %v4298
      %5950 = vmatprep.subr.bf16.mxu0 0
      %5951 = vmatpush1.bf16.msra.mxu0 %v4297
      %5952 = vmatprep.subr.bf16.mxu0 0
      %5953 = vmatpush1.bf16.msra.mxu0 %v4296
      %5954 = vmatprep.subr.bf16.mxu0 0
      %5955 = vmatpush1.bf16.msra.mxu0 %v4295
      %5956 = vmatprep.subr.bf16.mxu0 0
      %5957 = vmatpush1.bf16.msra.mxu0 %v4294
      %5958 = vmatprep.subr.bf16.mxu0 0
      %5959 = vmatpush2.bf16.msra.mxu0 %v4309
      %5960 = vmatprep.subr.bf16.mxu0 0
      %5961 = vmatpush2.bf16.msra.mxu0 %v4308
      %5962 = vmatprep.subr.bf16.mxu0 0
      %5963 = vmatpush2.bf16.msra.mxu0 %v4307
      %5964 = vmatprep.subr.bf16.mxu0 0
      %5965 = vmatpush2.bf16.msra.mxu0 %v4306
      %5966 = vmatprep.subr.bf16.mxu0 0
      %5967 = vmatpush2.bf16.msra.mxu0 %v4305
      %5968 = vmatprep.subr.bf16.mxu0 0
      %5969 = vmatpush2.bf16.msra.mxu0 %v4304
      %5970 = vmatprep.subr.bf16.mxu0 0
      %5971 = vmatpush2.bf16.msra.mxu0 %v4303
      %5972 = vmatprep.subr.bf16.mxu0 0
      %5973 = vmatpush2.bf16.msra.mxu0 %v4302
      %5974 = vmatprep.mubr.bf16.mxu0 %v795
      %5975 = vmatmul.mubr.bf16.gmra.mxu0 %v794
      %v5976 = vpop.f32.mrf.mxu0
      %v5977 = vadd.f32 %v5937, %v5976
      %v5978 = vpop.f32.mrf.mxu0
      %v5979 = vpop.f32.mrf.mxu0
      %v5980 = vpop.f32.mrf.mxu0
      %5981 = vdwg.mxu0
      %5982 = vmatprep.subr.bf16.mxu0 0
      %5983 = vmatpush1.bf16.msra.mxu0 %v4317
      %5984 = vmatprep.subr.bf16.mxu0 0
      %5985 = vmatpush1.bf16.msra.mxu0 %v4316
      %5986 = vmatprep.subr.bf16.mxu0 0
      %5987 = vmatpush1.bf16.msra.mxu0 %v4315
      %5988 = vmatprep.subr.bf16.mxu0 0
      %5989 = vmatpush1.bf16.msra.mxu0 %v4314
      %5990 = vmatprep.subr.bf16.mxu0 0
      %5991 = vmatpush1.bf16.msra.mxu0 %v4313
      %5992 = vmatprep.subr.bf16.mxu0 0
      %5993 = vmatpush1.bf16.msra.mxu0 %v4312
      %5994 = vmatprep.subr.bf16.mxu0 0
      %5995 = vmatpush1.bf16.msra.mxu0 %v4311
      %5996 = vmatprep.subr.bf16.mxu0 0
      %5997 = vmatpush1.bf16.msra.mxu0 %v4310
      %5998 = vmatprep.subr.bf16.mxu0 0
      %5999 = vmatpush2.bf16.msra.mxu0 %v4325
      %6000 = vmatprep.subr.bf16.mxu0 0
      %6001 = vmatpush2.bf16.msra.mxu0 %v4324
      %6002 = vmatprep.subr.bf16.mxu0 0
      %6003 = vmatpush2.bf16.msra.mxu0 %v4323
      %6004 = vmatprep.subr.bf16.mxu0 0
      %6005 = vmatpush2.bf16.msra.mxu0 %v4322
      %6006 = vmatprep.subr.bf16.mxu0 0
      %6007 = vmatpush2.bf16.msra.mxu0 %v4321
      %6008 = vmatprep.subr.bf16.mxu0 0
      %6009 = vmatpush2.bf16.msra.mxu0 %v4320
      %6010 = vmatprep.subr.bf16.mxu0 0
      %6011 = vmatpush2.bf16.msra.mxu0 %v4319
      %6012 = vmatprep.subr.bf16.mxu0 0
      %6013 = vmatpush2.bf16.msra.mxu0 %v4318
      %6014 = vmatprep.mubr.bf16.mxu0 %v797
      %6015 = vmatmul.mubr.bf16.gmra.mxu0 %v796
      %v6016 = vpop.f32.mrf.mxu0
      %v6017 = vadd.f32 %v5977, %v6016
      %v6018 = vpop.f32.mrf.mxu0
      %v6019 = vpop.f32.mrf.mxu0
      %v6020 = vpop.f32.mrf.mxu0
      %6021 = vdwg.mxu0
      %6022 = vmatprep.subr.bf16.mxu0 0
      %6023 = vmatpush1.bf16.msra.mxu0 %v4333
      %6024 = vmatprep.subr.bf16.mxu0 0
      %6025 = vmatpush1.bf16.msra.mxu0 %v4332
      %6026 = vmatprep.subr.bf16.mxu0 0
      %6027 = vmatpush1.bf16.msra.mxu0 %v4331
      %6028 = vmatprep.subr.bf16.mxu0 0
      %6029 = vmatpush1.bf16.msra.mxu0 %v4330
      %6030 = vmatprep.subr.bf16.mxu0 0
      %6031 = vmatpush1.bf16.msra.mxu0 %v4329
      %6032 = vmatprep.subr.bf16.mxu0 0
      %6033 = vmatpush1.bf16.msra.mxu0 %v4328
      %6034 = vmatprep.subr.bf16.mxu0 0
      %6035 = vmatpush1.bf16.msra.mxu0 %v4327
      %6036 = vmatprep.subr.bf16.mxu0 0
      %6037 = vmatpush1.bf16.msra.mxu0 %v4326
      %6038 = vmatprep.subr.bf16.mxu0 0
      %6039 = vmatpush2.bf16.msra.mxu0 %v4341
      %6040 = vmatprep.subr.bf16.mxu0 0
      %6041 = vmatpush2.bf16.msra.mxu0 %v4340
      %6042 = vmatprep.subr.bf16.mxu0 0
      %6043 = vmatpush2.bf16.msra.mxu0 %v4339
      %6044 = vmatprep.subr.bf16.mxu0 0
      %6045 = vmatpush2.bf16.msra.mxu0 %v4338
      %6046 = vmatprep.subr.bf16.mxu0 0
      %6047 = vmatpush2.bf16.msra.mxu0 %v4337
      %6048 = vmatprep.subr.bf16.mxu0 0
      %6049 = vmatpush2.bf16.msra.mxu0 %v4336
      %6050 = vmatprep.subr.bf16.mxu0 0
      %6051 = vmatpush2.bf16.msra.mxu0 %v4335
      %6052 = vmatprep.subr.bf16.mxu0 0
      %6053 = vmatpush2.bf16.msra.mxu0 %v4334
      %6054 = vmatprep.mubr.bf16.mxu0 %v799
      %6055 = vmatmul.mubr.bf16.gmra.mxu0 %v798
      %v6056 = vpop.f32.mrf.mxu0
      %v6057 = vadd.f32 %v6017, %v6056
      %v6058 = vpop.f32.mrf.mxu0
      %v6059 = vpop.f32.mrf.mxu0
      %v6060 = vpop.f32.mrf.mxu0
      %6061 = vdwg.mxu0
      %6062 = vmatprep.subr.bf16.mxu0 0
      %6063 = vmatpush1.bf16.msra.mxu0 %v4349
      %6064 = vmatprep.subr.bf16.mxu0 0
      %6065 = vmatpush1.bf16.msra.mxu0 %v4348
      %6066 = vmatprep.subr.bf16.mxu0 0
      %6067 = vmatpush1.bf16.msra.mxu0 %v4347
      %6068 = vmatprep.subr.bf16.mxu0 0
      %6069 = vmatpush1.bf16.msra.mxu0 %v4346
      %6070 = vmatprep.subr.bf16.mxu0 0
      %6071 = vmatpush1.bf16.msra.mxu0 %v4345
      %6072 = vmatprep.subr.bf16.mxu0 0
      %6073 = vmatpush1.bf16.msra.mxu0 %v4344
      %6074 = vmatprep.subr.bf16.mxu0 0
      %6075 = vmatpush1.bf16.msra.mxu0 %v4343
      %6076 = vmatprep.subr.bf16.mxu0 0
      %6077 = vmatpush1.bf16.msra.mxu0 %v4342
      %6078 = vmatprep.subr.bf16.mxu0 0
      %6079 = vmatpush2.bf16.msra.mxu0 %v4357
      %6080 = vmatprep.subr.bf16.mxu0 0
      %6081 = vmatpush2.bf16.msra.mxu0 %v4356
      %6082 = vmatprep.subr.bf16.mxu0 0
      %6083 = vmatpush2.bf16.msra.mxu0 %v4355
      %6084 = vmatprep.subr.bf16.mxu0 0
      %6085 = vmatpush2.bf16.msra.mxu0 %v4354
      %6086 = vmatprep.subr.bf16.mxu0 0
      %6087 = vmatpush2.bf16.msra.mxu0 %v4353
      %6088 = vmatprep.subr.bf16.mxu0 0
      %6089 = vmatpush2.bf16.msra.mxu0 %v4352
      %6090 = vmatprep.subr.bf16.mxu0 0
      %6091 = vmatpush2.bf16.msra.mxu0 %v4351
      %6092 = vmatprep.subr.bf16.mxu0 0
      %6093 = vmatpush2.bf16.msra.mxu0 %v4350
      %6094 = vmatprep.mubr.bf16.mxu0 %v801
      %6095 = vmatmul.mubr.bf16.gmra.mxu0 %v800
      %v6096 = vpop.f32.mrf.mxu0
      %v6097 = vadd.f32 %v6057, %v6096
      %v6098 = vpop.f32.mrf.mxu0
      %v6099 = vpop.f32.mrf.mxu0
      %v6100 = vpop.f32.mrf.mxu0
      %6101 = vdwg.mxu0
      %6102 = vmatprep.subr.bf16.mxu0 0
      %6103 = vmatpush1.bf16.msra.mxu0 %v4365
      %6104 = vmatprep.subr.bf16.mxu0 0
      %6105 = vmatpush1.bf16.msra.mxu0 %v4364
      %6106 = vmatprep.subr.bf16.mxu0 0
      %6107 = vmatpush1.bf16.msra.mxu0 %v4363
      %6108 = vmatprep.subr.bf16.mxu0 0
      %6109 = vmatpush1.bf16.msra.mxu0 %v4362
      %6110 = vmatprep.subr.bf16.mxu0 0
      %6111 = vmatpush1.bf16.msra.mxu0 %v4361
      %6112 = vmatprep.subr.bf16.mxu0 0
      %6113 = vmatpush1.bf16.msra.mxu0 %v4360
      %6114 = vmatprep.subr.bf16.mxu0 0
      %6115 = vmatpush1.bf16.msra.mxu0 %v4359
      %6116 = vmatprep.subr.bf16.mxu0 0
      %6117 = vmatpush1.bf16.msra.mxu0 %v4358
      %6118 = vmatprep.subr.bf16.mxu0 0
      %6119 = vmatpush2.bf16.msra.mxu0 %v4373
      %6120 = vmatprep.subr.bf16.mxu0 0
      %6121 = vmatpush2.bf16.msra.mxu0 %v4372
      %6122 = vmatprep.subr.bf16.mxu0 0
      %6123 = vmatpush2.bf16.msra.mxu0 %v4371
      %6124 = vmatprep.subr.bf16.mxu0 0
      %6125 = vmatpush2.bf16.msra.mxu0 %v4370
      %6126 = vmatprep.subr.bf16.mxu0 0
      %6127 = vmatpush2.bf16.msra.mxu0 %v4369
      %6128 = vmatprep.subr.bf16.mxu0 0
      %6129 = vmatpush2.bf16.msra.mxu0 %v4368
      %6130 = vmatprep.subr.bf16.mxu0 0
      %6131 = vmatpush2.bf16.msra.mxu0 %v4367
      %6132 = vmatprep.subr.bf16.mxu0 0
      %6133 = vmatpush2.bf16.msra.mxu0 %v4366
      %6134 = vmatprep.mubr.bf16.mxu0 %v803
      %6135 = vmatmul.mubr.bf16.gmra.mxu0 %v802
      %v6136 = vpop.f32.mrf.mxu0
      %v6137 = vadd.f32 %v6097, %v6136
      %v6138 = vpop.f32.mrf.mxu0
      %v6139 = vpop.f32.mrf.mxu0
      %v6140 = vpop.f32.mrf.mxu0
      %6141 = vdwg.mxu0
      %6142 = vmatprep.subr.bf16.mxu0 0
      %6143 = vmatpush1.bf16.msra.mxu0 %v4381
      %6144 = vmatprep.subr.bf16.mxu0 0
      %6145 = vmatpush1.bf16.msra.mxu0 %v4380
      %6146 = vmatprep.subr.bf16.mxu0 0
      %6147 = vmatpush1.bf16.msra.mxu0 %v4379
      %6148 = vmatprep.subr.bf16.mxu0 0
      %6149 = vmatpush1.bf16.msra.mxu0 %v4378
      %6150 = vmatprep.subr.bf16.mxu0 0
      %6151 = vmatpush1.bf16.msra.mxu0 %v4377
      %6152 = vmatprep.subr.bf16.mxu0 0
      %6153 = vmatpush1.bf16.msra.mxu0 %v4376
      %6154 = vmatprep.subr.bf16.mxu0 0
      %6155 = vmatpush1.bf16.msra.mxu0 %v4375
      %6156 = vmatprep.subr.bf16.mxu0 0
      %6157 = vmatpush1.bf16.msra.mxu0 %v4374
      %6158 = vmatprep.subr.bf16.mxu0 0
      %6159 = vmatpush2.bf16.msra.mxu0 %v4389
      %6160 = vmatprep.subr.bf16.mxu0 0
      %6161 = vmatpush2.bf16.msra.mxu0 %v4388
      %6162 = vmatprep.subr.bf16.mxu0 0
      %6163 = vmatpush2.bf16.msra.mxu0 %v4387
      %6164 = vmatprep.subr.bf16.mxu0 0
      %6165 = vmatpush2.bf16.msra.mxu0 %v4386
      %6166 = vmatprep.subr.bf16.mxu0 0
      %6167 = vmatpush2.bf16.msra.mxu0 %v4385
      %6168 = vmatprep.subr.bf16.mxu0 0
      %6169 = vmatpush2.bf16.msra.mxu0 %v4384
      %6170 = vmatprep.subr.bf16.mxu0 0
      %6171 = vmatpush2.bf16.msra.mxu0 %v4383
      %6172 = vmatprep.subr.bf16.mxu0 0
      %6173 = vmatpush2.bf16.msra.mxu0 %v4382
      %6174 = vmatprep.mubr.bf16.mxu0 %v805
      %6175 = vmatmul.mubr.bf16.gmra.mxu0 %v804
      %v6176 = vpop.f32.mrf.mxu0
      %v6177 = vadd.f32 %v6137, %v6176
      %v6178 = vpop.f32.mrf.mxu0
      %v6179 = vpop.f32.mrf.mxu0
      %v6180 = vpop.f32.mrf.mxu0
      %6181 = vdwg.mxu0
      %v6182 = vadd.f32 %v373, %v6177
      %6183 = vst [vmem:[#allocation2] sm:$0x3] %v6182
      // Predicated region
      $region53: #{net_forward.3} parent=47 // pred_check
        %p6184 = pneg %p368
      $region54: #{net_forward.3} parent=47 // pred_check_branch
        %6186 = sbr.rel (%p6184) target = $region56
      $region55: #{net_forward.3} parent=47 // pred_region
        %p6187 = scmp.eq.s32.totalorder %s24, 0
        %s6188 = scalar_select %p6187, 1, 0
        %s6189 = scvt.s32.f32 %s6188
        %v6190 = vld [vmem:[#allocation2] sm:$0x3]
        %v6191 = vld [vmem:[%s2] sm:$0x1]
        %v6192 = vstv %s6189
        %v6193 = vmul.f32 %v6192, %v6191
        %v6195 = vlaneseq
        %v6196 = vshrl.u32 %v6195, 7
        %v6197 = vsub.s32 0, %v6196
        %v6198 = vrot.slane %v6193, %v6197
        %v6200 = vadd.f32 %v6190, %v6198
        %v6201 = vpack.c.bf16 %v6200, %v6200
        %v6202 = vld [vmem:[%s3] sm:$0xf]
        %v6203 = vld [vmem:[%s3 + $0x4] sm:$0xf]
        %v6204 = vld [vmem:[%s3 + $0x8] sm:$0xf]
        %v6205 = vld [vmem:[%s3 + $0xc] sm:$0xf]
        %v6206 = vld [vmem:[%s3 + $0x10] sm:$0xf]
        %v6207 = vld [vmem:[%s3 + $0x14] sm:$0xf]
        %v6208 = vld [vmem:[%s3 + $0x18] sm:$0xf]
        %v6209 = vld [vmem:[%s3 + $0x1c] sm:$0xf]
        %v6210 = vld [vmem:[%s3 + $0x20] sm:$0xf]
        %v6211 = vld [vmem:[%s3 + $0x24] sm:$0xf]
        %v6212 = vld [vmem:[%s3 + $0x28] sm:$0xf]
        %v6213 = vld [vmem:[%s3 + $0x2c] sm:$0xf]
        %v6214 = vld [vmem:[%s3 + $0x30] sm:$0xf]
        %v6215 = vld [vmem:[%s3 + $0x34] sm:$0xf]
        %v6216 = vld [vmem:[%s3 + $0x38] sm:$0xf]
        %v6217 = vld [vmem:[%s3 + $0x3c] sm:$0xf]
        %v6218 = vld [vmem:[%s4] sm:$0x1]
        %v6219 = vmul.f32 %v6192, %v6218
        %v6221 = vlaneseq
        %v6222 = vshrl.u32 %v6221, 7
        %v6223 = vsub.s32 0, %v6222
        %v6224 = vrot.slane %v6219, %v6223
        %v6242 = vunpack.c.l.b16 %v6202
        %v6243 = vunpack.c.l.b16 %v6203
        %v6244 = vunpack.c.l.b16 %v6204
        %v6245 = vunpack.c.l.b16 %v6205
        %v6246 = vunpack.c.l.b16 %v6206
        %v6247 = vunpack.c.l.b16 %v6207
        %v6248 = vunpack.c.l.b16 %v6208
        %v6249 = vunpack.c.l.b16 %v6209
        %v6250 = vunpack.c.l.b16 %v6210
        %v6251 = vunpack.c.l.b16 %v6211
        %v6252 = vunpack.c.l.b16 %v6212
        %v6253 = vunpack.c.l.b16 %v6213
        %v6254 = vunpack.c.l.b16 %v6214
        %v6255 = vunpack.c.l.b16 %v6215
        %v6256 = vunpack.c.l.b16 %v6216
        %v6257 = vunpack.c.l.b16 %v6217
        %v6258 = vpack.c.b16 %v6243, %v6242
        %v6259 = vpack.c.b16 %v6245, %v6244
        %v6260 = vpack.c.b16 %v6247, %v6246
        %v6261 = vpack.c.b16 %v6249, %v6248
        %v6262 = vpack.c.b16 %v6251, %v6250
        %v6263 = vpack.c.b16 %v6253, %v6252
        %v6264 = vpack.c.b16 %v6255, %v6254
        %v6265 = vpack.c.b16 %v6257, %v6256
        %6274 = vmatprep.subr.bf16.mxu0 0
        %6275 = vmatpush1.bf16.msra.mxu0 %v6265
        %6276 = vmatprep.subr.bf16.mxu0 0
        %6277 = vmatpush1.bf16.msra.mxu0 %v6264
        %6278 = vmatprep.subr.bf16.mxu0 0
        %6279 = vmatpush1.bf16.msra.mxu0 %v6263
        %6280 = vmatprep.subr.bf16.mxu0 0
        %6281 = vmatpush1.bf16.msra.mxu0 %v6262
        %6282 = vmatprep.subr.bf16.mxu0 0
        %6283 = vmatpush1.bf16.msra.mxu0 %v6261
        %6284 = vmatprep.subr.bf16.mxu0 0
        %6285 = vmatpush1.bf16.msra.mxu0 %v6260
        %6286 = vmatprep.subr.bf16.mxu0 0
        %6287 = vmatpush1.bf16.msra.mxu0 %v6259
        %6288 = vmatprep.subr.bf16.mxu0 0
        %6289 = vmatpush1.bf16.msra.mxu0 %v6258
        %6290 = vmatprep.subr.bf16.mxu0 0
        %6291 = vmatpush2.bf16.msra.mxu0 0
        %6292 = vmatprep.subr.bf16.mxu0 0
        %6293 = vmatpush2.bf16.msra.mxu0 0
        %6294 = vmatprep.subr.bf16.mxu0 0
        %6295 = vmatpush2.bf16.msra.mxu0 0
        %6296 = vmatprep.subr.bf16.mxu0 0
        %6297 = vmatpush2.bf16.msra.mxu0 0
        %6298 = vmatprep.subr.bf16.mxu0 0
        %6299 = vmatpush2.bf16.msra.mxu0 0
        %6300 = vmatprep.subr.bf16.mxu0 0
        %6301 = vmatpush2.bf16.msra.mxu0 0
        %6302 = vmatprep.subr.bf16.mxu0 0
        %6303 = vmatpush2.bf16.msra.mxu0 0
        %6304 = vmatprep.subr.bf16.mxu0 0
        %6305 = vmatpush2.bf16.msra.mxu0 0
        %6306 = vmatprep.mubr.bf16.mxu0 0
        %6307 = vmatmul.mubr.bf16.gmra.mxu0 %v6201
        %v6308 = vpop.f32.mrf.mxu0
        %v6309 = vadd.f32 %v6224, %v6308
        %v6310 = vpop.f32.mrf.mxu0
        %v6311 = vpop.f32.mrf.mxu0
        %v6312 = vpop.f32.mrf.mxu0
        %6313 = vdwg.mxu0
        %6314 = vst [vmem:[%s361] sm:$0x3] %v6309
        %v6315 = vld [vmem:[%s5] sm:$0xff]
        %v6316 = vld [vmem:[%s5 + $0x8] sm:$0xff]
        %v6317 = vld [vmem:[%s5 + $0x10] sm:$0xff]
        %v6318 = vld [vmem:[%s5 + $0x18] sm:$0xff]
        %v6319 = vld [vmem:[%s5 + $0x20] sm:$0xff]
        %v6320 = vld [vmem:[%s5 + $0x28] sm:$0xff]
        %v6321 = vld [vmem:[%s5 + $0x30] sm:$0xff]
        %v6322 = vld [vmem:[%s5 + $0x38] sm:$0xff]
        %v6323 = vld [vmem:[%s5 + $0x40] sm:$0xff]
        %v6324 = vld [vmem:[%s5 + $0x48] sm:$0xff]
        %v6325 = vld [vmem:[%s5 + $0x50] sm:$0xff]
        %v6326 = vld [vmem:[%s5 + $0x58] sm:$0xff]
        %v6327 = vld [vmem:[%s5 + $0x60] sm:$0xff]
        %v6328 = vld [vmem:[%s5 + $0x68] sm:$0xff]
        %v6329 = vld [vmem:[%s5 + $0x70] sm:$0xff]
        %v6330 = vld [vmem:[%s5 + $0x78] sm:$0xff]
        %v6331 = vld [vmem:[%s5 + $0x80] sm:$0xff]
        %v6332 = vld [vmem:[%s5 + $0x88] sm:$0xff]
        %v6333 = vld [vmem:[%s5 + $0x90] sm:$0xff]
        %v6334 = vld [vmem:[%s5 + $0x98] sm:$0xff]
        %v6335 = vld [vmem:[%s5 + $0xa0] sm:$0xff]
        %v6336 = vld [vmem:[%s5 + $0xa8] sm:$0xff]
        %v6337 = vld [vmem:[%s5 + $0xb0] sm:$0xff]
        %v6338 = vld [vmem:[%s5 + $0xb8] sm:$0xff]
        %v6339 = vld [vmem:[%s5 + $0xc0] sm:$0xff]
        %v6340 = vld [vmem:[%s5 + $0xc8] sm:$0xff]
        %v6341 = vld [vmem:[%s5 + $0xd0] sm:$0xff]
        %v6342 = vld [vmem:[%s5 + $0xd8] sm:$0xff]
        %v6343 = vld [vmem:[%s5 + $0xe0] sm:$0xff]
        %v6344 = vld [vmem:[%s5 + $0xe8] sm:$0xff]
        %v6345 = vld [vmem:[%s5 + $0xf0] sm:$0xff]
        %v6346 = vld [vmem:[%s5 + $0xf8] sm:$0xff]
        %v6347 = vld [vmem:[%s5 + $0x100] sm:$0xff]
        %v6348 = vld [vmem:[%s5 + $0x108] sm:$0xff]
        %v6349 = vld [vmem:[%s5 + $0x110] sm:$0xff]
        %v6350 = vld [vmem:[%s5 + $0x118] sm:$0xff]
        %v6351 = vld [vmem:[%s5 + $0x120] sm:$0xff]
        %v6352 = vld [vmem:[%s5 + $0x128] sm:$0xff]
        %v6353 = vld [vmem:[%s5 + $0x130] sm:$0xff]
        %v6354 = vld [vmem:[%s5 + $0x138] sm:$0xff]
        %v6355 = vld [vmem:[%s5 + $0x140] sm:$0xff]
        %v6356 = vld [vmem:[%s5 + $0x148] sm:$0xff]
        %v6357 = vld [vmem:[%s5 + $0x150] sm:$0xff]
        %v6358 = vld [vmem:[%s5 + $0x158] sm:$0xff]
        %v6359 = vld [vmem:[%s5 + $0x160] sm:$0xff]
        %v6360 = vld [vmem:[%s5 + $0x168] sm:$0xff]
        %v6361 = vld [vmem:[%s5 + $0x170] sm:$0xff]
        %v6362 = vld [vmem:[%s5 + $0x178] sm:$0xff]
        %v6363 = vld [vmem:[%s5 + $0x180] sm:$0xff]
        %v6364 = vld [vmem:[%s5 + $0x188] sm:$0xff]
        %v6365 = vld [vmem:[%s5 + $0x190] sm:$0xff]
        %v6366 = vld [vmem:[%s5 + $0x198] sm:$0xff]
        %v6367 = vld [vmem:[%s5 + $0x1a0] sm:$0xff]
        %v6368 = vld [vmem:[%s5 + $0x1a8] sm:$0xff]
        %v6369 = vld [vmem:[%s5 + $0x1b0] sm:$0xff]
        %v6370 = vld [vmem:[%s5 + $0x1b8] sm:$0xff]
        %v6371 = vld [vmem:[%s5 + $0x1c0] sm:$0xff]
        %v6372 = vld [vmem:[%s5 + $0x1c8] sm:$0xff]
        %v6373 = vld [vmem:[%s5 + $0x1d0] sm:$0xff]
        %v6374 = vld [vmem:[%s5 + $0x1d8] sm:$0xff]
        %v6375 = vld [vmem:[%s5 + $0x1e0] sm:$0xff]
        %v6376 = vld [vmem:[%s5 + $0x1e8] sm:$0xff]
        %v6377 = vld [vmem:[%s5 + $0x1f0] sm:$0xff]
        %v6378 = vld [vmem:[%s5 + $0x1f8] sm:$0xff]
        %v6379 = vld [vmem:[%s6] sm:$0xff]
        %v6380 = vmul.f32 %v6192, %v6379
        %v6382 = vlaneseq
        %v6383 = vshrl.u32 %v6382, 7
        %v6384 = vsub.s32 0, %v6383
        %v6385 = vrot.slane %v6380, %v6384
        %v6386 = vlaneseq
        %v6387 = vshrl.u32 %v6386, 7
        %v6388 = vsub.s32 1, %v6387
        %v6389 = vrot.slane %v6380, %v6388
        %v6390 = vlaneseq
        %v6391 = vshrl.u32 %v6390, 7
        %v6392 = vsub.s32 2, %v6391
        %v6393 = vrot.slane %v6380, %v6392
        %v6394 = vlaneseq
        %v6395 = vshrl.u32 %v6394, 7
        %v6396 = vsub.s32 3, %v6395
        %v6397 = vrot.slane %v6380, %v6396
        %v6398 = vlaneseq
        %v6399 = vshrl.u32 %v6398, 7
        %v6400 = vsub.s32 4, %v6399
        %v6401 = vrot.slane %v6380, %v6400
        %v6402 = vlaneseq
        %v6403 = vshrl.u32 %v6402, 7
        %v6404 = vsub.s32 5, %v6403
        %v6405 = vrot.slane %v6380, %v6404
        %v6406 = vlaneseq
        %v6407 = vshrl.u32 %v6406, 7
        %v6408 = vsub.s32 6, %v6407
        %v6409 = vrot.slane %v6380, %v6408
        %v6410 = vlaneseq
        %v6411 = vshrl.u32 %v6410, 7
        %v6412 = vsub.s32 7, %v6411
        %v6413 = vrot.slane %v6380, %v6412
        %v6486 = vunpack.c.l.b16 %v6315
        %v6487 = vunpack.c.h.b16 %v6315
        %v6488 = vunpack.c.l.b16 %v6316
        %v6489 = vunpack.c.h.b16 %v6316
        %v6490 = vunpack.c.l.b16 %v6317
        %v6491 = vunpack.c.h.b16 %v6317
        %v6492 = vunpack.c.l.b16 %v6318
        %v6493 = vunpack.c.h.b16 %v6318
        %v6494 = vunpack.c.l.b16 %v6319
        %v6495 = vunpack.c.h.b16 %v6319
        %v6496 = vunpack.c.l.b16 %v6320
        %v6497 = vunpack.c.h.b16 %v6320
        %v6498 = vunpack.c.l.b16 %v6321
        %v6499 = vunpack.c.h.b16 %v6321
        %v6500 = vunpack.c.l.b16 %v6322
        %v6501 = vunpack.c.h.b16 %v6322
        %v6502 = vunpack.c.l.b16 %v6323
        %v6503 = vunpack.c.h.b16 %v6323
        %v6504 = vunpack.c.l.b16 %v6324
        %v6505 = vunpack.c.h.b16 %v6324
        %v6506 = vunpack.c.l.b16 %v6325
        %v6507 = vunpack.c.h.b16 %v6325
        %v6508 = vunpack.c.l.b16 %v6326
        %v6509 = vunpack.c.h.b16 %v6326
        %v6510 = vunpack.c.l.b16 %v6327
        %v6511 = vunpack.c.h.b16 %v6327
        %v6512 = vunpack.c.l.b16 %v6328
        %v6513 = vunpack.c.h.b16 %v6328
        %v6514 = vunpack.c.l.b16 %v6329
        %v6515 = vunpack.c.h.b16 %v6329
        %v6516 = vunpack.c.l.b16 %v6330
        %v6517 = vunpack.c.h.b16 %v6330
        %v6518 = vunpack.c.l.b16 %v6331
        %v6519 = vunpack.c.h.b16 %v6331
        %v6520 = vunpack.c.l.b16 %v6332
        %v6521 = vunpack.c.h.b16 %v6332
        %v6522 = vunpack.c.l.b16 %v6333
        %v6523 = vunpack.c.h.b16 %v6333
        %v6524 = vunpack.c.l.b16 %v6334
        %v6525 = vunpack.c.h.b16 %v6334
        %v6526 = vunpack.c.l.b16 %v6335
        %v6527 = vunpack.c.h.b16 %v6335
        %v6528 = vunpack.c.l.b16 %v6336
        %v6529 = vunpack.c.h.b16 %v6336
        %v6530 = vunpack.c.l.b16 %v6337
        %v6531 = vunpack.c.h.b16 %v6337
        %v6532 = vunpack.c.l.b16 %v6338
        %v6533 = vunpack.c.h.b16 %v6338
        %v6534 = vunpack.c.l.b16 %v6339
        %v6535 = vunpack.c.h.b16 %v6339
        %v6536 = vunpack.c.l.b16 %v6340
        %v6537 = vunpack.c.h.b16 %v6340
        %v6538 = vunpack.c.l.b16 %v6341
        %v6539 = vunpack.c.h.b16 %v6341
        %v6540 = vunpack.c.l.b16 %v6342
        %v6541 = vunpack.c.h.b16 %v6342
        %v6542 = vunpack.c.l.b16 %v6343
        %v6543 = vunpack.c.h.b16 %v6343
        %v6544 = vunpack.c.l.b16 %v6344
        %v6545 = vunpack.c.h.b16 %v6344
        %v6546 = vunpack.c.l.b16 %v6345
        %v6547 = vunpack.c.h.b16 %v6345
        %v6548 = vunpack.c.l.b16 %v6346
        %v6549 = vunpack.c.h.b16 %v6346
        %v6550 = vunpack.c.l.b16 %v6347
        %v6551 = vunpack.c.h.b16 %v6347
        %v6552 = vunpack.c.l.b16 %v6348
        %v6553 = vunpack.c.h.b16 %v6348
        %v6554 = vunpack.c.l.b16 %v6349
        %v6555 = vunpack.c.h.b16 %v6349
        %v6556 = vunpack.c.l.b16 %v6350
        %v6557 = vunpack.c.h.b16 %v6350
        %v6558 = vunpack.c.l.b16 %v6351
        %v6559 = vunpack.c.h.b16 %v6351
        %v6560 = vunpack.c.l.b16 %v6352
        %v6561 = vunpack.c.h.b16 %v6352
        %v6562 = vunpack.c.l.b16 %v6353
        %v6563 = vunpack.c.h.b16 %v6353
        %v6564 = vunpack.c.l.b16 %v6354
        %v6565 = vunpack.c.h.b16 %v6354
        %v6566 = vunpack.c.l.b16 %v6355
        %v6567 = vunpack.c.h.b16 %v6355
        %v6568 = vunpack.c.l.b16 %v6356
        %v6569 = vunpack.c.h.b16 %v6356
        %v6570 = vunpack.c.l.b16 %v6357
        %v6571 = vunpack.c.h.b16 %v6357
        %v6572 = vunpack.c.l.b16 %v6358
        %v6573 = vunpack.c.h.b16 %v6358
        %v6574 = vunpack.c.l.b16 %v6359
        %v6575 = vunpack.c.h.b16 %v6359
        %v6576 = vunpack.c.l.b16 %v6360
        %v6577 = vunpack.c.h.b16 %v6360
        %v6578 = vunpack.c.l.b16 %v6361
        %v6579 = vunpack.c.h.b16 %v6361
        %v6580 = vunpack.c.l.b16 %v6362
        %v6581 = vunpack.c.h.b16 %v6362
        %v6582 = vunpack.c.l.b16 %v6363
        %v6583 = vunpack.c.h.b16 %v6363
        %v6584 = vunpack.c.l.b16 %v6364
        %v6585 = vunpack.c.h.b16 %v6364
        %v6586 = vunpack.c.l.b16 %v6365
        %v6587 = vunpack.c.h.b16 %v6365
        %v6588 = vunpack.c.l.b16 %v6366
        %v6589 = vunpack.c.h.b16 %v6366
        %v6590 = vunpack.c.l.b16 %v6367
        %v6591 = vunpack.c.h.b16 %v6367
        %v6592 = vunpack.c.l.b16 %v6368
        %v6593 = vunpack.c.h.b16 %v6368
        %v6594 = vunpack.c.l.b16 %v6369
        %v6595 = vunpack.c.h.b16 %v6369
        %v6596 = vunpack.c.l.b16 %v6370
        %v6597 = vunpack.c.h.b16 %v6370
        %v6598 = vunpack.c.l.b16 %v6371
        %v6599 = vunpack.c.h.b16 %v6371
        %v6600 = vunpack.c.l.b16 %v6372
        %v6601 = vunpack.c.h.b16 %v6372
        %v6602 = vunpack.c.l.b16 %v6373
        %v6603 = vunpack.c.h.b16 %v6373
        %v6604 = vunpack.c.l.b16 %v6374
        %v6605 = vunpack.c.h.b16 %v6374
        %v6606 = vunpack.c.l.b16 %v6375
        %v6607 = vunpack.c.h.b16 %v6375
        %v6608 = vunpack.c.l.b16 %v6376
        %v6609 = vunpack.c.h.b16 %v6376
        %v6610 = vunpack.c.l.b16 %v6377
        %v6611 = vunpack.c.h.b16 %v6377
        %v6612 = vunpack.c.l.b16 %v6378
        %v6613 = vunpack.c.h.b16 %v6378
        %v6614 = vpack.c.b16 %v6494, %v6486
        %v6615 = vpack.c.b16 %v6495, %v6487
        %v6616 = vpack.c.b16 %v6496, %v6488
        %v6617 = vpack.c.b16 %v6497, %v6489
        %v6618 = vpack.c.b16 %v6498, %v6490
        %v6619 = vpack.c.b16 %v6499, %v6491
        %v6620 = vpack.c.b16 %v6500, %v6492
        %v6621 = vpack.c.b16 %v6501, %v6493
        %v6622 = vpack.c.b16 %v6510, %v6502
        %v6623 = vpack.c.b16 %v6511, %v6503
        %v6624 = vpack.c.b16 %v6512, %v6504
        %v6625 = vpack.c.b16 %v6513, %v6505
        %v6626 = vpack.c.b16 %v6514, %v6506
        %v6627 = vpack.c.b16 %v6515, %v6507
        %v6628 = vpack.c.b16 %v6516, %v6508
        %v6629 = vpack.c.b16 %v6517, %v6509
        %v6630 = vpack.c.b16 %v6526, %v6518
        %v6631 = vpack.c.b16 %v6527, %v6519
        %v6632 = vpack.c.b16 %v6528, %v6520
        %v6633 = vpack.c.b16 %v6529, %v6521
        %v6634 = vpack.c.b16 %v6530, %v6522
        %v6635 = vpack.c.b16 %v6531, %v6523
        %v6636 = vpack.c.b16 %v6532, %v6524
        %v6637 = vpack.c.b16 %v6533, %v6525
        %v6638 = vpack.c.b16 %v6542, %v6534
        %v6639 = vpack.c.b16 %v6543, %v6535
        %v6640 = vpack.c.b16 %v6544, %v6536
        %v6641 = vpack.c.b16 %v6545, %v6537
        %v6642 = vpack.c.b16 %v6546, %v6538
        %v6643 = vpack.c.b16 %v6547, %v6539
        %v6644 = vpack.c.b16 %v6548, %v6540
        %v6645 = vpack.c.b16 %v6549, %v6541
        %v6646 = vpack.c.b16 %v6558, %v6550
        %v6647 = vpack.c.b16 %v6559, %v6551
        %v6648 = vpack.c.b16 %v6560, %v6552
        %v6649 = vpack.c.b16 %v6561, %v6553
        %v6650 = vpack.c.b16 %v6562, %v6554
        %v6651 = vpack.c.b16 %v6563, %v6555
        %v6652 = vpack.c.b16 %v6564, %v6556
        %v6653 = vpack.c.b16 %v6565, %v6557
        %v6654 = vpack.c.b16 %v6574, %v6566
        %v6655 = vpack.c.b16 %v6575, %v6567
        %v6656 = vpack.c.b16 %v6576, %v6568
        %v6657 = vpack.c.b16 %v6577, %v6569
        %v6658 = vpack.c.b16 %v6578, %v6570
        %v6659 = vpack.c.b16 %v6579, %v6571
        %v6660 = vpack.c.b16 %v6580, %v6572
        %v6661 = vpack.c.b16 %v6581, %v6573
        %v6662 = vpack.c.b16 %v6590, %v6582
        %v6663 = vpack.c.b16 %v6591, %v6583
        %v6664 = vpack.c.b16 %v6592, %v6584
        %v6665 = vpack.c.b16 %v6593, %v6585
        %v6666 = vpack.c.b16 %v6594, %v6586
        %v6667 = vpack.c.b16 %v6595, %v6587
        %v6668 = vpack.c.b16 %v6596, %v6588
        %v6669 = vpack.c.b16 %v6597, %v6589
        %v6670 = vpack.c.b16 %v6606, %v6598
        %v6671 = vpack.c.b16 %v6607, %v6599
        %v6672 = vpack.c.b16 %v6608, %v6600
        %v6673 = vpack.c.b16 %v6609, %v6601
        %v6674 = vpack.c.b16 %v6610, %v6602
        %v6675 = vpack.c.b16 %v6611, %v6603
        %v6676 = vpack.c.b16 %v6612, %v6604
        %v6677 = vpack.c.b16 %v6613, %v6605
        %6742 = vmatprep.subr.bf16.mxu0 %v6671
        %6743 = vmatpush1.bf16.msra.mxu0 %v6670
        %6744 = vmatprep.subr.bf16.mxu0 %v6663
        %6745 = vmatpush1.bf16.msra.mxu0 %v6662
        %6746 = vmatprep.subr.bf16.mxu0 %v6655
        %6747 = vmatpush1.bf16.msra.mxu0 %v6654
        %6748 = vmatprep.subr.bf16.mxu0 %v6647
        %6749 = vmatpush1.bf16.msra.mxu0 %v6646
        %6750 = vmatprep.subr.bf16.mxu0 %v6639
        %6751 = vmatpush1.bf16.msra.mxu0 %v6638
        %6752 = vmatprep.subr.bf16.mxu0 %v6631
        %6753 = vmatpush1.bf16.msra.mxu0 %v6630
        %6754 = vmatprep.subr.bf16.mxu0 %v6623
        %6755 = vmatpush1.bf16.msra.mxu0 %v6622
        %6756 = vmatprep.subr.bf16.mxu0 %v6615
        %6757 = vmatpush1.bf16.msra.mxu0 %v6614
        %6758 = vmatprep.subr.bf16.mxu0 0
        %6759 = vmatpush2.bf16.msra.mxu0 0
        %6760 = vmatprep.subr.bf16.mxu0 0
        %6761 = vmatpush2.bf16.msra.mxu0 0
        %6762 = vmatprep.subr.bf16.mxu0 0
        %6763 = vmatpush2.bf16.msra.mxu0 0
        %6764 = vmatprep.subr.bf16.mxu0 0
        %6765 = vmatpush2.bf16.msra.mxu0 0
        %6766 = vmatprep.subr.bf16.mxu0 0
        %6767 = vmatpush2.bf16.msra.mxu0 0
        %6768 = vmatprep.subr.bf16.mxu0 0
        %6769 = vmatpush2.bf16.msra.mxu0 0
        %6770 = vmatprep.subr.bf16.mxu0 0
        %6771 = vmatpush2.bf16.msra.mxu0 0
        %6772 = vmatprep.subr.bf16.mxu0 0
        %6773 = vmatpush2.bf16.msra.mxu0 0
        %6774 = vmatprep.mubr.bf16.mxu0 0
        %6775 = vmatmul.mubr.bf16.gmra.mxu0 %v6201
        %v6776 = vpop.f32.mrf.mxu0
        %v6777 = vadd.f32 %v6385, %v6776
        %v6778 = vpop.f32.mrf.mxu0
        %v6779 = vadd.f32 %v6389, %v6778
        %v6780 = vpop.f32.mrf.mxu0
        %v6781 = vpop.f32.mrf.mxu0
        %6782 = vdwg.mxu0
        %6783 = vmatprep.subr.bf16.mxu0 %v6673
        %6784 = vmatpush1.bf16.msra.mxu0 %v6672
        %6785 = vmatprep.subr.bf16.mxu0 %v6665
        %6786 = vmatpush1.bf16.msra.mxu0 %v6664
        %6787 = vmatprep.subr.bf16.mxu0 %v6657
        %6788 = vmatpush1.bf16.msra.mxu0 %v6656
        %6789 = vmatprep.subr.bf16.mxu0 %v6649
        %6790 = vmatpush1.bf16.msra.mxu0 %v6648
        %6791 = vmatprep.subr.bf16.mxu0 %v6641
        %6792 = vmatpush1.bf16.msra.mxu0 %v6640
        %6793 = vmatprep.subr.bf16.mxu0 %v6633
        %6794 = vmatpush1.bf16.msra.mxu0 %v6632
        %6795 = vmatprep.subr.bf16.mxu0 %v6625
        %6796 = vmatpush1.bf16.msra.mxu0 %v6624
        %6797 = vmatprep.subr.bf16.mxu0 %v6617
        %6798 = vmatpush1.bf16.msra.mxu0 %v6616
        %6799 = vmatprep.subr.bf16.mxu0 0
        %6800 = vmatpush2.bf16.msra.mxu0 0
        %6801 = vmatprep.subr.bf16.mxu0 0
        %6802 = vmatpush2.bf16.msra.mxu0 0
        %6803 = vmatprep.subr.bf16.mxu0 0
        %6804 = vmatpush2.bf16.msra.mxu0 0
        %6805 = vmatprep.subr.bf16.mxu0 0
        %6806 = vmatpush2.bf16.msra.mxu0 0
        %6807 = vmatprep.subr.bf16.mxu0 0
        %6808 = vmatpush2.bf16.msra.mxu0 0
        %6809 = vmatprep.subr.bf16.mxu0 0
        %6810 = vmatpush2.bf16.msra.mxu0 0
        %6811 = vmatprep.subr.bf16.mxu0 0
        %6812 = vmatpush2.bf16.msra.mxu0 0
        %6813 = vmatprep.subr.bf16.mxu0 0
        %6814 = vmatpush2.bf16.msra.mxu0 0
        %6815 = vmatprep.mubr.bf16.mxu0 0
        %6816 = vmatmul.mubr.bf16.gmra.mxu0 %v6201
        %v6817 = vpop.f32.mrf.mxu0
        %v6818 = vadd.f32 %v6393, %v6817
        %v6819 = vpop.f32.mrf.mxu0
        %v6820 = vadd.f32 %v6397, %v6819
        %v6821 = vpop.f32.mrf.mxu0
        %v6822 = vpop.f32.mrf.mxu0
        %6823 = vdwg.mxu0
        %6824 = vmatprep.subr.bf16.mxu0 %v6675
        %6825 = vmatpush1.bf16.msra.mxu0 %v6674
        %6826 = vmatprep.subr.bf16.mxu0 %v6667
        %6827 = vmatpush1.bf16.msra.mxu0 %v6666
        %6828 = vmatprep.subr.bf16.mxu0 %v6659
        %6829 = vmatpush1.bf16.msra.mxu0 %v6658
        %6830 = vmatprep.subr.bf16.mxu0 %v6651
        %6831 = vmatpush1.bf16.msra.mxu0 %v6650
        %6832 = vmatprep.subr.bf16.mxu0 %v6643
        %6833 = vmatpush1.bf16.msra.mxu0 %v6642
        %6834 = vmatprep.subr.bf16.mxu0 %v6635
        %6835 = vmatpush1.bf16.msra.mxu0 %v6634
        %6836 = vmatprep.subr.bf16.mxu0 %v6627
        %6837 = vmatpush1.bf16.msra.mxu0 %v6626
        %6838 = vmatprep.subr.bf16.mxu0 %v6619
        %6839 = vmatpush1.bf16.msra.mxu0 %v6618
        %6840 = vmatprep.subr.bf16.mxu0 0
        %6841 = vmatpush2.bf16.msra.mxu0 0
        %6842 = vmatprep.subr.bf16.mxu0 0
        %6843 = vmatpush2.bf16.msra.mxu0 0
        %6844 = vmatprep.subr.bf16.mxu0 0
        %6845 = vmatpush2.bf16.msra.mxu0 0
        %6846 = vmatprep.subr.bf16.mxu0 0
        %6847 = vmatpush2.bf16.msra.mxu0 0
        %6848 = vmatprep.subr.bf16.mxu0 0
        %6849 = vmatpush2.bf16.msra.mxu0 0
        %6850 = vmatprep.subr.bf16.mxu0 0
        %6851 = vmatpush2.bf16.msra.mxu0 0
        %6852 = vmatprep.subr.bf16.mxu0 0
        %6853 = vmatpush2.bf16.msra.mxu0 0
        %6854 = vmatprep.subr.bf16.mxu0 0
        %6855 = vmatpush2.bf16.msra.mxu0 0
        %6856 = vmatprep.mubr.bf16.mxu0 0
        %6857 = vmatmul.mubr.bf16.gmra.mxu0 %v6201
        %v6858 = vpop.f32.mrf.mxu0
        %v6859 = vadd.f32 %v6401, %v6858
        %v6860 = vpop.f32.mrf.mxu0
        %v6861 = vadd.f32 %v6405, %v6860
        %v6862 = vpop.f32.mrf.mxu0
        %v6863 = vpop.f32.mrf.mxu0
        %6864 = vdwg.mxu0
        %6865 = vmatprep.subr.bf16.mxu0 %v6677
        %6866 = vmatpush1.bf16.msra.mxu0 %v6676
        %6867 = vmatprep.subr.bf16.mxu0 %v6669
        %6868 = vmatpush1.bf16.msra.mxu0 %v6668
        %6869 = vmatprep.subr.bf16.mxu0 %v6661
        %6870 = vmatpush1.bf16.msra.mxu0 %v6660
        %6871 = vmatprep.subr.bf16.mxu0 %v6653
        %6872 = vmatpush1.bf16.msra.mxu0 %v6652
        %6873 = vmatprep.subr.bf16.mxu0 %v6645
        %6874 = vmatpush1.bf16.msra.mxu0 %v6644
        %6875 = vmatprep.subr.bf16.mxu0 %v6637
        %6876 = vmatpush1.bf16.msra.mxu0 %v6636
        %6877 = vmatprep.subr.bf16.mxu0 %v6629
        %6878 = vmatpush1.bf16.msra.mxu0 %v6628
        %6879 = vmatprep.subr.bf16.mxu0 %v6621
        %6880 = vmatpush1.bf16.msra.mxu0 %v6620
        %6881 = vmatprep.subr.bf16.mxu0 0
        %6882 = vmatpush2.bf16.msra.mxu0 0
        %6883 = vmatprep.subr.bf16.mxu0 0
        %6884 = vmatpush2.bf16.msra.mxu0 0
        %6885 = vmatprep.subr.bf16.mxu0 0
        %6886 = vmatpush2.bf16.msra.mxu0 0
        %6887 = vmatprep.subr.bf16.mxu0 0
        %6888 = vmatpush2.bf16.msra.mxu0 0
        %6889 = vmatprep.subr.bf16.mxu0 0
        %6890 = vmatpush2.bf16.msra.mxu0 0
        %6891 = vmatprep.subr.bf16.mxu0 0
        %6892 = vmatpush2.bf16.msra.mxu0 0
        %6893 = vmatprep.subr.bf16.mxu0 0
        %6894 = vmatpush2.bf16.msra.mxu0 0
        %6895 = vmatprep.subr.bf16.mxu0 0
        %6896 = vmatpush2.bf16.msra.mxu0 0
        %6897 = vmatprep.mubr.bf16.mxu0 0
        %6898 = vmatmul.mubr.bf16.gmra.mxu0 %v6201
        %v6899 = vpop.f32.mrf.mxu0
        %v6900 = vadd.f32 %v6409, %v6899
        %v6901 = vpop.f32.mrf.mxu0
        %v6902 = vadd.f32 %v6413, %v6901
        %v6903 = vpop.f32.mrf.mxu0
        %v6904 = vpop.f32.mrf.mxu0
        %6905 = vdwg.mxu0
        %v6914 = vcombine.low %v6777, %v6779
        %v6915 = vcombine.low %v6818, %v6820
        %v6917 = vunpack.c.l.s4 1983009808
        %v6918 = vunpack.c.0.s8 %v6917
        %v6919 = vlaneseq
        %v6920 = vshrl.u32 %v6919, 7
        %v6921 = vsub.s32 %v6918, %v6920
        %v6922 = vrot.slane %v6914, %v6921
        %v6924 = vunpack.c.l.s4 1983009808
        %v6925 = vunpack.c.0.s8 %v6924
        %v6926 = vlaneseq
        %v6927 = vshrl.u32 %v6926, 7
        %v6928 = vsub.s32 %v6925, %v6927
        %v6929 = vrot.slane %v6915, %v6928
        %v6930 = vcombine.low %v6922, %v6929
        %v6931 = vcombine.low %v6859, %v6861
        %v6932 = vcombine.low %v6900, %v6902
        %v6934 = vunpack.c.l.s4 1983009808
        %v6935 = vunpack.c.0.s8 %v6934
        %v6936 = vlaneseq
        %v6937 = vshrl.u32 %v6936, 7
        %v6938 = vsub.s32 %v6935, %v6937
        %v6939 = vrot.slane %v6931, %v6938
        %v6941 = vunpack.c.l.s4 1983009808
        %v6942 = vunpack.c.0.s8 %v6941
        %v6943 = vlaneseq
        %v6944 = vshrl.u32 %v6943, 7
        %v6945 = vsub.s32 %v6942, %v6944
        %v6946 = vrot.slane %v6932, %v6945
        %v6947 = vcombine.low %v6939, %v6946
        %6950 = vst [vmem:[%s366] sm:$0xff] %v6930
        %6951 = vst [vmem:[%s366 + $0x8] sm:$0xff] %v6947
      $region56: #{net_forward.3} parent=47 // pred_fallthru
        _
      %p6952 = scmp.lt.s32.totalorder %s24, 1
      %s6953 = scalar_select %p6952, %s24, 1
      %s6954 = smul.addr %s6953, 2
      %s6955 = scalar_lea.vmem %s7, %s6954
      %p6956 = scmp.lt.s32.totalorder %s24, 1
      %s6957 = scalar_select %p6956, %s24, 1
      %s6958 = smul.addr %s6957, 8
      %s6959 = smul.addr %s6958, 2
      %s6960 = scalar_lea.vmem %s8, %s6959
      // Predicated region
      $region57: #{net_forward.3} parent=47 // pred_check
        %p6961 = pneg %p211
      $region58: #{net_forward.3} parent=47 // pred_check_branch
        %6963 = sbr.rel (%p6961) target = $region60
      $region59: #{net_forward.3} parent=47 // pred_region
        _
      $region60: #{net_forward.3} parent=47 // pred_fallthru
        _
      // Predicated region
      $region61: #{net_forward.3} parent=47 // pred_check
        %p6964 = pneg %p237
      $region62: #{net_forward.3} parent=47 // pred_check_branch
        %6966 = sbr.rel (%p6964) target = $region64
      $region63: #{net_forward.3} parent=47 // pred_region
        _
      $region64: #{net_forward.3} parent=47 // pred_fallthru
        _
    $region48: #{net_forward.3} parent=5 // pred_fallthru
      _
    %p6967 = scmp.le.s32.totalorder 2, %s15
    // Predicated region
    $region65: #{net_forward.3} parent=5 // pred_check
      %p6968 = pneg %p6967
    $region66: #{net_forward.3} parent=5 // pred_check_branch
      %6970 = sbr.rel (%p6968) target = $region68
    $region67: #{net_forward.3} parent=5 // pred_region
      %s6971 = ssub.s32 %s15, 2
      // Predicated region
      $region69: #{net_forward.3} parent=67 // pred_check
        %p6972 = pneg %p217
      $region70: #{net_forward.3} parent=67 // pred_check_branch
        %6974 = sbr.rel (%p6972) target = $region72
      $region71: #{net_forward.3} parent=67 // pred_region
        %p6975 = scmp.lt.s32.totalorder %s26, 1
        %s6976 = scalar_select %p6975, %s26, 1
        %s6977 = smul.addr %s6976, 2
        %s6978 = scalar_lea.vmem %s7, %s6977
      $region72: #{net_forward.3} parent=67 // pred_fallthru
        _
      // Predicated region
      $region73: #{net_forward.3} parent=67 // pred_check
        %p6979 = pneg %p243
      $region74: #{net_forward.3} parent=67 // pred_check_branch
        %6981 = sbr.rel (%p6979) target = $region76
      $region75: #{net_forward.3} parent=67 // pred_region
        %p6982 = scmp.lt.s32.totalorder %s26, 1
        %s6983 = scalar_select %p6982, %s26, 1
        %s6984 = smul.addr %s6983, 8
        %s6985 = smul.addr %s6984, 2
        %s6986 = scalar_lea.vmem %s8, %s6985
      $region76: #{net_forward.3} parent=67 // pred_fallthru
        _
    $region68: #{net_forward.3} parent=5 // pred_fallthru
      _
  $region6: #{net_forward.3} parent=0 // loop_footer
    %s19 = sadd.s32 1, %s15
  $region7: #{net_forward.3} parent=0 // loop_footer_branch
    %14 = sbr.rel target = $region3
  $region8: #{net_forward.3} parent=0 // loop_exit
    _

</llo_original>
